<compile_context>
chip_gen: v7x
topology: tpu7x:2x2x1
jax: 0.10.0
libtpu: 0.0.40
codegen_flags: <defaults>
</compile_context>

<pallas_src>
import numpy as np
import jax
import jax.numpy as jnp
from jax.experimental import pallas as pl
from jax.experimental.pallas import tpu as pltpu


# --------------------------- host-side precompute ---------------------------

def _round_up(x, m):
    return (x + m - 1) // m * m


def _build_conv_masks(h, w):
    """[9, h*w] validity masks for the 9 taps of a 3x3 'same' convolution on a
    row-major flattened [C, h*w] activation."""
    ii = np.repeat(np.arange(h), w)
    jj = np.tile(np.arange(w), h)
    m = np.zeros((9, h * w), np.float32)
    for ky in range(3):
        for kx in range(3):
            ok = ((ii + ky - 1 >= 0) & (ii + ky - 1 < h)
                  & (jj + kx - 1 >= 0) & (jj + kx - 1 < w))
            m[ky * 3 + kx] = ok.astype(np.float32)
    return m


def _build_pool_matrix(h, w):
    """[h*w, (h//2)*(w//2)] matrix implementing 2x2 average pooling on the
    flattened spatial dim (0.25 / 0 entries are exact in bf16)."""
    # TODO(synk): this matrix grows as hw^2/4 -- switch to an in-kernel
    # stencil/pool before increasing `spatial` much beyond 64.
    ho, wo = h // 2, w // 2
    idx = np.arange(h * w)
    ii, jj = idx // w, idx % w
    p = np.zeros((h * w, ho * wo), np.float32)
    p[idx, (ii // 2) * wo + (jj // 2)] = 0.25
    return p


def _build_spatial_attn_mats(w_sp, h, w):
    """Densify the kxk (in=2, out=1, pad=k//2) SpatialAttention conv into two
    [HW, HW] matrices, already transposed so the kernel computes
    logits[B,HW] = avg[B,HW] @ A0t + max[B,HW] @ A1t."""
    # TODO(synk): O(HW^2) densification is only sensible for the tiny final
    # feature map; use an in-kernel stencil for large spatial sizes.
    k = w_sp.shape[-1]
    pad = k // 2
    hw = h * w
    a = np.zeros((2, hw, hw), np.float32)
    for c in range(2):
        for ip in range(h):
            for jp in range(w):
                for iq in range(h):
                    for jq in range(w):
                        dy, dx = iq - ip + pad, jq - jp + pad
                        if 0 <= dy < k and 0 <= dx < k:
                            a[c, ip * w + jp, iq * w + jq] = w_sp[c, dy, dx]
    return a[0].T.copy(), a[1].T.copy()


def _use_blockdiag_pool(hw):
    # Per-image lane slices of the conv output are only free when hw is a
    # multiple of the 128-lane tile; otherwise use a (tiny) block-diagonal
    # pool matrix over the batch-concatenated lanes.
    return hw % 128 != 0


# ------------------------------ Pallas kernel -------------------------------

def _conv3x3_bn_relu(act, wflat, shift, mask_rows, width, cols):
    """Fused 3x3 'same' conv on act:[Cin, cols] (cols = B*hw, batch
    lane-concatenated). The 9 rolled+masked taps are stacked into a single
    [9*Cin, cols] bf16 operand and contracted against the BN-folded weights
    wflat:[Cout, 9*Cin] with ONE MXU matmul. Returns ReLU(conv + shift), f32."""
    taps = []
    for ky in range(3):
        for kx in range(3):
            t = ky * 3 + kx
            s = (ky - 1) * width + (kx - 1)     # flattened neighbour offset
            if s == 0:
                taps.append(act)                # centre tap is always valid
            else:
                # out[:, n] = act[:, n + s]; wrapped columns (image border and
                # the batch seam) are zeroed by the boundary mask.
                v = pltpu.roll(act, (-s) % cols, axis=1)
                taps.append(v * mask_rows[t])
    stacked = jnp.concatenate(taps, axis=0).astype(jnp.bfloat16)   # [9*Cin, cols]
    acc = jnp.dot(wflat, stacked, preferred_element_type=jnp.float32)
    return jnp.maximum(acc + shift, 0.0)


def _make_forward_kernel(batch, block_cfg):
    n_blk = len(block_cfg)

    def kernel(*refs):
        x_ref = refs[0]
        blk_refs = [refs[1 + 6 * i: 7 + 6 * i] for i in range(n_blk)]
        (wc1_ref, wc2_ref, a0t_ref, a1t_ref, w1t_ref, b1_ref, alpha_ref,
         bns_ref, bnt_ref, w2t_ref, b2_ref, out_ref) = refs[1 + 6 * n_blk:]

        # ------------- backbone: 4 x (conv-bn-relu x2, 2x2 avg-pool) --------
        act = x_ref[...]                               # [Cin0_pad, B*hw0] f32
        for bi, (_cin_pad, _cout, h, w) in enumerate(block_cfg):
            w1_ref, s1_ref, w2_ref, s2_ref, mask_ref, pool_ref = blk_refs[bi]
            hw = h * w
            cols = batch * hw
            masks = mask_ref[...].astype(jnp.float32)            # [9, cols]
            mask_rows = [masks[t:t + 1, :] for t in range(9)]    # hoisted once
            pool = pool_ref[...]                                 # bf16

            act = _conv3x3_bn_relu(act, w1_ref[...], s1_ref[...],
                                   mask_rows, w, cols)
            act = _conv3x3_bn_relu(act, w2_ref[...], s2_ref[...],
                                   mask_rows, w, cols)

            y16 = act.astype(jnp.bfloat16)
            if _use_blockdiag_pool(hw):
                # Block-diagonal pool over the batch-concatenated lanes.
                act = jnp.dot(y16, pool, preferred_element_type=jnp.float32)
            else:
                # hw is 128-aligned: per-image slices are free.
                act = jnp.concatenate(
                    [jnp.dot(y16[:, b * hw:(b + 1) * hw], pool,
                             preferred_element_type=jnp.float32)
                     for b in range(batch)], axis=1)

        # ------------- CBAM + global avg pool + FC head, batched ------------
        _, _, hl, wl = block_cfg[-1]
        hwf = (hl // 2) * (wl // 2)
        segs = [act[:, b * hwf:(b + 1) * hwf] for b in range(batch)]  # [C,hwf]

        # Channel attention: avg/max global pools for every image -> [C, 2B],
        # ONE pass through the shared MLP for all images and both stats.
        avg = jnp.concatenate(
            [jnp.mean(s, axis=1, keepdims=True) for s in segs], axis=1)
        mx = jnp.concatenate(
            [jnp.max(s, axis=1, keepdims=True) for s in segs], axis=1)
        stats = jnp.concatenate([avg, mx], axis=1)                  # [C, 2B]
        hid = jnp.maximum(
            jnp.dot(wc1_ref[...], stats, preferred_element_type=jnp.float32),
            0.0)
        mlp = jnp.dot(wc2_ref[...], hid, preferred_element_type=jnp.float32)
        ca = jax.nn.sigmoid(mlp[:, :batch] + mlp[:, batch:])        # [C, B]

        xcs = [segs[b] * ca[:, b:b + 1] for b in range(batch)]      # [C, hwf]

        # Spatial attention (7x7 conv densified to [hwf, hwf]), batched over B.
        savg = jnp.concatenate(
            [jnp.mean(xc, axis=0, keepdims=True) for xc in xcs], axis=0)
        smax = jnp.concatenate(
            [jnp.max(xc, axis=0, keepdims=True) for xc in xcs], axis=0)
        sattn = jax.nn.sigmoid(
            jnp.dot(savg, a0t_ref[...], preferred_element_type=jnp.float32)
            + jnp.dot(smax, a1t_ref[...], preferred_element_type=jnp.float32))

        pooled = jnp.concatenate(
            [jnp.mean(xcs[b] * sattn[b:b + 1, :], axis=1, keepdims=True)
             for b in range(batch)], axis=1)                        # [C, B]

        # FC head (Dropout = identity in eval), all batch columns at once.
        z = jnp.dot(w1t_ref[...], pooled,
                    preferred_element_type=jnp.float32) + b1_ref[...]
        z = jnp.where(z >= 0.0, z, z * alpha_ref[...])              # PReLU
        z = z * bns_ref[...] + bnt_ref[...]                         # BatchNorm1d
        out_ref[...] = (jnp.dot(w2t_ref[...], z,
                                preferred_element_type=jnp.float32)
                        + b2_ref[...])                              # [NC, B]

    return kernel


# ------------------------------ model assembly ------------------------------

def init_params(key, *, num_classes, num_channels, base_size, ratio,
                kernel_size, spatial):
    assert base_size % 8 == 0, "base_size must be a multiple of 8 (sublane tile)"
    assert spatial % 16 == 0, "spatial must survive four 2x2 pools"
    eps = 1e-5
    keys = iter(jax.random.split(key, 16))
    chans = [num_channels, base_size, base_size * 2, base_size * 4, base_size * 8]
    bn_scale = float(1.0 / np.sqrt(1.0 + eps))   # BatchNorm eval, default stats

    blocks, block_cfg = [], []
    h = w = spatial
    for bi in range(4):
        cin, cout = chans[bi], chans[bi + 1]
        cin_pad = _round_up(cin, 8)              # keep stacked taps 8-aligned
        blk = {}
        for name, ic, icp in (("conv1", cin, cin_pad), ("conv2", cout, cout)):
            std = float(np.sqrt(2.0 / (ic * 9)))          # kaiming_normal_, fan_in
            wt = jax.random.normal(next(keys), (cout, ic, 3, 3), jnp.float32) * std
            if icp > ic:                                  # zero-pad padded channels
                wt = jnp.pad(wt, ((0, 0), (0, icp - ic), (0, 0), (0, 0)))
            # [Cout, ky, kx, Cin_pad] -> [Cout, 9*Cin_pad], tap-major / cin-minor
            wflat = jnp.transpose(wt, (0, 2, 3, 1)).reshape(cout, 9 * icp)
            blk[name + "_w"] = (wflat * bn_scale).astype(jnp.bfloat16)
            # conv bias=False, BN beta=0, mean=0 -> folded shift is exactly 0.
            blk[name + "_shift"] = jnp.zeros((cout, 1), jnp.float32)
        blk["mask"] = _build_conv_masks(h, w)             # np.float32 [9, hw]
        blk["pool"] = _build_pool_matrix(h, w)            # np.float32 [hw, hw/4]
        blocks.append(blk)
        block_cfg.append((cin_pad, cout, h, w))
        h //= 2
        w //= 2

    c = base_size * 8
    cr = max(c // ratio, 1)
    params = {"blocks": blocks}
    # CBAM channel MLP: 1x1 convs, bias=False; PyTorch default init ~ U(+-1/sqrt(fan_in)).
    b_ca1 = float(1.0 / np.sqrt(c))
    params["ca_w1"] = jax.random.uniform(next(keys), (cr, c), jnp.float32, -b_ca1, b_ca1)
    b_ca2 = float(1.0 / np.sqrt(cr))
    params["ca_w2"] = jax.random.uniform(next(keys), (c, cr), jnp.float32, -b_ca2, b_ca2)
    # SpatialAttention conv (in=2, out=1, k x k, bias=False), densified on the
    # final (h x w) feature map.
    bsp = float(1.0 / np.sqrt(2 * kernel_size * kernel_size))
    sa_w = jax.random.uniform(next(keys), (2, kernel_size, kernel_size),
                              jnp.float32, -bsp, bsp)
    a0t, a1t = _build_spatial_attn_mats(np.asarray(sa_w), h, w)
    params["sa_a0t"] = jnp.asarray(a0t)
    params["sa_a1t"] = jnp.asarray(a1t)
    # FC head (Linear defaults).
    h1 = base_size * 2
    b1 = float(1.0 / np.sqrt(c))
    params["fc_w1t"] = jax.random.uniform(next(keys), (h1, c), jnp.float32, -b1, b1)
    params["fc_b1"] = jax.random.uniform(next(keys), (h1, 1), jnp.float32, -b1, b1)
    params["prelu_a"] = jnp.full((1, 1), 0.25, jnp.float32)   # nn.PReLU() default
    params["bn1_scale"] = jnp.full((h1, 1), bn_scale, jnp.float32)
    params["bn1_shift"] = jnp.zeros((h1, 1), jnp.float32)
    b2 = float(1.0 / np.sqrt(h1))
    params["fc_w2t"] = jax.random.uniform(next(keys), (num_classes, h1),
                                          jnp.float32, -b2, b2)
    params["fc_b2"] = jax.random.uniform(next(keys), (num_classes, 1),
                                         jnp.float32, -b2, b2)

    cfg = {"block_cfg": tuple(block_cfg), "num_classes": num_classes,
           "cin0_pad": block_cfg[0][0]}
    return params, cfg


def make_forward_fn(params, cfg, batch):
    """Batch-specialize the constants ONCE (numpy-side: mask tiling,
    block-diagonal pools, bf16 casts) and return a jitted forward(x_nchw)."""
    block_cfg = cfg["block_cfg"]
    num_classes = cfg["num_classes"]
    cin0_pad = cfg["cin0_pad"]

    const_args = []
    for blk, (_cin_pad, _cout, h, w) in zip(params["blocks"], block_cfg):
        hw = h * w
        mask_t = jnp.asarray(np.tile(blk["mask"], (1, batch))).astype(jnp.bfloat16)
        pool_np = blk["pool"]
        if _use_blockdiag_pool(hw):
            pool_np = np.kron(np.eye(batch, dtype=np.float32), pool_np)
        pool = jnp.asarray(pool_np).astype(jnp.bfloat16)
        const_args += [blk["conv1_w"], blk["conv1_shift"],
                       blk["conv2_w"], blk["conv2_shift"], mask_t, pool]
    const_args += [params["ca_w1"], params["ca_w2"], params["sa_a0t"],
                   params["sa_a1t"], params["fc_w1t"], params["fc_b1"],
                   params["prelu_a"], params["bn1_scale"], params["bn1_shift"],
                   params["fc_w2t"], params["fc_b2"]]

    kernel = _make_forward_kernel(batch, block_cfg)
    vmem = pl.BlockSpec(memory_space=pltpu.MemorySpace.VMEM)
    call = pl.pallas_call(
        kernel,
        out_shape=jax.ShapeDtypeStruct((num_classes, batch), jnp.float32),
        in_specs=[vmem] * (1 + len(const_args)),
        out_specs=vmem,
    )
    # TODO(synk): on v7x (2 TensorCores/chip) split the batch across cores with
    # grid=(batch,) + dimension_semantics=("parallel",) instead of the
    # lane-concatenated batch used here (which is the right layout for the
    # single-core v5e/v6e chips).

    def forward(x_nchw):
        b, cin, h, w = x_nchw.shape
        x = x_nchw.reshape(b, cin, h * w).astype(jnp.float32)
        if cin0_pad > cin:
            x = jnp.pad(x, ((0, 0), (0, cin0_pad - cin), (0, 0)))
        # [Cin_pad, B*HW]: batch concatenated along the lane axis.
        xt = jnp.transpose(x, (1, 0, 2)).reshape(cin0_pad, b * h * w)
        out_t = call(xt, *const_args)                    # [num_classes, B]
        return out_t.T                                   # [B, num_classes]

    return jax.jit(forward)


if __name__ == "__main__":
    key = jax.random.PRNGKey(0)
    batch, in_channels, spatial = 2, 4, 32
    num_classes, base_size, ratio, ksz = 10, 8, 16, 7

    pkey, xkey = jax.random.split(key)
    params, cfg = init_params(pkey, num_classes=num_classes,
                              num_channels=in_channels, base_size=base_size,
                              ratio=ratio, kernel_size=ksz, spatial=spatial)
    fwd = make_forward_fn(params, cfg, batch)

    x = jax.random.normal(xkey, (batch, in_channels, spatial, spatial),
                          jnp.float32)                    # PyTorch NCHW layout
    out = jax.block_until_ready(fwd(x))
    assert out.shape == (batch, num_classes), out.shape
    assert bool(jnp.all(jnp.isfinite(out)))
    print("KERNEL_OK")
</pallas_src>

<mosaic_0001>
module attributes {stable_mosaic.version = 11 : i64} {
  func.func @kernel(%arg0: memref<8x2048xf32, #tpu.memory_space<vmem>>, %arg1: memref<8x72xbf16, #tpu.memory_space<vmem>>, %arg2: memref<8x1xf32, #tpu.memory_space<vmem>>, %arg3: memref<8x72xbf16, #tpu.memory_space<vmem>>, %arg4: memref<8x1xf32, #tpu.memory_space<vmem>>, %arg5: memref<9x2048xbf16, #tpu.memory_space<vmem>>, %arg6: memref<1024x256xbf16, #tpu.memory_space<vmem>>, %arg7: memref<16x72xbf16, #tpu.memory_space<vmem>>, %arg8: memref<16x1xf32, #tpu.memory_space<vmem>>, %arg9: memref<16x144xbf16, #tpu.memory_space<vmem>>, %arg10: memref<16x1xf32, #tpu.memory_space<vmem>>, %arg11: memref<9x512xbf16, #tpu.memory_space<vmem>>, %arg12: memref<256x64xbf16, #tpu.memory_space<vmem>>, %arg13: memref<32x144xbf16, #tpu.memory_space<vmem>>, %arg14: memref<32x1xf32, #tpu.memory_space<vmem>>, %arg15: memref<32x288xbf16, #tpu.memory_space<vmem>>, %arg16: memref<32x1xf32, #tpu.memory_space<vmem>>, %arg17: memref<9x128xbf16, #tpu.memory_space<vmem>>, %arg18: memref<128x32xbf16, #tpu.memory_space<vmem>>, %arg19: memref<64x288xbf16, #tpu.memory_space<vmem>>, %arg20: memref<64x1xf32, #tpu.memory_space<vmem>>, %arg21: memref<64x576xbf16, #tpu.memory_space<vmem>>, %arg22: memref<64x1xf32, #tpu.memory_space<vmem>>, %arg23: memref<9x32xbf16, #tpu.memory_space<vmem>>, %arg24: memref<32x8xbf16, #tpu.memory_space<vmem>>, %arg25: memref<4x64xf32, #tpu.memory_space<vmem>>, %arg26: memref<64x4xf32, #tpu.memory_space<vmem>>, %arg27: memref<4x4xf32, #tpu.memory_space<vmem>>, %arg28: memref<4x4xf32, #tpu.memory_space<vmem>>, %arg29: memref<16x64xf32, #tpu.memory_space<vmem>>, %arg30: memref<16x1xf32, #tpu.memory_space<vmem>>, %arg31: memref<1x1xf32, #tpu.memory_space<vmem>>, %arg32: memref<16x1xf32, #tpu.memory_space<vmem>>, %arg33: memref<16x1xf32, #tpu.memory_space<vmem>>, %arg34: memref<10x16xf32, #tpu.memory_space<vmem>>, %arg35: memref<10x1xf32, #tpu.memory_space<vmem>>, %arg36: memref<10x2xf32, #tpu.memory_space<vmem>>) attributes {dimension_semantics = [], scalar_prefetch = 0 : i64, scratch_operands = 0 : i64, tpu.core_type = #tpu.core_type<tc>} {
    %c0 = arith.constant 0 : index
    %c0_0 = arith.constant 0 : index
    %0 = vector.load %arg0[%c0, %c0_0] : memref<8x2048xf32, #tpu.memory_space<vmem>>, vector<8x2048xf32>
    %c0_1 = arith.constant 0 : index
    %c0_2 = arith.constant 0 : index
    %1 = vector.load %arg5[%c0_1, %c0_2] : memref<9x2048xbf16, #tpu.memory_space<vmem>>, vector<9x2048xbf16>
    %2 = arith.extf %1 : vector<9x2048xbf16> to vector<9x2048xf32>
    %3 = vector.extract_strided_slice %2 {offsets = [0, 0], sizes = [1, 2048], strides = [1, 1]} : vector<9x2048xf32> to vector<1x2048xf32>
    %4 = vector.extract_strided_slice %2 {offsets = [1, 0], sizes = [1, 2048], strides = [1, 1]} : vector<9x2048xf32> to vector<1x2048xf32>
    %5 = vector.extract_strided_slice %2 {offsets = [2, 0], sizes = [1, 2048], strides = [1, 1]} : vector<9x2048xf32> to vector<1x2048xf32>
    %6 = vector.extract_strided_slice %2 {offsets = [3, 0], sizes = [1, 2048], strides = [1, 1]} : vector<9x2048xf32> to vector<1x2048xf32>
    %7 = vector.extract_strided_slice %2 {offsets = [5, 0], sizes = [1, 2048], strides = [1, 1]} : vector<9x2048xf32> to vector<1x2048xf32>
    %8 = vector.extract_strided_slice %2 {offsets = [6, 0], sizes = [1, 2048], strides = [1, 1]} : vector<9x2048xf32> to vector<1x2048xf32>
    %9 = vector.extract_strided_slice %2 {offsets = [7, 0], sizes = [1, 2048], strides = [1, 1]} : vector<9x2048xf32> to vector<1x2048xf32>
    %10 = vector.extract_strided_slice %2 {offsets = [8, 0], sizes = [1, 2048], strides = [1, 1]} : vector<9x2048xf32> to vector<1x2048xf32>
    %c0_3 = arith.constant 0 : index
    %c0_4 = arith.constant 0 : index
    %11 = vector.load %arg6[%c0_3, %c0_4] : memref<1024x256xbf16, #tpu.memory_space<vmem>>, vector<1024x256xbf16>
    %c0_5 = arith.constant 0 : index
    %c0_6 = arith.constant 0 : index
    %12 = vector.load %arg1[%c0_5, %c0_6] : memref<8x72xbf16, #tpu.memory_space<vmem>>, vector<8x72xbf16>
    %c0_7 = arith.constant 0 : index
    %c0_8 = arith.constant 0 : index
    %13 = vector.load %arg2[%c0_7, %c0_8] : memref<8x1xf32, #tpu.memory_space<vmem>>, vector<8x1xf32>
    %c33_i32 = arith.constant 33 : i32
    %14 = tpu.dynamic_rotate %0 by %c33_i32 dim 1 : vector<8x2048xf32>, i32 -> vector<8x2048xf32>
    %15 = vector.broadcast %3 : vector<1x2048xf32> to vector<8x2048xf32>
    %16 = arith.mulf %14, %15 : vector<8x2048xf32>
    %c32_i32 = arith.constant 32 : i32
    %17 = tpu.dynamic_rotate %0 by %c32_i32 dim 1 : vector<8x2048xf32>, i32 -> vector<8x2048xf32>
    %18 = vector.broadcast %4 : vector<1x2048xf32> to vector<8x2048xf32>
    %19 = arith.mulf %17, %18 : vector<8x2048xf32>
    %c31_i32 = arith.constant 31 : i32
    %20 = tpu.dynamic_rotate %0 by %c31_i32 dim 1 : vector<8x2048xf32>, i32 -> vector<8x2048xf32>
    %21 = vector.broadcast %5 : vector<1x2048xf32> to vector<8x2048xf32>
    %22 = arith.mulf %20, %21 : vector<8x2048xf32>
    %c1_i32 = arith.constant 1 : i32
    %23 = tpu.dynamic_rotate %0 by %c1_i32 dim 1 : vector<8x2048xf32>, i32 -> vector<8x2048xf32>
    %24 = vector.broadcast %6 : vector<1x2048xf32> to vector<8x2048xf32>
    %25 = arith.mulf %23, %24 : vector<8x2048xf32>
    %c2047_i32 = arith.constant 2047 : i32
    %26 = tpu.dynamic_rotate %0 by %c2047_i32 dim 1 : vector<8x2048xf32>, i32 -> vector<8x2048xf32>
    %27 = vector.broadcast %7 : vector<1x2048xf32> to vector<8x2048xf32>
    %28 = arith.mulf %26, %27 : vector<8x2048xf32>
    %c2017_i32 = arith.constant 2017 : i32
    %29 = tpu.dynamic_rotate %0 by %c2017_i32 dim 1 : vector<8x2048xf32>, i32 -> vector<8x2048xf32>
    %30 = vector.broadcast %8 : vector<1x2048xf32> to vector<8x2048xf32>
    %31 = arith.mulf %29, %30 : vector<8x2048xf32>
    %c2016_i32 = arith.constant 2016 : i32
    %32 = tpu.dynamic_rotate %0 by %c2016_i32 dim 1 : vector<8x2048xf32>, i32 -> vector<8x2048xf32>
    %33 = vector.broadcast %9 : vector<1x2048xf32> to vector<8x2048xf32>
    %34 = arith.mulf %32, %33 : vector<8x2048xf32>
    %c2015_i32 = arith.constant 2015 : i32
    %35 = tpu.dynamic_rotate %0 by %c2015_i32 dim 1 : vector<8x2048xf32>, i32 -> vector<8x2048xf32>
    %36 = vector.broadcast %10 : vector<1x2048xf32> to vector<8x2048xf32>
    %37 = arith.mulf %35, %36 : vector<8x2048xf32>
    %38 = tpu.concatenate %16, %19, %22, %25, %0, %28, %31, %34, %37 in 0 : vector<8x2048xf32>, vector<8x2048xf32>, vector<8x2048xf32>, vector<8x2048xf32>, vector<8x2048xf32>, vector<8x2048xf32>, vector<8x2048xf32>, vector<8x2048xf32>, vector<8x2048xf32> -> vector<72x2048xf32>
    %39 = arith.truncf %38 : vector<72x2048xf32> to vector<72x2048xbf16>
    %cst = arith.constant dense<0.000000e+00> : vector<8x2048xf32>
    %40 = tpu.matmul %12, %39, %cst {dimension_numbers = #tpu.dot_dimension_numbers<[1], [0], [0], [1], [0, 0, 1, 1], [], []>} : vector<8x72xbf16>, vector<72x2048xbf16>, vector<8x2048xf32> -> vector<8x2048xf32>
    %41 = vector.broadcast %13 : vector<8x1xf32> to vector<8x2048xf32>
    %42 = arith.addf %40, %41 : vector<8x2048xf32>
    %cst_9 = arith.constant 0.000000e+00 : f32
    %43 = vector.broadcast %cst_9 : f32 to vector<8x2048xf32>
    %44 = arith.maximumf %42, %43 : vector<8x2048xf32>
    %c0_10 = arith.constant 0 : index
    %c0_11 = arith.constant 0 : index
    %45 = vector.load %arg3[%c0_10, %c0_11] : memref<8x72xbf16, #tpu.memory_space<vmem>>, vector<8x72xbf16>
    %c0_12 = arith.constant 0 : index
    %c0_13 = arith.constant 0 : index
    %46 = vector.load %arg4[%c0_12, %c0_13] : memref<8x1xf32, #tpu.memory_space<vmem>>, vector<8x1xf32>
    %c33_i32_14 = arith.constant 33 : i32
    %47 = tpu.dynamic_rotate %44 by %c33_i32_14 dim 1 : vector<8x2048xf32>, i32 -> vector<8x2048xf32>
    %48 = vector.broadcast %3 : vector<1x2048xf32> to vector<8x2048xf32>
    %49 = arith.mulf %47, %48 : vector<8x2048xf32>
    %c32_i32_15 = arith.constant 32 : i32
    %50 = tpu.dynamic_rotate %44 by %c32_i32_15 dim 1 : vector<8x2048xf32>, i32 -> vector<8x2048xf32>
    %51 = vector.broadcast %4 : vector<1x2048xf32> to vector<8x2048xf32>
    %52 = arith.mulf %50, %51 : vector<8x2048xf32>
    %c31_i32_16 = arith.constant 31 : i32
    %53 = tpu.dynamic_rotate %44 by %c31_i32_16 dim 1 : vector<8x2048xf32>, i32 -> vector<8x2048xf32>
    %54 = vector.broadcast %5 : vector<1x2048xf32> to vector<8x2048xf32>
    %55 = arith.mulf %53, %54 : vector<8x2048xf32>
    %c1_i32_17 = arith.constant 1 : i32
    %56 = tpu.dynamic_rotate %44 by %c1_i32_17 dim 1 : vector<8x2048xf32>, i32 -> vector<8x2048xf32>
    %57 = vector.broadcast %6 : vector<1x2048xf32> to vector<8x2048xf32>
    %58 = arith.mulf %56, %57 : vector<8x2048xf32>
    %c2047_i32_18 = arith.constant 2047 : i32
    %59 = tpu.dynamic_rotate %44 by %c2047_i32_18 dim 1 : vector<8x2048xf32>, i32 -> vector<8x2048xf32>
    %60 = vector.broadcast %7 : vector<1x2048xf32> to vector<8x2048xf32>
    %61 = arith.mulf %59, %60 : vector<8x2048xf32>
    %c2017_i32_19 = arith.constant 2017 : i32
    %62 = tpu.dynamic_rotate %44 by %c2017_i32_19 dim 1 : vector<8x2048xf32>, i32 -> vector<8x2048xf32>
    %63 = vector.broadcast %8 : vector<1x2048xf32> to vector<8x2048xf32>
    %64 = arith.mulf %62, %63 : vector<8x2048xf32>
    %c2016_i32_20 = arith.constant 2016 : i32
    %65 = tpu.dynamic_rotate %44 by %c2016_i32_20 dim 1 : vector<8x2048xf32>, i32 -> vector<8x2048xf32>
    %66 = vector.broadcast %9 : vector<1x2048xf32> to vector<8x2048xf32>
    %67 = arith.mulf %65, %66 : vector<8x2048xf32>
    %c2015_i32_21 = arith.constant 2015 : i32
    %68 = tpu.dynamic_rotate %44 by %c2015_i32_21 dim 1 : vector<8x2048xf32>, i32 -> vector<8x2048xf32>
    %69 = vector.broadcast %10 : vector<1x2048xf32> to vector<8x2048xf32>
    %70 = arith.mulf %68, %69 : vector<8x2048xf32>
    %71 = tpu.concatenate %49, %52, %55, %58, %44, %61, %64, %67, %70 in 0 : vector<8x2048xf32>, vector<8x2048xf32>, vector<8x2048xf32>, vector<8x2048xf32>, vector<8x2048xf32>, vector<8x2048xf32>, vector<8x2048xf32>, vector<8x2048xf32>, vector<8x2048xf32> -> vector<72x2048xf32>
    %72 = arith.truncf %71 : vector<72x2048xf32> to vector<72x2048xbf16>
    %cst_22 = arith.constant dense<0.000000e+00> : vector<8x2048xf32>
    %73 = tpu.matmul %45, %72, %cst_22 {dimension_numbers = #tpu.dot_dimension_numbers<[1], [0], [0], [1], [0, 0, 1, 1], [], []>} : vector<8x72xbf16>, vector<72x2048xbf16>, vector<8x2048xf32> -> vector<8x2048xf32>
    %74 = vector.broadcast %46 : vector<8x1xf32> to vector<8x2048xf32>
    %75 = arith.addf %73, %74 : vector<8x2048xf32>
    %cst_23 = arith.constant 0.000000e+00 : f32
    %76 = vector.broadcast %cst_23 : f32 to vector<8x2048xf32>
    %77 = arith.maximumf %75, %76 : vector<8x2048xf32>
    %78 = arith.truncf %77 : vector<8x2048xf32> to vector<8x2048xbf16>
    %79 = vector.extract_strided_slice %78 {offsets = [0, 0], sizes = [8, 1024], strides = [1, 1]} : vector<8x2048xbf16> to vector<8x1024xbf16>
    %cst_24 = arith.constant dense<0.000000e+00> : vector<8x256xf32>
    %80 = tpu.matmul %79, %11, %cst_24 {dimension_numbers = #tpu.dot_dimension_numbers<[1], [0], [0], [1], [0, 0, 1, 1], [], []>} : vector<8x1024xbf16>, vector<1024x256xbf16>, vector<8x256xf32> -> vector<8x256xf32>
    %81 = vector.extract_strided_slice %78 {offsets = [0, 1024], sizes = [8, 1024], strides = [1, 1]} : vector<8x2048xbf16> to vector<8x1024xbf16>
    %cst_25 = arith.constant dense<0.000000e+00> : vector<8x256xf32>
    %82 = tpu.matmul %81, %11, %cst_25 {dimension_numbers = #tpu.dot_dimension_numbers<[1], [0], [0], [1], [0, 0, 1, 1], [], []>} : vector<8x1024xbf16>, vector<1024x256xbf16>, vector<8x256xf32> -> vector<8x256xf32>
    %83 = tpu.concatenate %80, %82 in 1 : vector<8x256xf32>, vector<8x256xf32> -> vector<8x512xf32>
    %c0_26 = arith.constant 0 : index
    %c0_27 = arith.constant 0 : index
    %84 = vector.load %arg11[%c0_26, %c0_27] : memref<9x512xbf16, #tpu.memory_space<vmem>>, vector<9x512xbf16>
    %85 = arith.extf %84 : vector<9x512xbf16> to vector<9x512xf32>
    %86 = vector.extract_strided_slice %85 {offsets = [0, 0], sizes = [1, 512], strides = [1, 1]} : vector<9x512xf32> to vector<1x512xf32>
    %87 = vector.extract_strided_slice %85 {offsets = [1, 0], sizes = [1, 512], strides = [1, 1]} : vector<9x512xf32> to vector<1x512xf32>
    %88 = vector.extract_strided_slice %85 {offsets = [2, 0], sizes = [1, 512], strides = [1, 1]} : vector<9x512xf32> to vector<1x512xf32>
    %89 = vector.extract_strided_slice %85 {offsets = [3, 0], sizes = [1, 512], strides = [1, 1]} : vector<9x512xf32> to vector<1x512xf32>
    %90 = vector.extract_strided_slice %85 {offsets = [5, 0], sizes = [1, 512], strides = [1, 1]} : vector<9x512xf32> to vector<1x512xf32>
    %91 = vector.extract_strided_slice %85 {offsets = [6, 0], sizes = [1, 512], strides = [1, 1]} : vector<9x512xf32> to vector<1x512xf32>
    %92 = vector.extract_strided_slice %85 {offsets = [7, 0], sizes = [1, 512], strides = [1, 1]} : vector<9x512xf32> to vector<1x512xf32>
    %93 = vector.extract_strided_slice %85 {offsets = [8, 0], sizes = [1, 512], strides = [1, 1]} : vector<9x512xf32> to vector<1x512xf32>
    %c0_28 = arith.constant 0 : index
    %c0_29 = arith.constant 0 : index
    %94 = vector.load %arg12[%c0_28, %c0_29] : memref<256x64xbf16, #tpu.memory_space<vmem>>, vector<256x64xbf16>
    %c0_30 = arith.constant 0 : index
    %c0_31 = arith.constant 0 : index
    %95 = vector.load %arg7[%c0_30, %c0_31] : memref<16x72xbf16, #tpu.memory_space<vmem>>, vector<16x72xbf16>
    %c0_32 = arith.constant 0 : index
    %c0_33 = arith.constant 0 : index
    %96 = vector.load %arg8[%c0_32, %c0_33] : memref<16x1xf32, #tpu.memory_space<vmem>>, vector<16x1xf32>
    %c17_i32 = arith.constant 17 : i32
    %97 = tpu.dynamic_rotate %83 by %c17_i32 dim 1 : vector<8x512xf32>, i32 -> vector<8x512xf32>
    %98 = vector.broadcast %86 : vector<1x512xf32> to vector<8x512xf32>
    %99 = arith.mulf %97, %98 : vector<8x512xf32>
    %c16_i32 = arith.constant 16 : i32
    %100 = tpu.dynamic_rotate %83 by %c16_i32 dim 1 : vector<8x512xf32>, i32 -> vector<8x512xf32>
    %101 = vector.broadcast %87 : vector<1x512xf32> to vector<8x512xf32>
    %102 = arith.mulf %100, %101 : vector<8x512xf32>
    %c15_i32 = arith.constant 15 : i32
    %103 = tpu.dynamic_rotate %83 by %c15_i32 dim 1 : vector<8x512xf32>, i32 -> vector<8x512xf32>
    %104 = vector.broadcast %88 : vector<1x512xf32> to vector<8x512xf32>
    %105 = arith.mulf %103, %104 : vector<8x512xf32>
    %c1_i32_34 = arith.constant 1 : i32
    %106 = tpu.dynamic_rotate %83 by %c1_i32_34 dim 1 : vector<8x512xf32>, i32 -> vector<8x512xf32>
    %107 = vector.broadcast %89 : vector<1x512xf32> to vector<8x512xf32>
    %108 = arith.mulf %106, %107 : vector<8x512xf32>
    %c511_i32 = arith.constant 511 : i32
    %109 = tpu.dynamic_rotate %83 by %c511_i32 dim 1 : vector<8x512xf32>, i32 -> vector<8x512xf32>
    %110 = vector.broadcast %90 : vector<1x512xf32> to vector<8x512xf32>
    %111 = arith.mulf %109, %110 : vector<8x512xf32>
    %c497_i32 = arith.constant 497 : i32
    %112 = tpu.dynamic_rotate %83 by %c497_i32 dim 1 : vector<8x512xf32>, i32 -> vector<8x512xf32>
    %113 = vector.broadcast %91 : vector<1x512xf32> to vector<8x512xf32>
    %114 = arith.mulf %112, %113 : vector<8x512xf32>
    %c496_i32 = arith.constant 496 : i32
    %115 = tpu.dynamic_rotate %83 by %c496_i32 dim 1 : vector<8x512xf32>, i32 -> vector<8x512xf32>
    %116 = vector.broadcast %92 : vector<1x512xf32> to vector<8x512xf32>
    %117 = arith.mulf %115, %116 : vector<8x512xf32>
    %c495_i32 = arith.constant 495 : i32
    %118 = tpu.dynamic_rotate %83 by %c495_i32 dim 1 : vector<8x512xf32>, i32 -> vector<8x512xf32>
    %119 = vector.broadcast %93 : vector<1x512xf32> to vector<8x512xf32>
    %120 = arith.mulf %118, %119 : vector<8x512xf32>
    %121 = tpu.concatenate %99, %102, %105, %108, %83, %111, %114, %117, %120 in 0 : vector<8x512xf32>, vector<8x512xf32>, vector<8x512xf32>, vector<8x512xf32>, vector<8x512xf32>, vector<8x512xf32>, vector<8x512xf32>, vector<8x512xf32>, vector<8x512xf32> -> vector<72x512xf32>
    %122 = arith.truncf %121 : vector<72x512xf32> to vector<72x512xbf16>
    %cst_35 = arith.constant dense<0.000000e+00> : vector<16x512xf32>
    %123 = tpu.matmul %95, %122, %cst_35 {dimension_numbers = #tpu.dot_dimension_numbers<[1], [0], [0], [1], [0, 0, 1, 1], [], []>} : vector<16x72xbf16>, vector<72x512xbf16>, vector<16x512xf32> -> vector<16x512xf32>
    %124 = vector.broadcast %96 : vector<16x1xf32> to vector<16x512xf32>
    %125 = arith.addf %123, %124 : vector<16x512xf32>
    %cst_36 = arith.constant 0.000000e+00 : f32
    %126 = vector.broadcast %cst_36 : f32 to vector<16x512xf32>
    %127 = arith.maximumf %125, %126 : vector<16x512xf32>
    %c0_37 = arith.constant 0 : index
    %c0_38 = arith.constant 0 : index
    %128 = vector.load %arg9[%c0_37, %c0_38] : memref<16x144xbf16, #tpu.memory_space<vmem>>, vector<16x144xbf16>
    %c0_39 = arith.constant 0 : index
    %c0_40 = arith.constant 0 : index
    %129 = vector.load %arg10[%c0_39, %c0_40] : memref<16x1xf32, #tpu.memory_space<vmem>>, vector<16x1xf32>
    %c17_i32_41 = arith.constant 17 : i32
    %130 = tpu.dynamic_rotate %127 by %c17_i32_41 dim 1 : vector<16x512xf32>, i32 -> vector<16x512xf32>
    %131 = vector.broadcast %86 : vector<1x512xf32> to vector<16x512xf32>
    %132 = arith.mulf %130, %131 : vector<16x512xf32>
    %c16_i32_42 = arith.constant 16 : i32
    %133 = tpu.dynamic_rotate %127 by %c16_i32_42 dim 1 : vector<16x512xf32>, i32 -> vector<16x512xf32>
    %134 = vector.broadcast %87 : vector<1x512xf32> to vector<16x512xf32>
    %135 = arith.mulf %133, %134 : vector<16x512xf32>
    %c15_i32_43 = arith.constant 15 : i32
    %136 = tpu.dynamic_rotate %127 by %c15_i32_43 dim 1 : vector<16x512xf32>, i32 -> vector<16x512xf32>
    %137 = vector.broadcast %88 : vector<1x512xf32> to vector<16x512xf32>
    %138 = arith.mulf %136, %137 : vector<16x512xf32>
    %c1_i32_44 = arith.constant 1 : i32
    %139 = tpu.dynamic_rotate %127 by %c1_i32_44 dim 1 : vector<16x512xf32>, i32 -> vector<16x512xf32>
    %140 = vector.broadcast %89 : vector<1x512xf32> to vector<16x512xf32>
    %141 = arith.mulf %139, %140 : vector<16x512xf32>
    %c511_i32_45 = arith.constant 511 : i32
    %142 = tpu.dynamic_rotate %127 by %c511_i32_45 dim 1 : vector<16x512xf32>, i32 -> vector<16x512xf32>
    %143 = vector.broadcast %90 : vector<1x512xf32> to vector<16x512xf32>
    %144 = arith.mulf %142, %143 : vector<16x512xf32>
    %c497_i32_46 = arith.constant 497 : i32
    %145 = tpu.dynamic_rotate %127 by %c497_i32_46 dim 1 : vector<16x512xf32>, i32 -> vector<16x512xf32>
    %146 = vector.broadcast %91 : vector<1x512xf32> to vector<16x512xf32>
    %147 = arith.mulf %145, %146 : vector<16x512xf32>
    %c496_i32_47 = arith.constant 496 : i32
    %148 = tpu.dynamic_rotate %127 by %c496_i32_47 dim 1 : vector<16x512xf32>, i32 -> vector<16x512xf32>
    %149 = vector.broadcast %92 : vector<1x512xf32> to vector<16x512xf32>
    %150 = arith.mulf %148, %149 : vector<16x512xf32>
    %c495_i32_48 = arith.constant 495 : i32
    %151 = tpu.dynamic_rotate %127 by %c495_i32_48 dim 1 : vector<16x512xf32>, i32 -> vector<16x512xf32>
    %152 = vector.broadcast %93 : vector<1x512xf32> to vector<16x512xf32>
    %153 = arith.mulf %151, %152 : vector<16x512xf32>
    %154 = tpu.concatenate %132, %135, %138, %141, %127, %144, %147, %150, %153 in 0 : vector<16x512xf32>, vector<16x512xf32>, vector<16x512xf32>, vector<16x512xf32>, vector<16x512xf32>, vector<16x512xf32>, vector<16x512xf32>, vector<16x512xf32>, vector<16x512xf32> -> vector<144x512xf32>
    %155 = arith.truncf %154 : vector<144x512xf32> to vector<144x512xbf16>
    %cst_49 = arith.constant dense<0.000000e+00> : vector<16x512xf32>
    %156 = tpu.matmul %128, %155, %cst_49 {dimension_numbers = #tpu.dot_dimension_numbers<[1], [0], [0], [1], [0, 0, 1, 1], [], []>} : vector<16x144xbf16>, vector<144x512xbf16>, vector<16x512xf32> -> vector<16x512xf32>
    %157 = vector.broadcast %129 : vector<16x1xf32> to vector<16x512xf32>
    %158 = arith.addf %156, %157 : vector<16x512xf32>
    %cst_50 = arith.constant 0.000000e+00 : f32
    %159 = vector.broadcast %cst_50 : f32 to vector<16x512xf32>
    %160 = arith.maximumf %158, %159 : vector<16x512xf32>
    %161 = arith.truncf %160 : vector<16x512xf32> to vector<16x512xbf16>
    %162 = vector.extract_strided_slice %161 {offsets = [0, 0], sizes = [16, 256], strides = [1, 1]} : vector<16x512xbf16> to vector<16x256xbf16>
    %cst_51 = arith.constant dense<0.000000e+00> : vector<16x64xf32>
    %163 = tpu.matmul %162, %94, %cst_51 {dimension_numbers = #tpu.dot_dimension_numbers<[1], [0], [0], [1], [0, 0, 1, 1], [], []>} : vector<16x256xbf16>, vector<256x64xbf16>, vector<16x64xf32> -> vector<16x64xf32>
    %164 = vector.extract_strided_slice %161 {offsets = [0, 256], sizes = [16, 256], strides = [1, 1]} : vector<16x512xbf16> to vector<16x256xbf16>
    %cst_52 = arith.constant dense<0.000000e+00> : vector<16x64xf32>
    %165 = tpu.matmul %164, %94, %cst_52 {dimension_numbers = #tpu.dot_dimension_numbers<[1], [0], [0], [1], [0, 0, 1, 1], [], []>} : vector<16x256xbf16>, vector<256x64xbf16>, vector<16x64xf32> -> vector<16x64xf32>
    %166 = tpu.concatenate %163, %165 in 1 : vector<16x64xf32>, vector<16x64xf32> -> vector<16x128xf32>
    %c0_53 = arith.constant 0 : index
    %c0_54 = arith.constant 0 : index
    %167 = vector.load %arg17[%c0_53, %c0_54] : memref<9x128xbf16, #tpu.memory_space<vmem>>, vector<9x128xbf16>
    %168 = arith.extf %167 : vector<9x128xbf16> to vector<9x128xf32>
    %169 = vector.extract_strided_slice %168 {offsets = [0, 0], sizes = [1, 128], strides = [1, 1]} : vector<9x128xf32> to vector<1x128xf32>
    %170 = vector.extract_strided_slice %168 {offsets = [1, 0], sizes = [1, 128], strides = [1, 1]} : vector<9x128xf32> to vector<1x128xf32>
    %171 = vector.extract_strided_slice %168 {offsets = [2, 0], sizes = [1, 128], strides = [1, 1]} : vector<9x128xf32> to vector<1x128xf32>
    %172 = vector.extract_strided_slice %168 {offsets = [3, 0], sizes = [1, 128], strides = [1, 1]} : vector<9x128xf32> to vector<1x128xf32>
    %173 = vector.extract_strided_slice %168 {offsets = [5, 0], sizes = [1, 128], strides = [1, 1]} : vector<9x128xf32> to vector<1x128xf32>
    %174 = vector.extract_strided_slice %168 {offsets = [6, 0], sizes = [1, 128], strides = [1, 1]} : vector<9x128xf32> to vector<1x128xf32>
    %175 = vector.extract_strided_slice %168 {offsets = [7, 0], sizes = [1, 128], strides = [1, 1]} : vector<9x128xf32> to vector<1x128xf32>
    %176 = vector.extract_strided_slice %168 {offsets = [8, 0], sizes = [1, 128], strides = [1, 1]} : vector<9x128xf32> to vector<1x128xf32>
    %c0_55 = arith.constant 0 : index
    %c0_56 = arith.constant 0 : index
    %177 = vector.load %arg18[%c0_55, %c0_56] : memref<128x32xbf16, #tpu.memory_space<vmem>>, vector<128x32xbf16>
    %c0_57 = arith.constant 0 : index
    %c0_58 = arith.constant 0 : index
    %178 = vector.load %arg13[%c0_57, %c0_58] : memref<32x144xbf16, #tpu.memory_space<vmem>>, vector<32x144xbf16>
    %c0_59 = arith.constant 0 : index
    %c0_60 = arith.constant 0 : index
    %179 = vector.load %arg14[%c0_59, %c0_60] : memref<32x1xf32, #tpu.memory_space<vmem>>, vector<32x1xf32>
    %c9_i32 = arith.constant 9 : i32
    %180 = tpu.dynamic_rotate %166 by %c9_i32 dim 1 : vector<16x128xf32>, i32 -> vector<16x128xf32>
    %181 = vector.broadcast %169 : vector<1x128xf32> to vector<16x128xf32>
    %182 = arith.mulf %180, %181 : vector<16x128xf32>
    %c8_i32 = arith.constant 8 : i32
    %183 = tpu.dynamic_rotate %166 by %c8_i32 dim 1 : vector<16x128xf32>, i32 -> vector<16x128xf32>
    %184 = vector.broadcast %170 : vector<1x128xf32> to vector<16x128xf32>
    %185 = arith.mulf %183, %184 : vector<16x128xf32>
    %c7_i32 = arith.constant 7 : i32
    %186 = tpu.dynamic_rotate %166 by %c7_i32 dim 1 : vector<16x128xf32>, i32 -> vector<16x128xf32>
    %187 = vector.broadcast %171 : vector<1x128xf32> to vector<16x128xf32>
    %188 = arith.mulf %186, %187 : vector<16x128xf32>
    %c1_i32_61 = arith.constant 1 : i32
    %189 = tpu.dynamic_rotate %166 by %c1_i32_61 dim 1 : vector<16x128xf32>, i32 -> vector<16x128xf32>
    %190 = vector.broadcast %172 : vector<1x128xf32> to vector<16x128xf32>
    %191 = arith.mulf %189, %190 : vector<16x128xf32>
    %c127_i32 = arith.constant 127 : i32
    %192 = tpu.dynamic_rotate %166 by %c127_i32 dim 1 : vector<16x128xf32>, i32 -> vector<16x128xf32>
    %193 = vector.broadcast %173 : vector<1x128xf32> to vector<16x128xf32>
    %194 = arith.mulf %192, %193 : vector<16x128xf32>
    %c121_i32 = arith.constant 121 : i32
    %195 = tpu.dynamic_rotate %166 by %c121_i32 dim 1 : vector<16x128xf32>, i32 -> vector<16x128xf32>
    %196 = vector.broadcast %174 : vector<1x128xf32> to vector<16x128xf32>
    %197 = arith.mulf %195, %196 : vector<16x128xf32>
    %c120_i32 = arith.constant 120 : i32
    %198 = tpu.dynamic_rotate %166 by %c120_i32 dim 1 : vector<16x128xf32>, i32 -> vector<16x128xf32>
    %199 = vector.broadcast %175 : vector<1x128xf32> to vector<16x128xf32>
    %200 = arith.mulf %198, %199 : vector<16x128xf32>
    %c119_i32 = arith.constant 119 : i32
    %201 = tpu.dynamic_rotate %166 by %c119_i32 dim 1 : vector<16x128xf32>, i32 -> vector<16x128xf32>
    %202 = vector.broadcast %176 : vector<1x128xf32> to vector<16x128xf32>
    %203 = arith.mulf %201, %202 : vector<16x128xf32>
    %204 = tpu.concatenate %182, %185, %188, %191, %166, %194, %197, %200, %203 in 0 : vector<16x128xf32>, vector<16x128xf32>, vector<16x128xf32>, vector<16x128xf32>, vector<16x128xf32>, vector<16x128xf32>, vector<16x128xf32>, vector<16x128xf32>, vector<16x128xf32> -> vector<144x128xf32>
    %205 = arith.truncf %204 : vector<144x128xf32> to vector<144x128xbf16>
    %cst_62 = arith.constant dense<0.000000e+00> : vector<32x128xf32>
    %206 = tpu.matmul %178, %205, %cst_62 {dimension_numbers = #tpu.dot_dimension_numbers<[1], [0], [0], [1], [0, 0, 1, 1], [], []>} : vector<32x144xbf16>, vector<144x128xbf16>, vector<32x128xf32> -> vector<32x128xf32>
    %207 = vector.broadcast %179 : vector<32x1xf32> to vector<32x128xf32>
    %208 = arith.addf %206, %207 : vector<32x128xf32>
    %cst_63 = arith.constant 0.000000e+00 : f32
    %209 = vector.broadcast %cst_63 : f32 to vector<32x128xf32>
    %210 = arith.maximumf %208, %209 : vector<32x128xf32>
    %c0_64 = arith.constant 0 : index
    %c0_65 = arith.constant 0 : index
    %211 = vector.load %arg15[%c0_64, %c0_65] : memref<32x288xbf16, #tpu.memory_space<vmem>>, vector<32x288xbf16>
    %c0_66 = arith.constant 0 : index
    %c0_67 = arith.constant 0 : index
    %212 = vector.load %arg16[%c0_66, %c0_67] : memref<32x1xf32, #tpu.memory_space<vmem>>, vector<32x1xf32>
    %c9_i32_68 = arith.constant 9 : i32
    %213 = tpu.dynamic_rotate %210 by %c9_i32_68 dim 1 : vector<32x128xf32>, i32 -> vector<32x128xf32>
    %214 = vector.broadcast %169 : vector<1x128xf32> to vector<32x128xf32>
    %215 = arith.mulf %213, %214 : vector<32x128xf32>
    %c8_i32_69 = arith.constant 8 : i32
    %216 = tpu.dynamic_rotate %210 by %c8_i32_69 dim 1 : vector<32x128xf32>, i32 -> vector<32x128xf32>
    %217 = vector.broadcast %170 : vector<1x128xf32> to vector<32x128xf32>
    %218 = arith.mulf %216, %217 : vector<32x128xf32>
    %c7_i32_70 = arith.constant 7 : i32
    %219 = tpu.dynamic_rotate %210 by %c7_i32_70 dim 1 : vector<32x128xf32>, i32 -> vector<32x128xf32>
    %220 = vector.broadcast %171 : vector<1x128xf32> to vector<32x128xf32>
    %221 = arith.mulf %219, %220 : vector<32x128xf32>
    %c1_i32_71 = arith.constant 1 : i32
    %222 = tpu.dynamic_rotate %210 by %c1_i32_71 dim 1 : vector<32x128xf32>, i32 -> vector<32x128xf32>
    %223 = vector.broadcast %172 : vector<1x128xf32> to vector<32x128xf32>
    %224 = arith.mulf %222, %223 : vector<32x128xf32>
    %c127_i32_72 = arith.constant 127 : i32
    %225 = tpu.dynamic_rotate %210 by %c127_i32_72 dim 1 : vector<32x128xf32>, i32 -> vector<32x128xf32>
    %226 = vector.broadcast %173 : vector<1x128xf32> to vector<32x128xf32>
    %227 = arith.mulf %225, %226 : vector<32x128xf32>
    %c121_i32_73 = arith.constant 121 : i32
    %228 = tpu.dynamic_rotate %210 by %c121_i32_73 dim 1 : vector<32x128xf32>, i32 -> vector<32x128xf32>
    %229 = vector.broadcast %174 : vector<1x128xf32> to vector<32x128xf32>
    %230 = arith.mulf %228, %229 : vector<32x128xf32>
    %c120_i32_74 = arith.constant 120 : i32
    %231 = tpu.dynamic_rotate %210 by %c120_i32_74 dim 1 : vector<32x128xf32>, i32 -> vector<32x128xf32>
    %232 = vector.broadcast %175 : vector<1x128xf32> to vector<32x128xf32>
    %233 = arith.mulf %231, %232 : vector<32x128xf32>
    %c119_i32_75 = arith.constant 119 : i32
    %234 = tpu.dynamic_rotate %210 by %c119_i32_75 dim 1 : vector<32x128xf32>, i32 -> vector<32x128xf32>
    %235 = vector.broadcast %176 : vector<1x128xf32> to vector<32x128xf32>
    %236 = arith.mulf %234, %235 : vector<32x128xf32>
    %237 = tpu.concatenate %215, %218, %221, %224, %210, %227, %230, %233, %236 in 0 : vector<32x128xf32>, vector<32x128xf32>, vector<32x128xf32>, vector<32x128xf32>, vector<32x128xf32>, vector<32x128xf32>, vector<32x128xf32>, vector<32x128xf32>, vector<32x128xf32> -> vector<288x128xf32>
    %238 = arith.truncf %237 : vector<288x128xf32> to vector<288x128xbf16>
    %cst_76 = arith.constant dense<0.000000e+00> : vector<32x128xf32>
    %239 = tpu.matmul %211, %238, %cst_76 {dimension_numbers = #tpu.dot_dimension_numbers<[1], [0], [0], [1], [0, 0, 1, 1], [], []>} : vector<32x288xbf16>, vector<288x128xbf16>, vector<32x128xf32> -> vector<32x128xf32>
    %240 = vector.broadcast %212 : vector<32x1xf32> to vector<32x128xf32>
    %241 = arith.addf %239, %240 : vector<32x128xf32>
    %cst_77 = arith.constant 0.000000e+00 : f32
    %242 = vector.broadcast %cst_77 : f32 to vector<32x128xf32>
    %243 = arith.maximumf %241, %242 : vector<32x128xf32>
    %244 = arith.truncf %243 : vector<32x128xf32> to vector<32x128xbf16>
    %cst_78 = arith.constant dense<0.000000e+00> : vector<32x32xf32>
    %245 = tpu.matmul %244, %177, %cst_78 {dimension_numbers = #tpu.dot_dimension_numbers<[1], [0], [0], [1], [0, 0, 1, 1], [], []>} : vector<32x128xbf16>, vector<128x32xbf16>, vector<32x32xf32> -> vector<32x32xf32>
    %c0_79 = arith.constant 0 : index
    %c0_80 = arith.constant 0 : index
    %246 = vector.load %arg23[%c0_79, %c0_80] : memref<9x32xbf16, #tpu.memory_space<vmem>>, vector<9x32xbf16>
    %247 = arith.extf %246 : vector<9x32xbf16> to vector<9x32xf32>
    %248 = vector.extract_strided_slice %247 {offsets = [0, 0], sizes = [1, 32], strides = [1, 1]} : vector<9x32xf32> to vector<1x32xf32>
    %249 = vector.extract_strided_slice %247 {offsets = [1, 0], sizes = [1, 32], strides = [1, 1]} : vector<9x32xf32> to vector<1x32xf32>
    %250 = vector.extract_strided_slice %247 {offsets = [2, 0], sizes = [1, 32], strides = [1, 1]} : vector<9x32xf32> to vector<1x32xf32>
    %251 = vector.extract_strided_slice %247 {offsets = [3, 0], sizes = [1, 32], strides = [1, 1]} : vector<9x32xf32> to vector<1x32xf32>
    %252 = vector.extract_strided_slice %247 {offsets = [5, 0], sizes = [1, 32], strides = [1, 1]} : vector<9x32xf32> to vector<1x32xf32>
    %253 = vector.extract_strided_slice %247 {offsets = [6, 0], sizes = [1, 32], strides = [1, 1]} : vector<9x32xf32> to vector<1x32xf32>
    %254 = vector.extract_strided_slice %247 {offsets = [7, 0], sizes = [1, 32], strides = [1, 1]} : vector<9x32xf32> to vector<1x32xf32>
    %255 = vector.extract_strided_slice %247 {offsets = [8, 0], sizes = [1, 32], strides = [1, 1]} : vector<9x32xf32> to vector<1x32xf32>
    %c0_81 = arith.constant 0 : index
    %c0_82 = arith.constant 0 : index
    %256 = vector.load %arg24[%c0_81, %c0_82] : memref<32x8xbf16, #tpu.memory_space<vmem>>, vector<32x8xbf16>
    %c0_83 = arith.constant 0 : index
    %c0_84 = arith.constant 0 : index
    %257 = vector.load %arg19[%c0_83, %c0_84] : memref<64x288xbf16, #tpu.memory_space<vmem>>, vector<64x288xbf16>
    %c0_85 = arith.constant 0 : index
    %c0_86 = arith.constant 0 : index
    %258 = vector.load %arg20[%c0_85, %c0_86] : memref<64x1xf32, #tpu.memory_space<vmem>>, vector<64x1xf32>
    %c5_i32 = arith.constant 5 : i32
    %259 = tpu.dynamic_rotate %245 by %c5_i32 dim 1 : vector<32x32xf32>, i32 -> vector<32x32xf32>
    %260 = vector.broadcast %248 : vector<1x32xf32> to vector<32x32xf32>
    %261 = arith.mulf %259, %260 : vector<32x32xf32>
    %c4_i32 = arith.constant 4 : i32
    %262 = tpu.dynamic_rotate %245 by %c4_i32 dim 1 : vector<32x32xf32>, i32 -> vector<32x32xf32>
    %263 = vector.broadcast %249 : vector<1x32xf32> to vector<32x32xf32>
    %264 = arith.mulf %262, %263 : vector<32x32xf32>
    %c3_i32 = arith.constant 3 : i32
    %265 = tpu.dynamic_rotate %245 by %c3_i32 dim 1 : vector<32x32xf32>, i32 -> vector<32x32xf32>
    %266 = vector.broadcast %250 : vector<1x32xf32> to vector<32x32xf32>
    %267 = arith.mulf %265, %266 : vector<32x32xf32>
    %c1_i32_87 = arith.constant 1 : i32
    %268 = tpu.dynamic_rotate %245 by %c1_i32_87 dim 1 : vector<32x32xf32>, i32 -> vector<32x32xf32>
    %269 = vector.broadcast %251 : vector<1x32xf32> to vector<32x32xf32>
    %270 = arith.mulf %268, %269 : vector<32x32xf32>
    %c31_i32_88 = arith.constant 31 : i32
    %271 = tpu.dynamic_rotate %245 by %c31_i32_88 dim 1 : vector<32x32xf32>, i32 -> vector<32x32xf32>
    %272 = vector.broadcast %252 : vector<1x32xf32> to vector<32x32xf32>
    %273 = arith.mulf %271, %272 : vector<32x32xf32>
    %c29_i32 = arith.constant 29 : i32
    %274 = tpu.dynamic_rotate %245 by %c29_i32 dim 1 : vector<32x32xf32>, i32 -> vector<32x32xf32>
    %275 = vector.broadcast %253 : vector<1x32xf32> to vector<32x32xf32>
    %276 = arith.mulf %274, %275 : vector<32x32xf32>
    %c28_i32 = arith.constant 28 : i32
    %277 = tpu.dynamic_rotate %245 by %c28_i32 dim 1 : vector<32x32xf32>, i32 -> vector<32x32xf32>
    %278 = vector.broadcast %254 : vector<1x32xf32> to vector<32x32xf32>
    %279 = arith.mulf %277, %278 : vector<32x32xf32>
    %c27_i32 = arith.constant 27 : i32
    %280 = tpu.dynamic_rotate %245 by %c27_i32 dim 1 : vector<32x32xf32>, i32 -> vector<32x32xf32>
    %281 = vector.broadcast %255 : vector<1x32xf32> to vector<32x32xf32>
    %282 = arith.mulf %280, %281 : vector<32x32xf32>
    %283 = tpu.concatenate %261, %264, %267, %270, %245, %273, %276, %279, %282 in 0 : vector<32x32xf32>, vector<32x32xf32>, vector<32x32xf32>, vector<32x32xf32>, vector<32x32xf32>, vector<32x32xf32>, vector<32x32xf32>, vector<32x32xf32>, vector<32x32xf32> -> vector<288x32xf32>
    %284 = arith.truncf %283 : vector<288x32xf32> to vector<288x32xbf16>
    %cst_89 = arith.constant dense<0.000000e+00> : vector<64x32xf32>
    %285 = tpu.matmul %257, %284, %cst_89 {dimension_numbers = #tpu.dot_dimension_numbers<[1], [0], [0], [1], [0, 0, 1, 1], [], []>} : vector<64x288xbf16>, vector<288x32xbf16>, vector<64x32xf32> -> vector<64x32xf32>
    %286 = vector.broadcast %258 : vector<64x1xf32> to vector<64x32xf32>
    %287 = arith.addf %285, %286 : vector<64x32xf32>
    %cst_90 = arith.constant 0.000000e+00 : f32
    %288 = vector.broadcast %cst_90 : f32 to vector<64x32xf32>
    %289 = arith.maximumf %287, %288 : vector<64x32xf32>
    %c0_91 = arith.constant 0 : index
    %c0_92 = arith.constant 0 : index
    %290 = vector.load %arg21[%c0_91, %c0_92] : memref<64x576xbf16, #tpu.memory_space<vmem>>, vector<64x576xbf16>
    %c0_93 = arith.constant 0 : index
    %c0_94 = arith.constant 0 : index
    %291 = vector.load %arg22[%c0_93, %c0_94] : memref<64x1xf32, #tpu.memory_space<vmem>>, vector<64x1xf32>
    %c5_i32_95 = arith.constant 5 : i32
    %292 = tpu.dynamic_rotate %289 by %c5_i32_95 dim 1 : vector<64x32xf32>, i32 -> vector<64x32xf32>
    %293 = vector.broadcast %248 : vector<1x32xf32> to vector<64x32xf32>
    %294 = arith.mulf %292, %293 : vector<64x32xf32>
    %c4_i32_96 = arith.constant 4 : i32
    %295 = tpu.dynamic_rotate %289 by %c4_i32_96 dim 1 : vector<64x32xf32>, i32 -> vector<64x32xf32>
    %296 = vector.broadcast %249 : vector<1x32xf32> to vector<64x32xf32>
    %297 = arith.mulf %295, %296 : vector<64x32xf32>
    %c3_i32_97 = arith.constant 3 : i32
    %298 = tpu.dynamic_rotate %289 by %c3_i32_97 dim 1 : vector<64x32xf32>, i32 -> vector<64x32xf32>
    %299 = vector.broadcast %250 : vector<1x32xf32> to vector<64x32xf32>
    %300 = arith.mulf %298, %299 : vector<64x32xf32>
    %c1_i32_98 = arith.constant 1 : i32
    %301 = tpu.dynamic_rotate %289 by %c1_i32_98 dim 1 : vector<64x32xf32>, i32 -> vector<64x32xf32>
    %302 = vector.broadcast %251 : vector<1x32xf32> to vector<64x32xf32>
    %303 = arith.mulf %301, %302 : vector<64x32xf32>
    %c31_i32_99 = arith.constant 31 : i32
    %304 = tpu.dynamic_rotate %289 by %c31_i32_99 dim 1 : vector<64x32xf32>, i32 -> vector<64x32xf32>
    %305 = vector.broadcast %252 : vector<1x32xf32> to vector<64x32xf32>
    %306 = arith.mulf %304, %305 : vector<64x32xf32>
    %c29_i32_100 = arith.constant 29 : i32
    %307 = tpu.dynamic_rotate %289 by %c29_i32_100 dim 1 : vector<64x32xf32>, i32 -> vector<64x32xf32>
    %308 = vector.broadcast %253 : vector<1x32xf32> to vector<64x32xf32>
    %309 = arith.mulf %307, %308 : vector<64x32xf32>
    %c28_i32_101 = arith.constant 28 : i32
    %310 = tpu.dynamic_rotate %289 by %c28_i32_101 dim 1 : vector<64x32xf32>, i32 -> vector<64x32xf32>
    %311 = vector.broadcast %254 : vector<1x32xf32> to vector<64x32xf32>
    %312 = arith.mulf %310, %311 : vector<64x32xf32>
    %c27_i32_102 = arith.constant 27 : i32
    %313 = tpu.dynamic_rotate %289 by %c27_i32_102 dim 1 : vector<64x32xf32>, i32 -> vector<64x32xf32>
    %314 = vector.broadcast %255 : vector<1x32xf32> to vector<64x32xf32>
    %315 = arith.mulf %313, %314 : vector<64x32xf32>
    %316 = tpu.concatenate %294, %297, %300, %303, %289, %306, %309, %312, %315 in 0 : vector<64x32xf32>, vector<64x32xf32>, vector<64x32xf32>, vector<64x32xf32>, vector<64x32xf32>, vector<64x32xf32>, vector<64x32xf32>, vector<64x32xf32>, vector<64x32xf32> -> vector<576x32xf32>
    %317 = arith.truncf %316 : vector<576x32xf32> to vector<576x32xbf16>
    %cst_103 = arith.constant dense<0.000000e+00> : vector<64x32xf32>
    %318 = tpu.matmul %290, %317, %cst_103 {dimension_numbers = #tpu.dot_dimension_numbers<[1], [0], [0], [1], [0, 0, 1, 1], [], []>} : vector<64x576xbf16>, vector<576x32xbf16>, vector<64x32xf32> -> vector<64x32xf32>
    %319 = vector.broadcast %291 : vector<64x1xf32> to vector<64x32xf32>
    %320 = arith.addf %318, %319 : vector<64x32xf32>
    %cst_104 = arith.constant 0.000000e+00 : f32
    %321 = vector.broadcast %cst_104 : f32 to vector<64x32xf32>
    %322 = arith.maximumf %320, %321 : vector<64x32xf32>
    %323 = arith.truncf %322 : vector<64x32xf32> to vector<64x32xbf16>
    %cst_105 = arith.constant dense<0.000000e+00> : vector<64x8xf32>
    %324 = tpu.matmul %323, %256, %cst_105 {dimension_numbers = #tpu.dot_dimension_numbers<[1], [0], [0], [1], [0, 0, 1, 1], [], []>} : vector<64x32xbf16>, vector<32x8xbf16>, vector<64x8xf32> -> vector<64x8xf32>
    %325 = vector.extract_strided_slice %324 {offsets = [0, 0], sizes = [64, 4], strides = [1, 1]} : vector<64x8xf32> to vector<64x4xf32>
    %326 = vector.extract_strided_slice %324 {offsets = [0, 4], sizes = [64, 4], strides = [1, 1]} : vector<64x8xf32> to vector<64x4xf32>
    %cst_106 = arith.constant dense<0.000000e+00> : vector<64xf32>
    %327 = vector.multi_reduction <add>, %325, %cst_106 [1] : vector<64x4xf32> to vector<64xf32>
    %328 = vector.shape_cast %327 : vector<64xf32> to vector<64x1xf32>
    %cst_107 = arith.constant 4.000000e+00 : f32
    %329 = vector.broadcast %cst_107 : f32 to vector<64x1xf32>
    %330 = arith.divf %328, %329 : vector<64x1xf32>
    %cst_108 = arith.constant dense<0.000000e+00> : vector<64xf32>
    %331 = vector.multi_reduction <add>, %326, %cst_108 [1] : vector<64x4xf32> to vector<64xf32>
    %332 = vector.shape_cast %331 : vector<64xf32> to vector<64x1xf32>
    %cst_109 = arith.constant 4.000000e+00 : f32
    %333 = vector.broadcast %cst_109 : f32 to vector<64x1xf32>
    %334 = arith.divf %332, %333 : vector<64x1xf32>
    %335 = tpu.concatenate %330, %334 in 1 : vector<64x1xf32>, vector<64x1xf32> -> vector<64x2xf32>
    %cst_110 = arith.constant dense<0xFF800000> : vector<64xf32>
    %336 = vector.multi_reduction <maximumf>, %325, %cst_110 [1] : vector<64x4xf32> to vector<64xf32>
    %337 = vector.shape_cast %336 : vector<64xf32> to vector<64x1xf32>
    %cst_111 = arith.constant dense<0xFF800000> : vector<64xf32>
    %338 = vector.multi_reduction <maximumf>, %326, %cst_111 [1] : vector<64x4xf32> to vector<64xf32>
    %339 = vector.shape_cast %338 : vector<64xf32> to vector<64x1xf32>
    %340 = tpu.concatenate %337, %339 in 1 : vector<64x1xf32>, vector<64x1xf32> -> vector<64x2xf32>
    %341 = tpu.concatenate %335, %340 in 1 : vector<64x2xf32>, vector<64x2xf32> -> vector<64x4xf32>
    %c0_112 = arith.constant 0 : index
    %c0_113 = arith.constant 0 : index
    %342 = vector.load %arg25[%c0_112, %c0_113] : memref<4x64xf32, #tpu.memory_space<vmem>>, vector<4x64xf32>
    %cst_114 = arith.constant dense<0.000000e+00> : vector<4x4xf32>
    %343 = tpu.matmul %342, %341, %cst_114 {dimension_numbers = #tpu.dot_dimension_numbers<[1], [0], [0], [1], [0, 0, 1, 1], [], []>} : vector<4x64xf32>, vector<64x4xf32>, vector<4x4xf32> -> vector<4x4xf32>
    %cst_115 = arith.constant 0.000000e+00 : f32
    %344 = vector.broadcast %cst_115 : f32 to vector<4x4xf32>
    %345 = arith.maximumf %343, %344 : vector<4x4xf32>
    %c0_116 = arith.constant 0 : index
    %c0_117 = arith.constant 0 : index
    %346 = vector.load %arg26[%c0_116, %c0_117] : memref<64x4xf32, #tpu.memory_space<vmem>>, vector<64x4xf32>
    %cst_118 = arith.constant dense<0.000000e+00> : vector<64x4xf32>
    %347 = tpu.matmul %346, %345, %cst_118 {dimension_numbers = #tpu.dot_dimension_numbers<[1], [0], [0], [1], [0, 0, 1, 1], [], []>} : vector<64x4xf32>, vector<4x4xf32>, vector<64x4xf32> -> vector<64x4xf32>
    %348 = vector.extract_strided_slice %347 {offsets = [0, 0], sizes = [64, 2], strides = [1, 1]} : vector<64x4xf32> to vector<64x2xf32>
    %349 = vector.extract_strided_slice %347 {offsets = [0, 2], sizes = [64, 2], strides = [1, 1]} : vector<64x4xf32> to vector<64x2xf32>
    %350 = arith.addf %348, %349 : vector<64x2xf32>
    %351 = arith.negf %350 : vector<64x2xf32>
    %352 = math.exp %351 : vector<64x2xf32>
    %cst_119 = arith.constant 1.000000e+00 : f32
    %353 = vector.broadcast %cst_119 : f32 to vector<64x2xf32>
    %354 = arith.addf %353, %352 : vector<64x2xf32>
    %355 = arith.divf %353, %354 : vector<64x2xf32>
    %356 = vector.extract_strided_slice %355 {offsets = [0, 0], sizes = [64, 1], strides = [1, 1]} : vector<64x2xf32> to vector<64x1xf32>
    %357 = vector.broadcast %356 : vector<64x1xf32> to vector<64x4xf32>
    %358 = arith.mulf %325, %357 : vector<64x4xf32>
    %359 = vector.extract_strided_slice %355 {offsets = [0, 1], sizes = [64, 1], strides = [1, 1]} : vector<64x2xf32> to vector<64x1xf32>
    %360 = vector.broadcast %359 : vector<64x1xf32> to vector<64x4xf32>
    %361 = arith.mulf %326, %360 : vector<64x4xf32>
    %cst_120 = arith.constant dense<0.000000e+00> : vector<4xf32>
    %362 = vector.multi_reduction <add>, %358, %cst_120 [0] : vector<64x4xf32> to vector<4xf32>
    %363 = vector.shape_cast %362 : vector<4xf32> to vector<1x4xf32>
    %cst_121 = arith.constant 6.400000e+01 : f32
    %364 = vector.broadcast %cst_121 : f32 to vector<1x4xf32>
    %365 = arith.divf %363, %364 : vector<1x4xf32>
    %cst_122 = arith.constant dense<0.000000e+00> : vector<4xf32>
    %366 = vector.multi_reduction <add>, %361, %cst_122 [0] : vector<64x4xf32> to vector<4xf32>
    %367 = vector.shape_cast %366 : vector<4xf32> to vector<1x4xf32>
    %cst_123 = arith.constant 6.400000e+01 : f32
    %368 = vector.broadcast %cst_123 : f32 to vector<1x4xf32>
    %369 = arith.divf %367, %368 : vector<1x4xf32>
    %370 = tpu.concatenate %365, %369 in 0 : vector<1x4xf32>, vector<1x4xf32> -> vector<2x4xf32>
    %cst_124 = arith.constant dense<0xFF800000> : vector<4xf32>
    %371 = vector.multi_reduction <maximumf>, %358, %cst_124 [0] : vector<64x4xf32> to vector<4xf32>
    %372 = vector.shape_cast %371 : vector<4xf32> to vector<1x4xf32>
    %cst_125 = arith.constant dense<0xFF800000> : vector<4xf32>
    %373 = vector.multi_reduction <maximumf>, %361, %cst_125 [0] : vector<64x4xf32> to vector<4xf32>
    %374 = vector.shape_cast %373 : vector<4xf32> to vector<1x4xf32>
    %375 = tpu.concatenate %372, %374 in 0 : vector<1x4xf32>, vector<1x4xf32> -> vector<2x4xf32>
    %c0_126 = arith.constant 0 : index
    %c0_127 = arith.constant 0 : index
    %376 = vector.load %arg27[%c0_126, %c0_127] : memref<4x4xf32, #tpu.memory_space<vmem>>, vector<4x4xf32>
    %cst_128 = arith.constant dense<0.000000e+00> : vector<2x4xf32>
    %377 = tpu.matmul %370, %376, %cst_128 {dimension_numbers = #tpu.dot_dimension_numbers<[1], [0], [0], [1], [0, 0, 1, 1], [], []>} : vector<2x4xf32>, vector<4x4xf32>, vector<2x4xf32> -> vector<2x4xf32>
    %c0_129 = arith.constant 0 : index
    %c0_130 = arith.constant 0 : index
    %378 = vector.load %arg28[%c0_129, %c0_130] : memref<4x4xf32, #tpu.memory_space<vmem>>, vector<4x4xf32>
    %cst_131 = arith.constant dense<0.000000e+00> : vector<2x4xf32>
    %379 = tpu.matmul %375, %378, %cst_131 {dimension_numbers = #tpu.dot_dimension_numbers<[1], [0], [0], [1], [0, 0, 1, 1], [], []>} : vector<2x4xf32>, vector<4x4xf32>, vector<2x4xf32> -> vector<2x4xf32>
    %380 = arith.addf %377, %379 : vector<2x4xf32>
    %381 = arith.negf %380 : vector<2x4xf32>
    %382 = math.exp %381 : vector<2x4xf32>
    %cst_132 = arith.constant 1.000000e+00 : f32
    %383 = vector.broadcast %cst_132 : f32 to vector<2x4xf32>
    %384 = arith.addf %383, %382 : vector<2x4xf32>
    %385 = arith.divf %383, %384 : vector<2x4xf32>
    %386 = vector.extract_strided_slice %385 {offsets = [0, 0], sizes = [1, 4], strides = [1, 1]} : vector<2x4xf32> to vector<1x4xf32>
    %387 = vector.broadcast %386 : vector<1x4xf32> to vector<64x4xf32>
    %388 = arith.mulf %358, %387 : vector<64x4xf32>
    %cst_133 = arith.constant dense<0.000000e+00> : vector<64xf32>
    %389 = vector.multi_reduction <add>, %388, %cst_133 [1] : vector<64x4xf32> to vector<64xf32>
    %390 = vector.shape_cast %389 : vector<64xf32> to vector<64x1xf32>
    %cst_134 = arith.constant 4.000000e+00 : f32
    %391 = vector.broadcast %cst_134 : f32 to vector<64x1xf32>
    %392 = arith.divf %390, %391 : vector<64x1xf32>
    %393 = vector.extract_strided_slice %385 {offsets = [1, 0], sizes = [1, 4], strides = [1, 1]} : vector<2x4xf32> to vector<1x4xf32>
    %394 = vector.broadcast %393 : vector<1x4xf32> to vector<64x4xf32>
    %395 = arith.mulf %361, %394 : vector<64x4xf32>
    %cst_135 = arith.constant dense<0.000000e+00> : vector<64xf32>
    %396 = vector.multi_reduction <add>, %395, %cst_135 [1] : vector<64x4xf32> to vector<64xf32>
    %397 = vector.shape_cast %396 : vector<64xf32> to vector<64x1xf32>
    %cst_136 = arith.constant 4.000000e+00 : f32
    %398 = vector.broadcast %cst_136 : f32 to vector<64x1xf32>
    %399 = arith.divf %397, %398 : vector<64x1xf32>
    %400 = tpu.concatenate %392, %399 in 1 : vector<64x1xf32>, vector<64x1xf32> -> vector<64x2xf32>
    %c0_137 = arith.constant 0 : index
    %c0_138 = arith.constant 0 : index
    %401 = vector.load %arg29[%c0_137, %c0_138] : memref<16x64xf32, #tpu.memory_space<vmem>>, vector<16x64xf32>
    %cst_139 = arith.constant dense<0.000000e+00> : vector<16x2xf32>
    %402 = tpu.matmul %401, %400, %cst_139 {dimension_numbers = #tpu.dot_dimension_numbers<[1], [0], [0], [1], [0, 0, 1, 1], [], []>} : vector<16x64xf32>, vector<64x2xf32>, vector<16x2xf32> -> vector<16x2xf32>
    %c0_140 = arith.constant 0 : index
    %c0_141 = arith.constant 0 : index
    %403 = vector.load %arg30[%c0_140, %c0_141] : memref<16x1xf32, #tpu.memory_space<vmem>>, vector<16x1xf32>
    %404 = vector.broadcast %403 : vector<16x1xf32> to vector<16x2xf32>
    %405 = arith.addf %402, %404 : vector<16x2xf32>
    %cst_142 = arith.constant 0.000000e+00 : f32
    %406 = vector.broadcast %cst_142 : f32 to vector<16x2xf32>
    %407 = arith.cmpf oge, %405, %406 : vector<16x2xf32>
    %c0_143 = arith.constant 0 : index
    %c0_144 = arith.constant 0 : index
    %408 = vector.load %arg31[%c0_143, %c0_144] : memref<1x1xf32, #tpu.memory_space<vmem>>, vector<1x1xf32>
    %409 = vector.broadcast %408 : vector<1x1xf32> to vector<16x2xf32>
    %410 = arith.mulf %405, %409 : vector<16x2xf32>
    %411 = arith.select %407, %405, %410 : vector<16x2xi1>, vector<16x2xf32>
    %c0_145 = arith.constant 0 : index
    %c0_146 = arith.constant 0 : index
    %412 = vector.load %arg32[%c0_145, %c0_146] : memref<16x1xf32, #tpu.memory_space<vmem>>, vector<16x1xf32>
    %413 = vector.broadcast %412 : vector<16x1xf32> to vector<16x2xf32>
    %414 = arith.mulf %411, %413 : vector<16x2xf32>
    %c0_147 = arith.constant 0 : index
    %c0_148 = arith.constant 0 : index
    %415 = vector.load %arg33[%c0_147, %c0_148] : memref<16x1xf32, #tpu.memory_space<vmem>>, vector<16x1xf32>
    %416 = vector.broadcast %415 : vector<16x1xf32> to vector<16x2xf32>
    %417 = arith.addf %414, %416 : vector<16x2xf32>
    %c0_149 = arith.constant 0 : index
    %c0_150 = arith.constant 0 : index
    %418 = vector.load %arg34[%c0_149, %c0_150] : memref<10x16xf32, #tpu.memory_space<vmem>>, vector<10x16xf32>
    %cst_151 = arith.constant dense<0.000000e+00> : vector<10x2xf32>
    %419 = tpu.matmul %418, %417, %cst_151 {dimension_numbers = #tpu.dot_dimension_numbers<[1], [0], [0], [1], [0, 0, 1, 1], [], []>} : vector<10x16xf32>, vector<16x2xf32>, vector<10x2xf32> -> vector<10x2xf32>
    %c0_152 = arith.constant 0 : index
    %c0_153 = arith.constant 0 : index
    %420 = vector.load %arg35[%c0_152, %c0_153] : memref<10x1xf32, #tpu.memory_space<vmem>>, vector<10x1xf32>
    %421 = vector.broadcast %420 : vector<10x1xf32> to vector<10x2xf32>
    %422 = arith.addf %419, %421 : vector<10x2xf32>
    %c0_154 = arith.constant 0 : index
    %c0_155 = arith.constant 0 : index
    %423 = vector.load %arg36[%c0_154, %c0_155] : memref<10x2xf32, #tpu.memory_space<vmem>>, vector<10x2xf32>
    tpu.vector_store %arg36[%c0_154, %c0_155], %422 {strides = array<i32>} : memref<10x2xf32, #tpu.memory_space<vmem>>, vector<10x2xf32>,
    return
  }
}

</mosaic_0001>

<llo_original>
// kernel: forward.1
$region0: #{forward.1}
  #allocation0 [shape = 'u32[]', space=smem, size = 0x4, offset = 0x4, fixed_abs, tag = 'smem constant byte address 0x4 - core index']
  #allocation1 [shape = 'u32[144,128]{1,0:T(1,128)}', space=vmem, size = 0x12000, scoped, tag = 'internal scratch']
  #allocation2 [shape = 'f32[1,1]{1,0:T(1,128)S(1)}', space=vmem, size = 0x200, scoped, tag = 'scoped memory for forward.1']
  %s0 = inlined_call_operand.smem [shape: u32[37], index: -1, kind: input, shape index: {}]
  %s1 = sld [smem:[%s0]]
  %s2 = scalar_lea.smem %s0, 1
  %s3 = sld [smem:[%s2]]
  %s4 = scalar_lea.smem %s0, 2
  %s5 = sld [smem:[%s4]]
  %s6 = scalar_lea.smem %s0, 3
  %s7 = sld [smem:[%s6]]
  %s8 = scalar_lea.smem %s0, 4
  %s9 = sld [smem:[%s8]]
  %s10 = scalar_lea.smem %s0, 5
  %s11 = sld [smem:[%s10]]
  %s12 = scalar_lea.smem %s0, 6
  %s13 = sld [smem:[%s12]]
  %s14 = scalar_lea.smem %s0, 7
  %s15 = sld [smem:[%s14]]
  %s16 = scalar_lea.smem %s0, 8
  %s17 = sld [smem:[%s16]]
  %s18 = scalar_lea.smem %s0, 9
  %s19 = sld [smem:[%s18]]
  %s20 = scalar_lea.smem %s0, 10
  %s21 = sld [smem:[%s20]]
  %s22 = scalar_lea.smem %s0, 11
  %s23 = sld [smem:[%s22]]
  %s24 = scalar_lea.smem %s0, 12
  %s25 = sld [smem:[%s24]]
  %s26 = scalar_lea.smem %s0, 13
  %s27 = sld [smem:[%s26]]
  %s28 = scalar_lea.smem %s0, 14
  %s29 = sld [smem:[%s28]]
  %s30 = scalar_lea.smem %s0, 15
  %s31 = sld [smem:[%s30]]
  %s32 = scalar_lea.smem %s0, 16
  %s33 = sld [smem:[%s32]]
  %s34 = scalar_lea.smem %s0, 17
  %s35 = sld [smem:[%s34]]
  %s36 = scalar_lea.smem %s0, 18
  %s37 = sld [smem:[%s36]]
  %s38 = scalar_lea.smem %s0, 19
  %s39 = sld [smem:[%s38]]
  %s40 = scalar_lea.smem %s0, 20
  %s41 = sld [smem:[%s40]]
  %s42 = scalar_lea.smem %s0, 21
  %s43 = sld [smem:[%s42]]
  %s44 = scalar_lea.smem %s0, 22
  %s45 = sld [smem:[%s44]]
  %s46 = scalar_lea.smem %s0, 23
  %s47 = sld [smem:[%s46]]
  %s48 = scalar_lea.smem %s0, 24
  %s49 = sld [smem:[%s48]]
  %s50 = scalar_lea.smem %s0, 25
  %s51 = sld [smem:[%s50]]
  %s52 = scalar_lea.smem %s0, 26
  %s53 = sld [smem:[%s52]]
  %s54 = scalar_lea.smem %s0, 27
  %s55 = sld [smem:[%s54]]
  %s56 = scalar_lea.smem %s0, 28
  %s57 = sld [smem:[%s56]]
  %s58 = scalar_lea.smem %s0, 29
  %s59 = sld [smem:[%s58]]
  %s60 = scalar_lea.smem %s0, 30
  %s61 = sld [smem:[%s60]]
  %s62 = scalar_lea.smem %s0, 31
  %s63 = sld [smem:[%s62]]
  %s64 = scalar_lea.smem %s0, 32
  %s65 = sld [smem:[%s64]]
  %s66 = scalar_lea.smem %s0, 33
  %s67 = sld [smem:[%s66]]
  %s68 = scalar_lea.smem %s0, 34
  %s69 = sld [smem:[%s68]]
  %s70 = scalar_lea.smem %s0, 35
  %s71 = sld [smem:[%s70]]
  %s72 = scalar_lea.smem %s0, 36
  %s73 = sld [smem:[%s72]]
  %s74 = sld [smem:[#allocation0]]
  $region154: #{forward.1} parent=0
    _
  %s76 = ssub.s32 1, %s74
  %s77 = scalar_select 0, %s76, %s74
  %v78 = vstv %s63
  %79 = vst [vmem:[#allocation2] sm:$0x1] %v78
  // Predicated region
  $region2: #{forward.1} parent=0 // pred_check
    _
  $region3: #{forward.1} parent=0 // pred_check_branch
    %81 = sbr.rel (0) target = $region5
  $region4: #{forward.1} parent=0 // pred_region
    _
  $region5: #{forward.1} parent=0 // pred_fallthru
    _
  // Predicated region
  $region6: #{forward.1} parent=0 // pred_check
    _
  $region7: #{forward.1} parent=0 // pred_check_branch
    %83 = sbr.rel (0) target = $region9
  $region8: #{forward.1} parent=0 // pred_region
    _
  $region9: #{forward.1} parent=0 // pred_fallthru
    _
  // Predicated region
  $region10: #{forward.1} parent=0 // pred_check
    _
  $region11: #{forward.1} parent=0 // pred_check_branch
    %85 = sbr.rel (0) target = $region13
  $region12: #{forward.1} parent=0 // pred_region
    _
  $region13: #{forward.1} parent=0 // pred_fallthru
    _
  // Predicated region
  $region14: #{forward.1} parent=0 // pred_check
    _
  $region15: #{forward.1} parent=0 // pred_check_branch
    %87 = sbr.rel (0) target = $region17
  $region16: #{forward.1} parent=0 // pred_region
    _
  $region17: #{forward.1} parent=0 // pred_fallthru
    _
  // Predicated region
  $region18: #{forward.1} parent=0 // pred_check
    _
  $region19: #{forward.1} parent=0 // pred_check_branch
    %89 = sbr.rel (0) target = $region21
  $region20: #{forward.1} parent=0 // pred_region
    _
  $region21: #{forward.1} parent=0 // pred_fallthru
    _
  // Predicated region
  $region22: #{forward.1} parent=0 // pred_check
    _
  $region23: #{forward.1} parent=0 // pred_check_branch
    %91 = sbr.rel (0) target = $region25
  $region24: #{forward.1} parent=0 // pred_region
    _
  $region25: #{forward.1} parent=0 // pred_fallthru
    _
  // Predicated region
  $region26: #{forward.1} parent=0 // pred_check
    _
  $region27: #{forward.1} parent=0 // pred_check_branch
    %93 = sbr.rel (0) target = $region29
  $region28: #{forward.1} parent=0 // pred_region
    _
  $region29: #{forward.1} parent=0 // pred_fallthru
    _
  // Predicated region
  $region30: #{forward.1} parent=0 // pred_check
    _
  $region31: #{forward.1} parent=0 // pred_check_branch
    %95 = sbr.rel (0) target = $region33
  $region32: #{forward.1} parent=0 // pred_region
    _
  $region33: #{forward.1} parent=0 // pred_fallthru
    _
  // Predicated region
  $region34: #{forward.1} parent=0 // pred_check
    _
  $region35: #{forward.1} parent=0 // pred_check_branch
    %97 = sbr.rel (0) target = $region37
  $region36: #{forward.1} parent=0 // pred_region
    _
  $region37: #{forward.1} parent=0 // pred_fallthru
    _
  // Predicated region
  $region38: #{forward.1} parent=0 // pred_check
    _
  $region39: #{forward.1} parent=0 // pred_check_branch
    %99 = sbr.rel (0) target = $region41
  $region40: #{forward.1} parent=0 // pred_region
    _
  $region41: #{forward.1} parent=0 // pred_fallthru
    _
  // Predicated region
  $region42: #{forward.1} parent=0 // pred_check
    _
  $region43: #{forward.1} parent=0 // pred_check_branch
    %101 = sbr.rel (0) target = $region45
  $region44: #{forward.1} parent=0 // pred_region
    _
  $region45: #{forward.1} parent=0 // pred_fallthru
    _
  // Predicated region
  $region46: #{forward.1} parent=0 // pred_check
    _
  $region47: #{forward.1} parent=0 // pred_check_branch
    %103 = sbr.rel (0) target = $region49
  $region48: #{forward.1} parent=0 // pred_region
    _
  $region49: #{forward.1} parent=0 // pred_fallthru
    _
  // Predicated region
  $region50: #{forward.1} parent=0 // pred_check
    _
  $region51: #{forward.1} parent=0 // pred_check_branch
    %105 = sbr.rel (0) target = $region53
  $region52: #{forward.1} parent=0 // pred_region
    _
  $region53: #{forward.1} parent=0 // pred_fallthru
    _
  // Predicated region
  $region54: #{forward.1} parent=0 // pred_check
    _
  $region55: #{forward.1} parent=0 // pred_check_branch
    %107 = sbr.rel (0) target = $region57
  $region56: #{forward.1} parent=0 // pred_region
    _
  $region57: #{forward.1} parent=0 // pred_fallthru
    _
  // Predicated region
  $region58: #{forward.1} parent=0 // pred_check
    _
  $region59: #{forward.1} parent=0 // pred_check_branch
    %109 = sbr.rel (0) target = $region61
  $region60: #{forward.1} parent=0 // pred_region
    _
  $region61: #{forward.1} parent=0 // pred_fallthru
    _
  // Predicated region
  $region62: #{forward.1} parent=0 // pred_check
    _
  $region63: #{forward.1} parent=0 // pred_check_branch
    %111 = sbr.rel (0) target = $region65
  $region64: #{forward.1} parent=0 // pred_region
    _
  $region65: #{forward.1} parent=0 // pred_fallthru
    _
  // Predicated region
  $region66: #{forward.1} parent=0 // pred_check
    _
  $region67: #{forward.1} parent=0 // pred_check_branch
    %113 = sbr.rel (0) target = $region69
  $region68: #{forward.1} parent=0 // pred_region
    _
  $region69: #{forward.1} parent=0 // pred_fallthru
    _
  // Predicated region
  $region70: #{forward.1} parent=0 // pred_check
    _
  $region71: #{forward.1} parent=0 // pred_check_branch
    %115 = sbr.rel (0) target = $region73
  $region72: #{forward.1} parent=0 // pred_region
    _
  $region73: #{forward.1} parent=0 // pred_fallthru
    _
  // Predicated region
  $region74: #{forward.1} parent=0 // pred_check
    _
  $region75: #{forward.1} parent=0 // pred_check_branch
    %117 = sbr.rel (0) target = $region77
  $region76: #{forward.1} parent=0 // pred_region
    _
  $region77: #{forward.1} parent=0 // pred_fallthru
    _
  // Predicated region
  $region78: #{forward.1} parent=0 // pred_check
    _
  $region79: #{forward.1} parent=0 // pred_check_branch
    %119 = sbr.rel (0) target = $region81
  $region80: #{forward.1} parent=0 // pred_region
    _
  $region81: #{forward.1} parent=0 // pred_fallthru
    _
  // Predicated region
  $region82: #{forward.1} parent=0 // pred_check
    _
  $region83: #{forward.1} parent=0 // pred_check_branch
    %121 = sbr.rel (0) target = $region85
  $region84: #{forward.1} parent=0 // pred_region
    _
  $region85: #{forward.1} parent=0 // pred_fallthru
    _
  // Predicated region
  $region86: #{forward.1} parent=0 // pred_check
    _
  $region87: #{forward.1} parent=0 // pred_check_branch
    %123 = sbr.rel (0) target = $region89
  $region88: #{forward.1} parent=0 // pred_region
    _
  $region89: #{forward.1} parent=0 // pred_fallthru
    _
  // Predicated region
  $region90: #{forward.1} parent=0 // pred_check
    _
  $region91: #{forward.1} parent=0 // pred_check_branch
    %125 = sbr.rel (0) target = $region93
  $region92: #{forward.1} parent=0 // pred_region
    _
  $region93: #{forward.1} parent=0 // pred_fallthru
    _
  // Predicated region
  $region94: #{forward.1} parent=0 // pred_check
    _
  $region95: #{forward.1} parent=0 // pred_check_branch
    %127 = sbr.rel (0) target = $region97
  $region96: #{forward.1} parent=0 // pred_region
    _
  $region97: #{forward.1} parent=0 // pred_fallthru
    _
  // Predicated region
  $region98: #{forward.1} parent=0 // pred_check
    _
  $region99: #{forward.1} parent=0 // pred_check_branch
    %129 = sbr.rel (0) target = $region101
  $region100: #{forward.1} parent=0 // pred_region
    _
  $region101: #{forward.1} parent=0 // pred_fallthru
    _
  // Predicated region
  $region102: #{forward.1} parent=0 // pred_check
    _
  $region103: #{forward.1} parent=0 // pred_check_branch
    %131 = sbr.rel (0) target = $region105
  $region104: #{forward.1} parent=0 // pred_region
    _
  $region105: #{forward.1} parent=0 // pred_fallthru
    _
  // Predicated region
  $region106: #{forward.1} parent=0 // pred_check
    _
  $region107: #{forward.1} parent=0 // pred_check_branch
    %133 = sbr.rel (0) target = $region109
  $region108: #{forward.1} parent=0 // pred_region
    _
  $region109: #{forward.1} parent=0 // pred_fallthru
    _
  // Predicated region
  $region110: #{forward.1} parent=0 // pred_check
    _
  $region111: #{forward.1} parent=0 // pred_check_branch
    %135 = sbr.rel (0) target = $region113
  $region112: #{forward.1} parent=0 // pred_region
    _
  $region113: #{forward.1} parent=0 // pred_fallthru
    _
  // Predicated region
  $region114: #{forward.1} parent=0 // pred_check
    _
  $region115: #{forward.1} parent=0 // pred_check_branch
    %137 = sbr.rel (0) target = $region117
  $region116: #{forward.1} parent=0 // pred_region
    _
  $region117: #{forward.1} parent=0 // pred_fallthru
    _
  // Predicated region
  $region118: #{forward.1} parent=0 // pred_check
    _
  $region119: #{forward.1} parent=0 // pred_check_branch
    %139 = sbr.rel (0) target = $region121
  $region120: #{forward.1} parent=0 // pred_region
    _
  $region121: #{forward.1} parent=0 // pred_fallthru
    _
  // Predicated region
  $region122: #{forward.1} parent=0 // pred_check
    _
  $region123: #{forward.1} parent=0 // pred_check_branch
    %141 = sbr.rel (0) target = $region125
  $region124: #{forward.1} parent=0 // pred_region
    _
  $region125: #{forward.1} parent=0 // pred_fallthru
    _
  // Predicated region
  $region126: #{forward.1} parent=0 // pred_check
    _
  $region127: #{forward.1} parent=0 // pred_check_branch
    %143 = sbr.rel (0) target = $region129
  $region128: #{forward.1} parent=0 // pred_region
    _
  $region129: #{forward.1} parent=0 // pred_fallthru
    _
  // Predicated region
  $region130: #{forward.1} parent=0 // pred_check
    _
  $region131: #{forward.1} parent=0 // pred_check_branch
    %145 = sbr.rel (0) target = $region133
  $region132: #{forward.1} parent=0 // pred_region
    _
  $region133: #{forward.1} parent=0 // pred_fallthru
    _
  // Predicated region
  $region134: #{forward.1} parent=0 // pred_check
    _
  $region135: #{forward.1} parent=0 // pred_check_branch
    %147 = sbr.rel (0) target = $region137
  $region136: #{forward.1} parent=0 // pred_region
    _
  $region137: #{forward.1} parent=0 // pred_fallthru
    _
  // Predicated region
  $region138: #{forward.1} parent=0 // pred_check
    _
  $region139: #{forward.1} parent=0 // pred_check_branch
    %149 = sbr.rel (0) target = $region141
  $region140: #{forward.1} parent=0 // pred_region
    _
  $region141: #{forward.1} parent=0 // pred_fallthru
    _
  // Predicated region
  $region142: #{forward.1} parent=0 // pred_check
    _
  $region143: #{forward.1} parent=0 // pred_check_branch
    %151 = sbr.rel (0) target = $region145
  $region144: #{forward.1} parent=0 // pred_region
    _
  $region145: #{forward.1} parent=0 // pred_fallthru
    _
  %v153 = vld [vmem:[%s1] sm:$0xff]
  %v154 = vld [vmem:[%s1 + $0x8] sm:$0xff]
  %v155 = vld [vmem:[%s1 + $0x10] sm:$0xff]
  %v156 = vld [vmem:[%s1 + $0x18] sm:$0xff]
  %v157 = vld [vmem:[%s1 + $0x20] sm:$0xff]
  %v158 = vld [vmem:[%s1 + $0x28] sm:$0xff]
  %v159 = vld [vmem:[%s1 + $0x30] sm:$0xff]
  %v160 = vld [vmem:[%s1 + $0x38] sm:$0xff]
  %v161 = vld [vmem:[%s1 + $0x40] sm:$0xff]
  %v162 = vld [vmem:[%s1 + $0x48] sm:$0xff]
  %v163 = vld [vmem:[%s1 + $0x50] sm:$0xff]
  %v164 = vld [vmem:[%s1 + $0x58] sm:$0xff]
  %v165 = vld [vmem:[%s1 + $0x60] sm:$0xff]
  %v166 = vld [vmem:[%s1 + $0x68] sm:$0xff]
  %v167 = vld [vmem:[%s1 + $0x70] sm:$0xff]
  %v168 = vld [vmem:[%s1 + $0x78] sm:$0xff]
  %v169 = vld [vmem:[%s11] sm:$0xff]
  %v170 = vld [vmem:[%s11 + $0x8] sm:$0xff]
  %v171 = vld [vmem:[%s11 + $0x10] sm:$0xff]
  %v172 = vld [vmem:[%s11 + $0x18] sm:$0xff]
  %v173 = vld [vmem:[%s11 + $0x20] sm:$0xff]
  %v174 = vld [vmem:[%s11 + $0x28] sm:$0xff]
  %v175 = vld [vmem:[%s11 + $0x30] sm:$0xff]
  %v176 = vld [vmem:[%s11 + $0x38] sm:$0xff]
  %v177 = vld [vmem:[%s11 + $0x40] sm:$0x11]
  %v178 = vld [vmem:[%s11 + $0x48] sm:$0x11]
  %v179 = vld [vmem:[%s11 + $0x50] sm:$0x11]
  %v180 = vld [vmem:[%s11 + $0x58] sm:$0x11]
  %v181 = vld [vmem:[%s11 + $0x60] sm:$0x11]
  %v182 = vld [vmem:[%s11 + $0x68] sm:$0x11]
  %v183 = vld [vmem:[%s11 + $0x70] sm:$0x11]
  %v184 = vld [vmem:[%s11 + $0x78] sm:$0x11]
  %v185 = vunpack.c.l.bf16 %v169
  %v186 = vunpack.c.h.bf16 %v169
  %v187 = vunpack.c.l.bf16 %v170
  %v188 = vunpack.c.h.bf16 %v170
  %v189 = vunpack.c.l.bf16 %v171
  %v190 = vunpack.c.h.bf16 %v171
  %v191 = vunpack.c.l.bf16 %v172
  %v192 = vunpack.c.h.bf16 %v172
  %v193 = vunpack.c.l.bf16 %v173
  %v194 = vunpack.c.h.bf16 %v173
  %v195 = vunpack.c.l.bf16 %v174
  %v196 = vunpack.c.h.bf16 %v174
  %v197 = vunpack.c.l.bf16 %v175
  %v198 = vunpack.c.h.bf16 %v175
  %v199 = vunpack.c.l.bf16 %v176
  %v200 = vunpack.c.h.bf16 %v176
  %v201 = vunpack.c.l.bf16 %v177
  %v202 = vunpack.c.h.bf16 %v177
  %v203 = vunpack.c.l.bf16 %v178
  %v204 = vunpack.c.h.bf16 %v178
  %v205 = vunpack.c.l.bf16 %v179
  %v206 = vunpack.c.h.bf16 %v179
  %v207 = vunpack.c.l.bf16 %v180
  %v208 = vunpack.c.h.bf16 %v180
  %v209 = vunpack.c.l.bf16 %v181
  %v210 = vunpack.c.h.bf16 %v181
  %v211 = vunpack.c.l.bf16 %v182
  %v212 = vunpack.c.h.bf16 %v182
  %v213 = vunpack.c.l.bf16 %v183
  %v214 = vunpack.c.h.bf16 %v183
  %v215 = vunpack.c.l.bf16 %v184
  %v216 = vunpack.c.h.bf16 %v184
  %v217 = vld [vmem:[%s13] sm:$0xff]
  %v218 = vld [vmem:[%s13 + $0x8] sm:$0xff]
  %v219 = vld [vmem:[%s13 + $0x10] sm:$0xff]
  %v220 = vld [vmem:[%s13 + $0x18] sm:$0xff]
  %v221 = vld [vmem:[%s13 + $0x20] sm:$0xff]
  %v222 = vld [vmem:[%s13 + $0x28] sm:$0xff]
  %v223 = vld [vmem:[%s13 + $0x30] sm:$0xff]
  %v224 = vld [vmem:[%s13 + $0x38] sm:$0xff]
  %v225 = vld [vmem:[%s13 + $0x40] sm:$0xff]
  %v226 = vld [vmem:[%s13 + $0x48] sm:$0xff]
  %v227 = vld [vmem:[%s13 + $0x50] sm:$0xff]
  %v228 = vld [vmem:[%s13 + $0x58] sm:$0xff]
  %v229 = vld [vmem:[%s13 + $0x60] sm:$0xff]
  %v230 = vld [vmem:[%s13 + $0x68] sm:$0xff]
  %v231 = vld [vmem:[%s13 + $0x70] sm:$0xff]
  %v232 = vld [vmem:[%s13 + $0x78] sm:$0xff]
  %v233 = vld [vmem:[%s13 + $0x80] sm:$0xff]
  %v234 = vld [vmem:[%s13 + $0x88] sm:$0xff]
  %v235 = vld [vmem:[%s13 + $0x90] sm:$0xff]
  %v236 = vld [vmem:[%s13 + $0x98] sm:$0xff]
  %v237 = vld [vmem:[%s13 + $0xa0] sm:$0xff]
  %v238 = vld [vmem:[%s13 + $0xa8] sm:$0xff]
  %v239 = vld [vmem:[%s13 + $0xb0] sm:$0xff]
  %v240 = vld [vmem:[%s13 + $0xb8] sm:$0xff]
  %v241 = vld [vmem:[%s13 + $0xc0] sm:$0xff]
  %v242 = vld [vmem:[%s13 + $0xc8] sm:$0xff]
  %v243 = vld [vmem:[%s13 + $0xd0] sm:$0xff]
  %v244 = vld [vmem:[%s13 + $0xd8] sm:$0xff]
  %v245 = vld [vmem:[%s13 + $0xe0] sm:$0xff]
  %v246 = vld [vmem:[%s13 + $0xe8] sm:$0xff]
  %v247 = vld [vmem:[%s13 + $0xf0] sm:$0xff]
  %v248 = vld [vmem:[%s13 + $0xf8] sm:$0xff]
  %v249 = vld [vmem:[%s13 + $0x100] sm:$0xff]
  %v250 = vld [vmem:[%s13 + $0x108] sm:$0xff]
  %v251 = vld [vmem:[%s13 + $0x110] sm:$0xff]
  %v252 = vld [vmem:[%s13 + $0x118] sm:$0xff]
  %v253 = vld [vmem:[%s13 + $0x120] sm:$0xff]
  %v254 = vld [vmem:[%s13 + $0x128] sm:$0xff]
  %v255 = vld [vmem:[%s13 + $0x130] sm:$0xff]
  %v256 = vld [vmem:[%s13 + $0x138] sm:$0xff]
  %v257 = vld [vmem:[%s13 + $0x140] sm:$0xff]
  %v258 = vld [vmem:[%s13 + $0x148] sm:$0xff]
  %v259 = vld [vmem:[%s13 + $0x150] sm:$0xff]
  %v260 = vld [vmem:[%s13 + $0x158] sm:$0xff]
  %v261 = vld [vmem:[%s13 + $0x160] sm:$0xff]
  %v262 = vld [vmem:[%s13 + $0x168] sm:$0xff]
  %v263 = vld [vmem:[%s13 + $0x170] sm:$0xff]
  %v264 = vld [vmem:[%s13 + $0x178] sm:$0xff]
  %v265 = vld [vmem:[%s13 + $0x180] sm:$0xff]
  %v266 = vld [vmem:[%s13 + $0x188] sm:$0xff]
  %v267 = vld [vmem:[%s13 + $0x190] sm:$0xff]
  %v268 = vld [vmem:[%s13 + $0x198] sm:$0xff]
  %v269 = vld [vmem:[%s13 + $0x1a0] sm:$0xff]
  %v270 = vld [vmem:[%s13 + $0x1a8] sm:$0xff]
  %v271 = vld [vmem:[%s13 + $0x1b0] sm:$0xff]
  %v272 = vld [vmem:[%s13 + $0x1b8] sm:$0xff]
  %v273 = vld [vmem:[%s13 + $0x1c0] sm:$0xff]
  %v274 = vld [vmem:[%s13 + $0x1c8] sm:$0xff]
  %v275 = vld [vmem:[%s13 + $0x1d0] sm:$0xff]
  %v276 = vld [vmem:[%s13 + $0x1d8] sm:$0xff]
  %v277 = vld [vmem:[%s13 + $0x1e0] sm:$0xff]
  %v278 = vld [vmem:[%s13 + $0x1e8] sm:$0xff]
  %v279 = vld [vmem:[%s13 + $0x1f0] sm:$0xff]
  %v280 = vld [vmem:[%s13 + $0x1f8] sm:$0xff]
  %v281 = vld [vmem:[%s13 + $0x200] sm:$0xff]
  %v282 = vld [vmem:[%s13 + $0x208] sm:$0xff]
  %v283 = vld [vmem:[%s13 + $0x210] sm:$0xff]
  %v284 = vld [vmem:[%s13 + $0x218] sm:$0xff]
  %v285 = vld [vmem:[%s13 + $0x220] sm:$0xff]
  %v286 = vld [vmem:[%s13 + $0x228] sm:$0xff]
  %v287 = vld [vmem:[%s13 + $0x230] sm:$0xff]
  %v288 = vld [vmem:[%s13 + $0x238] sm:$0xff]
  %v289 = vld [vmem:[%s13 + $0x240] sm:$0xff]
  %v290 = vld [vmem:[%s13 + $0x248] sm:$0xff]
  %v291 = vld [vmem:[%s13 + $0x250] sm:$0xff]
  %v292 = vld [vmem:[%s13 + $0x258] sm:$0xff]
  %v293 = vld [vmem:[%s13 + $0x260] sm:$0xff]
  %v294 = vld [vmem:[%s13 + $0x268] sm:$0xff]
  %v295 = vld [vmem:[%s13 + $0x270] sm:$0xff]
  %v296 = vld [vmem:[%s13 + $0x278] sm:$0xff]
  %v297 = vld [vmem:[%s13 + $0x280] sm:$0xff]
  %v298 = vld [vmem:[%s13 + $0x288] sm:$0xff]
  %v299 = vld [vmem:[%s13 + $0x290] sm:$0xff]
  %v300 = vld [vmem:[%s13 + $0x298] sm:$0xff]
  %v301 = vld [vmem:[%s13 + $0x2a0] sm:$0xff]
  %v302 = vld [vmem:[%s13 + $0x2a8] sm:$0xff]
  %v303 = vld [vmem:[%s13 + $0x2b0] sm:$0xff]
  %v304 = vld [vmem:[%s13 + $0x2b8] sm:$0xff]
  %v305 = vld [vmem:[%s13 + $0x2c0] sm:$0xff]
  %v306 = vld [vmem:[%s13 + $0x2c8] sm:$0xff]
  %v307 = vld [vmem:[%s13 + $0x2d0] sm:$0xff]
  %v308 = vld [vmem:[%s13 + $0x2d8] sm:$0xff]
  %v309 = vld [vmem:[%s13 + $0x2e0] sm:$0xff]
  %v310 = vld [vmem:[%s13 + $0x2e8] sm:$0xff]
  %v311 = vld [vmem:[%s13 + $0x2f0] sm:$0xff]
  %v312 = vld [vmem:[%s13 + $0x2f8] sm:$0xff]
  %v313 = vld [vmem:[%s13 + $0x300] sm:$0xff]
  %v314 = vld [vmem:[%s13 + $0x308] sm:$0xff]
  %v315 = vld [vmem:[%s13 + $0x310] sm:$0xff]
  %v316 = vld [vmem:[%s13 + $0x318] sm:$0xff]
  %v317 = vld [vmem:[%s13 + $0x320] sm:$0xff]
  %v318 = vld [vmem:[%s13 + $0x328] sm:$0xff]
  %v319 = vld [vmem:[%s13 + $0x330] sm:$0xff]
  %v320 = vld [vmem:[%s13 + $0x338] sm:$0xff]
  %v321 = vld [vmem:[%s13 + $0x340] sm:$0xff]
  %v322 = vld [vmem:[%s13 + $0x348] sm:$0xff]
  %v323 = vld [vmem:[%s13 + $0x350] sm:$0xff]
  %v324 = vld [vmem:[%s13 + $0x358] sm:$0xff]
  %v325 = vld [vmem:[%s13 + $0x360] sm:$0xff]
  %v326 = vld [vmem:[%s13 + $0x368] sm:$0xff]
  %v327 = vld [vmem:[%s13 + $0x370] sm:$0xff]
  %v328 = vld [vmem:[%s13 + $0x378] sm:$0xff]
  %v329 = vld [vmem:[%s13 + $0x380] sm:$0xff]
  %v330 = vld [vmem:[%s13 + $0x388] sm:$0xff]
  %v331 = vld [vmem:[%s13 + $0x390] sm:$0xff]
  %v332 = vld [vmem:[%s13 + $0x398] sm:$0xff]
  %v333 = vld [vmem:[%s13 + $0x3a0] sm:$0xff]
  %v334 = vld [vmem:[%s13 + $0x3a8] sm:$0xff]
  %v335 = vld [vmem:[%s13 + $0x3b0] sm:$0xff]
  %v336 = vld [vmem:[%s13 + $0x3b8] sm:$0xff]
  %v337 = vld [vmem:[%s13 + $0x3c0] sm:$0xff]
  %v338 = vld [vmem:[%s13 + $0x3c8] sm:$0xff]
  %v339 = vld [vmem:[%s13 + $0x3d0] sm:$0xff]
  %v340 = vld [vmem:[%s13 + $0x3d8] sm:$0xff]
  %v341 = vld [vmem:[%s13 + $0x3e0] sm:$0xff]
  %v342 = vld [vmem:[%s13 + $0x3e8] sm:$0xff]
  %v343 = vld [vmem:[%s13 + $0x3f0] sm:$0xff]
  %v344 = vld [vmem:[%s13 + $0x3f8] sm:$0xff]
  %v345 = vld [vmem:[%s3] sm:$0xf]
  %v346 = vld [vmem:[%s5] sm:$0xff]
  %347 = vrot.lane.b32.xlu0 %v153, 33
  %v348 = vpop.permute.xlu0 %347
  %349 = vrot.lane.b32.xlu0 %v154, 33
  %v350 = vpop.permute.xlu0 %349
  %351 = vrot.lane.b32.xlu0 %v155, 33
  %v352 = vpop.permute.xlu0 %351
  %353 = vrot.lane.b32.xlu0 %v156, 33
  %v354 = vpop.permute.xlu0 %353
  %355 = vrot.lane.b32.xlu0 %v157, 33
  %v356 = vpop.permute.xlu0 %355
  %357 = vrot.lane.b32.xlu0 %v158, 33
  %v358 = vpop.permute.xlu0 %357
  %359 = vrot.lane.b32.xlu0 %v159, 33
  %v360 = vpop.permute.xlu0 %359
  %361 = vrot.lane.b32.xlu0 %v160, 33
  %v362 = vpop.permute.xlu0 %361
  %363 = vrot.lane.b32.xlu0 %v161, 33
  %v364 = vpop.permute.xlu0 %363
  %365 = vrot.lane.b32.xlu0 %v162, 33
  %v366 = vpop.permute.xlu0 %365
  %367 = vrot.lane.b32.xlu0 %v163, 33
  %v368 = vpop.permute.xlu0 %367
  %369 = vrot.lane.b32.xlu0 %v164, 33
  %v370 = vpop.permute.xlu0 %369
  %371 = vrot.lane.b32.xlu0 %v165, 33
  %v372 = vpop.permute.xlu0 %371
  %373 = vrot.lane.b32.xlu0 %v166, 33
  %v374 = vpop.permute.xlu0 %373
  %375 = vrot.lane.b32.xlu0 %v167, 33
  %v376 = vpop.permute.xlu0 %375
  %377 = vrot.lane.b32.xlu0 %v168, 33
  %v378 = vpop.permute.xlu0 %377
  %v379 = vlaneseq
  %v380 = vand.u32 %v379, 127
  %vm381 = vcmp.lt.s32.totalorder %v380, 33
  %v382 = vsel %vm381, %v376, %v378
  %v383 = vsel %vm381, %v374, %v376
  %v384 = vsel %vm381, %v372, %v374
  %v385 = vsel %vm381, %v370, %v372
  %v386 = vsel %vm381, %v368, %v370
  %v387 = vsel %vm381, %v366, %v368
  %v388 = vsel %vm381, %v364, %v366
  %v389 = vsel %vm381, %v362, %v364
  %v390 = vsel %vm381, %v360, %v362
  %v391 = vsel %vm381, %v358, %v360
  %v392 = vsel %vm381, %v356, %v358
  %v393 = vsel %vm381, %v354, %v356
  %v394 = vsel %vm381, %v352, %v354
  %v395 = vsel %vm381, %v350, %v352
  %v396 = vsel %vm381, %v348, %v350
  %v397 = vsel %vm381, %v378, %v348
  %v398 = vlaneseq
  %v399 = vshrl.u32 %v398, 7
  %v400 = vsub.s32 0, %v399
  %v401 = vrot.slane %v185, %v400
  %v402 = vlaneseq
  %v403 = vshrl.u32 %v402, 7
  %v404 = vsub.s32 0, %v403
  %v405 = vrot.slane %v186, %v404
  %v406 = vlaneseq
  %v407 = vshrl.u32 %v406, 7
  %v408 = vsub.s32 0, %v407
  %v409 = vrot.slane %v187, %v408
  %v410 = vlaneseq
  %v411 = vshrl.u32 %v410, 7
  %v412 = vsub.s32 0, %v411
  %v413 = vrot.slane %v188, %v412
  %v414 = vlaneseq
  %v415 = vshrl.u32 %v414, 7
  %v416 = vsub.s32 0, %v415
  %v417 = vrot.slane %v189, %v416
  %v418 = vlaneseq
  %v419 = vshrl.u32 %v418, 7
  %v420 = vsub.s32 0, %v419
  %v421 = vrot.slane %v190, %v420
  %v422 = vlaneseq
  %v423 = vshrl.u32 %v422, 7
  %v424 = vsub.s32 0, %v423
  %v425 = vrot.slane %v191, %v424
  %v426 = vlaneseq
  %v427 = vshrl.u32 %v426, 7
  %v428 = vsub.s32 0, %v427
  %v429 = vrot.slane %v192, %v428
  %v430 = vlaneseq
  %v431 = vshrl.u32 %v430, 7
  %v432 = vsub.s32 0, %v431
  %v433 = vrot.slane %v193, %v432
  %v434 = vlaneseq
  %v435 = vshrl.u32 %v434, 7
  %v436 = vsub.s32 0, %v435
  %v437 = vrot.slane %v194, %v436
  %v438 = vlaneseq
  %v439 = vshrl.u32 %v438, 7
  %v440 = vsub.s32 0, %v439
  %v441 = vrot.slane %v195, %v440
  %v442 = vlaneseq
  %v443 = vshrl.u32 %v442, 7
  %v444 = vsub.s32 0, %v443
  %v445 = vrot.slane %v196, %v444
  %v446 = vlaneseq
  %v447 = vshrl.u32 %v446, 7
  %v448 = vsub.s32 0, %v447
  %v449 = vrot.slane %v197, %v448
  %v450 = vlaneseq
  %v451 = vshrl.u32 %v450, 7
  %v452 = vsub.s32 0, %v451
  %v453 = vrot.slane %v198, %v452
  %v454 = vlaneseq
  %v455 = vshrl.u32 %v454, 7
  %v456 = vsub.s32 0, %v455
  %v457 = vrot.slane %v199, %v456
  %v458 = vlaneseq
  %v459 = vshrl.u32 %v458, 7
  %v460 = vsub.s32 0, %v459
  %v461 = vrot.slane %v200, %v460
  %v462 = vmul.f32 %v397, %v401
  %v463 = vmul.f32 %v396, %v405
  %v464 = vmul.f32 %v395, %v409
  %v465 = vmul.f32 %v394, %v413
  %v466 = vmul.f32 %v393, %v417
  %v467 = vmul.f32 %v392, %v421
  %v468 = vmul.f32 %v391, %v425
  %v469 = vmul.f32 %v390, %v429
  %v470 = vmul.f32 %v389, %v433
  %v471 = vmul.f32 %v388, %v437
  %v472 = vmul.f32 %v387, %v441
  %v473 = vmul.f32 %v386, %v445
  %v474 = vmul.f32 %v385, %v449
  %v475 = vmul.f32 %v384, %v453
  %v476 = vmul.f32 %v383, %v457
  %v477 = vmul.f32 %v382, %v461
  %478 = vrot.lane.b32.xlu0 %v153, 32
  %v479 = vpop.permute.xlu0 %478
  %480 = vrot.lane.b32.xlu0 %v154, 32
  %v481 = vpop.permute.xlu0 %480
  %482 = vrot.lane.b32.xlu0 %v155, 32
  %v483 = vpop.permute.xlu0 %482
  %484 = vrot.lane.b32.xlu0 %v156, 32
  %v485 = vpop.permute.xlu0 %484
  %486 = vrot.lane.b32.xlu0 %v157, 32
  %v487 = vpop.permute.xlu0 %486
  %488 = vrot.lane.b32.xlu0 %v158, 32
  %v489 = vpop.permute.xlu0 %488
  %490 = vrot.lane.b32.xlu0 %v159, 32
  %v491 = vpop.permute.xlu0 %490
  %492 = vrot.lane.b32.xlu0 %v160, 32
  %v493 = vpop.permute.xlu0 %492
  %494 = vrot.lane.b32.xlu0 %v161, 32
  %v495 = vpop.permute.xlu0 %494
  %496 = vrot.lane.b32.xlu0 %v162, 32
  %v497 = vpop.permute.xlu0 %496
  %498 = vrot.lane.b32.xlu0 %v163, 32
  %v499 = vpop.permute.xlu0 %498
  %500 = vrot.lane.b32.xlu0 %v164, 32
  %v501 = vpop.permute.xlu0 %500
  %502 = vrot.lane.b32.xlu0 %v165, 32
  %v503 = vpop.permute.xlu0 %502
  %504 = vrot.lane.b32.xlu0 %v166, 32
  %v505 = vpop.permute.xlu0 %504
  %506 = vrot.lane.b32.xlu0 %v167, 32
  %v507 = vpop.permute.xlu0 %506
  %508 = vrot.lane.b32.xlu0 %v168, 32
  %v509 = vpop.permute.xlu0 %508
  %vm510 = vcmp.lt.s32.totalorder %v380, 32
  %v511 = vsel %vm510, %v507, %v509
  %v512 = vsel %vm510, %v505, %v507
  %v513 = vsel %vm510, %v503, %v505
  %v514 = vsel %vm510, %v501, %v503
  %v515 = vsel %vm510, %v499, %v501
  %v516 = vsel %vm510, %v497, %v499
  %v517 = vsel %vm510, %v495, %v497
  %v518 = vsel %vm510, %v493, %v495
  %v519 = vsel %vm510, %v491, %v493
  %v520 = vsel %vm510, %v489, %v491
  %v521 = vsel %vm510, %v487, %v489
  %v522 = vsel %vm510, %v485, %v487
  %v523 = vsel %vm510, %v483, %v485
  %v524 = vsel %vm510, %v481, %v483
  %v525 = vsel %vm510, %v479, %v481
  %v526 = vsel %vm510, %v509, %v479
  %v527 = vlaneseq
  %v528 = vshrl.u32 %v527, 7
  %v529 = vsub.s32 1, %v528
  %v530 = vrot.slane %v185, %v529
  %v531 = vlaneseq
  %v532 = vshrl.u32 %v531, 7
  %v533 = vsub.s32 1, %v532
  %v534 = vrot.slane %v186, %v533
  %v535 = vlaneseq
  %v536 = vshrl.u32 %v535, 7
  %v537 = vsub.s32 1, %v536
  %v538 = vrot.slane %v187, %v537
  %v539 = vlaneseq
  %v540 = vshrl.u32 %v539, 7
  %v541 = vsub.s32 1, %v540
  %v542 = vrot.slane %v188, %v541
  %v543 = vlaneseq
  %v544 = vshrl.u32 %v543, 7
  %v545 = vsub.s32 1, %v544
  %v546 = vrot.slane %v189, %v545
  %v547 = vlaneseq
  %v548 = vshrl.u32 %v547, 7
  %v549 = vsub.s32 1, %v548
  %v550 = vrot.slane %v190, %v549
  %v551 = vlaneseq
  %v552 = vshrl.u32 %v551, 7
  %v553 = vsub.s32 1, %v552
  %v554 = vrot.slane %v191, %v553
  %v555 = vlaneseq
  %v556 = vshrl.u32 %v555, 7
  %v557 = vsub.s32 1, %v556
  %v558 = vrot.slane %v192, %v557
  %v559 = vlaneseq
  %v560 = vshrl.u32 %v559, 7
  %v561 = vsub.s32 1, %v560
  %v562 = vrot.slane %v193, %v561
  %v563 = vlaneseq
  %v564 = vshrl.u32 %v563, 7
  %v565 = vsub.s32 1, %v564
  %v566 = vrot.slane %v194, %v565
  %v567 = vlaneseq
  %v568 = vshrl.u32 %v567, 7
  %v569 = vsub.s32 1, %v568
  %v570 = vrot.slane %v195, %v569
  %v571 = vlaneseq
  %v572 = vshrl.u32 %v571, 7
  %v573 = vsub.s32 1, %v572
  %v574 = vrot.slane %v196, %v573
  %v575 = vlaneseq
  %v576 = vshrl.u32 %v575, 7
  %v577 = vsub.s32 1, %v576
  %v578 = vrot.slane %v197, %v577
  %v579 = vlaneseq
  %v580 = vshrl.u32 %v579, 7
  %v581 = vsub.s32 1, %v580
  %v582 = vrot.slane %v198, %v581
  %v583 = vlaneseq
  %v584 = vshrl.u32 %v583, 7
  %v585 = vsub.s32 1, %v584
  %v586 = vrot.slane %v199, %v585
  %v587 = vlaneseq
  %v588 = vshrl.u32 %v587, 7
  %v589 = vsub.s32 1, %v588
  %v590 = vrot.slane %v200, %v589
  %v591 = vmul.f32 %v526, %v530
  %v592 = vmul.f32 %v525, %v534
  %v593 = vmul.f32 %v524, %v538
  %v594 = vmul.f32 %v523, %v542
  %v595 = vmul.f32 %v522, %v546
  %v596 = vmul.f32 %v521, %v550
  %v597 = vmul.f32 %v520, %v554
  %v598 = vmul.f32 %v519, %v558
  %v599 = vmul.f32 %v518, %v562
  %v600 = vmul.f32 %v517, %v566
  %v601 = vmul.f32 %v516, %v570
  %v602 = vmul.f32 %v515, %v574
  %v603 = vmul.f32 %v514, %v578
  %v604 = vmul.f32 %v513, %v582
  %v605 = vmul.f32 %v512, %v586
  %v606 = vmul.f32 %v511, %v590
  %607 = vrot.lane.b32.xlu0 %v153, 31
  %v608 = vpop.permute.xlu0 %607
  %609 = vrot.lane.b32.xlu0 %v154, 31
  %v610 = vpop.permute.xlu0 %609
  %611 = vrot.lane.b32.xlu0 %v155, 31
  %v612 = vpop.permute.xlu0 %611
  %613 = vrot.lane.b32.xlu0 %v156, 31
  %v614 = vpop.permute.xlu0 %613
  %615 = vrot.lane.b32.xlu0 %v157, 31
  %v616 = vpop.permute.xlu0 %615
  %617 = vrot.lane.b32.xlu0 %v158, 31
  %v618 = vpop.permute.xlu0 %617
  %619 = vrot.lane.b32.xlu0 %v159, 31
  %v620 = vpop.permute.xlu0 %619
  %621 = vrot.lane.b32.xlu0 %v160, 31
  %v622 = vpop.permute.xlu0 %621
  %623 = vrot.lane.b32.xlu0 %v161, 31
  %v624 = vpop.permute.xlu0 %623
  %625 = vrot.lane.b32.xlu0 %v162, 31
  %v626 = vpop.permute.xlu0 %625
  %627 = vrot.lane.b32.xlu0 %v163, 31
  %v628 = vpop.permute.xlu0 %627
  %629 = vrot.lane.b32.xlu0 %v164, 31
  %v630 = vpop.permute.xlu0 %629
  %631 = vrot.lane.b32.xlu0 %v165, 31
  %v632 = vpop.permute.xlu0 %631
  %633 = vrot.lane.b32.xlu0 %v166, 31
  %v634 = vpop.permute.xlu0 %633
  %635 = vrot.lane.b32.xlu0 %v167, 31
  %v636 = vpop.permute.xlu0 %635
  %637 = vrot.lane.b32.xlu0 %v168, 31
  %v638 = vpop.permute.xlu0 %637
  %vm639 = vcmp.lt.s32.totalorder %v380, 31
  %v640 = vsel %vm639, %v636, %v638
  %v641 = vsel %vm639, %v634, %v636
  %v642 = vsel %vm639, %v632, %v634
  %v643 = vsel %vm639, %v630, %v632
  %v644 = vsel %vm639, %v628, %v630
  %v645 = vsel %vm639, %v626, %v628
  %v646 = vsel %vm639, %v624, %v626
  %v647 = vsel %vm639, %v622, %v624
  %v648 = vsel %vm639, %v620, %v622
  %v649 = vsel %vm639, %v618, %v620
  %v650 = vsel %vm639, %v616, %v618
  %v651 = vsel %vm639, %v614, %v616
  %v652 = vsel %vm639, %v612, %v614
  %v653 = vsel %vm639, %v610, %v612
  %v654 = vsel %vm639, %v608, %v610
  %v655 = vsel %vm639, %v638, %v608
  %v656 = vlaneseq
  %v657 = vshrl.u32 %v656, 7
  %v658 = vsub.s32 2, %v657
  %v659 = vrot.slane %v185, %v658
  %v660 = vlaneseq
  %v661 = vshrl.u32 %v660, 7
  %v662 = vsub.s32 2, %v661
  %v663 = vrot.slane %v186, %v662
  %v664 = vlaneseq
  %v665 = vshrl.u32 %v664, 7
  %v666 = vsub.s32 2, %v665
  %v667 = vrot.slane %v187, %v666
  %v668 = vlaneseq
  %v669 = vshrl.u32 %v668, 7
  %v670 = vsub.s32 2, %v669
  %v671 = vrot.slane %v188, %v670
  %v672 = vlaneseq
  %v673 = vshrl.u32 %v672, 7
  %v674 = vsub.s32 2, %v673
  %v675 = vrot.slane %v189, %v674
  %v676 = vlaneseq
  %v677 = vshrl.u32 %v676, 7
  %v678 = vsub.s32 2, %v677
  %v679 = vrot.slane %v190, %v678
  %v680 = vlaneseq
  %v681 = vshrl.u32 %v680, 7
  %v682 = vsub.s32 2, %v681
  %v683 = vrot.slane %v191, %v682
  %v684 = vlaneseq
  %v685 = vshrl.u32 %v684, 7
  %v686 = vsub.s32 2, %v685
  %v687 = vrot.slane %v192, %v686
  %v688 = vlaneseq
  %v689 = vshrl.u32 %v688, 7
  %v690 = vsub.s32 2, %v689
  %v691 = vrot.slane %v193, %v690
  %v692 = vlaneseq
  %v693 = vshrl.u32 %v692, 7
  %v694 = vsub.s32 2, %v693
  %v695 = vrot.slane %v194, %v694
  %v696 = vlaneseq
  %v697 = vshrl.u32 %v696, 7
  %v698 = vsub.s32 2, %v697
  %v699 = vrot.slane %v195, %v698
  %v700 = vlaneseq
  %v701 = vshrl.u32 %v700, 7
  %v702 = vsub.s32 2, %v701
  %v703 = vrot.slane %v196, %v702
  %v704 = vlaneseq
  %v705 = vshrl.u32 %v704, 7
  %v706 = vsub.s32 2, %v705
  %v707 = vrot.slane %v197, %v706
  %v708 = vlaneseq
  %v709 = vshrl.u32 %v708, 7
  %v710 = vsub.s32 2, %v709
  %v711 = vrot.slane %v198, %v710
  %v712 = vlaneseq
  %v713 = vshrl.u32 %v712, 7
  %v714 = vsub.s32 2, %v713
  %v715 = vrot.slane %v199, %v714
  %v716 = vlaneseq
  %v717 = vshrl.u32 %v716, 7
  %v718 = vsub.s32 2, %v717
  %v719 = vrot.slane %v200, %v718
  %v720 = vmul.f32 %v655, %v659
  %v721 = vmul.f32 %v654, %v663
  %v722 = vmul.f32 %v653, %v667
  %v723 = vmul.f32 %v652, %v671
  %v724 = vmul.f32 %v651, %v675
  %v725 = vmul.f32 %v650, %v679
  %v726 = vmul.f32 %v649, %v683
  %v727 = vmul.f32 %v648, %v687
  %v728 = vmul.f32 %v647, %v691
  %v729 = vmul.f32 %v646, %v695
  %v730 = vmul.f32 %v645, %v699
  %v731 = vmul.f32 %v644, %v703
  %v732 = vmul.f32 %v643, %v707
  %v733 = vmul.f32 %v642, %v711
  %v734 = vmul.f32 %v641, %v715
  %v735 = vmul.f32 %v640, %v719
  %736 = vrot.lane.b32.xlu0 %v153, 1
  %v737 = vpop.permute.xlu0 %736
  %738 = vrot.lane.b32.xlu0 %v154, 1
  %v739 = vpop.permute.xlu0 %738
  %740 = vrot.lane.b32.xlu0 %v155, 1
  %v741 = vpop.permute.xlu0 %740
  %742 = vrot.lane.b32.xlu0 %v156, 1
  %v743 = vpop.permute.xlu0 %742
  %744 = vrot.lane.b32.xlu0 %v157, 1
  %v745 = vpop.permute.xlu0 %744
  %746 = vrot.lane.b32.xlu0 %v158, 1
  %v747 = vpop.permute.xlu0 %746
  %748 = vrot.lane.b32.xlu0 %v159, 1
  %v749 = vpop.permute.xlu0 %748
  %750 = vrot.lane.b32.xlu0 %v160, 1
  %v751 = vpop.permute.xlu0 %750
  %752 = vrot.lane.b32.xlu0 %v161, 1
  %v753 = vpop.permute.xlu0 %752
  %754 = vrot.lane.b32.xlu0 %v162, 1
  %v755 = vpop.permute.xlu0 %754
  %756 = vrot.lane.b32.xlu0 %v163, 1
  %v757 = vpop.permute.xlu0 %756
  %758 = vrot.lane.b32.xlu0 %v164, 1
  %v759 = vpop.permute.xlu0 %758
  %760 = vrot.lane.b32.xlu0 %v165, 1
  %v761 = vpop.permute.xlu0 %760
  %762 = vrot.lane.b32.xlu0 %v166, 1
  %v763 = vpop.permute.xlu0 %762
  %764 = vrot.lane.b32.xlu0 %v167, 1
  %v765 = vpop.permute.xlu0 %764
  %766 = vrot.lane.b32.xlu0 %v168, 1
  %v767 = vpop.permute.xlu0 %766
  %vm768 = vcmp.lt.s32.totalorder %v380, 1
  %v769 = vsel %vm768, %v765, %v767
  %v770 = vsel %vm768, %v763, %v765
  %v771 = vsel %vm768, %v761, %v763
  %v772 = vsel %vm768, %v759, %v761
  %v773 = vsel %vm768, %v757, %v759
  %v774 = vsel %vm768, %v755, %v757
  %v775 = vsel %vm768, %v753, %v755
  %v776 = vsel %vm768, %v751, %v753
  %v777 = vsel %vm768, %v749, %v751
  %v778 = vsel %vm768, %v747, %v749
  %v779 = vsel %vm768, %v745, %v747
  %v780 = vsel %vm768, %v743, %v745
  %v781 = vsel %vm768, %v741, %v743
  %v782 = vsel %vm768, %v739, %v741
  %v783 = vsel %vm768, %v737, %v739
  %v784 = vsel %vm768, %v767, %v737
  %v785 = vlaneseq
  %v786 = vshrl.u32 %v785, 7
  %v787 = vsub.s32 3, %v786
  %v788 = vrot.slane %v185, %v787
  %v789 = vlaneseq
  %v790 = vshrl.u32 %v789, 7
  %v791 = vsub.s32 3, %v790
  %v792 = vrot.slane %v186, %v791
  %v793 = vlaneseq
  %v794 = vshrl.u32 %v793, 7
  %v795 = vsub.s32 3, %v794
  %v796 = vrot.slane %v187, %v795
  %v797 = vlaneseq
  %v798 = vshrl.u32 %v797, 7
  %v799 = vsub.s32 3, %v798
  %v800 = vrot.slane %v188, %v799
  %v801 = vlaneseq
  %v802 = vshrl.u32 %v801, 7
  %v803 = vsub.s32 3, %v802
  %v804 = vrot.slane %v189, %v803
  %v805 = vlaneseq
  %v806 = vshrl.u32 %v805, 7
  %v807 = vsub.s32 3, %v806
  %v808 = vrot.slane %v190, %v807
  %v809 = vlaneseq
  %v810 = vshrl.u32 %v809, 7
  %v811 = vsub.s32 3, %v810
  %v812 = vrot.slane %v191, %v811
  %v813 = vlaneseq
  %v814 = vshrl.u32 %v813, 7
  %v815 = vsub.s32 3, %v814
  %v816 = vrot.slane %v192, %v815
  %v817 = vlaneseq
  %v818 = vshrl.u32 %v817, 7
  %v819 = vsub.s32 3, %v818
  %v820 = vrot.slane %v193, %v819
  %v821 = vlaneseq
  %v822 = vshrl.u32 %v821, 7
  %v823 = vsub.s32 3, %v822
  %v824 = vrot.slane %v194, %v823
  %v825 = vlaneseq
  %v826 = vshrl.u32 %v825, 7
  %v827 = vsub.s32 3, %v826
  %v828 = vrot.slane %v195, %v827
  %v829 = vlaneseq
  %v830 = vshrl.u32 %v829, 7
  %v831 = vsub.s32 3, %v830
  %v832 = vrot.slane %v196, %v831
  %v833 = vlaneseq
  %v834 = vshrl.u32 %v833, 7
  %v835 = vsub.s32 3, %v834
  %v836 = vrot.slane %v197, %v835
  %v837 = vlaneseq
  %v838 = vshrl.u32 %v837, 7
  %v839 = vsub.s32 3, %v838
  %v840 = vrot.slane %v198, %v839
  %v841 = vlaneseq
  %v842 = vshrl.u32 %v841, 7
  %v843 = vsub.s32 3, %v842
  %v844 = vrot.slane %v199, %v843
  %v845 = vlaneseq
  %v846 = vshrl.u32 %v845, 7
  %v847 = vsub.s32 3, %v846
  %v848 = vrot.slane %v200, %v847
  %v849 = vmul.f32 %v784, %v788
  %v850 = vmul.f32 %v783, %v792
  %v851 = vmul.f32 %v782, %v796
  %v852 = vmul.f32 %v781, %v800
  %v853 = vmul.f32 %v780, %v804
  %v854 = vmul.f32 %v779, %v808
  %v855 = vmul.f32 %v778, %v812
  %v856 = vmul.f32 %v777, %v816
  %v857 = vmul.f32 %v776, %v820
  %v858 = vmul.f32 %v775, %v824
  %v859 = vmul.f32 %v774, %v828
  %v860 = vmul.f32 %v773, %v832
  %v861 = vmul.f32 %v772, %v836
  %v862 = vmul.f32 %v771, %v840
  %v863 = vmul.f32 %v770, %v844
  %v864 = vmul.f32 %v769, %v848
  %865 = vrot.lane.b32.xlu0 %v153, 127
  %v866 = vpop.permute.xlu0 %865
  %867 = vrot.lane.b32.xlu0 %v154, 127
  %v868 = vpop.permute.xlu0 %867
  %869 = vrot.lane.b32.xlu0 %v155, 127
  %v870 = vpop.permute.xlu0 %869
  %871 = vrot.lane.b32.xlu0 %v156, 127
  %v872 = vpop.permute.xlu0 %871
  %873 = vrot.lane.b32.xlu0 %v157, 127
  %v874 = vpop.permute.xlu0 %873
  %875 = vrot.lane.b32.xlu0 %v158, 127
  %v876 = vpop.permute.xlu0 %875
  %877 = vrot.lane.b32.xlu0 %v159, 127
  %v878 = vpop.permute.xlu0 %877
  %879 = vrot.lane.b32.xlu0 %v160, 127
  %v880 = vpop.permute.xlu0 %879
  %881 = vrot.lane.b32.xlu0 %v161, 127
  %v882 = vpop.permute.xlu0 %881
  %883 = vrot.lane.b32.xlu0 %v162, 127
  %v884 = vpop.permute.xlu0 %883
  %885 = vrot.lane.b32.xlu0 %v163, 127
  %v886 = vpop.permute.xlu0 %885
  %887 = vrot.lane.b32.xlu0 %v164, 127
  %v888 = vpop.permute.xlu0 %887
  %889 = vrot.lane.b32.xlu0 %v165, 127
  %v890 = vpop.permute.xlu0 %889
  %891 = vrot.lane.b32.xlu0 %v166, 127
  %v892 = vpop.permute.xlu0 %891
  %893 = vrot.lane.b32.xlu0 %v167, 127
  %v894 = vpop.permute.xlu0 %893
  %895 = vrot.lane.b32.xlu0 %v168, 127
  %v896 = vpop.permute.xlu0 %895
  %vm897 = vcmp.lt.s32.totalorder %v380, 127
  %v898 = vsel %vm897, %v894, %v896
  %v899 = vsel %vm897, %v892, %v894
  %v900 = vsel %vm897, %v890, %v892
  %v901 = vsel %vm897, %v888, %v890
  %v902 = vsel %vm897, %v886, %v888
  %v903 = vsel %vm897, %v884, %v886
  %v904 = vsel %vm897, %v882, %v884
  %v905 = vsel %vm897, %v880, %v882
  %v906 = vsel %vm897, %v878, %v880
  %v907 = vsel %vm897, %v876, %v878
  %v908 = vsel %vm897, %v874, %v876
  %v909 = vsel %vm897, %v872, %v874
  %v910 = vsel %vm897, %v870, %v872
  %v911 = vsel %vm897, %v868, %v870
  %v912 = vsel %vm897, %v866, %v868
  %v913 = vsel %vm897, %v896, %v866
  %v914 = vlaneseq
  %v915 = vshrl.u32 %v914, 7
  %v916 = vsub.s32 5, %v915
  %v917 = vrot.slane %v185, %v916
  %v918 = vlaneseq
  %v919 = vshrl.u32 %v918, 7
  %v920 = vsub.s32 5, %v919
  %v921 = vrot.slane %v186, %v920
  %v922 = vlaneseq
  %v923 = vshrl.u32 %v922, 7
  %v924 = vsub.s32 5, %v923
  %v925 = vrot.slane %v187, %v924
  %v926 = vlaneseq
  %v927 = vshrl.u32 %v926, 7
  %v928 = vsub.s32 5, %v927
  %v929 = vrot.slane %v188, %v928
  %v930 = vlaneseq
  %v931 = vshrl.u32 %v930, 7
  %v932 = vsub.s32 5, %v931
  %v933 = vrot.slane %v189, %v932
  %v934 = vlaneseq
  %v935 = vshrl.u32 %v934, 7
  %v936 = vsub.s32 5, %v935
  %v937 = vrot.slane %v190, %v936
  %v938 = vlaneseq
  %v939 = vshrl.u32 %v938, 7
  %v940 = vsub.s32 5, %v939
  %v941 = vrot.slane %v191, %v940
  %v942 = vlaneseq
  %v943 = vshrl.u32 %v942, 7
  %v944 = vsub.s32 5, %v943
  %v945 = vrot.slane %v192, %v944
  %v946 = vlaneseq
  %v947 = vshrl.u32 %v946, 7
  %v948 = vsub.s32 5, %v947
  %v949 = vrot.slane %v193, %v948
  %v950 = vlaneseq
  %v951 = vshrl.u32 %v950, 7
  %v952 = vsub.s32 5, %v951
  %v953 = vrot.slane %v194, %v952
  %v954 = vlaneseq
  %v955 = vshrl.u32 %v954, 7
  %v956 = vsub.s32 5, %v955
  %v957 = vrot.slane %v195, %v956
  %v958 = vlaneseq
  %v959 = vshrl.u32 %v958, 7
  %v960 = vsub.s32 5, %v959
  %v961 = vrot.slane %v196, %v960
  %v962 = vlaneseq
  %v963 = vshrl.u32 %v962, 7
  %v964 = vsub.s32 5, %v963
  %v965 = vrot.slane %v197, %v964
  %v966 = vlaneseq
  %v967 = vshrl.u32 %v966, 7
  %v968 = vsub.s32 5, %v967
  %v969 = vrot.slane %v198, %v968
  %v970 = vlaneseq
  %v971 = vshrl.u32 %v970, 7
  %v972 = vsub.s32 5, %v971
  %v973 = vrot.slane %v199, %v972
  %v974 = vlaneseq
  %v975 = vshrl.u32 %v974, 7
  %v976 = vsub.s32 5, %v975
  %v977 = vrot.slane %v200, %v976
  %v978 = vmul.f32 %v912, %v917
  %v979 = vmul.f32 %v911, %v921
  %v980 = vmul.f32 %v910, %v925
  %v981 = vmul.f32 %v909, %v929
  %v982 = vmul.f32 %v908, %v933
  %v983 = vmul.f32 %v907, %v937
  %v984 = vmul.f32 %v906, %v941
  %v985 = vmul.f32 %v905, %v945
  %v986 = vmul.f32 %v904, %v949
  %v987 = vmul.f32 %v903, %v953
  %v988 = vmul.f32 %v902, %v957
  %v989 = vmul.f32 %v901, %v961
  %v990 = vmul.f32 %v900, %v965
  %v991 = vmul.f32 %v899, %v969
  %v992 = vmul.f32 %v898, %v973
  %v993 = vmul.f32 %v913, %v977
  %994 = vrot.lane.b32.xlu0 %v153, 97
  %v995 = vpop.permute.xlu0 %994
  %996 = vrot.lane.b32.xlu0 %v154, 97
  %v997 = vpop.permute.xlu0 %996
  %998 = vrot.lane.b32.xlu0 %v155, 97
  %v999 = vpop.permute.xlu0 %998
  %1000 = vrot.lane.b32.xlu0 %v156, 97
  %v1001 = vpop.permute.xlu0 %1000
  %1002 = vrot.lane.b32.xlu0 %v157, 97
  %v1003 = vpop.permute.xlu0 %1002
  %1004 = vrot.lane.b32.xlu0 %v158, 97
  %v1005 = vpop.permute.xlu0 %1004
  %1006 = vrot.lane.b32.xlu0 %v159, 97
  %v1007 = vpop.permute.xlu0 %1006
  %1008 = vrot.lane.b32.xlu0 %v160, 97
  %v1009 = vpop.permute.xlu0 %1008
  %1010 = vrot.lane.b32.xlu0 %v161, 97
  %v1011 = vpop.permute.xlu0 %1010
  %1012 = vrot.lane.b32.xlu0 %v162, 97
  %v1013 = vpop.permute.xlu0 %1012
  %1014 = vrot.lane.b32.xlu0 %v163, 97
  %v1015 = vpop.permute.xlu0 %1014
  %1016 = vrot.lane.b32.xlu0 %v164, 97
  %v1017 = vpop.permute.xlu0 %1016
  %1018 = vrot.lane.b32.xlu0 %v165, 97
  %v1019 = vpop.permute.xlu0 %1018
  %1020 = vrot.lane.b32.xlu0 %v166, 97
  %v1021 = vpop.permute.xlu0 %1020
  %1022 = vrot.lane.b32.xlu0 %v167, 97
  %v1023 = vpop.permute.xlu0 %1022
  %1024 = vrot.lane.b32.xlu0 %v168, 97
  %v1025 = vpop.permute.xlu0 %1024
  %vm1026 = vcmp.lt.s32.totalorder %v380, 97
  %v1027 = vsel %vm1026, %v1023, %v1025
  %v1028 = vsel %vm1026, %v1021, %v1023
  %v1029 = vsel %vm1026, %v1019, %v1021
  %v1030 = vsel %vm1026, %v1017, %v1019
  %v1031 = vsel %vm1026, %v1015, %v1017
  %v1032 = vsel %vm1026, %v1013, %v1015
  %v1033 = vsel %vm1026, %v1011, %v1013
  %v1034 = vsel %vm1026, %v1009, %v1011
  %v1035 = vsel %vm1026, %v1007, %v1009
  %v1036 = vsel %vm1026, %v1005, %v1007
  %v1037 = vsel %vm1026, %v1003, %v1005
  %v1038 = vsel %vm1026, %v1001, %v1003
  %v1039 = vsel %vm1026, %v999, %v1001
  %v1040 = vsel %vm1026, %v997, %v999
  %v1041 = vsel %vm1026, %v995, %v997
  %v1042 = vsel %vm1026, %v1025, %v995
  %v1043 = vlaneseq
  %v1044 = vshrl.u32 %v1043, 7
  %v1045 = vsub.s32 6, %v1044
  %v1046 = vrot.slane %v185, %v1045
  %v1047 = vlaneseq
  %v1048 = vshrl.u32 %v1047, 7
  %v1049 = vsub.s32 6, %v1048
  %v1050 = vrot.slane %v186, %v1049
  %v1051 = vlaneseq
  %v1052 = vshrl.u32 %v1051, 7
  %v1053 = vsub.s32 6, %v1052
  %v1054 = vrot.slane %v187, %v1053
  %v1055 = vlaneseq
  %v1056 = vshrl.u32 %v1055, 7
  %v1057 = vsub.s32 6, %v1056
  %v1058 = vrot.slane %v188, %v1057
  %v1059 = vlaneseq
  %v1060 = vshrl.u32 %v1059, 7
  %v1061 = vsub.s32 6, %v1060
  %v1062 = vrot.slane %v189, %v1061
  %v1063 = vlaneseq
  %v1064 = vshrl.u32 %v1063, 7
  %v1065 = vsub.s32 6, %v1064
  %v1066 = vrot.slane %v190, %v1065
  %v1067 = vlaneseq
  %v1068 = vshrl.u32 %v1067, 7
  %v1069 = vsub.s32 6, %v1068
  %v1070 = vrot.slane %v191, %v1069
  %v1071 = vlaneseq
  %v1072 = vshrl.u32 %v1071, 7
  %v1073 = vsub.s32 6, %v1072
  %v1074 = vrot.slane %v192, %v1073
  %v1075 = vlaneseq
  %v1076 = vshrl.u32 %v1075, 7
  %v1077 = vsub.s32 6, %v1076
  %v1078 = vrot.slane %v193, %v1077
  %v1079 = vlaneseq
  %v1080 = vshrl.u32 %v1079, 7
  %v1081 = vsub.s32 6, %v1080
  %v1082 = vrot.slane %v194, %v1081
  %v1083 = vlaneseq
  %v1084 = vshrl.u32 %v1083, 7
  %v1085 = vsub.s32 6, %v1084
  %v1086 = vrot.slane %v195, %v1085
  %v1087 = vlaneseq
  %v1088 = vshrl.u32 %v1087, 7
  %v1089 = vsub.s32 6, %v1088
  %v1090 = vrot.slane %v196, %v1089
  %v1091 = vlaneseq
  %v1092 = vshrl.u32 %v1091, 7
  %v1093 = vsub.s32 6, %v1092
  %v1094 = vrot.slane %v197, %v1093
  %v1095 = vlaneseq
  %v1096 = vshrl.u32 %v1095, 7
  %v1097 = vsub.s32 6, %v1096
  %v1098 = vrot.slane %v198, %v1097
  %v1099 = vlaneseq
  %v1100 = vshrl.u32 %v1099, 7
  %v1101 = vsub.s32 6, %v1100
  %v1102 = vrot.slane %v199, %v1101
  %v1103 = vlaneseq
  %v1104 = vshrl.u32 %v1103, 7
  %v1105 = vsub.s32 6, %v1104
  %v1106 = vrot.slane %v200, %v1105
  %v1107 = vmul.f32 %v1041, %v1046
  %v1108 = vmul.f32 %v1040, %v1050
  %v1109 = vmul.f32 %v1039, %v1054
  %v1110 = vmul.f32 %v1038, %v1058
  %v1111 = vmul.f32 %v1037, %v1062
  %v1112 = vmul.f32 %v1036, %v1066
  %v1113 = vmul.f32 %v1035, %v1070
  %v1114 = vmul.f32 %v1034, %v1074
  %v1115 = vmul.f32 %v1033, %v1078
  %v1116 = vmul.f32 %v1032, %v1082
  %v1117 = vmul.f32 %v1031, %v1086
  %v1118 = vmul.f32 %v1030, %v1090
  %v1119 = vmul.f32 %v1029, %v1094
  %v1120 = vmul.f32 %v1028, %v1098
  %v1121 = vmul.f32 %v1027, %v1102
  %v1122 = vmul.f32 %v1042, %v1106
  %1123 = vrot.lane.b32.xlu0 %v153, 96
  %v1124 = vpop.permute.xlu0 %1123
  %1125 = vrot.lane.b32.xlu0 %v154, 96
  %v1126 = vpop.permute.xlu0 %1125
  %1127 = vrot.lane.b32.xlu0 %v155, 96
  %v1128 = vpop.permute.xlu0 %1127
  %1129 = vrot.lane.b32.xlu0 %v156, 96
  %v1130 = vpop.permute.xlu0 %1129
  %1131 = vrot.lane.b32.xlu0 %v157, 96
  %v1132 = vpop.permute.xlu0 %1131
  %1133 = vrot.lane.b32.xlu0 %v158, 96
  %v1134 = vpop.permute.xlu0 %1133
  %1135 = vrot.lane.b32.xlu0 %v159, 96
  %v1136 = vpop.permute.xlu0 %1135
  %1137 = vrot.lane.b32.xlu0 %v160, 96
  %v1138 = vpop.permute.xlu0 %1137
  %1139 = vrot.lane.b32.xlu0 %v161, 96
  %v1140 = vpop.permute.xlu0 %1139
  %1141 = vrot.lane.b32.xlu0 %v162, 96
  %v1142 = vpop.permute.xlu0 %1141
  %1143 = vrot.lane.b32.xlu0 %v163, 96
  %v1144 = vpop.permute.xlu0 %1143
  %1145 = vrot.lane.b32.xlu0 %v164, 96
  %v1146 = vpop.permute.xlu0 %1145
  %1147 = vrot.lane.b32.xlu0 %v165, 96
  %v1148 = vpop.permute.xlu0 %1147
  %1149 = vrot.lane.b32.xlu0 %v166, 96
  %v1150 = vpop.permute.xlu0 %1149
  %1151 = vrot.lane.b32.xlu0 %v167, 96
  %v1152 = vpop.permute.xlu0 %1151
  %1153 = vrot.lane.b32.xlu0 %v168, 96
  %v1154 = vpop.permute.xlu0 %1153
  %vm1155 = vcmp.lt.s32.totalorder %v380, 96
  %v1156 = vsel %vm1155, %v1152, %v1154
  %v1157 = vsel %vm1155, %v1150, %v1152
  %v1158 = vsel %vm1155, %v1148, %v1150
  %v1159 = vsel %vm1155, %v1146, %v1148
  %v1160 = vsel %vm1155, %v1144, %v1146
  %v1161 = vsel %vm1155, %v1142, %v1144
  %v1162 = vsel %vm1155, %v1140, %v1142
  %v1163 = vsel %vm1155, %v1138, %v1140
  %v1164 = vsel %vm1155, %v1136, %v1138
  %v1165 = vsel %vm1155, %v1134, %v1136
  %v1166 = vsel %vm1155, %v1132, %v1134
  %v1167 = vsel %vm1155, %v1130, %v1132
  %v1168 = vsel %vm1155, %v1128, %v1130
  %v1169 = vsel %vm1155, %v1126, %v1128
  %v1170 = vsel %vm1155, %v1124, %v1126
  %v1171 = vsel %vm1155, %v1154, %v1124
  %v1172 = vlaneseq
  %v1173 = vshrl.u32 %v1172, 7
  %v1174 = vsub.s32 7, %v1173
  %v1175 = vrot.slane %v185, %v1174
  %v1176 = vlaneseq
  %v1177 = vshrl.u32 %v1176, 7
  %v1178 = vsub.s32 7, %v1177
  %v1179 = vrot.slane %v186, %v1178
  %v1180 = vlaneseq
  %v1181 = vshrl.u32 %v1180, 7
  %v1182 = vsub.s32 7, %v1181
  %v1183 = vrot.slane %v187, %v1182
  %v1184 = vlaneseq
  %v1185 = vshrl.u32 %v1184, 7
  %v1186 = vsub.s32 7, %v1185
  %v1187 = vrot.slane %v188, %v1186
  %v1188 = vlaneseq
  %v1189 = vshrl.u32 %v1188, 7
  %v1190 = vsub.s32 7, %v1189
  %v1191 = vrot.slane %v189, %v1190
  %v1192 = vlaneseq
  %v1193 = vshrl.u32 %v1192, 7
  %v1194 = vsub.s32 7, %v1193
  %v1195 = vrot.slane %v190, %v1194
  %v1196 = vlaneseq
  %v1197 = vshrl.u32 %v1196, 7
  %v1198 = vsub.s32 7, %v1197
  %v1199 = vrot.slane %v191, %v1198
  %v1200 = vlaneseq
  %v1201 = vshrl.u32 %v1200, 7
  %v1202 = vsub.s32 7, %v1201
  %v1203 = vrot.slane %v192, %v1202
  %v1204 = vlaneseq
  %v1205 = vshrl.u32 %v1204, 7
  %v1206 = vsub.s32 7, %v1205
  %v1207 = vrot.slane %v193, %v1206
  %v1208 = vlaneseq
  %v1209 = vshrl.u32 %v1208, 7
  %v1210 = vsub.s32 7, %v1209
  %v1211 = vrot.slane %v194, %v1210
  %v1212 = vlaneseq
  %v1213 = vshrl.u32 %v1212, 7
  %v1214 = vsub.s32 7, %v1213
  %v1215 = vrot.slane %v195, %v1214
  %v1216 = vlaneseq
  %v1217 = vshrl.u32 %v1216, 7
  %v1218 = vsub.s32 7, %v1217
  %v1219 = vrot.slane %v196, %v1218
  %v1220 = vlaneseq
  %v1221 = vshrl.u32 %v1220, 7
  %v1222 = vsub.s32 7, %v1221
  %v1223 = vrot.slane %v197, %v1222
  %v1224 = vlaneseq
  %v1225 = vshrl.u32 %v1224, 7
  %v1226 = vsub.s32 7, %v1225
  %v1227 = vrot.slane %v198, %v1226
  %v1228 = vlaneseq
  %v1229 = vshrl.u32 %v1228, 7
  %v1230 = vsub.s32 7, %v1229
  %v1231 = vrot.slane %v199, %v1230
  %v1232 = vlaneseq
  %v1233 = vshrl.u32 %v1232, 7
  %v1234 = vsub.s32 7, %v1233
  %v1235 = vrot.slane %v200, %v1234
  %v1236 = vmul.f32 %v1170, %v1175
  %v1237 = vmul.f32 %v1169, %v1179
  %v1238 = vmul.f32 %v1168, %v1183
  %v1239 = vmul.f32 %v1167, %v1187
  %v1240 = vmul.f32 %v1166, %v1191
  %v1241 = vmul.f32 %v1165, %v1195
  %v1242 = vmul.f32 %v1164, %v1199
  %v1243 = vmul.f32 %v1163, %v1203
  %v1244 = vmul.f32 %v1162, %v1207
  %v1245 = vmul.f32 %v1161, %v1211
  %v1246 = vmul.f32 %v1160, %v1215
  %v1247 = vmul.f32 %v1159, %v1219
  %v1248 = vmul.f32 %v1158, %v1223
  %v1249 = vmul.f32 %v1157, %v1227
  %v1250 = vmul.f32 %v1156, %v1231
  %v1251 = vmul.f32 %v1171, %v1235
  %1252 = vrot.lane.b32.xlu0 %v153, 95
  %v1253 = vpop.permute.xlu0 %1252
  %1254 = vrot.lane.b32.xlu0 %v154, 95
  %v1255 = vpop.permute.xlu0 %1254
  %1256 = vrot.lane.b32.xlu0 %v155, 95
  %v1257 = vpop.permute.xlu0 %1256
  %1258 = vrot.lane.b32.xlu0 %v156, 95
  %v1259 = vpop.permute.xlu0 %1258
  %1260 = vrot.lane.b32.xlu0 %v157, 95
  %v1261 = vpop.permute.xlu0 %1260
  %1262 = vrot.lane.b32.xlu0 %v158, 95
  %v1263 = vpop.permute.xlu0 %1262
  %1264 = vrot.lane.b32.xlu0 %v159, 95
  %v1265 = vpop.permute.xlu0 %1264
  %1266 = vrot.lane.b32.xlu0 %v160, 95
  %v1267 = vpop.permute.xlu0 %1266
  %1268 = vrot.lane.b32.xlu0 %v161, 95
  %v1269 = vpop.permute.xlu0 %1268
  %1270 = vrot.lane.b32.xlu0 %v162, 95
  %v1271 = vpop.permute.xlu0 %1270
  %1272 = vrot.lane.b32.xlu0 %v163, 95
  %v1273 = vpop.permute.xlu0 %1272
  %1274 = vrot.lane.b32.xlu0 %v164, 95
  %v1275 = vpop.permute.xlu0 %1274
  %1276 = vrot.lane.b32.xlu0 %v165, 95
  %v1277 = vpop.permute.xlu0 %1276
  %1278 = vrot.lane.b32.xlu0 %v166, 95
  %v1279 = vpop.permute.xlu0 %1278
  %1280 = vrot.lane.b32.xlu0 %v167, 95
  %v1281 = vpop.permute.xlu0 %1280
  %1282 = vrot.lane.b32.xlu0 %v168, 95
  %v1283 = vpop.permute.xlu0 %1282
  %vm1284 = vcmp.lt.s32.totalorder %v380, 95
  %v1285 = vsel %vm1284, %v1281, %v1283
  %v1286 = vsel %vm1284, %v1279, %v1281
  %v1287 = vsel %vm1284, %v1277, %v1279
  %v1288 = vsel %vm1284, %v1275, %v1277
  %v1289 = vsel %vm1284, %v1273, %v1275
  %v1290 = vsel %vm1284, %v1271, %v1273
  %v1291 = vsel %vm1284, %v1269, %v1271
  %v1292 = vsel %vm1284, %v1267, %v1269
  %v1293 = vsel %vm1284, %v1265, %v1267
  %v1294 = vsel %vm1284, %v1263, %v1265
  %v1295 = vsel %vm1284, %v1261, %v1263
  %v1296 = vsel %vm1284, %v1259, %v1261
  %v1297 = vsel %vm1284, %v1257, %v1259
  %v1298 = vsel %vm1284, %v1255, %v1257
  %v1299 = vsel %vm1284, %v1253, %v1255
  %v1300 = vsel %vm1284, %v1283, %v1253
  %v1301 = vlaneseq
  %v1302 = vshrl.u32 %v1301, 7
  %v1303 = vsub.s32 0, %v1302
  %v1304 = vrot.slane %v201, %v1303
  %v1305 = vlaneseq
  %v1306 = vshrl.u32 %v1305, 7
  %v1307 = vsub.s32 0, %v1306
  %v1308 = vrot.slane %v202, %v1307
  %v1309 = vlaneseq
  %v1310 = vshrl.u32 %v1309, 7
  %v1311 = vsub.s32 0, %v1310
  %v1312 = vrot.slane %v203, %v1311
  %v1313 = vlaneseq
  %v1314 = vshrl.u32 %v1313, 7
  %v1315 = vsub.s32 0, %v1314
  %v1316 = vrot.slane %v204, %v1315
  %v1317 = vlaneseq
  %v1318 = vshrl.u32 %v1317, 7
  %v1319 = vsub.s32 0, %v1318
  %v1320 = vrot.slane %v205, %v1319
  %v1321 = vlaneseq
  %v1322 = vshrl.u32 %v1321, 7
  %v1323 = vsub.s32 0, %v1322
  %v1324 = vrot.slane %v206, %v1323
  %v1325 = vlaneseq
  %v1326 = vshrl.u32 %v1325, 7
  %v1327 = vsub.s32 0, %v1326
  %v1328 = vrot.slane %v207, %v1327
  %v1329 = vlaneseq
  %v1330 = vshrl.u32 %v1329, 7
  %v1331 = vsub.s32 0, %v1330
  %v1332 = vrot.slane %v208, %v1331
  %v1333 = vlaneseq
  %v1334 = vshrl.u32 %v1333, 7
  %v1335 = vsub.s32 0, %v1334
  %v1336 = vrot.slane %v209, %v1335
  %v1337 = vlaneseq
  %v1338 = vshrl.u32 %v1337, 7
  %v1339 = vsub.s32 0, %v1338
  %v1340 = vrot.slane %v210, %v1339
  %v1341 = vlaneseq
  %v1342 = vshrl.u32 %v1341, 7
  %v1343 = vsub.s32 0, %v1342
  %v1344 = vrot.slane %v211, %v1343
  %v1345 = vlaneseq
  %v1346 = vshrl.u32 %v1345, 7
  %v1347 = vsub.s32 0, %v1346
  %v1348 = vrot.slane %v212, %v1347
  %v1349 = vlaneseq
  %v1350 = vshrl.u32 %v1349, 7
  %v1351 = vsub.s32 0, %v1350
  %v1352 = vrot.slane %v213, %v1351
  %v1353 = vlaneseq
  %v1354 = vshrl.u32 %v1353, 7
  %v1355 = vsub.s32 0, %v1354
  %v1356 = vrot.slane %v214, %v1355
  %v1357 = vlaneseq
  %v1358 = vshrl.u32 %v1357, 7
  %v1359 = vsub.s32 0, %v1358
  %v1360 = vrot.slane %v215, %v1359
  %v1361 = vlaneseq
  %v1362 = vshrl.u32 %v1361, 7
  %v1363 = vsub.s32 0, %v1362
  %v1364 = vrot.slane %v216, %v1363
  %v1365 = vmul.f32 %v1299, %v1304
  %v1366 = vmul.f32 %v1298, %v1308
  %v1367 = vmul.f32 %v1297, %v1312
  %v1368 = vmul.f32 %v1296, %v1316
  %v1369 = vmul.f32 %v1295, %v1320
  %v1370 = vmul.f32 %v1294, %v1324
  %v1371 = vmul.f32 %v1293, %v1328
  %v1372 = vmul.f32 %v1292, %v1332
  %v1373 = vmul.f32 %v1291, %v1336
  %v1374 = vmul.f32 %v1290, %v1340
  %v1375 = vmul.f32 %v1289, %v1344
  %v1376 = vmul.f32 %v1288, %v1348
  %v1377 = vmul.f32 %v1287, %v1352
  %v1378 = vmul.f32 %v1286, %v1356
  %v1379 = vmul.f32 %v1285, %v1360
  %v1380 = vmul.f32 %v1300, %v1364
  %v1381 = vpack.c.bf16 %v591, %v462
  %v1382 = vpack.c.bf16 %v592, %v463
  %v1383 = vpack.c.bf16 %v593, %v464
  %v1384 = vpack.c.bf16 %v594, %v465
  %v1385 = vpack.c.bf16 %v595, %v466
  %v1386 = vpack.c.bf16 %v596, %v467
  %v1387 = vpack.c.bf16 %v597, %v468
  %v1388 = vpack.c.bf16 %v598, %v469
  %v1389 = vpack.c.bf16 %v599, %v470
  %v1390 = vpack.c.bf16 %v600, %v471
  %v1391 = vpack.c.bf16 %v601, %v472
  %v1392 = vpack.c.bf16 %v602, %v473
  %v1393 = vpack.c.bf16 %v603, %v474
  %v1394 = vpack.c.bf16 %v604, %v475
  %v1395 = vpack.c.bf16 %v605, %v476
  %v1396 = vpack.c.bf16 %v606, %v477
  %v1397 = vpack.c.bf16 %v849, %v720
  %v1398 = vpack.c.bf16 %v850, %v721
  %v1399 = vpack.c.bf16 %v851, %v722
  %v1400 = vpack.c.bf16 %v852, %v723
  %v1401 = vpack.c.bf16 %v853, %v724
  %v1402 = vpack.c.bf16 %v854, %v725
  %v1403 = vpack.c.bf16 %v855, %v726
  %v1404 = vpack.c.bf16 %v856, %v727
  %v1405 = vpack.c.bf16 %v857, %v728
  %v1406 = vpack.c.bf16 %v858, %v729
  %v1407 = vpack.c.bf16 %v859, %v730
  %v1408 = vpack.c.bf16 %v860, %v731
  %v1409 = vpack.c.bf16 %v861, %v732
  %v1410 = vpack.c.bf16 %v862, %v733
  %v1411 = vpack.c.bf16 %v863, %v734
  %v1412 = vpack.c.bf16 %v864, %v735
  %v1413 = vpack.c.bf16 %v978, %v153
  %v1414 = vpack.c.bf16 %v979, %v154
  %v1415 = vpack.c.bf16 %v980, %v155
  %v1416 = vpack.c.bf16 %v981, %v156
  %v1417 = vpack.c.bf16 %v982, %v157
  %v1418 = vpack.c.bf16 %v983, %v158
  %v1419 = vpack.c.bf16 %v984, %v159
  %v1420 = vpack.c.bf16 %v985, %v160
  %v1421 = vpack.c.bf16 %v986, %v161
  %v1422 = vpack.c.bf16 %v987, %v162
  %v1423 = vpack.c.bf16 %v988, %v163
  %v1424 = vpack.c.bf16 %v989, %v164
  %v1425 = vpack.c.bf16 %v990, %v165
  %v1426 = vpack.c.bf16 %v991, %v166
  %v1427 = vpack.c.bf16 %v992, %v167
  %v1428 = vpack.c.bf16 %v993, %v168
  %v1429 = vpack.c.bf16 %v1236, %v1107
  %v1430 = vpack.c.bf16 %v1237, %v1108
  %v1431 = vpack.c.bf16 %v1238, %v1109
  %v1432 = vpack.c.bf16 %v1239, %v1110
  %v1433 = vpack.c.bf16 %v1240, %v1111
  %v1434 = vpack.c.bf16 %v1241, %v1112
  %v1435 = vpack.c.bf16 %v1242, %v1113
  %v1436 = vpack.c.bf16 %v1243, %v1114
  %v1437 = vpack.c.bf16 %v1244, %v1115
  %v1438 = vpack.c.bf16 %v1245, %v1116
  %v1439 = vpack.c.bf16 %v1246, %v1117
  %v1440 = vpack.c.bf16 %v1247, %v1118
  %v1441 = vpack.c.bf16 %v1248, %v1119
  %v1442 = vpack.c.bf16 %v1249, %v1120
  %v1443 = vpack.c.bf16 %v1250, %v1121
  %v1444 = vpack.c.bf16 %v1251, %v1122
  %v1445 = vpack.c.bf16 %v1365, %v1365
  %v1446 = vpack.c.bf16 %v1366, %v1366
  %v1447 = vpack.c.bf16 %v1367, %v1367
  %v1448 = vpack.c.bf16 %v1368, %v1368
  %v1449 = vpack.c.bf16 %v1369, %v1369
  %v1450 = vpack.c.bf16 %v1370, %v1370
  %v1451 = vpack.c.bf16 %v1371, %v1371
  %v1452 = vpack.c.bf16 %v1372, %v1372
  %v1453 = vpack.c.bf16 %v1373, %v1373
  %v1454 = vpack.c.bf16 %v1374, %v1374
  %v1455 = vpack.c.bf16 %v1375, %v1375
  %v1456 = vpack.c.bf16 %v1376, %v1376
  %v1457 = vpack.c.bf16 %v1377, %v1377
  %v1458 = vpack.c.bf16 %v1378, %v1378
  %v1459 = vpack.c.bf16 %v1379, %v1379
  %v1460 = vpack.c.bf16 %v1380, %v1380
  %1462 = vset.pattern.permute.xlu0 0
  %1463 = vperm.xlu0 %1462, %v346
  %v1464 = vpop.permute.xlu0 %1463
  %vm1466 = vcmask 588800
  %v1468 = vsel %vm1466, %v345, 0
  %vm1470 = vcmask 1043456
  %v1472 = vsel %vm1470, %v1445, 0
  %v1475 = vsel %vm1470, %v1446, 0
  %v1478 = vsel %vm1470, %v1447, 0
  %v1481 = vsel %vm1470, %v1448, 0
  %v1484 = vsel %vm1470, %v1449, 0
  %v1487 = vsel %vm1470, %v1450, 0
  %v1490 = vsel %vm1470, %v1451, 0
  %v1493 = vsel %vm1470, %v1452, 0
  %v1496 = vsel %vm1470, %v1453, 0
  %v1499 = vsel %vm1470, %v1454, 0
  %v1502 = vsel %vm1470, %v1455, 0
  %v1505 = vsel %vm1470, %v1456, 0
  %v1508 = vsel %vm1470, %v1457, 0
  %v1511 = vsel %vm1470, %v1458, 0
  %v1514 = vsel %vm1470, %v1459, 0
  %v1517 = vsel %vm1470, %v1460, 0
  %1519 = vmatprep.subr.bf16.mxu0 %v1382
  %1520 = vmatpush1.bf16.msra.mxu0 %v1381
  %1521 = vmatprep.subr.bf16.mxu0 %v1398
  %1522 = vmatpush1.bf16.msra.mxu0 %v1397
  %1523 = vmatprep.subr.bf16.mxu0 %v1414
  %1524 = vmatpush1.bf16.msra.mxu0 %v1413
  %1525 = vmatprep.subr.bf16.mxu0 %v1430
  %1526 = vmatpush1.bf16.msra.mxu0 %v1429
  %1527 = vmatprep.subr.bf16.mxu0 %v1475
  %1528 = vmatpush1.bf16.msra.mxu0 %v1472
  %1529 = vmatprep.subr.bf16.mxu0 0
  %1530 = vmatpush1.bf16.msra.mxu0 0
  %1531 = vmatprep.subr.bf16.mxu0 0
  %1532 = vmatpush1.bf16.msra.mxu0 0
  %1533 = vmatprep.subr.bf16.mxu0 0
  %1534 = vmatpush1.bf16.msra.mxu0 0
  %1535 = vmatprep.subr.bf16.mxu0 0
  %1536 = vmatpush1.bf16.msra.mxu0 0
  %1537 = vmatprep.subr.bf16.mxu0 0
  %1538 = vmatpush1.bf16.msra.mxu0 0
  %1539 = vmatprep.subr.bf16.mxu0 0
  %1540 = vmatpush1.bf16.msra.mxu0 0
  %1541 = vmatprep.subr.bf16.mxu0 0
  %1542 = vmatpush1.bf16.msra.mxu0 0
  %1543 = vmatprep.subr.bf16.mxu0 0
  %1544 = vmatpush1.bf16.msra.mxu0 0
  %1545 = vmatprep.subr.bf16.mxu0 0
  %1546 = vmatpush1.bf16.msra.mxu0 0
  %1547 = vmatprep.subr.bf16.mxu0 0
  %1548 = vmatpush1.bf16.msra.mxu0 0
  %1549 = vmatprep.subr.bf16.mxu0 0
  %1550 = vmatpush1.bf16.msra.mxu0 0
  %1551 = vmatprep.mubr.bf16.mxu0 0
  %1552 = vmatmul.mubr.bf16.gmra.mrb[0].mxu0 %v1468
  %v1553 = vpop.f32.mrb[0].mxu0
  %v1554 = vadd.f32 %v1464, %v1553
  %v1555 = vpop.f32.mrb[0].mxu0
  %v1556 = vadd.f32 %v1464, %v1555
  %v1557 = vpop.f32.mrb[0].mxu0
  %v1558 = vpop.f32.mrb[0].mxu0
  %1559 = vdwg.mxu0
  %1560 = vmatprep.subr.bf16.mxu0 %v1384
  %1561 = vmatpush1.bf16.msra.mxu0 %v1383
  %1562 = vmatprep.subr.bf16.mxu0 %v1400
  %1563 = vmatpush1.bf16.msra.mxu0 %v1399
  %1564 = vmatprep.subr.bf16.mxu0 %v1416
  %1565 = vmatpush1.bf16.msra.mxu0 %v1415
  %1566 = vmatprep.subr.bf16.mxu0 %v1432
  %1567 = vmatpush1.bf16.msra.mxu0 %v1431
  %1568 = vmatprep.subr.bf16.mxu0 %v1481
  %1569 = vmatpush1.bf16.msra.mxu0 %v1478
  %1570 = vmatprep.subr.bf16.mxu0 0
  %1571 = vmatpush1.bf16.msra.mxu0 0
  %1572 = vmatprep.subr.bf16.mxu0 0
  %1573 = vmatpush1.bf16.msra.mxu0 0
  %1574 = vmatprep.subr.bf16.mxu0 0
  %1575 = vmatpush1.bf16.msra.mxu0 0
  %1576 = vmatprep.subr.bf16.mxu0 0
  %1577 = vmatpush1.bf16.msra.mxu0 0
  %1578 = vmatprep.subr.bf16.mxu0 0
  %1579 = vmatpush1.bf16.msra.mxu0 0
  %1580 = vmatprep.subr.bf16.mxu0 0
  %1581 = vmatpush1.bf16.msra.mxu0 0
  %1582 = vmatprep.subr.bf16.mxu0 0
  %1583 = vmatpush1.bf16.msra.mxu0 0
  %1584 = vmatprep.subr.bf16.mxu0 0
  %1585 = vmatpush1.bf16.msra.mxu0 0
  %1586 = vmatprep.subr.bf16.mxu0 0
  %1587 = vmatpush1.bf16.msra.mxu0 0
  %1588 = vmatprep.subr.bf16.mxu0 0
  %1589 = vmatpush1.bf16.msra.mxu0 0
  %1590 = vmatprep.subr.bf16.mxu0 0
  %1591 = vmatpush1.bf16.msra.mxu0 0
  %1592 = vmatprep.mubr.bf16.mxu0 0
  %1593 = vmatmul.mubr.bf16.gmra.mrb[0].mxu0 %v1468
  %v1594 = vpop.f32.mrb[0].mxu0
  %v1595 = vadd.f32 %v1464, %v1594
  %v1596 = vpop.f32.mrb[0].mxu0
  %v1597 = vadd.f32 %v1464, %v1596
  %v1598 = vpop.f32.mrb[0].mxu0
  %v1599 = vpop.f32.mrb[0].mxu0
  %1600 = vdwg.mxu0
  %1601 = vmatprep.subr.bf16.mxu0 %v1386
  %1602 = vmatpush1.bf16.msra.mxu0 %v1385
  %1603 = vmatprep.subr.bf16.mxu0 %v1402
  %1604 = vmatpush1.bf16.msra.mxu0 %v1401
  %1605 = vmatprep.subr.bf16.mxu0 %v1418
  %1606 = vmatpush1.bf16.msra.mxu0 %v1417
  %1607 = vmatprep.subr.bf16.mxu0 %v1434
  %1608 = vmatpush1.bf16.msra.mxu0 %v1433
  %1609 = vmatprep.subr.bf16.mxu0 %v1487
  %1610 = vmatpush1.bf16.msra.mxu0 %v1484
  %1611 = vmatprep.subr.bf16.mxu0 0
  %1612 = vmatpush1.bf16.msra.mxu0 0
  %1613 = vmatprep.subr.bf16.mxu0 0
  %1614 = vmatpush1.bf16.msra.mxu0 0
  %1615 = vmatprep.subr.bf16.mxu0 0
  %1616 = vmatpush1.bf16.msra.mxu0 0
  %1617 = vmatprep.subr.bf16.mxu0 0
  %1618 = vmatpush1.bf16.msra.mxu0 0
  %1619 = vmatprep.subr.bf16.mxu0 0
  %1620 = vmatpush1.bf16.msra.mxu0 0
  %1621 = vmatprep.subr.bf16.mxu0 0
  %1622 = vmatpush1.bf16.msra.mxu0 0
  %1623 = vmatprep.subr.bf16.mxu0 0
  %1624 = vmatpush1.bf16.msra.mxu0 0
  %1625 = vmatprep.subr.bf16.mxu0 0
  %1626 = vmatpush1.bf16.msra.mxu0 0
  %1627 = vmatprep.subr.bf16.mxu0 0
  %1628 = vmatpush1.bf16.msra.mxu0 0
  %1629 = vmatprep.subr.bf16.mxu0 0
  %1630 = vmatpush1.bf16.msra.mxu0 0
  %1631 = vmatprep.subr.bf16.mxu0 0
  %1632 = vmatpush1.bf16.msra.mxu0 0
  %1633 = vmatprep.mubr.bf16.mxu0 0
  %1634 = vmatmul.mubr.bf16.gmra.mrb[0].mxu0 %v1468
  %v1635 = vpop.f32.mrb[0].mxu0
  %v1636 = vadd.f32 %v1464, %v1635
  %v1637 = vpop.f32.mrb[0].mxu0
  %v1638 = vadd.f32 %v1464, %v1637
  %v1639 = vpop.f32.mrb[0].mxu0
  %v1640 = vpop.f32.mrb[0].mxu0
  %1641 = vdwg.mxu0
  %1642 = vmatprep.subr.bf16.mxu0 %v1388
  %1643 = vmatpush1.bf16.msra.mxu0 %v1387
  %1644 = vmatprep.subr.bf16.mxu0 %v1404
  %1645 = vmatpush1.bf16.msra.mxu0 %v1403
  %1646 = vmatprep.subr.bf16.mxu0 %v1420
  %1647 = vmatpush1.bf16.msra.mxu0 %v1419
  %1648 = vmatprep.subr.bf16.mxu0 %v1436
  %1649 = vmatpush1.bf16.msra.mxu0 %v1435
  %1650 = vmatprep.subr.bf16.mxu0 %v1493
  %1651 = vmatpush1.bf16.msra.mxu0 %v1490
  %1652 = vmatprep.subr.bf16.mxu0 0
  %1653 = vmatpush1.bf16.msra.mxu0 0
  %1654 = vmatprep.subr.bf16.mxu0 0
  %1655 = vmatpush1.bf16.msra.mxu0 0
  %1656 = vmatprep.subr.bf16.mxu0 0
  %1657 = vmatpush1.bf16.msra.mxu0 0
  %1658 = vmatprep.subr.bf16.mxu0 0
  %1659 = vmatpush1.bf16.msra.mxu0 0
  %1660 = vmatprep.subr.bf16.mxu0 0
  %1661 = vmatpush1.bf16.msra.mxu0 0
  %1662 = vmatprep.subr.bf16.mxu0 0
  %1663 = vmatpush1.bf16.msra.mxu0 0
  %1664 = vmatprep.subr.bf16.mxu0 0
  %1665 = vmatpush1.bf16.msra.mxu0 0
  %1666 = vmatprep.subr.bf16.mxu0 0
  %1667 = vmatpush1.bf16.msra.mxu0 0
  %1668 = vmatprep.subr.bf16.mxu0 0
  %1669 = vmatpush1.bf16.msra.mxu0 0
  %1670 = vmatprep.subr.bf16.mxu0 0
  %1671 = vmatpush1.bf16.msra.mxu0 0
  %1672 = vmatprep.subr.bf16.mxu0 0
  %1673 = vmatpush1.bf16.msra.mxu0 0
  %1674 = vmatprep.mubr.bf16.mxu0 0
  %1675 = vmatmul.mubr.bf16.gmra.mrb[0].mxu0 %v1468
  %v1676 = vpop.f32.mrb[0].mxu0
  %v1677 = vadd.f32 %v1464, %v1676
  %v1678 = vpop.f32.mrb[0].mxu0
  %v1679 = vadd.f32 %v1464, %v1678
  %v1680 = vpop.f32.mrb[0].mxu0
  %v1681 = vpop.f32.mrb[0].mxu0
  %1682 = vdwg.mxu0
  %1683 = vmatprep.subr.bf16.mxu0 %v1390
  %1684 = vmatpush1.bf16.msra.mxu0 %v1389
  %1685 = vmatprep.subr.bf16.mxu0 %v1406
  %1686 = vmatpush1.bf16.msra.mxu0 %v1405
  %1687 = vmatprep.subr.bf16.mxu0 %v1422
  %1688 = vmatpush1.bf16.msra.mxu0 %v1421
  %1689 = vmatprep.subr.bf16.mxu0 %v1438
  %1690 = vmatpush1.bf16.msra.mxu0 %v1437
  %1691 = vmatprep.subr.bf16.mxu0 %v1499
  %1692 = vmatpush1.bf16.msra.mxu0 %v1496
  %1693 = vmatprep.subr.bf16.mxu0 0
  %1694 = vmatpush1.bf16.msra.mxu0 0
  %1695 = vmatprep.subr.bf16.mxu0 0
  %1696 = vmatpush1.bf16.msra.mxu0 0
  %1697 = vmatprep.subr.bf16.mxu0 0
  %1698 = vmatpush1.bf16.msra.mxu0 0
  %1699 = vmatprep.subr.bf16.mxu0 0
  %1700 = vmatpush1.bf16.msra.mxu0 0
  %1701 = vmatprep.subr.bf16.mxu0 0
  %1702 = vmatpush1.bf16.msra.mxu0 0
  %1703 = vmatprep.subr.bf16.mxu0 0
  %1704 = vmatpush1.bf16.msra.mxu0 0
  %1705 = vmatprep.subr.bf16.mxu0 0
  %1706 = vmatpush1.bf16.msra.mxu0 0
  %1707 = vmatprep.subr.bf16.mxu0 0
  %1708 = vmatpush1.bf16.msra.mxu0 0
  %1709 = vmatprep.subr.bf16.mxu0 0
  %1710 = vmatpush1.bf16.msra.mxu0 0
  %1711 = vmatprep.subr.bf16.mxu0 0
  %1712 = vmatpush1.bf16.msra.mxu0 0
  %1713 = vmatprep.subr.bf16.mxu0 0
  %1714 = vmatpush1.bf16.msra.mxu0 0
  %1715 = vmatprep.mubr.bf16.mxu0 0
  %1716 = vmatmul.mubr.bf16.gmra.mrb[0].mxu0 %v1468
  %v1717 = vpop.f32.mrb[0].mxu0
  %v1718 = vadd.f32 %v1464, %v1717
  %v1719 = vpop.f32.mrb[0].mxu0
  %v1720 = vadd.f32 %v1464, %v1719
  %v1721 = vpop.f32.mrb[0].mxu0
  %v1722 = vpop.f32.mrb[0].mxu0
  %1723 = vdwg.mxu0
  %1724 = vmatprep.subr.bf16.mxu0 %v1392
  %1725 = vmatpush1.bf16.msra.mxu0 %v1391
  %1726 = vmatprep.subr.bf16.mxu0 %v1408
  %1727 = vmatpush1.bf16.msra.mxu0 %v1407
  %1728 = vmatprep.subr.bf16.mxu0 %v1424
  %1729 = vmatpush1.bf16.msra.mxu0 %v1423
  %1730 = vmatprep.subr.bf16.mxu0 %v1440
  %1731 = vmatpush1.bf16.msra.mxu0 %v1439
  %1732 = vmatprep.subr.bf16.mxu0 %v1505
  %1733 = vmatpush1.bf16.msra.mxu0 %v1502
  %1734 = vmatprep.subr.bf16.mxu0 0
  %1735 = vmatpush1.bf16.msra.mxu0 0
  %1736 = vmatprep.subr.bf16.mxu0 0
  %1737 = vmatpush1.bf16.msra.mxu0 0
  %1738 = vmatprep.subr.bf16.mxu0 0
  %1739 = vmatpush1.bf16.msra.mxu0 0
  %1740 = vmatprep.subr.bf16.mxu0 0
  %1741 = vmatpush1.bf16.msra.mxu0 0
  %1742 = vmatprep.subr.bf16.mxu0 0
  %1743 = vmatpush1.bf16.msra.mxu0 0
  %1744 = vmatprep.subr.bf16.mxu0 0
  %1745 = vmatpush1.bf16.msra.mxu0 0
  %1746 = vmatprep.subr.bf16.mxu0 0
  %1747 = vmatpush1.bf16.msra.mxu0 0
  %1748 = vmatprep.subr.bf16.mxu0 0
  %1749 = vmatpush1.bf16.msra.mxu0 0
  %1750 = vmatprep.subr.bf16.mxu0 0
  %1751 = vmatpush1.bf16.msra.mxu0 0
  %1752 = vmatprep.subr.bf16.mxu0 0
  %1753 = vmatpush1.bf16.msra.mxu0 0
  %1754 = vmatprep.subr.bf16.mxu0 0
  %1755 = vmatpush1.bf16.msra.mxu0 0
  %1756 = vmatprep.mubr.bf16.mxu0 0
  %1757 = vmatmul.mubr.bf16.gmra.mrb[0].mxu0 %v1468
  %v1758 = vpop.f32.mrb[0].mxu0
  %v1759 = vadd.f32 %v1464, %v1758
  %v1760 = vpop.f32.mrb[0].mxu0
  %v1761 = vadd.f32 %v1464, %v1760
  %v1762 = vpop.f32.mrb[0].mxu0
  %v1763 = vpop.f32.mrb[0].mxu0
  %1764 = vdwg.mxu0
  %1765 = vmatprep.subr.bf16.mxu0 %v1394
  %1766 = vmatpush1.bf16.msra.mxu0 %v1393
  %1767 = vmatprep.subr.bf16.mxu0 %v1410
  %1768 = vmatpush1.bf16.msra.mxu0 %v1409
  %1769 = vmatprep.subr.bf16.mxu0 %v1426
  %1770 = vmatpush1.bf16.msra.mxu0 %v1425
  %1771 = vmatprep.subr.bf16.mxu0 %v1442
  %1772 = vmatpush1.bf16.msra.mxu0 %v1441
  %1773 = vmatprep.subr.bf16.mxu0 %v1511
  %1774 = vmatpush1.bf16.msra.mxu0 %v1508
  %1775 = vmatprep.subr.bf16.mxu0 0
  %1776 = vmatpush1.bf16.msra.mxu0 0
  %1777 = vmatprep.subr.bf16.mxu0 0
  %1778 = vmatpush1.bf16.msra.mxu0 0
  %1779 = vmatprep.subr.bf16.mxu0 0
  %1780 = vmatpush1.bf16.msra.mxu0 0
  %1781 = vmatprep.subr.bf16.mxu0 0
  %1782 = vmatpush1.bf16.msra.mxu0 0
  %1783 = vmatprep.subr.bf16.mxu0 0
  %1784 = vmatpush1.bf16.msra.mxu0 0
  %1785 = vmatprep.subr.bf16.mxu0 0
  %1786 = vmatpush1.bf16.msra.mxu0 0
  %1787 = vmatprep.subr.bf16.mxu0 0
  %1788 = vmatpush1.bf16.msra.mxu0 0
  %1789 = vmatprep.subr.bf16.mxu0 0
  %1790 = vmatpush1.bf16.msra.mxu0 0
  %1791 = vmatprep.subr.bf16.mxu0 0
  %1792 = vmatpush1.bf16.msra.mxu0 0
  %1793 = vmatprep.subr.bf16.mxu0 0
  %1794 = vmatpush1.bf16.msra.mxu0 0
  %1795 = vmatprep.subr.bf16.mxu0 0
  %1796 = vmatpush1.bf16.msra.mxu0 0
  %1797 = vmatprep.mubr.bf16.mxu0 0
  %1798 = vmatmul.mubr.bf16.gmra.mrb[0].mxu0 %v1468
  %v1799 = vpop.f32.mrb[0].mxu0
  %v1800 = vadd.f32 %v1464, %v1799
  %v1801 = vpop.f32.mrb[0].mxu0
  %v1802 = vadd.f32 %v1464, %v1801
  %v1803 = vpop.f32.mrb[0].mxu0
  %v1804 = vpop.f32.mrb[0].mxu0
  %1805 = vdwg.mxu0
  %1806 = vmatprep.subr.bf16.mxu0 %v1396
  %1807 = vmatpush1.bf16.msra.mxu0 %v1395
  %1808 = vmatprep.subr.bf16.mxu0 %v1412
  %1809 = vmatpush1.bf16.msra.mxu0 %v1411
  %1810 = vmatprep.subr.bf16.mxu0 %v1428
  %1811 = vmatpush1.bf16.msra.mxu0 %v1427
  %1812 = vmatprep.subr.bf16.mxu0 %v1444
  %1813 = vmatpush1.bf16.msra.mxu0 %v1443
  %1814 = vmatprep.subr.bf16.mxu0 %v1517
  %1815 = vmatpush1.bf16.msra.mxu0 %v1514
  %1816 = vmatprep.subr.bf16.mxu0 0
  %1817 = vmatpush1.bf16.msra.mxu0 0
  %1818 = vmatprep.subr.bf16.mxu0 0
  %1819 = vmatpush1.bf16.msra.mxu0 0
  %1820 = vmatprep.subr.bf16.mxu0 0
  %1821 = vmatpush1.bf16.msra.mxu0 0
  %1822 = vmatprep.subr.bf16.mxu0 0
  %1823 = vmatpush1.bf16.msra.mxu0 0
  %1824 = vmatprep.subr.bf16.mxu0 0
  %1825 = vmatpush1.bf16.msra.mxu0 0
  %1826 = vmatprep.subr.bf16.mxu0 0
  %1827 = vmatpush1.bf16.msra.mxu0 0
  %1828 = vmatprep.subr.bf16.mxu0 0
  %1829 = vmatpush1.bf16.msra.mxu0 0
  %1830 = vmatprep.subr.bf16.mxu0 0
  %1831 = vmatpush1.bf16.msra.mxu0 0
  %1832 = vmatprep.subr.bf16.mxu0 0
  %1833 = vmatpush1.bf16.msra.mxu0 0
  %1834 = vmatprep.subr.bf16.mxu0 0
  %1835 = vmatpush1.bf16.msra.mxu0 0
  %1836 = vmatprep.subr.bf16.mxu0 0
  %1837 = vmatpush1.bf16.msra.mxu0 0
  %1838 = vmatprep.mubr.bf16.mxu0 0
  %1839 = vmatmul.mubr.bf16.gmra.mrb[0].mxu0 %v1468
  %v1840 = vpop.f32.mrb[0].mxu0
  %v1841 = vadd.f32 %v1464, %v1840
  %v1842 = vpop.f32.mrb[0].mxu0
  %v1843 = vadd.f32 %v1464, %v1842
  %v1844 = vpop.f32.mrb[0].mxu0
  %v1845 = vpop.f32.mrb[0].mxu0
  %1846 = vdwg.mxu0
  %v1847 = vmax.f32 %v1554, 0.0
  %v1848 = vmax.f32 %v1556, 0.0
  %v1849 = vmax.f32 %v1595, 0.0
  %v1850 = vmax.f32 %v1597, 0.0
  %v1851 = vmax.f32 %v1636, 0.0
  %v1852 = vmax.f32 %v1638, 0.0
  %v1853 = vmax.f32 %v1677, 0.0
  %v1854 = vmax.f32 %v1679, 0.0
  %v1855 = vmax.f32 %v1718, 0.0
  %v1856 = vmax.f32 %v1720, 0.0
  %v1857 = vmax.f32 %v1759, 0.0
  %v1858 = vmax.f32 %v1761, 0.0
  %v1859 = vmax.f32 %v1800, 0.0
  %v1860 = vmax.f32 %v1802, 0.0
  %v1861 = vmax.f32 %v1841, 0.0
  %v1862 = vmax.f32 %v1843, 0.0
  %v1863 = vld [vmem:[%s7] sm:$0xf]
  %v1864 = vld [vmem:[%s9] sm:$0xff]
  %1865 = vrot.lane.b32.xlu0 %v1847, 33
  %v1866 = vpop.permute.xlu0 %1865
  %1867 = vrot.lane.b32.xlu0 %v1848, 33
  %v1868 = vpop.permute.xlu0 %1867
  %1869 = vrot.lane.b32.xlu0 %v1849, 33
  %v1870 = vpop.permute.xlu0 %1869
  %1871 = vrot.lane.b32.xlu0 %v1850, 33
  %v1872 = vpop.permute.xlu0 %1871
  %1873 = vrot.lane.b32.xlu0 %v1851, 33
  %v1874 = vpop.permute.xlu0 %1873
  %1875 = vrot.lane.b32.xlu0 %v1852, 33
  %v1876 = vpop.permute.xlu0 %1875
  %1877 = vrot.lane.b32.xlu0 %v1853, 33
  %v1878 = vpop.permute.xlu0 %1877
  %1879 = vrot.lane.b32.xlu0 %v1854, 33
  %v1880 = vpop.permute.xlu0 %1879
  %1881 = vrot.lane.b32.xlu0 %v1855, 33
  %v1882 = vpop.permute.xlu0 %1881
  %1883 = vrot.lane.b32.xlu0 %v1856, 33
  %v1884 = vpop.permute.xlu0 %1883
  %1885 = vrot.lane.b32.xlu0 %v1857, 33
  %v1886 = vpop.permute.xlu0 %1885
  %1887 = vrot.lane.b32.xlu0 %v1858, 33
  %v1888 = vpop.permute.xlu0 %1887
  %1889 = vrot.lane.b32.xlu0 %v1859, 33
  %v1890 = vpop.permute.xlu0 %1889
  %1891 = vrot.lane.b32.xlu0 %v1860, 33
  %v1892 = vpop.permute.xlu0 %1891
  %1893 = vrot.lane.b32.xlu0 %v1861, 33
  %v1894 = vpop.permute.xlu0 %1893
  %1895 = vrot.lane.b32.xlu0 %v1862, 33
  %v1896 = vpop.permute.xlu0 %1895
  %v1897 = vsel %vm381, %v1894, %v1896
  %v1898 = vsel %vm381, %v1892, %v1894
  %v1899 = vsel %vm381, %v1890, %v1892
  %v1900 = vsel %vm381, %v1888, %v1890
  %v1901 = vsel %vm381, %v1886, %v1888
  %v1902 = vsel %vm381, %v1884, %v1886
  %v1903 = vsel %vm381, %v1882, %v1884
  %v1904 = vsel %vm381, %v1880, %v1882
  %v1905 = vsel %vm381, %v1878, %v1880
  %v1906 = vsel %vm381, %v1876, %v1878
  %v1907 = vsel %vm381, %v1874, %v1876
  %v1908 = vsel %vm381, %v1872, %v1874
  %v1909 = vsel %vm381, %v1870, %v1872
  %v1910 = vsel %vm381, %v1868, %v1870
  %v1911 = vsel %vm381, %v1866, %v1868
  %v1912 = vsel %vm381, %v1896, %v1866
  %v1913 = vmul.f32 %v1912, %v401
  %v1914 = vmul.f32 %v1911, %v405
  %v1915 = vmul.f32 %v1910, %v409
  %v1916 = vmul.f32 %v1909, %v413
  %v1917 = vmul.f32 %v1908, %v417
  %v1918 = vmul.f32 %v1907, %v421
  %v1919 = vmul.f32 %v1906, %v425
  %v1920 = vmul.f32 %v1905, %v429
  %v1921 = vmul.f32 %v1904, %v433
  %v1922 = vmul.f32 %v1903, %v437
  %v1923 = vmul.f32 %v1902, %v441
  %v1924 = vmul.f32 %v1901, %v445
  %v1925 = vmul.f32 %v1900, %v449
  %v1926 = vmul.f32 %v1899, %v453
  %v1927 = vmul.f32 %v1898, %v457
  %v1928 = vmul.f32 %v1897, %v461
  %1929 = vrot.lane.b32.xlu0 %v1847, 32
  %v1930 = vpop.permute.xlu0 %1929
  %1931 = vrot.lane.b32.xlu0 %v1848, 32
  %v1932 = vpop.permute.xlu0 %1931
  %1933 = vrot.lane.b32.xlu0 %v1849, 32
  %v1934 = vpop.permute.xlu0 %1933
  %1935 = vrot.lane.b32.xlu0 %v1850, 32
  %v1936 = vpop.permute.xlu0 %1935
  %1937 = vrot.lane.b32.xlu0 %v1851, 32
  %v1938 = vpop.permute.xlu0 %1937
  %1939 = vrot.lane.b32.xlu0 %v1852, 32
  %v1940 = vpop.permute.xlu0 %1939
  %1941 = vrot.lane.b32.xlu0 %v1853, 32
  %v1942 = vpop.permute.xlu0 %1941
  %1943 = vrot.lane.b32.xlu0 %v1854, 32
  %v1944 = vpop.permute.xlu0 %1943
  %1945 = vrot.lane.b32.xlu0 %v1855, 32
  %v1946 = vpop.permute.xlu0 %1945
  %1947 = vrot.lane.b32.xlu0 %v1856, 32
  %v1948 = vpop.permute.xlu0 %1947
  %1949 = vrot.lane.b32.xlu0 %v1857, 32
  %v1950 = vpop.permute.xlu0 %1949
  %1951 = vrot.lane.b32.xlu0 %v1858, 32
  %v1952 = vpop.permute.xlu0 %1951
  %1953 = vrot.lane.b32.xlu0 %v1859, 32
  %v1954 = vpop.permute.xlu0 %1953
  %1955 = vrot.lane.b32.xlu0 %v1860, 32
  %v1956 = vpop.permute.xlu0 %1955
  %1957 = vrot.lane.b32.xlu0 %v1861, 32
  %v1958 = vpop.permute.xlu0 %1957
  %1959 = vrot.lane.b32.xlu0 %v1862, 32
  %v1960 = vpop.permute.xlu0 %1959
  %v1961 = vsel %vm510, %v1958, %v1960
  %v1962 = vsel %vm510, %v1956, %v1958
  %v1963 = vsel %vm510, %v1954, %v1956
  %v1964 = vsel %vm510, %v1952, %v1954
  %v1965 = vsel %vm510, %v1950, %v1952
  %v1966 = vsel %vm510, %v1948, %v1950
  %v1967 = vsel %vm510, %v1946, %v1948
  %v1968 = vsel %vm510, %v1944, %v1946
  %v1969 = vsel %vm510, %v1942, %v1944
  %v1970 = vsel %vm510, %v1940, %v1942
  %v1971 = vsel %vm510, %v1938, %v1940
  %v1972 = vsel %vm510, %v1936, %v1938
  %v1973 = vsel %vm510, %v1934, %v1936
  %v1974 = vsel %vm510, %v1932, %v1934
  %v1975 = vsel %vm510, %v1930, %v1932
  %v1976 = vsel %vm510, %v1960, %v1930
  %v1977 = vmul.f32 %v1976, %v530
  %v1978 = vmul.f32 %v1975, %v534
  %v1979 = vmul.f32 %v1974, %v538
  %v1980 = vmul.f32 %v1973, %v542
  %v1981 = vmul.f32 %v1972, %v546
  %v1982 = vmul.f32 %v1971, %v550
  %v1983 = vmul.f32 %v1970, %v554
  %v1984 = vmul.f32 %v1969, %v558
  %v1985 = vmul.f32 %v1968, %v562
  %v1986 = vmul.f32 %v1967, %v566
  %v1987 = vmul.f32 %v1966, %v570
  %v1988 = vmul.f32 %v1965, %v574
  %v1989 = vmul.f32 %v1964, %v578
  %v1990 = vmul.f32 %v1963, %v582
  %v1991 = vmul.f32 %v1962, %v586
  %v1992 = vmul.f32 %v1961, %v590
  %1993 = vrot.lane.b32.xlu0 %v1847, 31
  %v1994 = vpop.permute.xlu0 %1993
  %1995 = vrot.lane.b32.xlu0 %v1848, 31
  %v1996 = vpop.permute.xlu0 %1995
  %1997 = vrot.lane.b32.xlu0 %v1849, 31
  %v1998 = vpop.permute.xlu0 %1997
  %1999 = vrot.lane.b32.xlu0 %v1850, 31
  %v2000 = vpop.permute.xlu0 %1999
  %2001 = vrot.lane.b32.xlu0 %v1851, 31
  %v2002 = vpop.permute.xlu0 %2001
  %2003 = vrot.lane.b32.xlu0 %v1852, 31
  %v2004 = vpop.permute.xlu0 %2003
  %2005 = vrot.lane.b32.xlu0 %v1853, 31
  %v2006 = vpop.permute.xlu0 %2005
  %2007 = vrot.lane.b32.xlu0 %v1854, 31
  %v2008 = vpop.permute.xlu0 %2007
  %2009 = vrot.lane.b32.xlu0 %v1855, 31
  %v2010 = vpop.permute.xlu0 %2009
  %2011 = vrot.lane.b32.xlu0 %v1856, 31
  %v2012 = vpop.permute.xlu0 %2011
  %2013 = vrot.lane.b32.xlu0 %v1857, 31
  %v2014 = vpop.permute.xlu0 %2013
  %2015 = vrot.lane.b32.xlu0 %v1858, 31
  %v2016 = vpop.permute.xlu0 %2015
  %2017 = vrot.lane.b32.xlu0 %v1859, 31
  %v2018 = vpop.permute.xlu0 %2017
  %2019 = vrot.lane.b32.xlu0 %v1860, 31
  %v2020 = vpop.permute.xlu0 %2019
  %2021 = vrot.lane.b32.xlu0 %v1861, 31
  %v2022 = vpop.permute.xlu0 %2021
  %2023 = vrot.lane.b32.xlu0 %v1862, 31
  %v2024 = vpop.permute.xlu0 %2023
  %v2025 = vsel %vm639, %v2022, %v2024
  %v2026 = vsel %vm639, %v2020, %v2022
  %v2027 = vsel %vm639, %v2018, %v2020
  %v2028 = vsel %vm639, %v2016, %v2018
  %v2029 = vsel %vm639, %v2014, %v2016
  %v2030 = vsel %vm639, %v2012, %v2014
  %v2031 = vsel %vm639, %v2010, %v2012
  %v2032 = vsel %vm639, %v2008, %v2010
  %v2033 = vsel %vm639, %v2006, %v2008
  %v2034 = vsel %vm639, %v2004, %v2006
  %v2035 = vsel %vm639, %v2002, %v2004
  %v2036 = vsel %vm639, %v2000, %v2002
  %v2037 = vsel %vm639, %v1998, %v2000
  %v2038 = vsel %vm639, %v1996, %v1998
  %v2039 = vsel %vm639, %v1994, %v1996
  %v2040 = vsel %vm639, %v2024, %v1994
  %v2041 = vmul.f32 %v2040, %v659
  %v2042 = vmul.f32 %v2039, %v663
  %v2043 = vmul.f32 %v2038, %v667
  %v2044 = vmul.f32 %v2037, %v671
  %v2045 = vmul.f32 %v2036, %v675
  %v2046 = vmul.f32 %v2035, %v679
  %v2047 = vmul.f32 %v2034, %v683
  %v2048 = vmul.f32 %v2033, %v687
  %v2049 = vmul.f32 %v2032, %v691
  %v2050 = vmul.f32 %v2031, %v695
  %v2051 = vmul.f32 %v2030, %v699
  %v2052 = vmul.f32 %v2029, %v703
  %v2053 = vmul.f32 %v2028, %v707
  %v2054 = vmul.f32 %v2027, %v711
  %v2055 = vmul.f32 %v2026, %v715
  %v2056 = vmul.f32 %v2025, %v719
  %2057 = vrot.lane.b32.xlu0 %v1847, 1
  %v2058 = vpop.permute.xlu0 %2057
  %2059 = vrot.lane.b32.xlu0 %v1848, 1
  %v2060 = vpop.permute.xlu0 %2059
  %2061 = vrot.lane.b32.xlu0 %v1849, 1
  %v2062 = vpop.permute.xlu0 %2061
  %2063 = vrot.lane.b32.xlu0 %v1850, 1
  %v2064 = vpop.permute.xlu0 %2063
  %2065 = vrot.lane.b32.xlu0 %v1851, 1
  %v2066 = vpop.permute.xlu0 %2065
  %2067 = vrot.lane.b32.xlu0 %v1852, 1
  %v2068 = vpop.permute.xlu0 %2067
  %2069 = vrot.lane.b32.xlu0 %v1853, 1
  %v2070 = vpop.permute.xlu0 %2069
  %2071 = vrot.lane.b32.xlu0 %v1854, 1
  %v2072 = vpop.permute.xlu0 %2071
  %2073 = vrot.lane.b32.xlu0 %v1855, 1
  %v2074 = vpop.permute.xlu0 %2073
  %2075 = vrot.lane.b32.xlu0 %v1856, 1
  %v2076 = vpop.permute.xlu0 %2075
  %2077 = vrot.lane.b32.xlu0 %v1857, 1
  %v2078 = vpop.permute.xlu0 %2077
  %2079 = vrot.lane.b32.xlu0 %v1858, 1
  %v2080 = vpop.permute.xlu0 %2079
  %2081 = vrot.lane.b32.xlu0 %v1859, 1
  %v2082 = vpop.permute.xlu0 %2081
  %2083 = vrot.lane.b32.xlu0 %v1860, 1
  %v2084 = vpop.permute.xlu0 %2083
  %2085 = vrot.lane.b32.xlu0 %v1861, 1
  %v2086 = vpop.permute.xlu0 %2085
  %2087 = vrot.lane.b32.xlu0 %v1862, 1
  %v2088 = vpop.permute.xlu0 %2087
  %v2089 = vsel %vm768, %v2086, %v2088
  %v2090 = vsel %vm768, %v2084, %v2086
  %v2091 = vsel %vm768, %v2082, %v2084
  %v2092 = vsel %vm768, %v2080, %v2082
  %v2093 = vsel %vm768, %v2078, %v2080
  %v2094 = vsel %vm768, %v2076, %v2078
  %v2095 = vsel %vm768, %v2074, %v2076
  %v2096 = vsel %vm768, %v2072, %v2074
  %v2097 = vsel %vm768, %v2070, %v2072
  %v2098 = vsel %vm768, %v2068, %v2070
  %v2099 = vsel %vm768, %v2066, %v2068
  %v2100 = vsel %vm768, %v2064, %v2066
  %v2101 = vsel %vm768, %v2062, %v2064
  %v2102 = vsel %vm768, %v2060, %v2062
  %v2103 = vsel %vm768, %v2058, %v2060
  %v2104 = vsel %vm768, %v2088, %v2058
  %v2105 = vmul.f32 %v2104, %v788
  %v2106 = vmul.f32 %v2103, %v792
  %v2107 = vmul.f32 %v2102, %v796
  %v2108 = vmul.f32 %v2101, %v800
  %v2109 = vmul.f32 %v2100, %v804
  %v2110 = vmul.f32 %v2099, %v808
  %v2111 = vmul.f32 %v2098, %v812
  %v2112 = vmul.f32 %v2097, %v816
  %v2113 = vmul.f32 %v2096, %v820
  %v2114 = vmul.f32 %v2095, %v824
  %v2115 = vmul.f32 %v2094, %v828
  %v2116 = vmul.f32 %v2093, %v832
  %v2117 = vmul.f32 %v2092, %v836
  %v2118 = vmul.f32 %v2091, %v840
  %v2119 = vmul.f32 %v2090, %v844
  %v2120 = vmul.f32 %v2089, %v848
  %2121 = vrot.lane.b32.xlu0 %v1847, 127
  %v2122 = vpop.permute.xlu0 %2121
  %2123 = vrot.lane.b32.xlu0 %v1848, 127
  %v2124 = vpop.permute.xlu0 %2123
  %2125 = vrot.lane.b32.xlu0 %v1849, 127
  %v2126 = vpop.permute.xlu0 %2125
  %2127 = vrot.lane.b32.xlu0 %v1850, 127
  %v2128 = vpop.permute.xlu0 %2127
  %2129 = vrot.lane.b32.xlu0 %v1851, 127
  %v2130 = vpop.permute.xlu0 %2129
  %2131 = vrot.lane.b32.xlu0 %v1852, 127
  %v2132 = vpop.permute.xlu0 %2131
  %2133 = vrot.lane.b32.xlu0 %v1853, 127
  %v2134 = vpop.permute.xlu0 %2133
  %2135 = vrot.lane.b32.xlu0 %v1854, 127
  %v2136 = vpop.permute.xlu0 %2135
  %2137 = vrot.lane.b32.xlu0 %v1855, 127
  %v2138 = vpop.permute.xlu0 %2137
  %2139 = vrot.lane.b32.xlu0 %v1856, 127
  %v2140 = vpop.permute.xlu0 %2139
  %2141 = vrot.lane.b32.xlu0 %v1857, 127
  %v2142 = vpop.permute.xlu0 %2141
  %2143 = vrot.lane.b32.xlu0 %v1858, 127
  %v2144 = vpop.permute.xlu0 %2143
  %2145 = vrot.lane.b32.xlu0 %v1859, 127
  %v2146 = vpop.permute.xlu0 %2145
  %2147 = vrot.lane.b32.xlu0 %v1860, 127
  %v2148 = vpop.permute.xlu0 %2147
  %2149 = vrot.lane.b32.xlu0 %v1861, 127
  %v2150 = vpop.permute.xlu0 %2149
  %2151 = vrot.lane.b32.xlu0 %v1862, 127
  %v2152 = vpop.permute.xlu0 %2151
  %v2153 = vsel %vm897, %v2150, %v2152
  %v2154 = vsel %vm897, %v2148, %v2150
  %v2155 = vsel %vm897, %v2146, %v2148
  %v2156 = vsel %vm897, %v2144, %v2146
  %v2157 = vsel %vm897, %v2142, %v2144
  %v2158 = vsel %vm897, %v2140, %v2142
  %v2159 = vsel %vm897, %v2138, %v2140
  %v2160 = vsel %vm897, %v2136, %v2138
  %v2161 = vsel %vm897, %v2134, %v2136
  %v2162 = vsel %vm897, %v2132, %v2134
  %v2163 = vsel %vm897, %v2130, %v2132
  %v2164 = vsel %vm897, %v2128, %v2130
  %v2165 = vsel %vm897, %v2126, %v2128
  %v2166 = vsel %vm897, %v2124, %v2126
  %v2167 = vsel %vm897, %v2122, %v2124
  %v2168 = vsel %vm897, %v2152, %v2122
  %v2169 = vmul.f32 %v2167, %v917
  %v2170 = vmul.f32 %v2166, %v921
  %v2171 = vmul.f32 %v2165, %v925
  %v2172 = vmul.f32 %v2164, %v929
  %v2173 = vmul.f32 %v2163, %v933
  %v2174 = vmul.f32 %v2162, %v937
  %v2175 = vmul.f32 %v2161, %v941
  %v2176 = vmul.f32 %v2160, %v945
  %v2177 = vmul.f32 %v2159, %v949
  %v2178 = vmul.f32 %v2158, %v953
  %v2179 = vmul.f32 %v2157, %v957
  %v2180 = vmul.f32 %v2156, %v961
  %v2181 = vmul.f32 %v2155, %v965
  %v2182 = vmul.f32 %v2154, %v969
  %v2183 = vmul.f32 %v2153, %v973
  %v2184 = vmul.f32 %v2168, %v977
  %2185 = vrot.lane.b32.xlu0 %v1847, 97
  %v2186 = vpop.permute.xlu0 %2185
  %2187 = vrot.lane.b32.xlu0 %v1848, 97
  %v2188 = vpop.permute.xlu0 %2187
  %2189 = vrot.lane.b32.xlu0 %v1849, 97
  %v2190 = vpop.permute.xlu0 %2189
  %2191 = vrot.lane.b32.xlu0 %v1850, 97
  %v2192 = vpop.permute.xlu0 %2191
  %2193 = vrot.lane.b32.xlu0 %v1851, 97
  %v2194 = vpop.permute.xlu0 %2193
  %2195 = vrot.lane.b32.xlu0 %v1852, 97
  %v2196 = vpop.permute.xlu0 %2195
  %2197 = vrot.lane.b32.xlu0 %v1853, 97
  %v2198 = vpop.permute.xlu0 %2197
  %2199 = vrot.lane.b32.xlu0 %v1854, 97
  %v2200 = vpop.permute.xlu0 %2199
  %2201 = vrot.lane.b32.xlu0 %v1855, 97
  %v2202 = vpop.permute.xlu0 %2201
  %2203 = vrot.lane.b32.xlu0 %v1856, 97
  %v2204 = vpop.permute.xlu0 %2203
  %2205 = vrot.lane.b32.xlu0 %v1857, 97
  %v2206 = vpop.permute.xlu0 %2205
  %2207 = vrot.lane.b32.xlu0 %v1858, 97
  %v2208 = vpop.permute.xlu0 %2207
  %2209 = vrot.lane.b32.xlu0 %v1859, 97
  %v2210 = vpop.permute.xlu0 %2209
  %2211 = vrot.lane.b32.xlu0 %v1860, 97
  %v2212 = vpop.permute.xlu0 %2211
  %2213 = vrot.lane.b32.xlu0 %v1861, 97
  %v2214 = vpop.permute.xlu0 %2213
  %2215 = vrot.lane.b32.xlu0 %v1862, 97
  %v2216 = vpop.permute.xlu0 %2215
  %v2217 = vsel %vm1026, %v2214, %v2216
  %v2218 = vsel %vm1026, %v2212, %v2214
  %v2219 = vsel %vm1026, %v2210, %v2212
  %v2220 = vsel %vm1026, %v2208, %v2210
  %v2221 = vsel %vm1026, %v2206, %v2208
  %v2222 = vsel %vm1026, %v2204, %v2206
  %v2223 = vsel %vm1026, %v2202, %v2204
  %v2224 = vsel %vm1026, %v2200, %v2202
  %v2225 = vsel %vm1026, %v2198, %v2200
  %v2226 = vsel %vm1026, %v2196, %v2198
  %v2227 = vsel %vm1026, %v2194, %v2196
  %v2228 = vsel %vm1026, %v2192, %v2194
  %v2229 = vsel %vm1026, %v2190, %v2192
  %v2230 = vsel %vm1026, %v2188, %v2190
  %v2231 = vsel %vm1026, %v2186, %v2188
  %v2232 = vsel %vm1026, %v2216, %v2186
  %v2233 = vmul.f32 %v2231, %v1046
  %v2234 = vmul.f32 %v2230, %v1050
  %v2235 = vmul.f32 %v2229, %v1054
  %v2236 = vmul.f32 %v2228, %v1058
  %v2237 = vmul.f32 %v2227, %v1062
  %v2238 = vmul.f32 %v2226, %v1066
  %v2239 = vmul.f32 %v2225, %v1070
  %v2240 = vmul.f32 %v2224, %v1074
  %v2241 = vmul.f32 %v2223, %v1078
  %v2242 = vmul.f32 %v2222, %v1082
  %v2243 = vmul.f32 %v2221, %v1086
  %v2244 = vmul.f32 %v2220, %v1090
  %v2245 = vmul.f32 %v2219, %v1094
  %v2246 = vmul.f32 %v2218, %v1098
  %v2247 = vmul.f32 %v2217, %v1102
  %v2248 = vmul.f32 %v2232, %v1106
  %2249 = vrot.lane.b32.xlu0 %v1847, 96
  %v2250 = vpop.permute.xlu0 %2249
  %2251 = vrot.lane.b32.xlu0 %v1848, 96
  %v2252 = vpop.permute.xlu0 %2251
  %2253 = vrot.lane.b32.xlu0 %v1849, 96
  %v2254 = vpop.permute.xlu0 %2253
  %2255 = vrot.lane.b32.xlu0 %v1850, 96
  %v2256 = vpop.permute.xlu0 %2255
  %2257 = vrot.lane.b32.xlu0 %v1851, 96
  %v2258 = vpop.permute.xlu0 %2257
  %2259 = vrot.lane.b32.xlu0 %v1852, 96
  %v2260 = vpop.permute.xlu0 %2259
  %2261 = vrot.lane.b32.xlu0 %v1853, 96
  %v2262 = vpop.permute.xlu0 %2261
  %2263 = vrot.lane.b32.xlu0 %v1854, 96
  %v2264 = vpop.permute.xlu0 %2263
  %2265 = vrot.lane.b32.xlu0 %v1855, 96
  %v2266 = vpop.permute.xlu0 %2265
  %2267 = vrot.lane.b32.xlu0 %v1856, 96
  %v2268 = vpop.permute.xlu0 %2267
  %2269 = vrot.lane.b32.xlu0 %v1857, 96
  %v2270 = vpop.permute.xlu0 %2269
  %2271 = vrot.lane.b32.xlu0 %v1858, 96
  %v2272 = vpop.permute.xlu0 %2271
  %2273 = vrot.lane.b32.xlu0 %v1859, 96
  %v2274 = vpop.permute.xlu0 %2273
  %2275 = vrot.lane.b32.xlu0 %v1860, 96
  %v2276 = vpop.permute.xlu0 %2275
  %2277 = vrot.lane.b32.xlu0 %v1861, 96
  %v2278 = vpop.permute.xlu0 %2277
  %2279 = vrot.lane.b32.xlu0 %v1862, 96
  %v2280 = vpop.permute.xlu0 %2279
  %v2281 = vsel %vm1155, %v2278, %v2280
  %v2282 = vsel %vm1155, %v2276, %v2278
  %v2283 = vsel %vm1155, %v2274, %v2276
  %v2284 = vsel %vm1155, %v2272, %v2274
  %v2285 = vsel %vm1155, %v2270, %v2272
  %v2286 = vsel %vm1155, %v2268, %v2270
  %v2287 = vsel %vm1155, %v2266, %v2268
  %v2288 = vsel %vm1155, %v2264, %v2266
  %v2289 = vsel %vm1155, %v2262, %v2264
  %v2290 = vsel %vm1155, %v2260, %v2262
  %v2291 = vsel %vm1155, %v2258, %v2260
  %v2292 = vsel %vm1155, %v2256, %v2258
  %v2293 = vsel %vm1155, %v2254, %v2256
  %v2294 = vsel %vm1155, %v2252, %v2254
  %v2295 = vsel %vm1155, %v2250, %v2252
  %v2296 = vsel %vm1155, %v2280, %v2250
  %v2297 = vmul.f32 %v2295, %v1175
  %v2298 = vmul.f32 %v2294, %v1179
  %v2299 = vmul.f32 %v2293, %v1183
  %v2300 = vmul.f32 %v2292, %v1187
  %v2301 = vmul.f32 %v2291, %v1191
  %v2302 = vmul.f32 %v2290, %v1195
  %v2303 = vmul.f32 %v2289, %v1199
  %v2304 = vmul.f32 %v2288, %v1203
  %v2305 = vmul.f32 %v2287, %v1207
  %v2306 = vmul.f32 %v2286, %v1211
  %v2307 = vmul.f32 %v2285, %v1215
  %v2308 = vmul.f32 %v2284, %v1219
  %v2309 = vmul.f32 %v2283, %v1223
  %v2310 = vmul.f32 %v2282, %v1227
  %v2311 = vmul.f32 %v2281, %v1231
  %v2312 = vmul.f32 %v2296, %v1235
  %2313 = vrot.lane.b32.xlu0 %v1847, 95
  %v2314 = vpop.permute.xlu0 %2313
  %2315 = vrot.lane.b32.xlu0 %v1848, 95
  %v2316 = vpop.permute.xlu0 %2315
  %2317 = vrot.lane.b32.xlu0 %v1849, 95
  %v2318 = vpop.permute.xlu0 %2317
  %2319 = vrot.lane.b32.xlu0 %v1850, 95
  %v2320 = vpop.permute.xlu0 %2319
  %2321 = vrot.lane.b32.xlu0 %v1851, 95
  %v2322 = vpop.permute.xlu0 %2321
  %2323 = vrot.lane.b32.xlu0 %v1852, 95
  %v2324 = vpop.permute.xlu0 %2323
  %2325 = vrot.lane.b32.xlu0 %v1853, 95
  %v2326 = vpop.permute.xlu0 %2325
  %2327 = vrot.lane.b32.xlu0 %v1854, 95
  %v2328 = vpop.permute.xlu0 %2327
  %2329 = vrot.lane.b32.xlu0 %v1855, 95
  %v2330 = vpop.permute.xlu0 %2329
  %2331 = vrot.lane.b32.xlu0 %v1856, 95
  %v2332 = vpop.permute.xlu0 %2331
  %2333 = vrot.lane.b32.xlu0 %v1857, 95
  %v2334 = vpop.permute.xlu0 %2333
  %2335 = vrot.lane.b32.xlu0 %v1858, 95
  %v2336 = vpop.permute.xlu0 %2335
  %2337 = vrot.lane.b32.xlu0 %v1859, 95
  %v2338 = vpop.permute.xlu0 %2337
  %2339 = vrot.lane.b32.xlu0 %v1860, 95
  %v2340 = vpop.permute.xlu0 %2339
  %2341 = vrot.lane.b32.xlu0 %v1861, 95
  %v2342 = vpop.permute.xlu0 %2341
  %2343 = vrot.lane.b32.xlu0 %v1862, 95
  %v2344 = vpop.permute.xlu0 %2343
  %v2345 = vsel %vm1284, %v2342, %v2344
  %v2346 = vsel %vm1284, %v2340, %v2342
  %v2347 = vsel %vm1284, %v2338, %v2340
  %v2348 = vsel %vm1284, %v2336, %v2338
  %v2349 = vsel %vm1284, %v2334, %v2336
  %v2350 = vsel %vm1284, %v2332, %v2334
  %v2351 = vsel %vm1284, %v2330, %v2332
  %v2352 = vsel %vm1284, %v2328, %v2330
  %v2353 = vsel %vm1284, %v2326, %v2328
  %v2354 = vsel %vm1284, %v2324, %v2326
  %v2355 = vsel %vm1284, %v2322, %v2324
  %v2356 = vsel %vm1284, %v2320, %v2322
  %v2357 = vsel %vm1284, %v2318, %v2320
  %v2358 = vsel %vm1284, %v2316, %v2318
  %v2359 = vsel %vm1284, %v2314, %v2316
  %v2360 = vsel %vm1284, %v2344, %v2314
  %v2361 = vmul.f32 %v2359, %v1304
  %v2362 = vmul.f32 %v2358, %v1308
  %v2363 = vmul.f32 %v2357, %v1312
  %v2364 = vmul.f32 %v2356, %v1316
  %v2365 = vmul.f32 %v2355, %v1320
  %v2366 = vmul.f32 %v2354, %v1324
  %v2367 = vmul.f32 %v2353, %v1328
  %v2368 = vmul.f32 %v2352, %v1332
  %v2369 = vmul.f32 %v2351, %v1336
  %v2370 = vmul.f32 %v2350, %v1340
  %v2371 = vmul.f32 %v2349, %v1344
  %v2372 = vmul.f32 %v2348, %v1348
  %v2373 = vmul.f32 %v2347, %v1352
  %v2374 = vmul.f32 %v2346, %v1356
  %v2375 = vmul.f32 %v2345, %v1360
  %v2376 = vmul.f32 %v2360, %v1364
  %v2377 = vpack.c.bf16 %v1977, %v1913
  %v2378 = vpack.c.bf16 %v1978, %v1914
  %v2379 = vpack.c.bf16 %v1979, %v1915
  %v2380 = vpack.c.bf16 %v1980, %v1916
  %v2381 = vpack.c.bf16 %v1981, %v1917
  %v2382 = vpack.c.bf16 %v1982, %v1918
  %v2383 = vpack.c.bf16 %v1983, %v1919
  %v2384 = vpack.c.bf16 %v1984, %v1920
  %v2385 = vpack.c.bf16 %v1985, %v1921
  %v2386 = vpack.c.bf16 %v1986, %v1922
  %v2387 = vpack.c.bf16 %v1987, %v1923
  %v2388 = vpack.c.bf16 %v1988, %v1924
  %v2389 = vpack.c.bf16 %v1989, %v1925
  %v2390 = vpack.c.bf16 %v1990, %v1926
  %v2391 = vpack.c.bf16 %v1991, %v1927
  %v2392 = vpack.c.bf16 %v1992, %v1928
  %v2393 = vpack.c.bf16 %v2105, %v2041
  %v2394 = vpack.c.bf16 %v2106, %v2042
  %v2395 = vpack.c.bf16 %v2107, %v2043
  %v2396 = vpack.c.bf16 %v2108, %v2044
  %v2397 = vpack.c.bf16 %v2109, %v2045
  %v2398 = vpack.c.bf16 %v2110, %v2046
  %v2399 = vpack.c.bf16 %v2111, %v2047
  %v2400 = vpack.c.bf16 %v2112, %v2048
  %v2401 = vpack.c.bf16 %v2113, %v2049
  %v2402 = vpack.c.bf16 %v2114, %v2050
  %v2403 = vpack.c.bf16 %v2115, %v2051
  %v2404 = vpack.c.bf16 %v2116, %v2052
  %v2405 = vpack.c.bf16 %v2117, %v2053
  %v2406 = vpack.c.bf16 %v2118, %v2054
  %v2407 = vpack.c.bf16 %v2119, %v2055
  %v2408 = vpack.c.bf16 %v2120, %v2056
  %v2409 = vpack.c.bf16 %v2169, %v1847
  %v2410 = vpack.c.bf16 %v2170, %v1848
  %v2411 = vpack.c.bf16 %v2171, %v1849
  %v2412 = vpack.c.bf16 %v2172, %v1850
  %v2413 = vpack.c.bf16 %v2173, %v1851
  %v2414 = vpack.c.bf16 %v2174, %v1852
  %v2415 = vpack.c.bf16 %v2175, %v1853
  %v2416 = vpack.c.bf16 %v2176, %v1854
  %v2417 = vpack.c.bf16 %v2177, %v1855
  %v2418 = vpack.c.bf16 %v2178, %v1856
  %v2419 = vpack.c.bf16 %v2179, %v1857
  %v2420 = vpack.c.bf16 %v2180, %v1858
  %v2421 = vpack.c.bf16 %v2181, %v1859
  %v2422 = vpack.c.bf16 %v2182, %v1860
  %v2423 = vpack.c.bf16 %v2183, %v1861
  %v2424 = vpack.c.bf16 %v2184, %v1862
  %v2425 = vpack.c.bf16 %v2297, %v2233
  %v2426 = vpack.c.bf16 %v2298, %v2234
  %v2427 = vpack.c.bf16 %v2299, %v2235
  %v2428 = vpack.c.bf16 %v2300, %v2236
  %v2429 = vpack.c.bf16 %v2301, %v2237
  %v2430 = vpack.c.bf16 %v2302, %v2238
  %v2431 = vpack.c.bf16 %v2303, %v2239
  %v2432 = vpack.c.bf16 %v2304, %v2240
  %v2433 = vpack.c.bf16 %v2305, %v2241
  %v2434 = vpack.c.bf16 %v2306, %v2242
  %v2435 = vpack.c.bf16 %v2307, %v2243
  %v2436 = vpack.c.bf16 %v2308, %v2244
  %v2437 = vpack.c.bf16 %v2309, %v2245
  %v2438 = vpack.c.bf16 %v2310, %v2246
  %v2439 = vpack.c.bf16 %v2311, %v2247
  %v2440 = vpack.c.bf16 %v2312, %v2248
  %v2441 = vpack.c.bf16 %v2361, %v2361
  %v2442 = vpack.c.bf16 %v2362, %v2362
  %v2443 = vpack.c.bf16 %v2363, %v2363
  %v2444 = vpack.c.bf16 %v2364, %v2364
  %v2445 = vpack.c.bf16 %v2365, %v2365
  %v2446 = vpack.c.bf16 %v2366, %v2366
  %v2447 = vpack.c.bf16 %v2367, %v2367
  %v2448 = vpack.c.bf16 %v2368, %v2368
  %v2449 = vpack.c.bf16 %v2369, %v2369
  %v2450 = vpack.c.bf16 %v2370, %v2370
  %v2451 = vpack.c.bf16 %v2371, %v2371
  %v2452 = vpack.c.bf16 %v2372, %v2372
  %v2453 = vpack.c.bf16 %v2373, %v2373
  %v2454 = vpack.c.bf16 %v2374, %v2374
  %v2455 = vpack.c.bf16 %v2375, %v2375
  %v2456 = vpack.c.bf16 %v2376, %v2376
  %2458 = vset.pattern.permute.xlu0 0
  %2459 = vperm.xlu0 %2458, %v1864
  %v2460 = vpop.permute.xlu0 %2459
  %v2463 = vsel %vm1466, %v1863, 0
  %v2466 = vsel %vm1470, %v2441, 0
  %v2469 = vsel %vm1470, %v2442, 0
  %v2472 = vsel %vm1470, %v2443, 0
  %v2475 = vsel %vm1470, %v2444, 0
  %v2478 = vsel %vm1470, %v2445, 0
  %v2481 = vsel %vm1470, %v2446, 0
  %v2484 = vsel %vm1470, %v2447, 0
  %v2487 = vsel %vm1470, %v2448, 0
  %v2490 = vsel %vm1470, %v2449, 0
  %v2493 = vsel %vm1470, %v2450, 0
  %v2496 = vsel %vm1470, %v2451, 0
  %v2499 = vsel %vm1470, %v2452, 0
  %v2502 = vsel %vm1470, %v2453, 0
  %v2505 = vsel %vm1470, %v2454, 0
  %v2508 = vsel %vm1470, %v2455, 0
  %v2511 = vsel %vm1470, %v2456, 0
  %2513 = vmatprep.subr.bf16.mxu0 %v2378
  %2514 = vmatpush1.bf16.msra.mxu0 %v2377
  %2515 = vmatprep.subr.bf16.mxu0 %v2394
  %2516 = vmatpush1.bf16.msra.mxu0 %v2393
  %2517 = vmatprep.subr.bf16.mxu0 %v2410
  %2518 = vmatpush1.bf16.msra.mxu0 %v2409
  %2519 = vmatprep.subr.bf16.mxu0 %v2426
  %2520 = vmatpush1.bf16.msra.mxu0 %v2425
  %2521 = vmatprep.subr.bf16.mxu0 %v2469
  %2522 = vmatpush1.bf16.msra.mxu0 %v2466
  %2523 = vmatprep.subr.bf16.mxu0 0
  %2524 = vmatpush1.bf16.msra.mxu0 0
  %2525 = vmatprep.subr.bf16.mxu0 0
  %2526 = vmatpush1.bf16.msra.mxu0 0
  %2527 = vmatprep.subr.bf16.mxu0 0
  %2528 = vmatpush1.bf16.msra.mxu0 0
  %2529 = vmatprep.subr.bf16.mxu0 0
  %2530 = vmatpush1.bf16.msra.mxu0 0
  %2531 = vmatprep.subr.bf16.mxu0 0
  %2532 = vmatpush1.bf16.msra.mxu0 0
  %2533 = vmatprep.subr.bf16.mxu0 0
  %2534 = vmatpush1.bf16.msra.mxu0 0
  %2535 = vmatprep.subr.bf16.mxu0 0
  %2536 = vmatpush1.bf16.msra.mxu0 0
  %2537 = vmatprep.subr.bf16.mxu0 0
  %2538 = vmatpush1.bf16.msra.mxu0 0
  %2539 = vmatprep.subr.bf16.mxu0 0
  %2540 = vmatpush1.bf16.msra.mxu0 0
  %2541 = vmatprep.subr.bf16.mxu0 0
  %2542 = vmatpush1.bf16.msra.mxu0 0
  %2543 = vmatprep.subr.bf16.mxu0 0
  %2544 = vmatpush1.bf16.msra.mxu0 0
  %2545 = vmatprep.mubr.bf16.mxu0 0
  %2546 = vmatmul.mubr.bf16.gmra.mrb[0].mxu0 %v2463
  %v2547 = vpop.f32.mrb[0].mxu0
  %v2548 = vadd.f32 %v2460, %v2547
  %v2549 = vpop.f32.mrb[0].mxu0
  %v2550 = vadd.f32 %v2460, %v2549
  %v2551 = vpop.f32.mrb[0].mxu0
  %v2552 = vpop.f32.mrb[0].mxu0
  %2553 = vdwg.mxu0
  %2554 = vmatprep.subr.bf16.mxu0 %v2380
  %2555 = vmatpush1.bf16.msra.mxu0 %v2379
  %2556 = vmatprep.subr.bf16.mxu0 %v2396
  %2557 = vmatpush1.bf16.msra.mxu0 %v2395
  %2558 = vmatprep.subr.bf16.mxu0 %v2412
  %2559 = vmatpush1.bf16.msra.mxu0 %v2411
  %2560 = vmatprep.subr.bf16.mxu0 %v2428
  %2561 = vmatpush1.bf16.msra.mxu0 %v2427
  %2562 = vmatprep.subr.bf16.mxu0 %v2475
  %2563 = vmatpush1.bf16.msra.mxu0 %v2472
  %2564 = vmatprep.subr.bf16.mxu0 0
  %2565 = vmatpush1.bf16.msra.mxu0 0
  %2566 = vmatprep.subr.bf16.mxu0 0
  %2567 = vmatpush1.bf16.msra.mxu0 0
  %2568 = vmatprep.subr.bf16.mxu0 0
  %2569 = vmatpush1.bf16.msra.mxu0 0
  %2570 = vmatprep.subr.bf16.mxu0 0
  %2571 = vmatpush1.bf16.msra.mxu0 0
  %2572 = vmatprep.subr.bf16.mxu0 0
  %2573 = vmatpush1.bf16.msra.mxu0 0
  %2574 = vmatprep.subr.bf16.mxu0 0
  %2575 = vmatpush1.bf16.msra.mxu0 0
  %2576 = vmatprep.subr.bf16.mxu0 0
  %2577 = vmatpush1.bf16.msra.mxu0 0
  %2578 = vmatprep.subr.bf16.mxu0 0
  %2579 = vmatpush1.bf16.msra.mxu0 0
  %2580 = vmatprep.subr.bf16.mxu0 0
  %2581 = vmatpush1.bf16.msra.mxu0 0
  %2582 = vmatprep.subr.bf16.mxu0 0
  %2583 = vmatpush1.bf16.msra.mxu0 0
  %2584 = vmatprep.subr.bf16.mxu0 0
  %2585 = vmatpush1.bf16.msra.mxu0 0
  %2586 = vmatprep.mubr.bf16.mxu0 0
  %2587 = vmatmul.mubr.bf16.gmra.mrb[0].mxu0 %v2463
  %v2588 = vpop.f32.mrb[0].mxu0
  %v2589 = vadd.f32 %v2460, %v2588
  %v2590 = vpop.f32.mrb[0].mxu0
  %v2591 = vadd.f32 %v2460, %v2590
  %v2592 = vpop.f32.mrb[0].mxu0
  %v2593 = vpop.f32.mrb[0].mxu0
  %2594 = vdwg.mxu0
  %2595 = vmatprep.subr.bf16.mxu0 %v2382
  %2596 = vmatpush1.bf16.msra.mxu0 %v2381
  %2597 = vmatprep.subr.bf16.mxu0 %v2398
  %2598 = vmatpush1.bf16.msra.mxu0 %v2397
  %2599 = vmatprep.subr.bf16.mxu0 %v2414
  %2600 = vmatpush1.bf16.msra.mxu0 %v2413
  %2601 = vmatprep.subr.bf16.mxu0 %v2430
  %2602 = vmatpush1.bf16.msra.mxu0 %v2429
  %2603 = vmatprep.subr.bf16.mxu0 %v2481
  %2604 = vmatpush1.bf16.msra.mxu0 %v2478
  %2605 = vmatprep.subr.bf16.mxu0 0
  %2606 = vmatpush1.bf16.msra.mxu0 0
  %2607 = vmatprep.subr.bf16.mxu0 0
  %2608 = vmatpush1.bf16.msra.mxu0 0
  %2609 = vmatprep.subr.bf16.mxu0 0
  %2610 = vmatpush1.bf16.msra.mxu0 0
  %2611 = vmatprep.subr.bf16.mxu0 0
  %2612 = vmatpush1.bf16.msra.mxu0 0
  %2613 = vmatprep.subr.bf16.mxu0 0
  %2614 = vmatpush1.bf16.msra.mxu0 0
  %2615 = vmatprep.subr.bf16.mxu0 0
  %2616 = vmatpush1.bf16.msra.mxu0 0
  %2617 = vmatprep.subr.bf16.mxu0 0
  %2618 = vmatpush1.bf16.msra.mxu0 0
  %2619 = vmatprep.subr.bf16.mxu0 0
  %2620 = vmatpush1.bf16.msra.mxu0 0
  %2621 = vmatprep.subr.bf16.mxu0 0
  %2622 = vmatpush1.bf16.msra.mxu0 0
  %2623 = vmatprep.subr.bf16.mxu0 0
  %2624 = vmatpush1.bf16.msra.mxu0 0
  %2625 = vmatprep.subr.bf16.mxu0 0
  %2626 = vmatpush1.bf16.msra.mxu0 0
  %2627 = vmatprep.mubr.bf16.mxu0 0
  %2628 = vmatmul.mubr.bf16.gmra.mrb[0].mxu0 %v2463
  %v2629 = vpop.f32.mrb[0].mxu0
  %v2630 = vadd.f32 %v2460, %v2629
  %v2631 = vpop.f32.mrb[0].mxu0
  %v2632 = vadd.f32 %v2460, %v2631
  %v2633 = vpop.f32.mrb[0].mxu0
  %v2634 = vpop.f32.mrb[0].mxu0
  %2635 = vdwg.mxu0
  %2636 = vmatprep.subr.bf16.mxu0 %v2384
  %2637 = vmatpush1.bf16.msra.mxu0 %v2383
  %2638 = vmatprep.subr.bf16.mxu0 %v2400
  %2639 = vmatpush1.bf16.msra.mxu0 %v2399
  %2640 = vmatprep.subr.bf16.mxu0 %v2416
  %2641 = vmatpush1.bf16.msra.mxu0 %v2415
  %2642 = vmatprep.subr.bf16.mxu0 %v2432
  %2643 = vmatpush1.bf16.msra.mxu0 %v2431
  %2644 = vmatprep.subr.bf16.mxu0 %v2487
  %2645 = vmatpush1.bf16.msra.mxu0 %v2484
  %2646 = vmatprep.subr.bf16.mxu0 0
  %2647 = vmatpush1.bf16.msra.mxu0 0
  %2648 = vmatprep.subr.bf16.mxu0 0
  %2649 = vmatpush1.bf16.msra.mxu0 0
  %2650 = vmatprep.subr.bf16.mxu0 0
  %2651 = vmatpush1.bf16.msra.mxu0 0
  %2652 = vmatprep.subr.bf16.mxu0 0
  %2653 = vmatpush1.bf16.msra.mxu0 0
  %2654 = vmatprep.subr.bf16.mxu0 0
  %2655 = vmatpush1.bf16.msra.mxu0 0
  %2656 = vmatprep.subr.bf16.mxu0 0
  %2657 = vmatpush1.bf16.msra.mxu0 0
  %2658 = vmatprep.subr.bf16.mxu0 0
  %2659 = vmatpush1.bf16.msra.mxu0 0
  %2660 = vmatprep.subr.bf16.mxu0 0
  %2661 = vmatpush1.bf16.msra.mxu0 0
  %2662 = vmatprep.subr.bf16.mxu0 0
  %2663 = vmatpush1.bf16.msra.mxu0 0
  %2664 = vmatprep.subr.bf16.mxu0 0
  %2665 = vmatpush1.bf16.msra.mxu0 0
  %2666 = vmatprep.subr.bf16.mxu0 0
  %2667 = vmatpush1.bf16.msra.mxu0 0
  %2668 = vmatprep.mubr.bf16.mxu0 0
  %2669 = vmatmul.mubr.bf16.gmra.mrb[0].mxu0 %v2463
  %v2670 = vpop.f32.mrb[0].mxu0
  %v2671 = vadd.f32 %v2460, %v2670
  %v2672 = vpop.f32.mrb[0].mxu0
  %v2673 = vadd.f32 %v2460, %v2672
  %v2674 = vpop.f32.mrb[0].mxu0
  %v2675 = vpop.f32.mrb[0].mxu0
  %2676 = vdwg.mxu0
  %2677 = vmatprep.subr.bf16.mxu0 %v2386
  %2678 = vmatpush1.bf16.msra.mxu0 %v2385
  %2679 = vmatprep.subr.bf16.mxu0 %v2402
  %2680 = vmatpush1.bf16.msra.mxu0 %v2401
  %2681 = vmatprep.subr.bf16.mxu0 %v2418
  %2682 = vmatpush1.bf16.msra.mxu0 %v2417
  %2683 = vmatprep.subr.bf16.mxu0 %v2434
  %2684 = vmatpush1.bf16.msra.mxu0 %v2433
  %2685 = vmatprep.subr.bf16.mxu0 %v2493
  %2686 = vmatpush1.bf16.msra.mxu0 %v2490
  %2687 = vmatprep.subr.bf16.mxu0 0
  %2688 = vmatpush1.bf16.msra.mxu0 0
  %2689 = vmatprep.subr.bf16.mxu0 0
  %2690 = vmatpush1.bf16.msra.mxu0 0
  %2691 = vmatprep.subr.bf16.mxu0 0
  %2692 = vmatpush1.bf16.msra.mxu0 0
  %2693 = vmatprep.subr.bf16.mxu0 0
  %2694 = vmatpush1.bf16.msra.mxu0 0
  %2695 = vmatprep.subr.bf16.mxu0 0
  %2696 = vmatpush1.bf16.msra.mxu0 0
  %2697 = vmatprep.subr.bf16.mxu0 0
  %2698 = vmatpush1.bf16.msra.mxu0 0
  %2699 = vmatprep.subr.bf16.mxu0 0
  %2700 = vmatpush1.bf16.msra.mxu0 0
  %2701 = vmatprep.subr.bf16.mxu0 0
  %2702 = vmatpush1.bf16.msra.mxu0 0
  %2703 = vmatprep.subr.bf16.mxu0 0
  %2704 = vmatpush1.bf16.msra.mxu0 0
  %2705 = vmatprep.subr.bf16.mxu0 0
  %2706 = vmatpush1.bf16.msra.mxu0 0
  %2707 = vmatprep.subr.bf16.mxu0 0
  %2708 = vmatpush1.bf16.msra.mxu0 0
  %2709 = vmatprep.mubr.bf16.mxu0 0
  %2710 = vmatmul.mubr.bf16.gmra.mrb[0].mxu0 %v2463
  %v2711 = vpop.f32.mrb[0].mxu0
  %v2712 = vadd.f32 %v2460, %v2711
  %v2713 = vpop.f32.mrb[0].mxu0
  %v2714 = vadd.f32 %v2460, %v2713
  %v2715 = vpop.f32.mrb[0].mxu0
  %v2716 = vpop.f32.mrb[0].mxu0
  %2717 = vdwg.mxu0
  %2718 = vmatprep.subr.bf16.mxu0 %v2388
  %2719 = vmatpush1.bf16.msra.mxu0 %v2387
  %2720 = vmatprep.subr.bf16.mxu0 %v2404
  %2721 = vmatpush1.bf16.msra.mxu0 %v2403
  %2722 = vmatprep.subr.bf16.mxu0 %v2420
  %2723 = vmatpush1.bf16.msra.mxu0 %v2419
  %2724 = vmatprep.subr.bf16.mxu0 %v2436
  %2725 = vmatpush1.bf16.msra.mxu0 %v2435
  %2726 = vmatprep.subr.bf16.mxu0 %v2499
  %2727 = vmatpush1.bf16.msra.mxu0 %v2496
  %2728 = vmatprep.subr.bf16.mxu0 0
  %2729 = vmatpush1.bf16.msra.mxu0 0
  %2730 = vmatprep.subr.bf16.mxu0 0
  %2731 = vmatpush1.bf16.msra.mxu0 0
  %2732 = vmatprep.subr.bf16.mxu0 0
  %2733 = vmatpush1.bf16.msra.mxu0 0
  %2734 = vmatprep.subr.bf16.mxu0 0
  %2735 = vmatpush1.bf16.msra.mxu0 0
  %2736 = vmatprep.subr.bf16.mxu0 0
  %2737 = vmatpush1.bf16.msra.mxu0 0
  %2738 = vmatprep.subr.bf16.mxu0 0
  %2739 = vmatpush1.bf16.msra.mxu0 0
  %2740 = vmatprep.subr.bf16.mxu0 0
  %2741 = vmatpush1.bf16.msra.mxu0 0
  %2742 = vmatprep.subr.bf16.mxu0 0
  %2743 = vmatpush1.bf16.msra.mxu0 0
  %2744 = vmatprep.subr.bf16.mxu0 0
  %2745 = vmatpush1.bf16.msra.mxu0 0
  %2746 = vmatprep.subr.bf16.mxu0 0
  %2747 = vmatpush1.bf16.msra.mxu0 0
  %2748 = vmatprep.subr.bf16.mxu0 0
  %2749 = vmatpush1.bf16.msra.mxu0 0
  %2750 = vmatprep.mubr.bf16.mxu0 0
  %2751 = vmatmul.mubr.bf16.gmra.mrb[0].mxu0 %v2463
  %v2752 = vpop.f32.mrb[0].mxu0
  %v2753 = vadd.f32 %v2460, %v2752
  %v2754 = vpop.f32.mrb[0].mxu0
  %v2755 = vadd.f32 %v2460, %v2754
  %v2756 = vpop.f32.mrb[0].mxu0
  %v2757 = vpop.f32.mrb[0].mxu0
  %2758 = vdwg.mxu0
  %2759 = vmatprep.subr.bf16.mxu0 %v2390
  %2760 = vmatpush1.bf16.msra.mxu0 %v2389
  %2761 = vmatprep.subr.bf16.mxu0 %v2406
  %2762 = vmatpush1.bf16.msra.mxu0 %v2405
  %2763 = vmatprep.subr.bf16.mxu0 %v2422
  %2764 = vmatpush1.bf16.msra.mxu0 %v2421
  %2765 = vmatprep.subr.bf16.mxu0 %v2438
  %2766 = vmatpush1.bf16.msra.mxu0 %v2437
  %2767 = vmatprep.subr.bf16.mxu0 %v2505
  %2768 = vmatpush1.bf16.msra.mxu0 %v2502
  %2769 = vmatprep.subr.bf16.mxu0 0
  %2770 = vmatpush1.bf16.msra.mxu0 0
  %2771 = vmatprep.subr.bf16.mxu0 0
  %2772 = vmatpush1.bf16.msra.mxu0 0
  %2773 = vmatprep.subr.bf16.mxu0 0
  %2774 = vmatpush1.bf16.msra.mxu0 0
  %2775 = vmatprep.subr.bf16.mxu0 0
  %2776 = vmatpush1.bf16.msra.mxu0 0
  %2777 = vmatprep.subr.bf16.mxu0 0
  %2778 = vmatpush1.bf16.msra.mxu0 0
  %2779 = vmatprep.subr.bf16.mxu0 0
  %2780 = vmatpush1.bf16.msra.mxu0 0
  %2781 = vmatprep.subr.bf16.mxu0 0
  %2782 = vmatpush1.bf16.msra.mxu0 0
  %2783 = vmatprep.subr.bf16.mxu0 0
  %2784 = vmatpush1.bf16.msra.mxu0 0
  %2785 = vmatprep.subr.bf16.mxu0 0
  %2786 = vmatpush1.bf16.msra.mxu0 0
  %2787 = vmatprep.subr.bf16.mxu0 0
  %2788 = vmatpush1.bf16.msra.mxu0 0
  %2789 = vmatprep.subr.bf16.mxu0 0
  %2790 = vmatpush1.bf16.msra.mxu0 0
  %2791 = vmatprep.mubr.bf16.mxu0 0
  %2792 = vmatmul.mubr.bf16.gmra.mrb[0].mxu0 %v2463
  %v2793 = vpop.f32.mrb[0].mxu0
  %v2794 = vadd.f32 %v2460, %v2793
  %v2795 = vpop.f32.mrb[0].mxu0
  %v2796 = vadd.f32 %v2460, %v2795
  %v2797 = vpop.f32.mrb[0].mxu0
  %v2798 = vpop.f32.mrb[0].mxu0
  %2799 = vdwg.mxu0
  %2800 = vmatprep.subr.bf16.mxu0 %v2392
  %2801 = vmatpush1.bf16.msra.mxu0 %v2391
  %2802 = vmatprep.subr.bf16.mxu0 %v2408
  %2803 = vmatpush1.bf16.msra.mxu0 %v2407
  %2804 = vmatprep.subr.bf16.mxu0 %v2424
  %2805 = vmatpush1.bf16.msra.mxu0 %v2423
  %2806 = vmatprep.subr.bf16.mxu0 %v2440
  %2807 = vmatpush1.bf16.msra.mxu0 %v2439
  %2808 = vmatprep.subr.bf16.mxu0 %v2511
  %2809 = vmatpush1.bf16.msra.mxu0 %v2508
  %2810 = vmatprep.subr.bf16.mxu0 0
  %2811 = vmatpush1.bf16.msra.mxu0 0
  %2812 = vmatprep.subr.bf16.mxu0 0
  %2813 = vmatpush1.bf16.msra.mxu0 0
  %2814 = vmatprep.subr.bf16.mxu0 0
  %2815 = vmatpush1.bf16.msra.mxu0 0
  %2816 = vmatprep.subr.bf16.mxu0 0
  %2817 = vmatpush1.bf16.msra.mxu0 0
  %2818 = vmatprep.subr.bf16.mxu0 0
  %2819 = vmatpush1.bf16.msra.mxu0 0
  %2820 = vmatprep.subr.bf16.mxu0 0
  %2821 = vmatpush1.bf16.msra.mxu0 0
  %2822 = vmatprep.subr.bf16.mxu0 0
  %2823 = vmatpush1.bf16.msra.mxu0 0
  %2824 = vmatprep.subr.bf16.mxu0 0
  %2825 = vmatpush1.bf16.msra.mxu0 0
  %2826 = vmatprep.subr.bf16.mxu0 0
  %2827 = vmatpush1.bf16.msra.mxu0 0
  %2828 = vmatprep.subr.bf16.mxu0 0
  %2829 = vmatpush1.bf16.msra.mxu0 0
  %2830 = vmatprep.subr.bf16.mxu0 0
  %2831 = vmatpush1.bf16.msra.mxu0 0
  %2832 = vmatprep.mubr.bf16.mxu0 0
  %2833 = vmatmul.mubr.bf16.gmra.mrb[0].mxu0 %v2463
  %v2834 = vpop.f32.mrb[0].mxu0
  %v2835 = vadd.f32 %v2460, %v2834
  %v2836 = vpop.f32.mrb[0].mxu0
  %v2837 = vadd.f32 %v2460, %v2836
  %v2838 = vpop.f32.mrb[0].mxu0
  %v2839 = vpop.f32.mrb[0].mxu0
  %2840 = vdwg.mxu0
  %v2841 = vmax.f32 %v2548, 0.0
  %v2842 = vmax.f32 %v2550, 0.0
  %v2843 = vmax.f32 %v2589, 0.0
  %v2844 = vmax.f32 %v2591, 0.0
  %v2845 = vmax.f32 %v2630, 0.0
  %v2846 = vmax.f32 %v2632, 0.0
  %v2847 = vmax.f32 %v2671, 0.0
  %v2848 = vmax.f32 %v2673, 0.0
  %v2849 = vmax.f32 %v2712, 0.0
  %v2850 = vmax.f32 %v2714, 0.0
  %v2851 = vmax.f32 %v2753, 0.0
  %v2852 = vmax.f32 %v2755, 0.0
  %v2853 = vmax.f32 %v2794, 0.0
  %v2854 = vmax.f32 %v2796, 0.0
  %v2855 = vmax.f32 %v2835, 0.0
  %v2856 = vmax.f32 %v2837, 0.0
  %v2857 = vpack.c.bf16 %v2841, %v2841
  %v2858 = vpack.c.bf16 %v2842, %v2842
  %v2859 = vpack.c.bf16 %v2843, %v2843
  %v2860 = vpack.c.bf16 %v2844, %v2844
  %v2861 = vpack.c.bf16 %v2845, %v2845
  %v2862 = vpack.c.bf16 %v2846, %v2846
  %v2863 = vpack.c.bf16 %v2847, %v2847
  %v2864 = vpack.c.bf16 %v2848, %v2848
  %v2865 = vpack.c.bf16 %v2849, %v2849
  %v2866 = vpack.c.bf16 %v2850, %v2850
  %v2867 = vpack.c.bf16 %v2851, %v2851
  %v2868 = vpack.c.bf16 %v2852, %v2852
  %v2869 = vpack.c.bf16 %v2853, %v2853
  %v2870 = vpack.c.bf16 %v2854, %v2854
  %v2871 = vpack.c.bf16 %v2855, %v2855
  %v2872 = vpack.c.bf16 %v2856, %v2856
  %v3001 = vunpack.c.l.b16 %v217
  %v3002 = vunpack.c.h.b16 %v217
  %v3003 = vunpack.c.l.b16 %v218
  %v3004 = vunpack.c.h.b16 %v218
  %v3005 = vunpack.c.l.b16 %v219
  %v3006 = vunpack.c.h.b16 %v219
  %v3007 = vunpack.c.l.b16 %v220
  %v3008 = vunpack.c.h.b16 %v220
  %v3009 = vunpack.c.l.b16 %v221
  %v3010 = vunpack.c.h.b16 %v221
  %v3011 = vunpack.c.l.b16 %v222
  %v3012 = vunpack.c.h.b16 %v222
  %v3013 = vunpack.c.l.b16 %v223
  %v3014 = vunpack.c.h.b16 %v223
  %v3015 = vunpack.c.l.b16 %v224
  %v3016 = vunpack.c.h.b16 %v224
  %v3017 = vunpack.c.l.b16 %v225
  %v3018 = vunpack.c.h.b16 %v225
  %v3019 = vunpack.c.l.b16 %v226
  %v3020 = vunpack.c.h.b16 %v226
  %v3021 = vunpack.c.l.b16 %v227
  %v3022 = vunpack.c.h.b16 %v227
  %v3023 = vunpack.c.l.b16 %v228
  %v3024 = vunpack.c.h.b16 %v228
  %v3025 = vunpack.c.l.b16 %v229
  %v3026 = vunpack.c.h.b16 %v229
  %v3027 = vunpack.c.l.b16 %v230
  %v3028 = vunpack.c.h.b16 %v230
  %v3029 = vunpack.c.l.b16 %v231
  %v3030 = vunpack.c.h.b16 %v231
  %v3031 = vunpack.c.l.b16 %v232
  %v3032 = vunpack.c.h.b16 %v232
  %v3033 = vunpack.c.l.b16 %v233
  %v3034 = vunpack.c.h.b16 %v233
  %v3035 = vunpack.c.l.b16 %v234
  %v3036 = vunpack.c.h.b16 %v234
  %v3037 = vunpack.c.l.b16 %v235
  %v3038 = vunpack.c.h.b16 %v235
  %v3039 = vunpack.c.l.b16 %v236
  %v3040 = vunpack.c.h.b16 %v236
  %v3041 = vunpack.c.l.b16 %v237
  %v3042 = vunpack.c.h.b16 %v237
  %v3043 = vunpack.c.l.b16 %v238
  %v3044 = vunpack.c.h.b16 %v238
  %v3045 = vunpack.c.l.b16 %v239
  %v3046 = vunpack.c.h.b16 %v239
  %v3047 = vunpack.c.l.b16 %v240
  %v3048 = vunpack.c.h.b16 %v240
  %v3049 = vunpack.c.l.b16 %v241
  %v3050 = vunpack.c.h.b16 %v241
  %v3051 = vunpack.c.l.b16 %v242
  %v3052 = vunpack.c.h.b16 %v242
  %v3053 = vunpack.c.l.b16 %v243
  %v3054 = vunpack.c.h.b16 %v243
  %v3055 = vunpack.c.l.b16 %v244
  %v3056 = vunpack.c.h.b16 %v244
  %v3057 = vunpack.c.l.b16 %v245
  %v3058 = vunpack.c.h.b16 %v245
  %v3059 = vunpack.c.l.b16 %v246
  %v3060 = vunpack.c.h.b16 %v246
  %v3061 = vunpack.c.l.b16 %v247
  %v3062 = vunpack.c.h.b16 %v247
  %v3063 = vunpack.c.l.b16 %v248
  %v3064 = vunpack.c.h.b16 %v248
  %v3065 = vunpack.c.l.b16 %v249
  %v3066 = vunpack.c.h.b16 %v249
  %v3067 = vunpack.c.l.b16 %v250
  %v3068 = vunpack.c.h.b16 %v250
  %v3069 = vunpack.c.l.b16 %v251
  %v3070 = vunpack.c.h.b16 %v251
  %v3071 = vunpack.c.l.b16 %v252
  %v3072 = vunpack.c.h.b16 %v252
  %v3073 = vunpack.c.l.b16 %v253
  %v3074 = vunpack.c.h.b16 %v253
  %v3075 = vunpack.c.l.b16 %v254
  %v3076 = vunpack.c.h.b16 %v254
  %v3077 = vunpack.c.l.b16 %v255
  %v3078 = vunpack.c.h.b16 %v255
  %v3079 = vunpack.c.l.b16 %v256
  %v3080 = vunpack.c.h.b16 %v256
  %v3081 = vunpack.c.l.b16 %v257
  %v3082 = vunpack.c.h.b16 %v257
  %v3083 = vunpack.c.l.b16 %v258
  %v3084 = vunpack.c.h.b16 %v258
  %v3085 = vunpack.c.l.b16 %v259
  %v3086 = vunpack.c.h.b16 %v259
  %v3087 = vunpack.c.l.b16 %v260
  %v3088 = vunpack.c.h.b16 %v260
  %v3089 = vunpack.c.l.b16 %v261
  %v3090 = vunpack.c.h.b16 %v261
  %v3091 = vunpack.c.l.b16 %v262
  %v3092 = vunpack.c.h.b16 %v262
  %v3093 = vunpack.c.l.b16 %v263
  %v3094 = vunpack.c.h.b16 %v263
  %v3095 = vunpack.c.l.b16 %v264
  %v3096 = vunpack.c.h.b16 %v264
  %v3097 = vunpack.c.l.b16 %v265
  %v3098 = vunpack.c.h.b16 %v265
  %v3099 = vunpack.c.l.b16 %v266
  %v3100 = vunpack.c.h.b16 %v266
  %v3101 = vunpack.c.l.b16 %v267
  %v3102 = vunpack.c.h.b16 %v267
  %v3103 = vunpack.c.l.b16 %v268
  %v3104 = vunpack.c.h.b16 %v268
  %v3105 = vunpack.c.l.b16 %v269
  %v3106 = vunpack.c.h.b16 %v269
  %v3107 = vunpack.c.l.b16 %v270
  %v3108 = vunpack.c.h.b16 %v270
  %v3109 = vunpack.c.l.b16 %v271
  %v3110 = vunpack.c.h.b16 %v271
  %v3111 = vunpack.c.l.b16 %v272
  %v3112 = vunpack.c.h.b16 %v272
  %v3113 = vunpack.c.l.b16 %v273
  %v3114 = vunpack.c.h.b16 %v273
  %v3115 = vunpack.c.l.b16 %v274
  %v3116 = vunpack.c.h.b16 %v274
  %v3117 = vunpack.c.l.b16 %v275
  %v3118 = vunpack.c.h.b16 %v275
  %v3119 = vunpack.c.l.b16 %v276
  %v3120 = vunpack.c.h.b16 %v276
  %v3121 = vunpack.c.l.b16 %v277
  %v3122 = vunpack.c.h.b16 %v277
  %v3123 = vunpack.c.l.b16 %v278
  %v3124 = vunpack.c.h.b16 %v278
  %v3125 = vunpack.c.l.b16 %v279
  %v3126 = vunpack.c.h.b16 %v279
  %v3127 = vunpack.c.l.b16 %v280
  %v3128 = vunpack.c.h.b16 %v280
  %v3129 = vunpack.c.l.b16 %v281
  %v3130 = vunpack.c.h.b16 %v281
  %v3131 = vunpack.c.l.b16 %v282
  %v3132 = vunpack.c.h.b16 %v282
  %v3133 = vunpack.c.l.b16 %v283
  %v3134 = vunpack.c.h.b16 %v283
  %v3135 = vunpack.c.l.b16 %v284
  %v3136 = vunpack.c.h.b16 %v284
  %v3137 = vunpack.c.l.b16 %v285
  %v3138 = vunpack.c.h.b16 %v285
  %v3139 = vunpack.c.l.b16 %v286
  %v3140 = vunpack.c.h.b16 %v286
  %v3141 = vunpack.c.l.b16 %v287
  %v3142 = vunpack.c.h.b16 %v287
  %v3143 = vunpack.c.l.b16 %v288
  %v3144 = vunpack.c.h.b16 %v288
  %v3145 = vunpack.c.l.b16 %v289
  %v3146 = vunpack.c.h.b16 %v289
  %v3147 = vunpack.c.l.b16 %v290
  %v3148 = vunpack.c.h.b16 %v290
  %v3149 = vunpack.c.l.b16 %v291
  %v3150 = vunpack.c.h.b16 %v291
  %v3151 = vunpack.c.l.b16 %v292
  %v3152 = vunpack.c.h.b16 %v292
  %v3153 = vunpack.c.l.b16 %v293
  %v3154 = vunpack.c.h.b16 %v293
  %v3155 = vunpack.c.l.b16 %v294
  %v3156 = vunpack.c.h.b16 %v294
  %v3157 = vunpack.c.l.b16 %v295
  %v3158 = vunpack.c.h.b16 %v295
  %v3159 = vunpack.c.l.b16 %v296
  %v3160 = vunpack.c.h.b16 %v296
  %v3161 = vunpack.c.l.b16 %v297
  %v3162 = vunpack.c.h.b16 %v297
  %v3163 = vunpack.c.l.b16 %v298
  %v3164 = vunpack.c.h.b16 %v298
  %v3165 = vunpack.c.l.b16 %v299
  %v3166 = vunpack.c.h.b16 %v299
  %v3167 = vunpack.c.l.b16 %v300
  %v3168 = vunpack.c.h.b16 %v300
  %v3169 = vunpack.c.l.b16 %v301
  %v3170 = vunpack.c.h.b16 %v301
  %v3171 = vunpack.c.l.b16 %v302
  %v3172 = vunpack.c.h.b16 %v302
  %v3173 = vunpack.c.l.b16 %v303
  %v3174 = vunpack.c.h.b16 %v303
  %v3175 = vunpack.c.l.b16 %v304
  %v3176 = vunpack.c.h.b16 %v304
  %v3177 = vunpack.c.l.b16 %v305
  %v3178 = vunpack.c.h.b16 %v305
  %v3179 = vunpack.c.l.b16 %v306
  %v3180 = vunpack.c.h.b16 %v306
  %v3181 = vunpack.c.l.b16 %v307
  %v3182 = vunpack.c.h.b16 %v307
  %v3183 = vunpack.c.l.b16 %v308
  %v3184 = vunpack.c.h.b16 %v308
  %v3185 = vunpack.c.l.b16 %v309
  %v3186 = vunpack.c.h.b16 %v309
  %v3187 = vunpack.c.l.b16 %v310
  %v3188 = vunpack.c.h.b16 %v310
  %v3189 = vunpack.c.l.b16 %v311
  %v3190 = vunpack.c.h.b16 %v311
  %v3191 = vunpack.c.l.b16 %v312
  %v3192 = vunpack.c.h.b16 %v312
  %v3193 = vunpack.c.l.b16 %v313
  %v3194 = vunpack.c.h.b16 %v313
  %v3195 = vunpack.c.l.b16 %v314
  %v3196 = vunpack.c.h.b16 %v314
  %v3197 = vunpack.c.l.b16 %v315
  %v3198 = vunpack.c.h.b16 %v315
  %v3199 = vunpack.c.l.b16 %v316
  %v3200 = vunpack.c.h.b16 %v316
  %v3201 = vunpack.c.l.b16 %v317
  %v3202 = vunpack.c.h.b16 %v317
  %v3203 = vunpack.c.l.b16 %v318
  %v3204 = vunpack.c.h.b16 %v318
  %v3205 = vunpack.c.l.b16 %v319
  %v3206 = vunpack.c.h.b16 %v319
  %v3207 = vunpack.c.l.b16 %v320
  %v3208 = vunpack.c.h.b16 %v320
  %v3209 = vunpack.c.l.b16 %v321
  %v3210 = vunpack.c.h.b16 %v321
  %v3211 = vunpack.c.l.b16 %v322
  %v3212 = vunpack.c.h.b16 %v322
  %v3213 = vunpack.c.l.b16 %v323
  %v3214 = vunpack.c.h.b16 %v323
  %v3215 = vunpack.c.l.b16 %v324
  %v3216 = vunpack.c.h.b16 %v324
  %v3217 = vunpack.c.l.b16 %v325
  %v3218 = vunpack.c.h.b16 %v325
  %v3219 = vunpack.c.l.b16 %v326
  %v3220 = vunpack.c.h.b16 %v326
  %v3221 = vunpack.c.l.b16 %v327
  %v3222 = vunpack.c.h.b16 %v327
  %v3223 = vunpack.c.l.b16 %v328
  %v3224 = vunpack.c.h.b16 %v328
  %v3225 = vunpack.c.l.b16 %v329
  %v3226 = vunpack.c.h.b16 %v329
  %v3227 = vunpack.c.l.b16 %v330
  %v3228 = vunpack.c.h.b16 %v330
  %v3229 = vunpack.c.l.b16 %v331
  %v3230 = vunpack.c.h.b16 %v331
  %v3231 = vunpack.c.l.b16 %v332
  %v3232 = vunpack.c.h.b16 %v332
  %v3233 = vunpack.c.l.b16 %v333
  %v3234 = vunpack.c.h.b16 %v333
  %v3235 = vunpack.c.l.b16 %v334
  %v3236 = vunpack.c.h.b16 %v334
  %v3237 = vunpack.c.l.b16 %v335
  %v3238 = vunpack.c.h.b16 %v335
  %v3239 = vunpack.c.l.b16 %v336
  %v3240 = vunpack.c.h.b16 %v336
  %v3241 = vunpack.c.l.b16 %v337
  %v3242 = vunpack.c.h.b16 %v337
  %v3243 = vunpack.c.l.b16 %v338
  %v3244 = vunpack.c.h.b16 %v338
  %v3245 = vunpack.c.l.b16 %v339
  %v3246 = vunpack.c.h.b16 %v339
  %v3247 = vunpack.c.l.b16 %v340
  %v3248 = vunpack.c.h.b16 %v340
  %v3249 = vunpack.c.l.b16 %v341
  %v3250 = vunpack.c.h.b16 %v341
  %v3251 = vunpack.c.l.b16 %v342
  %v3252 = vunpack.c.h.b16 %v342
  %v3253 = vunpack.c.l.b16 %v343
  %v3254 = vunpack.c.h.b16 %v343
  %v3255 = vunpack.c.l.b16 %v344
  %v3256 = vunpack.c.h.b16 %v344
  %v3257 = vpack.c.b16 %v3003, %v3001
  %v3258 = vpack.c.b16 %v3004, %v3002
  %v3259 = vpack.c.b16 %v3007, %v3005
  %v3260 = vpack.c.b16 %v3008, %v3006
  %v3261 = vpack.c.b16 %v3011, %v3009
  %v3262 = vpack.c.b16 %v3012, %v3010
  %v3263 = vpack.c.b16 %v3015, %v3013
  %v3264 = vpack.c.b16 %v3016, %v3014
  %v3265 = vpack.c.b16 %v3019, %v3017
  %v3266 = vpack.c.b16 %v3020, %v3018
  %v3267 = vpack.c.b16 %v3023, %v3021
  %v3268 = vpack.c.b16 %v3024, %v3022
  %v3269 = vpack.c.b16 %v3027, %v3025
  %v3270 = vpack.c.b16 %v3028, %v3026
  %v3271 = vpack.c.b16 %v3031, %v3029
  %v3272 = vpack.c.b16 %v3032, %v3030
  %v3273 = vpack.c.b16 %v3035, %v3033
  %v3274 = vpack.c.b16 %v3036, %v3034
  %v3275 = vpack.c.b16 %v3039, %v3037
  %v3276 = vpack.c.b16 %v3040, %v3038
  %v3277 = vpack.c.b16 %v3043, %v3041
  %v3278 = vpack.c.b16 %v3044, %v3042
  %v3279 = vpack.c.b16 %v3047, %v3045
  %v3280 = vpack.c.b16 %v3048, %v3046
  %v3281 = vpack.c.b16 %v3051, %v3049
  %v3282 = vpack.c.b16 %v3052, %v3050
  %v3283 = vpack.c.b16 %v3055, %v3053
  %v3284 = vpack.c.b16 %v3056, %v3054
  %v3285 = vpack.c.b16 %v3059, %v3057
  %v3286 = vpack.c.b16 %v3060, %v3058
  %v3287 = vpack.c.b16 %v3063, %v3061
  %v3288 = vpack.c.b16 %v3064, %v3062
  %v3289 = vpack.c.b16 %v3067, %v3065
  %v3290 = vpack.c.b16 %v3068, %v3066
  %v3291 = vpack.c.b16 %v3071, %v3069
  %v3292 = vpack.c.b16 %v3072, %v3070
  %v3293 = vpack.c.b16 %v3075, %v3073
  %v3294 = vpack.c.b16 %v3076, %v3074
  %v3295 = vpack.c.b16 %v3079, %v3077
  %v3296 = vpack.c.b16 %v3080, %v3078
  %v3297 = vpack.c.b16 %v3083, %v3081
  %v3298 = vpack.c.b16 %v3084, %v3082
  %v3299 = vpack.c.b16 %v3087, %v3085
  %v3300 = vpack.c.b16 %v3088, %v3086
  %v3301 = vpack.c.b16 %v3091, %v3089
  %v3302 = vpack.c.b16 %v3092, %v3090
  %v3303 = vpack.c.b16 %v3095, %v3093
  %v3304 = vpack.c.b16 %v3096, %v3094
  %v3305 = vpack.c.b16 %v3099, %v3097
  %v3306 = vpack.c.b16 %v3100, %v3098
  %v3307 = vpack.c.b16 %v3103, %v3101
  %v3308 = vpack.c.b16 %v3104, %v3102
  %v3309 = vpack.c.b16 %v3107, %v3105
  %v3310 = vpack.c.b16 %v3108, %v3106
  %v3311 = vpack.c.b16 %v3111, %v3109
  %v3312 = vpack.c.b16 %v3112, %v3110
  %v3313 = vpack.c.b16 %v3115, %v3113
  %v3314 = vpack.c.b16 %v3116, %v3114
  %v3315 = vpack.c.b16 %v3119, %v3117
  %v3316 = vpack.c.b16 %v3120, %v3118
  %v3317 = vpack.c.b16 %v3123, %v3121
  %v3318 = vpack.c.b16 %v3124, %v3122
  %v3319 = vpack.c.b16 %v3127, %v3125
  %v3320 = vpack.c.b16 %v3128, %v3126
  %v3321 = vpack.c.b16 %v3131, %v3129
  %v3322 = vpack.c.b16 %v3132, %v3130
  %v3323 = vpack.c.b16 %v3135, %v3133
  %v3324 = vpack.c.b16 %v3136, %v3134
  %v3325 = vpack.c.b16 %v3139, %v3137
  %v3326 = vpack.c.b16 %v3140, %v3138
  %v3327 = vpack.c.b16 %v3143, %v3141
  %v3328 = vpack.c.b16 %v3144, %v3142
  %v3329 = vpack.c.b16 %v3147, %v3145
  %v3330 = vpack.c.b16 %v3148, %v3146
  %v3331 = vpack.c.b16 %v3151, %v3149
  %v3332 = vpack.c.b16 %v3152, %v3150
  %v3333 = vpack.c.b16 %v3155, %v3153
  %v3334 = vpack.c.b16 %v3156, %v3154
  %v3335 = vpack.c.b16 %v3159, %v3157
  %v3336 = vpack.c.b16 %v3160, %v3158
  %v3337 = vpack.c.b16 %v3163, %v3161
  %v3338 = vpack.c.b16 %v3164, %v3162
  %v3339 = vpack.c.b16 %v3167, %v3165
  %v3340 = vpack.c.b16 %v3168, %v3166
  %v3341 = vpack.c.b16 %v3171, %v3169
  %v3342 = vpack.c.b16 %v3172, %v3170
  %v3343 = vpack.c.b16 %v3175, %v3173
  %v3344 = vpack.c.b16 %v3176, %v3174
  %v3345 = vpack.c.b16 %v3179, %v3177
  %v3346 = vpack.c.b16 %v3180, %v3178
  %v3347 = vpack.c.b16 %v3183, %v3181
  %v3348 = vpack.c.b16 %v3184, %v3182
  %v3349 = vpack.c.b16 %v3187, %v3185
  %v3350 = vpack.c.b16 %v3188, %v3186
  %v3351 = vpack.c.b16 %v3191, %v3189
  %v3352 = vpack.c.b16 %v3192, %v3190
  %v3353 = vpack.c.b16 %v3195, %v3193
  %v3354 = vpack.c.b16 %v3196, %v3194
  %v3355 = vpack.c.b16 %v3199, %v3197
  %v3356 = vpack.c.b16 %v3200, %v3198
  %v3357 = vpack.c.b16 %v3203, %v3201
  %v3358 = vpack.c.b16 %v3204, %v3202
  %v3359 = vpack.c.b16 %v3207, %v3205
  %v3360 = vpack.c.b16 %v3208, %v3206
  %v3361 = vpack.c.b16 %v3211, %v3209
  %v3362 = vpack.c.b16 %v3212, %v3210
  %v3363 = vpack.c.b16 %v3215, %v3213
  %v3364 = vpack.c.b16 %v3216, %v3214
  %v3365 = vpack.c.b16 %v3219, %v3217
  %v3366 = vpack.c.b16 %v3220, %v3218
  %v3367 = vpack.c.b16 %v3223, %v3221
  %v3368 = vpack.c.b16 %v3224, %v3222
  %v3369 = vpack.c.b16 %v3227, %v3225
  %v3370 = vpack.c.b16 %v3228, %v3226
  %v3371 = vpack.c.b16 %v3231, %v3229
  %v3372 = vpack.c.b16 %v3232, %v3230
  %v3373 = vpack.c.b16 %v3235, %v3233
  %v3374 = vpack.c.b16 %v3236, %v3234
  %v3375 = vpack.c.b16 %v3239, %v3237
  %v3376 = vpack.c.b16 %v3240, %v3238
  %v3377 = vpack.c.b16 %v3243, %v3241
  %v3378 = vpack.c.b16 %v3244, %v3242
  %v3379 = vpack.c.b16 %v3247, %v3245
  %v3380 = vpack.c.b16 %v3248, %v3246
  %v3381 = vpack.c.b16 %v3251, %v3249
  %v3382 = vpack.c.b16 %v3252, %v3250
  %v3383 = vpack.c.b16 %v3255, %v3253
  %v3384 = vpack.c.b16 %v3256, %v3254
  %3513 = vmatprep.subr.bf16.mxu0 %v3258
  %3514 = vmatpush1.bf16.msra.mxu0 %v3257
  %3515 = vmatprep.subr.bf16.mxu0 %v3260
  %3516 = vmatpush1.bf16.msra.mxu0 %v3259
  %3517 = vmatprep.subr.bf16.mxu0 %v3262
  %3518 = vmatpush1.bf16.msra.mxu0 %v3261
  %3519 = vmatprep.subr.bf16.mxu0 %v3264
  %3520 = vmatpush1.bf16.msra.mxu0 %v3263
  %3521 = vmatprep.subr.bf16.mxu0 %v3266
  %3522 = vmatpush1.bf16.msra.mxu0 %v3265
  %3523 = vmatprep.subr.bf16.mxu0 %v3268
  %3524 = vmatpush1.bf16.msra.mxu0 %v3267
  %3525 = vmatprep.subr.bf16.mxu0 %v3270
  %3526 = vmatpush1.bf16.msra.mxu0 %v3269
  %3527 = vmatprep.subr.bf16.mxu0 %v3272
  %3528 = vmatpush1.bf16.msra.mxu0 %v3271
  %3529 = vmatprep.subr.bf16.mxu0 %v3274
  %3530 = vmatpush1.bf16.msra.mxu0 %v3273
  %3531 = vmatprep.subr.bf16.mxu0 %v3276
  %3532 = vmatpush1.bf16.msra.mxu0 %v3275
  %3533 = vmatprep.subr.bf16.mxu0 %v3278
  %3534 = vmatpush1.bf16.msra.mxu0 %v3277
  %3535 = vmatprep.subr.bf16.mxu0 %v3280
  %3536 = vmatpush1.bf16.msra.mxu0 %v3279
  %3537 = vmatprep.subr.bf16.mxu0 %v3282
  %3538 = vmatpush1.bf16.msra.mxu0 %v3281
  %3539 = vmatprep.subr.bf16.mxu0 %v3284
  %3540 = vmatpush1.bf16.msra.mxu0 %v3283
  %3541 = vmatprep.subr.bf16.mxu0 %v3286
  %3542 = vmatpush1.bf16.msra.mxu0 %v3285
  %3543 = vmatprep.subr.bf16.mxu0 %v3288
  %3544 = vmatpush1.bf16.msra.mxu0 %v3287
  %3545 = vmatprep.mubr.bf16.mxu0 %v2858
  %3546 = vmatmul.mubr.bf16.gmra.mrb[0].mxu0 %v2857
  %v3547 = vpop.f32.mrb[0].mxu0
  %v3548 = vadd.f32 0.0, %v3547
  %v3549 = vpop.f32.mrb[0].mxu0
  %v3550 = vadd.f32 0.0, %v3549
  %v3551 = vpop.f32.mrb[0].mxu0
  %v3552 = vpop.f32.mrb[0].mxu0
  %3553 = vdwg.mxu0
  %3554 = vmatprep.subr.bf16.mxu0 %v3290
  %3555 = vmatpush1.bf16.msra.mxu0 %v3289
  %3556 = vmatprep.subr.bf16.mxu0 %v3292
  %3557 = vmatpush1.bf16.msra.mxu0 %v3291
  %3558 = vmatprep.subr.bf16.mxu0 %v3294
  %3559 = vmatpush1.bf16.msra.mxu0 %v3293
  %3560 = vmatprep.subr.bf16.mxu0 %v3296
  %3561 = vmatpush1.bf16.msra.mxu0 %v3295
  %3562 = vmatprep.subr.bf16.mxu0 %v3298
  %3563 = vmatpush1.bf16.msra.mxu0 %v3297
  %3564 = vmatprep.subr.bf16.mxu0 %v3300
  %3565 = vmatpush1.bf16.msra.mxu0 %v3299
  %3566 = vmatprep.subr.bf16.mxu0 %v3302
  %3567 = vmatpush1.bf16.msra.mxu0 %v3301
  %3568 = vmatprep.subr.bf16.mxu0 %v3304
  %3569 = vmatpush1.bf16.msra.mxu0 %v3303
  %3570 = vmatprep.subr.bf16.mxu0 %v3306
  %3571 = vmatpush1.bf16.msra.mxu0 %v3305
  %3572 = vmatprep.subr.bf16.mxu0 %v3308
  %3573 = vmatpush1.bf16.msra.mxu0 %v3307
  %3574 = vmatprep.subr.bf16.mxu0 %v3310
  %3575 = vmatpush1.bf16.msra.mxu0 %v3309
  %3576 = vmatprep.subr.bf16.mxu0 %v3312
  %3577 = vmatpush1.bf16.msra.mxu0 %v3311
  %3578 = vmatprep.subr.bf16.mxu0 %v3314
  %3579 = vmatpush1.bf16.msra.mxu0 %v3313
  %3580 = vmatprep.subr.bf16.mxu0 %v3316
  %3581 = vmatpush1.bf16.msra.mxu0 %v3315
  %3582 = vmatprep.subr.bf16.mxu0 %v3318
  %3583 = vmatpush1.bf16.msra.mxu0 %v3317
  %3584 = vmatprep.subr.bf16.mxu0 %v3320
  %3585 = vmatpush1.bf16.msra.mxu0 %v3319
  %3586 = vmatprep.mubr.bf16.mxu0 %v2860
  %3587 = vmatmul.mubr.bf16.gmra.mrb[0].mxu0 %v2859
  %v3588 = vpop.f32.mrb[0].mxu0
  %v3589 = vadd.f32 %v3548, %v3588
  %v3590 = vpop.f32.mrb[0].mxu0
  %v3591 = vadd.f32 %v3550, %v3590
  %v3592 = vpop.f32.mrb[0].mxu0
  %v3593 = vpop.f32.mrb[0].mxu0
  %3594 = vdwg.mxu0
  %3595 = vmatprep.subr.bf16.mxu0 %v3322
  %3596 = vmatpush1.bf16.msra.mxu0 %v3321
  %3597 = vmatprep.subr.bf16.mxu0 %v3324
  %3598 = vmatpush1.bf16.msra.mxu0 %v3323
  %3599 = vmatprep.subr.bf16.mxu0 %v3326
  %3600 = vmatpush1.bf16.msra.mxu0 %v3325
  %3601 = vmatprep.subr.bf16.mxu0 %v3328
  %3602 = vmatpush1.bf16.msra.mxu0 %v3327
  %3603 = vmatprep.subr.bf16.mxu0 %v3330
  %3604 = vmatpush1.bf16.msra.mxu0 %v3329
  %3605 = vmatprep.subr.bf16.mxu0 %v3332
  %3606 = vmatpush1.bf16.msra.mxu0 %v3331
  %3607 = vmatprep.subr.bf16.mxu0 %v3334
  %3608 = vmatpush1.bf16.msra.mxu0 %v3333
  %3609 = vmatprep.subr.bf16.mxu0 %v3336
  %3610 = vmatpush1.bf16.msra.mxu0 %v3335
  %3611 = vmatprep.subr.bf16.mxu0 %v3338
  %3612 = vmatpush1.bf16.msra.mxu0 %v3337
  %3613 = vmatprep.subr.bf16.mxu0 %v3340
  %3614 = vmatpush1.bf16.msra.mxu0 %v3339
  %3615 = vmatprep.subr.bf16.mxu0 %v3342
  %3616 = vmatpush1.bf16.msra.mxu0 %v3341
  %3617 = vmatprep.subr.bf16.mxu0 %v3344
  %3618 = vmatpush1.bf16.msra.mxu0 %v3343
  %3619 = vmatprep.subr.bf16.mxu0 %v3346
  %3620 = vmatpush1.bf16.msra.mxu0 %v3345
  %3621 = vmatprep.subr.bf16.mxu0 %v3348
  %3622 = vmatpush1.bf16.msra.mxu0 %v3347
  %3623 = vmatprep.subr.bf16.mxu0 %v3350
  %3624 = vmatpush1.bf16.msra.mxu0 %v3349
  %3625 = vmatprep.subr.bf16.mxu0 %v3352
  %3626 = vmatpush1.bf16.msra.mxu0 %v3351
  %3627 = vmatprep.mubr.bf16.mxu0 %v2862
  %3628 = vmatmul.mubr.bf16.gmra.mrb[0].mxu0 %v2861
  %v3629 = vpop.f32.mrb[0].mxu0
  %v3630 = vadd.f32 %v3589, %v3629
  %v3631 = vpop.f32.mrb[0].mxu0
  %v3632 = vadd.f32 %v3591, %v3631
  %v3633 = vpop.f32.mrb[0].mxu0
  %v3634 = vpop.f32.mrb[0].mxu0
  %3635 = vdwg.mxu0
  %3636 = vmatprep.subr.bf16.mxu0 %v3354
  %3637 = vmatpush1.bf16.msra.mxu0 %v3353
  %3638 = vmatprep.subr.bf16.mxu0 %v3356
  %3639 = vmatpush1.bf16.msra.mxu0 %v3355
  %3640 = vmatprep.subr.bf16.mxu0 %v3358
  %3641 = vmatpush1.bf16.msra.mxu0 %v3357
  %3642 = vmatprep.subr.bf16.mxu0 %v3360
  %3643 = vmatpush1.bf16.msra.mxu0 %v3359
  %3644 = vmatprep.subr.bf16.mxu0 %v3362
  %3645 = vmatpush1.bf16.msra.mxu0 %v3361
  %3646 = vmatprep.subr.bf16.mxu0 %v3364
  %3647 = vmatpush1.bf16.msra.mxu0 %v3363
  %3648 = vmatprep.subr.bf16.mxu0 %v3366
  %3649 = vmatpush1.bf16.msra.mxu0 %v3365
  %3650 = vmatprep.subr.bf16.mxu0 %v3368
  %3651 = vmatpush1.bf16.msra.mxu0 %v3367
  %3652 = vmatprep.subr.bf16.mxu0 %v3370
  %3653 = vmatpush1.bf16.msra.mxu0 %v3369
  %3654 = vmatprep.subr.bf16.mxu0 %v3372
  %3655 = vmatpush1.bf16.msra.mxu0 %v3371
  %3656 = vmatprep.subr.bf16.mxu0 %v3374
  %3657 = vmatpush1.bf16.msra.mxu0 %v3373
  %3658 = vmatprep.subr.bf16.mxu0 %v3376
  %3659 = vmatpush1.bf16.msra.mxu0 %v3375
  %3660 = vmatprep.subr.bf16.mxu0 %v3378
  %3661 = vmatpush1.bf16.msra.mxu0 %v3377
  %3662 = vmatprep.subr.bf16.mxu0 %v3380
  %3663 = vmatpush1.bf16.msra.mxu0 %v3379
  %3664 = vmatprep.subr.bf16.mxu0 %v3382
  %3665 = vmatpush1.bf16.msra.mxu0 %v3381
  %3666 = vmatprep.subr.bf16.mxu0 %v3384
  %3667 = vmatpush1.bf16.msra.mxu0 %v3383
  %3668 = vmatprep.mubr.bf16.mxu0 %v2864
  %3669 = vmatmul.mubr.bf16.gmra.mrb[0].mxu0 %v2863
  %v3670 = vpop.f32.mrb[0].mxu0
  %v3671 = vadd.f32 %v3630, %v3670
  %v3672 = vpop.f32.mrb[0].mxu0
  %v3673 = vadd.f32 %v3632, %v3672
  %v3674 = vpop.f32.mrb[0].mxu0
  %v3675 = vpop.f32.mrb[0].mxu0
  %3676 = vdwg.mxu0
  %3677 = vmatprep.subr.bf16.mxu0 %v3258
  %3678 = vmatpush1.bf16.msra.mxu0 %v3257
  %3679 = vmatprep.subr.bf16.mxu0 %v3260
  %3680 = vmatpush1.bf16.msra.mxu0 %v3259
  %3681 = vmatprep.subr.bf16.mxu0 %v3262
  %3682 = vmatpush1.bf16.msra.mxu0 %v3261
  %3683 = vmatprep.subr.bf16.mxu0 %v3264
  %3684 = vmatpush1.bf16.msra.mxu0 %v3263
  %3685 = vmatprep.subr.bf16.mxu0 %v3266
  %3686 = vmatpush1.bf16.msra.mxu0 %v3265
  %3687 = vmatprep.subr.bf16.mxu0 %v3268
  %3688 = vmatpush1.bf16.msra.mxu0 %v3267
  %3689 = vmatprep.subr.bf16.mxu0 %v3270
  %3690 = vmatpush1.bf16.msra.mxu0 %v3269
  %3691 = vmatprep.subr.bf16.mxu0 %v3272
  %3692 = vmatpush1.bf16.msra.mxu0 %v3271
  %3693 = vmatprep.subr.bf16.mxu0 %v3274
  %3694 = vmatpush1.bf16.msra.mxu0 %v3273
  %3695 = vmatprep.subr.bf16.mxu0 %v3276
  %3696 = vmatpush1.bf16.msra.mxu0 %v3275
  %3697 = vmatprep.subr.bf16.mxu0 %v3278
  %3698 = vmatpush1.bf16.msra.mxu0 %v3277
  %3699 = vmatprep.subr.bf16.mxu0 %v3280
  %3700 = vmatpush1.bf16.msra.mxu0 %v3279
  %3701 = vmatprep.subr.bf16.mxu0 %v3282
  %3702 = vmatpush1.bf16.msra.mxu0 %v3281
  %3703 = vmatprep.subr.bf16.mxu0 %v3284
  %3704 = vmatpush1.bf16.msra.mxu0 %v3283
  %3705 = vmatprep.subr.bf16.mxu0 %v3286
  %3706 = vmatpush1.bf16.msra.mxu0 %v3285
  %3707 = vmatprep.subr.bf16.mxu0 %v3288
  %3708 = vmatpush1.bf16.msra.mxu0 %v3287
  %3709 = vmatprep.mubr.bf16.mxu0 %v2866
  %3710 = vmatmul.mubr.bf16.gmra.mrb[0].mxu0 %v2865
  %v3711 = vpop.f32.mrb[0].mxu0
  %v3712 = vadd.f32 0.0, %v3711
  %v3713 = vpop.f32.mrb[0].mxu0
  %v3714 = vadd.f32 0.0, %v3713
  %v3715 = vpop.f32.mrb[0].mxu0
  %v3716 = vpop.f32.mrb[0].mxu0
  %3717 = vdwg.mxu0
  %3718 = vmatprep.subr.bf16.mxu0 %v3290
  %3719 = vmatpush1.bf16.msra.mxu0 %v3289
  %3720 = vmatprep.subr.bf16.mxu0 %v3292
  %3721 = vmatpush1.bf16.msra.mxu0 %v3291
  %3722 = vmatprep.subr.bf16.mxu0 %v3294
  %3723 = vmatpush1.bf16.msra.mxu0 %v3293
  %3724 = vmatprep.subr.bf16.mxu0 %v3296
  %3725 = vmatpush1.bf16.msra.mxu0 %v3295
  %3726 = vmatprep.subr.bf16.mxu0 %v3298
  %3727 = vmatpush1.bf16.msra.mxu0 %v3297
  %3728 = vmatprep.subr.bf16.mxu0 %v3300
  %3729 = vmatpush1.bf16.msra.mxu0 %v3299
  %3730 = vmatprep.subr.bf16.mxu0 %v3302
  %3731 = vmatpush1.bf16.msra.mxu0 %v3301
  %3732 = vmatprep.subr.bf16.mxu0 %v3304
  %3733 = vmatpush1.bf16.msra.mxu0 %v3303
  %3734 = vmatprep.subr.bf16.mxu0 %v3306
  %3735 = vmatpush1.bf16.msra.mxu0 %v3305
  %3736 = vmatprep.subr.bf16.mxu0 %v3308
  %3737 = vmatpush1.bf16.msra.mxu0 %v3307
  %3738 = vmatprep.subr.bf16.mxu0 %v3310
  %3739 = vmatpush1.bf16.msra.mxu0 %v3309
  %3740 = vmatprep.subr.bf16.mxu0 %v3312
  %3741 = vmatpush1.bf16.msra.mxu0 %v3311
  %3742 = vmatprep.subr.bf16.mxu0 %v3314
  %3743 = vmatpush1.bf16.msra.mxu0 %v3313
  %3744 = vmatprep.subr.bf16.mxu0 %v3316
  %3745 = vmatpush1.bf16.msra.mxu0 %v3315
  %3746 = vmatprep.subr.bf16.mxu0 %v3318
  %3747 = vmatpush1.bf16.msra.mxu0 %v3317
  %3748 = vmatprep.subr.bf16.mxu0 %v3320
  %3749 = vmatpush1.bf16.msra.mxu0 %v3319
  %3750 = vmatprep.mubr.bf16.mxu0 %v2868
  %3751 = vmatmul.mubr.bf16.gmra.mrb[0].mxu0 %v2867
  %v3752 = vpop.f32.mrb[0].mxu0
  %v3753 = vadd.f32 %v3712, %v3752
  %v3754 = vpop.f32.mrb[0].mxu0
  %v3755 = vadd.f32 %v3714, %v3754
  %v3756 = vpop.f32.mrb[0].mxu0
  %v3757 = vpop.f32.mrb[0].mxu0
  %3758 = vdwg.mxu0
  %3759 = vmatprep.subr.bf16.mxu0 %v3322
  %3760 = vmatpush1.bf16.msra.mxu0 %v3321
  %3761 = vmatprep.subr.bf16.mxu0 %v3324
  %3762 = vmatpush1.bf16.msra.mxu0 %v3323
  %3763 = vmatprep.subr.bf16.mxu0 %v3326
  %3764 = vmatpush1.bf16.msra.mxu0 %v3325
  %3765 = vmatprep.subr.bf16.mxu0 %v3328
  %3766 = vmatpush1.bf16.msra.mxu0 %v3327
  %3767 = vmatprep.subr.bf16.mxu0 %v3330
  %3768 = vmatpush1.bf16.msra.mxu0 %v3329
  %3769 = vmatprep.subr.bf16.mxu0 %v3332
  %3770 = vmatpush1.bf16.msra.mxu0 %v3331
  %3771 = vmatprep.subr.bf16.mxu0 %v3334
  %3772 = vmatpush1.bf16.msra.mxu0 %v3333
  %3773 = vmatprep.subr.bf16.mxu0 %v3336
  %3774 = vmatpush1.bf16.msra.mxu0 %v3335
  %3775 = vmatprep.subr.bf16.mxu0 %v3338
  %3776 = vmatpush1.bf16.msra.mxu0 %v3337
  %3777 = vmatprep.subr.bf16.mxu0 %v3340
  %3778 = vmatpush1.bf16.msra.mxu0 %v3339
  %3779 = vmatprep.subr.bf16.mxu0 %v3342
  %3780 = vmatpush1.bf16.msra.mxu0 %v3341
  %3781 = vmatprep.subr.bf16.mxu0 %v3344
  %3782 = vmatpush1.bf16.msra.mxu0 %v3343
  %3783 = vmatprep.subr.bf16.mxu0 %v3346
  %3784 = vmatpush1.bf16.msra.mxu0 %v3345
  %3785 = vmatprep.subr.bf16.mxu0 %v3348
  %3786 = vmatpush1.bf16.msra.mxu0 %v3347
  %3787 = vmatprep.subr.bf16.mxu0 %v3350
  %3788 = vmatpush1.bf16.msra.mxu0 %v3349
  %3789 = vmatprep.subr.bf16.mxu0 %v3352
  %3790 = vmatpush1.bf16.msra.mxu0 %v3351
  %3791 = vmatprep.mubr.bf16.mxu0 %v2870
  %3792 = vmatmul.mubr.bf16.gmra.mrb[0].mxu0 %v2869
  %v3793 = vpop.f32.mrb[0].mxu0
  %v3794 = vadd.f32 %v3753, %v3793
  %v3795 = vpop.f32.mrb[0].mxu0
  %v3796 = vadd.f32 %v3755, %v3795
  %v3797 = vpop.f32.mrb[0].mxu0
  %v3798 = vpop.f32.mrb[0].mxu0
  %3799 = vdwg.mxu0
  %3800 = vmatprep.subr.bf16.mxu0 %v3354
  %3801 = vmatpush1.bf16.msra.mxu0 %v3353
  %3802 = vmatprep.subr.bf16.mxu0 %v3356
  %3803 = vmatpush1.bf16.msra.mxu0 %v3355
  %3804 = vmatprep.subr.bf16.mxu0 %v3358
  %3805 = vmatpush1.bf16.msra.mxu0 %v3357
  %3806 = vmatprep.subr.bf16.mxu0 %v3360
  %3807 = vmatpush1.bf16.msra.mxu0 %v3359
  %3808 = vmatprep.subr.bf16.mxu0 %v3362
  %3809 = vmatpush1.bf16.msra.mxu0 %v3361
  %3810 = vmatprep.subr.bf16.mxu0 %v3364
  %3811 = vmatpush1.bf16.msra.mxu0 %v3363
  %3812 = vmatprep.subr.bf16.mxu0 %v3366
  %3813 = vmatpush1.bf16.msra.mxu0 %v3365
  %3814 = vmatprep.subr.bf16.mxu0 %v3368
  %3815 = vmatpush1.bf16.msra.mxu0 %v3367
  %3816 = vmatprep.subr.bf16.mxu0 %v3370
  %3817 = vmatpush1.bf16.msra.mxu0 %v3369
  %3818 = vmatprep.subr.bf16.mxu0 %v3372
  %3819 = vmatpush1.bf16.msra.mxu0 %v3371
  %3820 = vmatprep.subr.bf16.mxu0 %v3374
  %3821 = vmatpush1.bf16.msra.mxu0 %v3373
  %3822 = vmatprep.subr.bf16.mxu0 %v3376
  %3823 = vmatpush1.bf16.msra.mxu0 %v3375
  %3824 = vmatprep.subr.bf16.mxu0 %v3378
  %3825 = vmatpush1.bf16.msra.mxu0 %v3377
  %3826 = vmatprep.subr.bf16.mxu0 %v3380
  %3827 = vmatpush1.bf16.msra.mxu0 %v3379
  %3828 = vmatprep.subr.bf16.mxu0 %v3382
  %3829 = vmatpush1.bf16.msra.mxu0 %v3381
  %3830 = vmatprep.subr.bf16.mxu0 %v3384
  %3831 = vmatpush1.bf16.msra.mxu0 %v3383
  %3832 = vmatprep.mubr.bf16.mxu0 %v2872
  %3833 = vmatmul.mubr.bf16.gmra.mrb[0].mxu0 %v2871
  %v3834 = vpop.f32.mrb[0].mxu0
  %v3835 = vadd.f32 %v3794, %v3834
  %v3836 = vpop.f32.mrb[0].mxu0
  %v3837 = vadd.f32 %v3796, %v3836
  %v3838 = vpop.f32.mrb[0].mxu0
  %v3839 = vpop.f32.mrb[0].mxu0
  %3840 = vdwg.mxu0
  %v3841 = vld [vmem:[%s23] sm:$0xff]
  %v3842 = vld [vmem:[%s23 + $0x8] sm:$0xff]
  %v3843 = vld [vmem:[%s23 + $0x10] sm:$0x11]
  %v3844 = vld [vmem:[%s23 + $0x18] sm:$0x11]
  %v3845 = vunpack.c.l.bf16 %v3841
  %v3846 = vunpack.c.h.bf16 %v3841
  %v3847 = vunpack.c.l.bf16 %v3842
  %v3848 = vunpack.c.h.bf16 %v3842
  %v3849 = vunpack.c.l.bf16 %v3843
  %v3850 = vunpack.c.h.bf16 %v3843
  %v3851 = vunpack.c.l.bf16 %v3844
  %v3852 = vunpack.c.h.bf16 %v3844
  %v3853 = vld [vmem:[%s25] sm:$0xf]
  %v3854 = vld [vmem:[%s25 + $0x4] sm:$0xf]
  %v3855 = vld [vmem:[%s25 + $0x8] sm:$0xf]
  %v3856 = vld [vmem:[%s25 + $0xc] sm:$0xf]
  %v3857 = vld [vmem:[%s25 + $0x10] sm:$0xf]
  %v3858 = vld [vmem:[%s25 + $0x14] sm:$0xf]
  %v3859 = vld [vmem:[%s25 + $0x18] sm:$0xf]
  %v3860 = vld [vmem:[%s25 + $0x1c] sm:$0xf]
  %v3861 = vld [vmem:[%s25 + $0x20] sm:$0xf]
  %v3862 = vld [vmem:[%s25 + $0x24] sm:$0xf]
  %v3863 = vld [vmem:[%s25 + $0x28] sm:$0xf]
  %v3864 = vld [vmem:[%s25 + $0x2c] sm:$0xf]
  %v3865 = vld [vmem:[%s25 + $0x30] sm:$0xf]
  %v3866 = vld [vmem:[%s25 + $0x34] sm:$0xf]
  %v3867 = vld [vmem:[%s25 + $0x38] sm:$0xf]
  %v3868 = vld [vmem:[%s25 + $0x3c] sm:$0xf]
  %v3869 = vld [vmem:[%s25 + $0x40] sm:$0xf]
  %v3870 = vld [vmem:[%s25 + $0x44] sm:$0xf]
  %v3871 = vld [vmem:[%s25 + $0x48] sm:$0xf]
  %v3872 = vld [vmem:[%s25 + $0x4c] sm:$0xf]
  %v3873 = vld [vmem:[%s25 + $0x50] sm:$0xf]
  %v3874 = vld [vmem:[%s25 + $0x54] sm:$0xf]
  %v3875 = vld [vmem:[%s25 + $0x58] sm:$0xf]
  %v3876 = vld [vmem:[%s25 + $0x5c] sm:$0xf]
  %v3877 = vld [vmem:[%s25 + $0x60] sm:$0xf]
  %v3878 = vld [vmem:[%s25 + $0x64] sm:$0xf]
  %v3879 = vld [vmem:[%s25 + $0x68] sm:$0xf]
  %v3880 = vld [vmem:[%s25 + $0x6c] sm:$0xf]
  %v3881 = vld [vmem:[%s25 + $0x70] sm:$0xf]
  %v3882 = vld [vmem:[%s25 + $0x74] sm:$0xf]
  %v3883 = vld [vmem:[%s25 + $0x78] sm:$0xf]
  %v3884 = vld [vmem:[%s25 + $0x7c] sm:$0xf]
  %v3885 = vld [vmem:[%s15] sm:$0xf]
  %v3886 = vld [vmem:[%s15 + $0x4] sm:$0xf]
  %v3887 = vld [vmem:[%s17] sm:$0xff]
  %v3888 = vld [vmem:[%s17 + $0x8] sm:$0xff]
  %3889 = vrot.lane.b32.xlu0 %v3671, 17
  %v3890 = vpop.permute.xlu0 %3889
  %3891 = vrot.lane.b32.xlu0 %v3673, 17
  %v3892 = vpop.permute.xlu0 %3891
  %3893 = vrot.lane.b32.xlu0 %v3835, 17
  %v3894 = vpop.permute.xlu0 %3893
  %3895 = vrot.lane.b32.xlu0 %v3837, 17
  %v3896 = vpop.permute.xlu0 %3895
  %vm3897 = vcmp.lt.s32.totalorder %v380, 17
  %v3898 = vsel %vm3897, %v3894, %v3896
  %v3899 = vsel %vm3897, %v3892, %v3894
  %v3900 = vsel %vm3897, %v3890, %v3892
  %v3901 = vsel %vm3897, %v3896, %v3890
  %v3902 = vlaneseq
  %v3903 = vshrl.u32 %v3902, 7
  %v3904 = vsub.s32 0, %v3903
  %v3905 = vrot.slane %v3845, %v3904
  %v3906 = vlaneseq
  %v3907 = vshrl.u32 %v3906, 7
  %v3908 = vsub.s32 0, %v3907
  %v3909 = vrot.slane %v3846, %v3908
  %v3910 = vlaneseq
  %v3911 = vshrl.u32 %v3910, 7
  %v3912 = vsub.s32 0, %v3911
  %v3913 = vrot.slane %v3847, %v3912
  %v3914 = vlaneseq
  %v3915 = vshrl.u32 %v3914, 7
  %v3916 = vsub.s32 0, %v3915
  %v3917 = vrot.slane %v3848, %v3916
  %v3918 = vmul.f32 %v3901, %v3905
  %v3919 = vmul.f32 %v3900, %v3909
  %v3920 = vmul.f32 %v3899, %v3913
  %v3921 = vmul.f32 %v3898, %v3917
  %3922 = vrot.lane.b32.xlu0 %v3671, 16
  %v3923 = vpop.permute.xlu0 %3922
  %3924 = vrot.lane.b32.xlu0 %v3673, 16
  %v3925 = vpop.permute.xlu0 %3924
  %3926 = vrot.lane.b32.xlu0 %v3835, 16
  %v3927 = vpop.permute.xlu0 %3926
  %3928 = vrot.lane.b32.xlu0 %v3837, 16
  %v3929 = vpop.permute.xlu0 %3928
  %vm3930 = vcmp.lt.s32.totalorder %v380, 16
  %v3931 = vsel %vm3930, %v3927, %v3929
  %v3932 = vsel %vm3930, %v3925, %v3927
  %v3933 = vsel %vm3930, %v3923, %v3925
  %v3934 = vsel %vm3930, %v3929, %v3923
  %v3935 = vlaneseq
  %v3936 = vshrl.u32 %v3935, 7
  %v3937 = vsub.s32 1, %v3936
  %v3938 = vrot.slane %v3845, %v3937
  %v3939 = vlaneseq
  %v3940 = vshrl.u32 %v3939, 7
  %v3941 = vsub.s32 1, %v3940
  %v3942 = vrot.slane %v3846, %v3941
  %v3943 = vlaneseq
  %v3944 = vshrl.u32 %v3943, 7
  %v3945 = vsub.s32 1, %v3944
  %v3946 = vrot.slane %v3847, %v3945
  %v3947 = vlaneseq
  %v3948 = vshrl.u32 %v3947, 7
  %v3949 = vsub.s32 1, %v3948
  %v3950 = vrot.slane %v3848, %v3949
  %v3951 = vmul.f32 %v3934, %v3938
  %v3952 = vmul.f32 %v3933, %v3942
  %v3953 = vmul.f32 %v3932, %v3946
  %v3954 = vmul.f32 %v3931, %v3950
  %3955 = vrot.lane.b32.xlu0 %v3671, 15
  %v3956 = vpop.permute.xlu0 %3955
  %3957 = vrot.lane.b32.xlu0 %v3673, 15
  %v3958 = vpop.permute.xlu0 %3957
  %3959 = vrot.lane.b32.xlu0 %v3835, 15
  %v3960 = vpop.permute.xlu0 %3959
  %3961 = vrot.lane.b32.xlu0 %v3837, 15
  %v3962 = vpop.permute.xlu0 %3961
  %vm3963 = vcmp.lt.s32.totalorder %v380, 15
  %v3964 = vsel %vm3963, %v3960, %v3962
  %v3965 = vsel %vm3963, %v3958, %v3960
  %v3966 = vsel %vm3963, %v3956, %v3958
  %v3967 = vsel %vm3963, %v3962, %v3956
  %v3968 = vlaneseq
  %v3969 = vshrl.u32 %v3968, 7
  %v3970 = vsub.s32 2, %v3969
  %v3971 = vrot.slane %v3845, %v3970
  %v3972 = vlaneseq
  %v3973 = vshrl.u32 %v3972, 7
  %v3974 = vsub.s32 2, %v3973
  %v3975 = vrot.slane %v3846, %v3974
  %v3976 = vlaneseq
  %v3977 = vshrl.u32 %v3976, 7
  %v3978 = vsub.s32 2, %v3977
  %v3979 = vrot.slane %v3847, %v3978
  %v3980 = vlaneseq
  %v3981 = vshrl.u32 %v3980, 7
  %v3982 = vsub.s32 2, %v3981
  %v3983 = vrot.slane %v3848, %v3982
  %v3984 = vmul.f32 %v3967, %v3971
  %v3985 = vmul.f32 %v3966, %v3975
  %v3986 = vmul.f32 %v3965, %v3979
  %v3987 = vmul.f32 %v3964, %v3983
  %3988 = vrot.lane.b32.xlu0 %v3671, 1
  %v3989 = vpop.permute.xlu0 %3988
  %3990 = vrot.lane.b32.xlu0 %v3673, 1
  %v3991 = vpop.permute.xlu0 %3990
  %3992 = vrot.lane.b32.xlu0 %v3835, 1
  %v3993 = vpop.permute.xlu0 %3992
  %3994 = vrot.lane.b32.xlu0 %v3837, 1
  %v3995 = vpop.permute.xlu0 %3994
  %v3996 = vsel %vm768, %v3993, %v3995
  %v3997 = vsel %vm768, %v3991, %v3993
  %v3998 = vsel %vm768, %v3989, %v3991
  %v3999 = vsel %vm768, %v3995, %v3989
  %v4000 = vlaneseq
  %v4001 = vshrl.u32 %v4000, 7
  %v4002 = vsub.s32 3, %v4001
  %v4003 = vrot.slane %v3845, %v4002
  %v4004 = vlaneseq
  %v4005 = vshrl.u32 %v4004, 7
  %v4006 = vsub.s32 3, %v4005
  %v4007 = vrot.slane %v3846, %v4006
  %v4008 = vlaneseq
  %v4009 = vshrl.u32 %v4008, 7
  %v4010 = vsub.s32 3, %v4009
  %v4011 = vrot.slane %v3847, %v4010
  %v4012 = vlaneseq
  %v4013 = vshrl.u32 %v4012, 7
  %v4014 = vsub.s32 3, %v4013
  %v4015 = vrot.slane %v3848, %v4014
  %v4016 = vmul.f32 %v3999, %v4003
  %v4017 = vmul.f32 %v3998, %v4007
  %v4018 = vmul.f32 %v3997, %v4011
  %v4019 = vmul.f32 %v3996, %v4015
  %4020 = vrot.lane.b32.xlu0 %v3671, 127
  %v4021 = vpop.permute.xlu0 %4020
  %4022 = vrot.lane.b32.xlu0 %v3673, 127
  %v4023 = vpop.permute.xlu0 %4022
  %4024 = vrot.lane.b32.xlu0 %v3835, 127
  %v4025 = vpop.permute.xlu0 %4024
  %4026 = vrot.lane.b32.xlu0 %v3837, 127
  %v4027 = vpop.permute.xlu0 %4026
  %v4028 = vsel %vm897, %v4025, %v4027
  %v4029 = vsel %vm897, %v4023, %v4025
  %v4030 = vsel %vm897, %v4021, %v4023
  %v4031 = vsel %vm897, %v4027, %v4021
  %v4032 = vlaneseq
  %v4033 = vshrl.u32 %v4032, 7
  %v4034 = vsub.s32 5, %v4033
  %v4035 = vrot.slane %v3845, %v4034
  %v4036 = vlaneseq
  %v4037 = vshrl.u32 %v4036, 7
  %v4038 = vsub.s32 5, %v4037
  %v4039 = vrot.slane %v3846, %v4038
  %v4040 = vlaneseq
  %v4041 = vshrl.u32 %v4040, 7
  %v4042 = vsub.s32 5, %v4041
  %v4043 = vrot.slane %v3847, %v4042
  %v4044 = vlaneseq
  %v4045 = vshrl.u32 %v4044, 7
  %v4046 = vsub.s32 5, %v4045
  %v4047 = vrot.slane %v3848, %v4046
  %v4048 = vmul.f32 %v4030, %v4035
  %v4049 = vmul.f32 %v4029, %v4039
  %v4050 = vmul.f32 %v4028, %v4043
  %v4051 = vmul.f32 %v4031, %v4047
  %4052 = vrot.lane.b32.xlu0 %v3671, 113
  %v4053 = vpop.permute.xlu0 %4052
  %4054 = vrot.lane.b32.xlu0 %v3673, 113
  %v4055 = vpop.permute.xlu0 %4054
  %4056 = vrot.lane.b32.xlu0 %v3835, 113
  %v4057 = vpop.permute.xlu0 %4056
  %4058 = vrot.lane.b32.xlu0 %v3837, 113
  %v4059 = vpop.permute.xlu0 %4058
  %vm4060 = vcmp.lt.s32.totalorder %v380, 113
  %v4061 = vsel %vm4060, %v4057, %v4059
  %v4062 = vsel %vm4060, %v4055, %v4057
  %v4063 = vsel %vm4060, %v4053, %v4055
  %v4064 = vsel %vm4060, %v4059, %v4053
  %v4065 = vlaneseq
  %v4066 = vshrl.u32 %v4065, 7
  %v4067 = vsub.s32 6, %v4066
  %v4068 = vrot.slane %v3845, %v4067
  %v4069 = vlaneseq
  %v4070 = vshrl.u32 %v4069, 7
  %v4071 = vsub.s32 6, %v4070
  %v4072 = vrot.slane %v3846, %v4071
  %v4073 = vlaneseq
  %v4074 = vshrl.u32 %v4073, 7
  %v4075 = vsub.s32 6, %v4074
  %v4076 = vrot.slane %v3847, %v4075
  %v4077 = vlaneseq
  %v4078 = vshrl.u32 %v4077, 7
  %v4079 = vsub.s32 6, %v4078
  %v4080 = vrot.slane %v3848, %v4079
  %v4081 = vmul.f32 %v4063, %v4068
  %v4082 = vmul.f32 %v4062, %v4072
  %v4083 = vmul.f32 %v4061, %v4076
  %v4084 = vmul.f32 %v4064, %v4080
  %4085 = vrot.lane.b32.xlu0 %v3671, 112
  %v4086 = vpop.permute.xlu0 %4085
  %4087 = vrot.lane.b32.xlu0 %v3673, 112
  %v4088 = vpop.permute.xlu0 %4087
  %4089 = vrot.lane.b32.xlu0 %v3835, 112
  %v4090 = vpop.permute.xlu0 %4089
  %4091 = vrot.lane.b32.xlu0 %v3837, 112
  %v4092 = vpop.permute.xlu0 %4091
  %vm4093 = vcmp.lt.s32.totalorder %v380, 112
  %v4094 = vsel %vm4093, %v4090, %v4092
  %v4095 = vsel %vm4093, %v4088, %v4090
  %v4096 = vsel %vm4093, %v4086, %v4088
  %v4097 = vsel %vm4093, %v4092, %v4086
  %v4098 = vlaneseq
  %v4099 = vshrl.u32 %v4098, 7
  %v4100 = vsub.s32 7, %v4099
  %v4101 = vrot.slane %v3845, %v4100
  %v4102 = vlaneseq
  %v4103 = vshrl.u32 %v4102, 7
  %v4104 = vsub.s32 7, %v4103
  %v4105 = vrot.slane %v3846, %v4104
  %v4106 = vlaneseq
  %v4107 = vshrl.u32 %v4106, 7
  %v4108 = vsub.s32 7, %v4107
  %v4109 = vrot.slane %v3847, %v4108
  %v4110 = vlaneseq
  %v4111 = vshrl.u32 %v4110, 7
  %v4112 = vsub.s32 7, %v4111
  %v4113 = vrot.slane %v3848, %v4112
  %v4114 = vmul.f32 %v4096, %v4101
  %v4115 = vmul.f32 %v4095, %v4105
  %v4116 = vmul.f32 %v4094, %v4109
  %v4117 = vmul.f32 %v4097, %v4113
  %4118 = vrot.lane.b32.xlu0 %v3671, 111
  %v4119 = vpop.permute.xlu0 %4118
  %4120 = vrot.lane.b32.xlu0 %v3673, 111
  %v4121 = vpop.permute.xlu0 %4120
  %4122 = vrot.lane.b32.xlu0 %v3835, 111
  %v4123 = vpop.permute.xlu0 %4122
  %4124 = vrot.lane.b32.xlu0 %v3837, 111
  %v4125 = vpop.permute.xlu0 %4124
  %vm4126 = vcmp.lt.s32.totalorder %v380, 111
  %v4127 = vsel %vm4126, %v4123, %v4125
  %v4128 = vsel %vm4126, %v4121, %v4123
  %v4129 = vsel %vm4126, %v4119, %v4121
  %v4130 = vsel %vm4126, %v4125, %v4119
  %v4131 = vlaneseq
  %v4132 = vshrl.u32 %v4131, 7
  %v4133 = vsub.s32 0, %v4132
  %v4134 = vrot.slane %v3849, %v4133
  %v4135 = vlaneseq
  %v4136 = vshrl.u32 %v4135, 7
  %v4137 = vsub.s32 0, %v4136
  %v4138 = vrot.slane %v3850, %v4137
  %v4139 = vlaneseq
  %v4140 = vshrl.u32 %v4139, 7
  %v4141 = vsub.s32 0, %v4140
  %v4142 = vrot.slane %v3851, %v4141
  %v4143 = vlaneseq
  %v4144 = vshrl.u32 %v4143, 7
  %v4145 = vsub.s32 0, %v4144
  %v4146 = vrot.slane %v3852, %v4145
  %v4147 = vmul.f32 %v4129, %v4134
  %v4148 = vmul.f32 %v4128, %v4138
  %v4149 = vmul.f32 %v4127, %v4142
  %v4150 = vmul.f32 %v4130, %v4146
  %v4151 = vpack.c.bf16 %v3951, %v3918
  %v4152 = vpack.c.bf16 %v3952, %v3919
  %v4153 = vpack.c.bf16 %v3953, %v3920
  %v4154 = vpack.c.bf16 %v3954, %v3921
  %v4155 = vpack.c.bf16 %v4016, %v3984
  %v4156 = vpack.c.bf16 %v4017, %v3985
  %v4157 = vpack.c.bf16 %v4018, %v3986
  %v4158 = vpack.c.bf16 %v4019, %v3987
  %v4159 = vpack.c.bf16 %v4048, %v3671
  %v4160 = vpack.c.bf16 %v4049, %v3673
  %v4161 = vpack.c.bf16 %v4050, %v3835
  %v4162 = vpack.c.bf16 %v4051, %v3837
  %v4163 = vpack.c.bf16 %v4114, %v4081
  %v4164 = vpack.c.bf16 %v4115, %v4082
  %v4165 = vpack.c.bf16 %v4116, %v4083
  %v4166 = vpack.c.bf16 %v4117, %v4084
  %v4167 = vpack.c.bf16 %v4147, %v4147
  %v4168 = vpack.c.bf16 %v4148, %v4148
  %v4169 = vpack.c.bf16 %v4149, %v4149
  %v4170 = vpack.c.bf16 %v4150, %v4150
  %4172 = vset.pattern.permute.xlu0 0
  %4173 = vperm.xlu0 %4172, %v3887
  %v4174 = vpop.permute.xlu0 %4173
  %4177 = vset.pattern.permute.xlu0 0
  %4178 = vperm.xlu0 %4177, %v3888
  %v4179 = vpop.permute.xlu0 %4178
  %v4183 = vunpack.c.l.b16 %v3885
  %v4184 = vunpack.c.l.b16 %v3886
  %v4185 = vpack.c.b16 %v4184, %v4183
  %v4187 = vsel %vm1466, %v4185, 0
  %v4190 = vsel %vm1470, %v4167, 0
  %v4193 = vsel %vm1470, %v4168, 0
  %v4196 = vsel %vm1470, %v4169, 0
  %v4199 = vsel %vm1470, %v4170, 0
  %4201 = vmatprep.subr.bf16.mxu0 %v4152
  %4202 = vmatpush1.bf16.msra.mxu0 %v4151
  %4203 = vmatprep.subr.bf16.mxu0 %v4156
  %4204 = vmatpush1.bf16.msra.mxu0 %v4155
  %4205 = vmatprep.subr.bf16.mxu0 %v4160
  %4206 = vmatpush1.bf16.msra.mxu0 %v4159
  %4207 = vmatprep.subr.bf16.mxu0 %v4164
  %4208 = vmatpush1.bf16.msra.mxu0 %v4163
  %4209 = vmatprep.subr.bf16.mxu0 %v4193
  %4210 = vmatpush1.bf16.msra.mxu0 %v4190
  %4211 = vmatprep.subr.bf16.mxu0 0
  %4212 = vmatpush1.bf16.msra.mxu0 0
  %4213 = vmatprep.subr.bf16.mxu0 0
  %4214 = vmatpush1.bf16.msra.mxu0 0
  %4215 = vmatprep.subr.bf16.mxu0 0
  %4216 = vmatpush1.bf16.msra.mxu0 0
  %4217 = vmatprep.subr.bf16.mxu0 0
  %4218 = vmatpush1.bf16.msra.mxu0 0
  %4219 = vmatprep.subr.bf16.mxu0 0
  %4220 = vmatpush1.bf16.msra.mxu0 0
  %4221 = vmatprep.subr.bf16.mxu0 0
  %4222 = vmatpush1.bf16.msra.mxu0 0
  %4223 = vmatprep.subr.bf16.mxu0 0
  %4224 = vmatpush1.bf16.msra.mxu0 0
  %4225 = vmatprep.subr.bf16.mxu0 0
  %4226 = vmatpush1.bf16.msra.mxu0 0
  %4227 = vmatprep.subr.bf16.mxu0 0
  %4228 = vmatpush1.bf16.msra.mxu0 0
  %4229 = vmatprep.subr.bf16.mxu0 0
  %4230 = vmatpush1.bf16.msra.mxu0 0
  %4231 = vmatprep.subr.bf16.mxu0 0
  %4232 = vmatpush1.bf16.msra.mxu0 0
  %4233 = vmatprep.mubr.bf16.mxu0 0
  %4234 = vmatmul.mubr.bf16.gmra.mrb[0].mxu0 %v4187
  %v4235 = vpop.f32.mrb[0].mxu0
  %v4236 = vadd.f32 %v4174, %v4235
  %v4237 = vpop.f32.mrb[0].mxu0
  %v4238 = vadd.f32 %v4174, %v4237
  %v4239 = vpop.f32.mrb[0].mxu0
  %v4240 = vadd.f32 %v4179, %v4239
  %v4241 = vpop.f32.mrb[0].mxu0
  %v4242 = vadd.f32 %v4179, %v4241
  %4243 = vdwg.mxu0
  %4244 = vmatprep.subr.bf16.mxu0 %v4154
  %4245 = vmatpush1.bf16.msra.mxu0 %v4153
  %4246 = vmatprep.subr.bf16.mxu0 %v4158
  %4247 = vmatpush1.bf16.msra.mxu0 %v4157
  %4248 = vmatprep.subr.bf16.mxu0 %v4162
  %4249 = vmatpush1.bf16.msra.mxu0 %v4161
  %4250 = vmatprep.subr.bf16.mxu0 %v4166
  %4251 = vmatpush1.bf16.msra.mxu0 %v4165
  %4252 = vmatprep.subr.bf16.mxu0 %v4199
  %4253 = vmatpush1.bf16.msra.mxu0 %v4196
  %4254 = vmatprep.subr.bf16.mxu0 0
  %4255 = vmatpush1.bf16.msra.mxu0 0
  %4256 = vmatprep.subr.bf16.mxu0 0
  %4257 = vmatpush1.bf16.msra.mxu0 0
  %4258 = vmatprep.subr.bf16.mxu0 0
  %4259 = vmatpush1.bf16.msra.mxu0 0
  %4260 = vmatprep.subr.bf16.mxu0 0
  %4261 = vmatpush1.bf16.msra.mxu0 0
  %4262 = vmatprep.subr.bf16.mxu0 0
  %4263 = vmatpush1.bf16.msra.mxu0 0
  %4264 = vmatprep.subr.bf16.mxu0 0
  %4265 = vmatpush1.bf16.msra.mxu0 0
  %4266 = vmatprep.subr.bf16.mxu0 0
  %4267 = vmatpush1.bf16.msra.mxu0 0
  %4268 = vmatprep.subr.bf16.mxu0 0
  %4269 = vmatpush1.bf16.msra.mxu0 0
  %4270 = vmatprep.subr.bf16.mxu0 0
  %4271 = vmatpush1.bf16.msra.mxu0 0
  %4272 = vmatprep.subr.bf16.mxu0 0
  %4273 = vmatpush1.bf16.msra.mxu0 0
  %4274 = vmatprep.subr.bf16.mxu0 0
  %4275 = vmatpush1.bf16.msra.mxu0 0
  %4276 = vmatprep.mubr.bf16.mxu0 0
  %4277 = vmatmul.mubr.bf16.gmra.mrb[0].mxu0 %v4187
  %v4278 = vpop.f32.mrb[0].mxu0
  %v4279 = vadd.f32 %v4174, %v4278
  %v4280 = vpop.f32.mrb[0].mxu0
  %v4281 = vadd.f32 %v4174, %v4280
  %v4282 = vpop.f32.mrb[0].mxu0
  %v4283 = vadd.f32 %v4179, %v4282
  %v4284 = vpop.f32.mrb[0].mxu0
  %v4285 = vadd.f32 %v4179, %v4284
  %4286 = vdwg.mxu0
  %v4287 = vmax.f32 %v4236, 0.0
  %v4288 = vmax.f32 %v4238, 0.0
  %v4289 = vmax.f32 %v4279, 0.0
  %v4290 = vmax.f32 %v4281, 0.0
  %v4291 = vmax.f32 %v4240, 0.0
  %v4292 = vmax.f32 %v4242, 0.0
  %v4293 = vmax.f32 %v4283, 0.0
  %v4294 = vmax.f32 %v4285, 0.0
  %v4295 = vld [vmem:[%s19] sm:$0xff]
  %v4296 = vld [vmem:[%s19 + $0x8] sm:$0xff]
  %v4297 = vld [vmem:[%s21] sm:$0xff]
  %v4298 = vld [vmem:[%s21 + $0x8] sm:$0xff]
  %4299 = vrot.lane.b32.xlu0 %v4287, 17
  %v4300 = vpop.permute.xlu0 %4299
  %4301 = vrot.lane.b32.xlu0 %v4291, 17
  %v4302 = vpop.permute.xlu0 %4301
  %4303 = vrot.lane.b32.xlu0 %v4288, 17
  %v4304 = vpop.permute.xlu0 %4303
  %4305 = vrot.lane.b32.xlu0 %v4292, 17
  %v4306 = vpop.permute.xlu0 %4305
  %4307 = vrot.lane.b32.xlu0 %v4289, 17
  %v4308 = vpop.permute.xlu0 %4307
  %4309 = vrot.lane.b32.xlu0 %v4293, 17
  %v4310 = vpop.permute.xlu0 %4309
  %4311 = vrot.lane.b32.xlu0 %v4290, 17
  %v4312 = vpop.permute.xlu0 %4311
  %4313 = vrot.lane.b32.xlu0 %v4294, 17
  %v4314 = vpop.permute.xlu0 %4313
  %v4315 = vsel %vm3897, %v4308, %v4312
  %v4316 = vsel %vm3897, %v4310, %v4314
  %v4317 = vsel %vm3897, %v4304, %v4308
  %v4318 = vsel %vm3897, %v4306, %v4310
  %v4319 = vsel %vm3897, %v4300, %v4304
  %v4320 = vsel %vm3897, %v4302, %v4306
  %v4321 = vsel %vm3897, %v4312, %v4300
  %v4322 = vsel %vm3897, %v4314, %v4302
  %v4323 = vmul.f32 %v4321, %v3905
  %v4324 = vmul.f32 %v4319, %v3909
  %v4325 = vmul.f32 %v4317, %v3913
  %v4326 = vmul.f32 %v4315, %v3917
  %v4327 = vmul.f32 %v4322, %v3905
  %v4328 = vmul.f32 %v4320, %v3909
  %v4329 = vmul.f32 %v4318, %v3913
  %v4330 = vmul.f32 %v4316, %v3917
  %4331 = vrot.lane.b32.xlu0 %v4287, 16
  %v4332 = vpop.permute.xlu0 %4331
  %4333 = vrot.lane.b32.xlu0 %v4291, 16
  %v4334 = vpop.permute.xlu0 %4333
  %4335 = vrot.lane.b32.xlu0 %v4288, 16
  %v4336 = vpop.permute.xlu0 %4335
  %4337 = vrot.lane.b32.xlu0 %v4292, 16
  %v4338 = vpop.permute.xlu0 %4337
  %4339 = vrot.lane.b32.xlu0 %v4289, 16
  %v4340 = vpop.permute.xlu0 %4339
  %4341 = vrot.lane.b32.xlu0 %v4293, 16
  %v4342 = vpop.permute.xlu0 %4341
  %4343 = vrot.lane.b32.xlu0 %v4290, 16
  %v4344 = vpop.permute.xlu0 %4343
  %4345 = vrot.lane.b32.xlu0 %v4294, 16
  %v4346 = vpop.permute.xlu0 %4345
  %v4347 = vsel %vm3930, %v4340, %v4344
  %v4348 = vsel %vm3930, %v4342, %v4346
  %v4349 = vsel %vm3930, %v4336, %v4340
  %v4350 = vsel %vm3930, %v4338, %v4342
  %v4351 = vsel %vm3930, %v4332, %v4336
  %v4352 = vsel %vm3930, %v4334, %v4338
  %v4353 = vsel %vm3930, %v4344, %v4332
  %v4354 = vsel %vm3930, %v4346, %v4334
  %v4355 = vmul.f32 %v4353, %v3938
  %v4356 = vmul.f32 %v4351, %v3942
  %v4357 = vmul.f32 %v4349, %v3946
  %v4358 = vmul.f32 %v4347, %v3950
  %v4359 = vmul.f32 %v4354, %v3938
  %v4360 = vmul.f32 %v4352, %v3942
  %v4361 = vmul.f32 %v4350, %v3946
  %v4362 = vmul.f32 %v4348, %v3950
  %4363 = vrot.lane.b32.xlu0 %v4287, 15
  %v4364 = vpop.permute.xlu0 %4363
  %4365 = vrot.lane.b32.xlu0 %v4291, 15
  %v4366 = vpop.permute.xlu0 %4365
  %4367 = vrot.lane.b32.xlu0 %v4288, 15
  %v4368 = vpop.permute.xlu0 %4367
  %4369 = vrot.lane.b32.xlu0 %v4292, 15
  %v4370 = vpop.permute.xlu0 %4369
  %4371 = vrot.lane.b32.xlu0 %v4289, 15
  %v4372 = vpop.permute.xlu0 %4371
  %4373 = vrot.lane.b32.xlu0 %v4293, 15
  %v4374 = vpop.permute.xlu0 %4373
  %4375 = vrot.lane.b32.xlu0 %v4290, 15
  %v4376 = vpop.permute.xlu0 %4375
  %4377 = vrot.lane.b32.xlu0 %v4294, 15
  %v4378 = vpop.permute.xlu0 %4377
  %v4379 = vsel %vm3963, %v4372, %v4376
  %v4380 = vsel %vm3963, %v4374, %v4378
  %v4381 = vsel %vm3963, %v4368, %v4372
  %v4382 = vsel %vm3963, %v4370, %v4374
  %v4383 = vsel %vm3963, %v4364, %v4368
  %v4384 = vsel %vm3963, %v4366, %v4370
  %v4385 = vsel %vm3963, %v4376, %v4364
  %v4386 = vsel %vm3963, %v4378, %v4366
  %v4387 = vmul.f32 %v4385, %v3971
  %v4388 = vmul.f32 %v4383, %v3975
  %v4389 = vmul.f32 %v4381, %v3979
  %v4390 = vmul.f32 %v4379, %v3983
  %v4391 = vmul.f32 %v4386, %v3971
  %v4392 = vmul.f32 %v4384, %v3975
  %v4393 = vmul.f32 %v4382, %v3979
  %v4394 = vmul.f32 %v4380, %v3983
  %4395 = vrot.lane.b32.xlu0 %v4287, 1
  %v4396 = vpop.permute.xlu0 %4395
  %4397 = vrot.lane.b32.xlu0 %v4291, 1
  %v4398 = vpop.permute.xlu0 %4397
  %4399 = vrot.lane.b32.xlu0 %v4288, 1
  %v4400 = vpop.permute.xlu0 %4399
  %4401 = vrot.lane.b32.xlu0 %v4292, 1
  %v4402 = vpop.permute.xlu0 %4401
  %4403 = vrot.lane.b32.xlu0 %v4289, 1
  %v4404 = vpop.permute.xlu0 %4403
  %4405 = vrot.lane.b32.xlu0 %v4293, 1
  %v4406 = vpop.permute.xlu0 %4405
  %4407 = vrot.lane.b32.xlu0 %v4290, 1
  %v4408 = vpop.permute.xlu0 %4407
  %4409 = vrot.lane.b32.xlu0 %v4294, 1
  %v4410 = vpop.permute.xlu0 %4409
  %v4411 = vsel %vm768, %v4404, %v4408
  %v4412 = vsel %vm768, %v4406, %v4410
  %v4413 = vsel %vm768, %v4400, %v4404
  %v4414 = vsel %vm768, %v4402, %v4406
  %v4415 = vsel %vm768, %v4396, %v4400
  %v4416 = vsel %vm768, %v4398, %v4402
  %v4417 = vsel %vm768, %v4408, %v4396
  %v4418 = vsel %vm768, %v4410, %v4398
  %v4419 = vmul.f32 %v4417, %v4003
  %v4420 = vmul.f32 %v4415, %v4007
  %v4421 = vmul.f32 %v4413, %v4011
  %v4422 = vmul.f32 %v4411, %v4015
  %v4423 = vmul.f32 %v4418, %v4003
  %v4424 = vmul.f32 %v4416, %v4007
  %v4425 = vmul.f32 %v4414, %v4011
  %v4426 = vmul.f32 %v4412, %v4015
  %4427 = vrot.lane.b32.xlu0 %v4287, 127
  %v4428 = vpop.permute.xlu0 %4427
  %4429 = vrot.lane.b32.xlu0 %v4291, 127
  %v4430 = vpop.permute.xlu0 %4429
  %4431 = vrot.lane.b32.xlu0 %v4288, 127
  %v4432 = vpop.permute.xlu0 %4431
  %4433 = vrot.lane.b32.xlu0 %v4292, 127
  %v4434 = vpop.permute.xlu0 %4433
  %4435 = vrot.lane.b32.xlu0 %v4289, 127
  %v4436 = vpop.permute.xlu0 %4435
  %4437 = vrot.lane.b32.xlu0 %v4293, 127
  %v4438 = vpop.permute.xlu0 %4437
  %4439 = vrot.lane.b32.xlu0 %v4290, 127
  %v4440 = vpop.permute.xlu0 %4439
  %4441 = vrot.lane.b32.xlu0 %v4294, 127
  %v4442 = vpop.permute.xlu0 %4441
  %v4443 = vsel %vm897, %v4436, %v4440
  %v4444 = vsel %vm897, %v4438, %v4442
  %v4445 = vsel %vm897, %v4432, %v4436
  %v4446 = vsel %vm897, %v4434, %v4438
  %v4447 = vsel %vm897, %v4428, %v4432
  %v4448 = vsel %vm897, %v4430, %v4434
  %v4449 = vsel %vm897, %v4440, %v4428
  %v4450 = vsel %vm897, %v4442, %v4430
  %v4451 = vmul.f32 %v4447, %v4035
  %v4452 = vmul.f32 %v4445, %v4039
  %v4453 = vmul.f32 %v4443, %v4043
  %v4454 = vmul.f32 %v4449, %v4047
  %v4455 = vmul.f32 %v4448, %v4035
  %v4456 = vmul.f32 %v4446, %v4039
  %v4457 = vmul.f32 %v4444, %v4043
  %v4458 = vmul.f32 %v4450, %v4047
  %4459 = vrot.lane.b32.xlu0 %v4287, 113
  %v4460 = vpop.permute.xlu0 %4459
  %4461 = vrot.lane.b32.xlu0 %v4291, 113
  %v4462 = vpop.permute.xlu0 %4461
  %4463 = vrot.lane.b32.xlu0 %v4288, 113
  %v4464 = vpop.permute.xlu0 %4463
  %4465 = vrot.lane.b32.xlu0 %v4292, 113
  %v4466 = vpop.permute.xlu0 %4465
  %4467 = vrot.lane.b32.xlu0 %v4289, 113
  %v4468 = vpop.permute.xlu0 %4467
  %4469 = vrot.lane.b32.xlu0 %v4293, 113
  %v4470 = vpop.permute.xlu0 %4469
  %4471 = vrot.lane.b32.xlu0 %v4290, 113
  %v4472 = vpop.permute.xlu0 %4471
  %4473 = vrot.lane.b32.xlu0 %v4294, 113
  %v4474 = vpop.permute.xlu0 %4473
  %v4475 = vsel %vm4060, %v4468, %v4472
  %v4476 = vsel %vm4060, %v4470, %v4474
  %v4477 = vsel %vm4060, %v4464, %v4468
  %v4478 = vsel %vm4060, %v4466, %v4470
  %v4479 = vsel %vm4060, %v4460, %v4464
  %v4480 = vsel %vm4060, %v4462, %v4466
  %v4481 = vsel %vm4060, %v4472, %v4460
  %v4482 = vsel %vm4060, %v4474, %v4462
  %v4483 = vmul.f32 %v4479, %v4068
  %v4484 = vmul.f32 %v4477, %v4072
  %v4485 = vmul.f32 %v4475, %v4076
  %v4486 = vmul.f32 %v4481, %v4080
  %v4487 = vmul.f32 %v4480, %v4068
  %v4488 = vmul.f32 %v4478, %v4072
  %v4489 = vmul.f32 %v4476, %v4076
  %v4490 = vmul.f32 %v4482, %v4080
  %4491 = vrot.lane.b32.xlu0 %v4287, 112
  %v4492 = vpop.permute.xlu0 %4491
  %4493 = vrot.lane.b32.xlu0 %v4291, 112
  %v4494 = vpop.permute.xlu0 %4493
  %4495 = vrot.lane.b32.xlu0 %v4288, 112
  %v4496 = vpop.permute.xlu0 %4495
  %4497 = vrot.lane.b32.xlu0 %v4292, 112
  %v4498 = vpop.permute.xlu0 %4497
  %4499 = vrot.lane.b32.xlu0 %v4289, 112
  %v4500 = vpop.permute.xlu0 %4499
  %4501 = vrot.lane.b32.xlu0 %v4293, 112
  %v4502 = vpop.permute.xlu0 %4501
  %4503 = vrot.lane.b32.xlu0 %v4290, 112
  %v4504 = vpop.permute.xlu0 %4503
  %4505 = vrot.lane.b32.xlu0 %v4294, 112
  %v4506 = vpop.permute.xlu0 %4505
  %v4507 = vsel %vm4093, %v4500, %v4504
  %v4508 = vsel %vm4093, %v4502, %v4506
  %v4509 = vsel %vm4093, %v4496, %v4500
  %v4510 = vsel %vm4093, %v4498, %v4502
  %v4511 = vsel %vm4093, %v4492, %v4496
  %v4512 = vsel %vm4093, %v4494, %v4498
  %v4513 = vsel %vm4093, %v4504, %v4492
  %v4514 = vsel %vm4093, %v4506, %v4494
  %v4515 = vmul.f32 %v4511, %v4101
  %v4516 = vmul.f32 %v4509, %v4105
  %v4517 = vmul.f32 %v4507, %v4109
  %v4518 = vmul.f32 %v4513, %v4113
  %v4519 = vmul.f32 %v4512, %v4101
  %v4520 = vmul.f32 %v4510, %v4105
  %v4521 = vmul.f32 %v4508, %v4109
  %v4522 = vmul.f32 %v4514, %v4113
  %4523 = vrot.lane.b32.xlu0 %v4287, 111
  %v4524 = vpop.permute.xlu0 %4523
  %4525 = vrot.lane.b32.xlu0 %v4291, 111
  %v4526 = vpop.permute.xlu0 %4525
  %4527 = vrot.lane.b32.xlu0 %v4288, 111
  %v4528 = vpop.permute.xlu0 %4527
  %4529 = vrot.lane.b32.xlu0 %v4292, 111
  %v4530 = vpop.permute.xlu0 %4529
  %4531 = vrot.lane.b32.xlu0 %v4289, 111
  %v4532 = vpop.permute.xlu0 %4531
  %4533 = vrot.lane.b32.xlu0 %v4293, 111
  %v4534 = vpop.permute.xlu0 %4533
  %4535 = vrot.lane.b32.xlu0 %v4290, 111
  %v4536 = vpop.permute.xlu0 %4535
  %4537 = vrot.lane.b32.xlu0 %v4294, 111
  %v4538 = vpop.permute.xlu0 %4537
  %v4539 = vsel %vm4126, %v4532, %v4536
  %v4540 = vsel %vm4126, %v4534, %v4538
  %v4541 = vsel %vm4126, %v4528, %v4532
  %v4542 = vsel %vm4126, %v4530, %v4534
  %v4543 = vsel %vm4126, %v4524, %v4528
  %v4544 = vsel %vm4126, %v4526, %v4530
  %v4545 = vsel %vm4126, %v4536, %v4524
  %v4546 = vsel %vm4126, %v4538, %v4526
  %v4547 = vmul.f32 %v4543, %v4134
  %v4548 = vmul.f32 %v4541, %v4138
  %v4549 = vmul.f32 %v4539, %v4142
  %v4550 = vmul.f32 %v4545, %v4146
  %v4551 = vmul.f32 %v4544, %v4134
  %v4552 = vmul.f32 %v4542, %v4138
  %v4553 = vmul.f32 %v4540, %v4142
  %v4554 = vmul.f32 %v4546, %v4146
  %v4555 = vpack.c.bf16 %v4327, %v4323
  %v4556 = vpack.c.bf16 %v4328, %v4324
  %v4557 = vpack.c.bf16 %v4329, %v4325
  %v4558 = vpack.c.bf16 %v4330, %v4326
  %v4559 = vpack.c.bf16 %v4359, %v4355
  %v4560 = vpack.c.bf16 %v4360, %v4356
  %v4561 = vpack.c.bf16 %v4361, %v4357
  %v4562 = vpack.c.bf16 %v4362, %v4358
  %v4563 = vpack.c.bf16 %v4391, %v4387
  %v4564 = vpack.c.bf16 %v4392, %v4388
  %v4565 = vpack.c.bf16 %v4393, %v4389
  %v4566 = vpack.c.bf16 %v4394, %v4390
  %v4567 = vpack.c.bf16 %v4423, %v4419
  %v4568 = vpack.c.bf16 %v4424, %v4420
  %v4569 = vpack.c.bf16 %v4425, %v4421
  %v4570 = vpack.c.bf16 %v4426, %v4422
  %v4571 = vpack.c.bf16 %v4291, %v4287
  %v4572 = vpack.c.bf16 %v4292, %v4288
  %v4573 = vpack.c.bf16 %v4293, %v4289
  %v4574 = vpack.c.bf16 %v4294, %v4290
  %v4575 = vpack.c.bf16 %v4455, %v4451
  %v4576 = vpack.c.bf16 %v4456, %v4452
  %v4577 = vpack.c.bf16 %v4457, %v4453
  %v4578 = vpack.c.bf16 %v4458, %v4454
  %v4579 = vpack.c.bf16 %v4487, %v4483
  %v4580 = vpack.c.bf16 %v4488, %v4484
  %v4581 = vpack.c.bf16 %v4489, %v4485
  %v4582 = vpack.c.bf16 %v4490, %v4486
  %v4583 = vpack.c.bf16 %v4519, %v4515
  %v4584 = vpack.c.bf16 %v4520, %v4516
  %v4585 = vpack.c.bf16 %v4521, %v4517
  %v4586 = vpack.c.bf16 %v4522, %v4518
  %v4587 = vpack.c.bf16 %v4551, %v4547
  %v4588 = vpack.c.bf16 %v4552, %v4548
  %v4589 = vpack.c.bf16 %v4553, %v4549
  %v4590 = vpack.c.bf16 %v4554, %v4550
  %4592 = vset.pattern.permute.xlu0 0
  %4593 = vperm.xlu0 %4592, %v4297
  %v4594 = vpop.permute.xlu0 %4593
  %4597 = vset.pattern.permute.xlu0 0
  %4598 = vperm.xlu0 %4597, %v4298
  %v4599 = vpop.permute.xlu0 %4598
  %v4603 = vunpack.c.l.b16 %v4295
  %v4604 = vunpack.c.h.b16 %v4295
  %v4605 = vunpack.c.l.b16 %v4296
  %v4606 = vunpack.c.h.b16 %v4296
  %v4607 = vpack.c.b16 %v4605, %v4603
  %v4608 = vpack.c.b16 %v4606, %v4604
  %vm4610 = vcmask 130048
  %v4612 = vsel %vm4610, %v4608, 0
  %4614 = vmatprep.subr.bf16.mxu0 %v4556
  %4615 = vmatpush1.bf16.msra.mxu0 %v4555
  %4616 = vmatprep.subr.bf16.mxu0 %v4560
  %4617 = vmatpush1.bf16.msra.mxu0 %v4559
  %4618 = vmatprep.subr.bf16.mxu0 %v4564
  %4619 = vmatpush1.bf16.msra.mxu0 %v4563
  %4620 = vmatprep.subr.bf16.mxu0 %v4568
  %4621 = vmatpush1.bf16.msra.mxu0 %v4567
  %4622 = vmatprep.subr.bf16.mxu0 %v4572
  %4623 = vmatpush1.bf16.msra.mxu0 %v4571
  %4624 = vmatprep.subr.bf16.mxu0 %v4576
  %4625 = vmatpush1.bf16.msra.mxu0 %v4575
  %4626 = vmatprep.subr.bf16.mxu0 %v4580
  %4627 = vmatpush1.bf16.msra.mxu0 %v4579
  %4628 = vmatprep.subr.bf16.mxu0 %v4584
  %4629 = vmatpush1.bf16.msra.mxu0 %v4583
  %4630 = vmatprep.subr.bf16.mxu0 %v4588
  %4631 = vmatpush1.bf16.msra.mxu0 %v4587
  %4632 = vmatprep.subr.bf16.mxu0 0
  %4633 = vmatpush1.bf16.msra.mxu0 0
  %4634 = vmatprep.subr.bf16.mxu0 0
  %4635 = vmatpush1.bf16.msra.mxu0 0
  %4636 = vmatprep.subr.bf16.mxu0 0
  %4637 = vmatpush1.bf16.msra.mxu0 0
  %4638 = vmatprep.subr.bf16.mxu0 0
  %4639 = vmatpush1.bf16.msra.mxu0 0
  %4640 = vmatprep.subr.bf16.mxu0 0
  %4641 = vmatpush1.bf16.msra.mxu0 0
  %4642 = vmatprep.subr.bf16.mxu0 0
  %4643 = vmatpush1.bf16.msra.mxu0 0
  %4644 = vmatprep.subr.bf16.mxu0 0
  %4645 = vmatpush1.bf16.msra.mxu0 0
  %4646 = vmatprep.mubr.bf16.mxu0 %v4612
  %4647 = vmatmul.mubr.bf16.gmra.mrb[0].mxu0 %v4607
  %v4648 = vpop.f32.mrb[0].mxu0
  %v4649 = vadd.f32 %v4594, %v4648
  %v4650 = vpop.f32.mrb[0].mxu0
  %v4651 = vadd.f32 %v4594, %v4650
  %v4652 = vpop.f32.mrb[0].mxu0
  %v4653 = vadd.f32 %v4599, %v4652
  %v4654 = vpop.f32.mrb[0].mxu0
  %v4655 = vadd.f32 %v4599, %v4654
  %4656 = vdwg.mxu0
  %4657 = vmatprep.subr.bf16.mxu0 %v4558
  %4658 = vmatpush1.bf16.msra.mxu0 %v4557
  %4659 = vmatprep.subr.bf16.mxu0 %v4562
  %4660 = vmatpush1.bf16.msra.mxu0 %v4561
  %4661 = vmatprep.subr.bf16.mxu0 %v4566
  %4662 = vmatpush1.bf16.msra.mxu0 %v4565
  %4663 = vmatprep.subr.bf16.mxu0 %v4570
  %4664 = vmatpush1.bf16.msra.mxu0 %v4569
  %4665 = vmatprep.subr.bf16.mxu0 %v4574
  %4666 = vmatpush1.bf16.msra.mxu0 %v4573
  %4667 = vmatprep.subr.bf16.mxu0 %v4578
  %4668 = vmatpush1.bf16.msra.mxu0 %v4577
  %4669 = vmatprep.subr.bf16.mxu0 %v4582
  %4670 = vmatpush1.bf16.msra.mxu0 %v4581
  %4671 = vmatprep.subr.bf16.mxu0 %v4586
  %4672 = vmatpush1.bf16.msra.mxu0 %v4585
  %4673 = vmatprep.subr.bf16.mxu0 %v4590
  %4674 = vmatpush1.bf16.msra.mxu0 %v4589
  %4675 = vmatprep.subr.bf16.mxu0 0
  %4676 = vmatpush1.bf16.msra.mxu0 0
  %4677 = vmatprep.subr.bf16.mxu0 0
  %4678 = vmatpush1.bf16.msra.mxu0 0
  %4679 = vmatprep.subr.bf16.mxu0 0
  %4680 = vmatpush1.bf16.msra.mxu0 0
  %4681 = vmatprep.subr.bf16.mxu0 0
  %4682 = vmatpush1.bf16.msra.mxu0 0
  %4683 = vmatprep.subr.bf16.mxu0 0
  %4684 = vmatpush1.bf16.msra.mxu0 0
  %4685 = vmatprep.subr.bf16.mxu0 0
  %4686 = vmatpush1.bf16.msra.mxu0 0
  %4687 = vmatprep.subr.bf16.mxu0 0
  %4688 = vmatpush1.bf16.msra.mxu0 0
  %4689 = vmatprep.mubr.bf16.mxu0 %v4612
  %4690 = vmatmul.mubr.bf16.gmra.mrb[0].mxu0 %v4607
  %v4691 = vpop.f32.mrb[0].mxu0
  %v4692 = vadd.f32 %v4594, %v4691
  %v4693 = vpop.f32.mrb[0].mxu0
  %v4694 = vadd.f32 %v4594, %v4693
  %v4695 = vpop.f32.mrb[0].mxu0
  %v4696 = vadd.f32 %v4599, %v4695
  %v4697 = vpop.f32.mrb[0].mxu0
  %v4698 = vadd.f32 %v4599, %v4697
  %4699 = vdwg.mxu0
  %v4700 = vmax.f32 %v4649, 0.0
  %v4701 = vmax.f32 %v4651, 0.0
  %v4702 = vmax.f32 %v4692, 0.0
  %v4703 = vmax.f32 %v4694, 0.0
  %v4704 = vmax.f32 %v4653, 0.0
  %v4705 = vmax.f32 %v4655, 0.0
  %v4706 = vmax.f32 %v4696, 0.0
  %v4707 = vmax.f32 %v4698, 0.0
  %v4708 = vpack.c.bf16 %v4704, %v4700
  %v4709 = vpack.c.bf16 %v4705, %v4701
  %v4710 = vpack.c.bf16 %v4706, %v4702
  %v4711 = vpack.c.bf16 %v4707, %v4703
  %v4744 = vunpack.c.l.b16 %v3853
  %v4745 = vunpack.c.l.b16 %v3854
  %v4746 = vunpack.c.l.b16 %v3855
  %v4747 = vunpack.c.l.b16 %v3856
  %v4748 = vunpack.c.l.b16 %v3857
  %v4749 = vunpack.c.l.b16 %v3858
  %v4750 = vunpack.c.l.b16 %v3859
  %v4751 = vunpack.c.l.b16 %v3860
  %v4752 = vunpack.c.l.b16 %v3861
  %v4753 = vunpack.c.l.b16 %v3862
  %v4754 = vunpack.c.l.b16 %v3863
  %v4755 = vunpack.c.l.b16 %v3864
  %v4756 = vunpack.c.l.b16 %v3865
  %v4757 = vunpack.c.l.b16 %v3866
  %v4758 = vunpack.c.l.b16 %v3867
  %v4759 = vunpack.c.l.b16 %v3868
  %v4760 = vunpack.c.l.b16 %v3869
  %v4761 = vunpack.c.l.b16 %v3870
  %v4762 = vunpack.c.l.b16 %v3871
  %v4763 = vunpack.c.l.b16 %v3872
  %v4764 = vunpack.c.l.b16 %v3873
  %v4765 = vunpack.c.l.b16 %v3874
  %v4766 = vunpack.c.l.b16 %v3875
  %v4767 = vunpack.c.l.b16 %v3876
  %v4768 = vunpack.c.l.b16 %v3877
  %v4769 = vunpack.c.l.b16 %v3878
  %v4770 = vunpack.c.l.b16 %v3879
  %v4771 = vunpack.c.l.b16 %v3880
  %v4772 = vunpack.c.l.b16 %v3881
  %v4773 = vunpack.c.l.b16 %v3882
  %v4774 = vunpack.c.l.b16 %v3883
  %v4775 = vunpack.c.l.b16 %v3884
  %v4776 = vpack.c.b16 %v4745, %v4744
  %v4777 = vpack.c.b16 %v4747, %v4746
  %v4778 = vpack.c.b16 %v4749, %v4748
  %v4779 = vpack.c.b16 %v4751, %v4750
  %v4780 = vpack.c.b16 %v4753, %v4752
  %v4781 = vpack.c.b16 %v4755, %v4754
  %v4782 = vpack.c.b16 %v4757, %v4756
  %v4783 = vpack.c.b16 %v4759, %v4758
  %v4784 = vpack.c.b16 %v4761, %v4760
  %v4785 = vpack.c.b16 %v4763, %v4762
  %v4786 = vpack.c.b16 %v4765, %v4764
  %v4787 = vpack.c.b16 %v4767, %v4766
  %v4788 = vpack.c.b16 %v4769, %v4768
  %v4789 = vpack.c.b16 %v4771, %v4770
  %v4790 = vpack.c.b16 %v4773, %v4772
  %v4791 = vpack.c.b16 %v4775, %v4774
  %4808 = vmatprep.subr.bf16.mxu0 0
  %4809 = vmatpush1.bf16.msra.mxu0 %v4776
  %4810 = vmatprep.subr.bf16.mxu0 0
  %4811 = vmatpush1.bf16.msra.mxu0 %v4777
  %4812 = vmatprep.subr.bf16.mxu0 0
  %4813 = vmatpush1.bf16.msra.mxu0 %v4778
  %4814 = vmatprep.subr.bf16.mxu0 0
  %4815 = vmatpush1.bf16.msra.mxu0 %v4779
  %4816 = vmatprep.subr.bf16.mxu0 0
  %4817 = vmatpush1.bf16.msra.mxu0 %v4780
  %4818 = vmatprep.subr.bf16.mxu0 0
  %4819 = vmatpush1.bf16.msra.mxu0 %v4781
  %4820 = vmatprep.subr.bf16.mxu0 0
  %4821 = vmatpush1.bf16.msra.mxu0 %v4782
  %4822 = vmatprep.subr.bf16.mxu0 0
  %4823 = vmatpush1.bf16.msra.mxu0 %v4783
  %4824 = vmatprep.subr.bf16.mxu0 0
  %4825 = vmatpush1.bf16.msra.mxu0 %v4784
  %4826 = vmatprep.subr.bf16.mxu0 0
  %4827 = vmatpush1.bf16.msra.mxu0 %v4785
  %4828 = vmatprep.subr.bf16.mxu0 0
  %4829 = vmatpush1.bf16.msra.mxu0 %v4786
  %4830 = vmatprep.subr.bf16.mxu0 0
  %4831 = vmatpush1.bf16.msra.mxu0 %v4787
  %4832 = vmatprep.subr.bf16.mxu0 0
  %4833 = vmatpush1.bf16.msra.mxu0 %v4788
  %4834 = vmatprep.subr.bf16.mxu0 0
  %4835 = vmatpush1.bf16.msra.mxu0 %v4789
  %4836 = vmatprep.subr.bf16.mxu0 0
  %4837 = vmatpush1.bf16.msra.mxu0 %v4790
  %4838 = vmatprep.subr.bf16.mxu0 0
  %4839 = vmatpush1.bf16.msra.mxu0 %v4791
  %4840 = vmatprep.mubr.bf16.mxu0 %v4709
  %4841 = vmatmul.mubr.bf16.gmra.mrb[0].mxu0 %v4708
  %v4842 = vpop.f32.mrb[0].mxu0
  %v4843 = vadd.f32 0.0, %v4842
  %v4844 = vpop.f32.mrb[0].mxu0
  %v4845 = vpop.f32.mrb[0].mxu0
  %v4846 = vadd.f32 0.0, %v4845
  %v4847 = vpop.f32.mrb[0].mxu0
  %4848 = vdwg.mxu0
  %4849 = vmatprep.subr.bf16.mxu0 0
  %4850 = vmatpush1.bf16.msra.mxu0 %v4776
  %4851 = vmatprep.subr.bf16.mxu0 0
  %4852 = vmatpush1.bf16.msra.mxu0 %v4777
  %4853 = vmatprep.subr.bf16.mxu0 0
  %4854 = vmatpush1.bf16.msra.mxu0 %v4778
  %4855 = vmatprep.subr.bf16.mxu0 0
  %4856 = vmatpush1.bf16.msra.mxu0 %v4779
  %4857 = vmatprep.subr.bf16.mxu0 0
  %4858 = vmatpush1.bf16.msra.mxu0 %v4780
  %4859 = vmatprep.subr.bf16.mxu0 0
  %4860 = vmatpush1.bf16.msra.mxu0 %v4781
  %4861 = vmatprep.subr.bf16.mxu0 0
  %4862 = vmatpush1.bf16.msra.mxu0 %v4782
  %4863 = vmatprep.subr.bf16.mxu0 0
  %4864 = vmatpush1.bf16.msra.mxu0 %v4783
  %4865 = vmatprep.subr.bf16.mxu0 0
  %4866 = vmatpush1.bf16.msra.mxu0 %v4784
  %4867 = vmatprep.subr.bf16.mxu0 0
  %4868 = vmatpush1.bf16.msra.mxu0 %v4785
  %4869 = vmatprep.subr.bf16.mxu0 0
  %4870 = vmatpush1.bf16.msra.mxu0 %v4786
  %4871 = vmatprep.subr.bf16.mxu0 0
  %4872 = vmatpush1.bf16.msra.mxu0 %v4787
  %4873 = vmatprep.subr.bf16.mxu0 0
  %4874 = vmatpush1.bf16.msra.mxu0 %v4788
  %4875 = vmatprep.subr.bf16.mxu0 0
  %4876 = vmatpush1.bf16.msra.mxu0 %v4789
  %4877 = vmatprep.subr.bf16.mxu0 0
  %4878 = vmatpush1.bf16.msra.mxu0 %v4790
  %4879 = vmatprep.subr.bf16.mxu0 0
  %4880 = vmatpush1.bf16.msra.mxu0 %v4791
  %4881 = vmatprep.mubr.bf16.mxu0 %v4711
  %4882 = vmatmul.mubr.bf16.gmra.mrb[0].mxu0 %v4710
  %v4883 = vpop.f32.mrb[0].mxu0
  %v4884 = vadd.f32 0.0, %v4883
  %v4885 = vpop.f32.mrb[0].mxu0
  %v4886 = vpop.f32.mrb[0].mxu0
  %v4887 = vadd.f32 0.0, %v4886
  %v4888 = vpop.f32.mrb[0].mxu0
  %4889 = vdwg.mxu0
  %4892 = vrot.lane.b32.xlu0 %v4884, 64
  %v4893 = vpop.permute.xlu0 %4892
  %4894 = vrot.lane.b32.xlu0 %v4887, 64
  %v4895 = vpop.permute.xlu0 %4894
  %vm4898 = vcmask 523264
  %v4899 = vsel %vm4898, %v4843, %v4893
  %v4900 = vsel %vm4898, %v4846, %v4895
  %v4901 = vld [vmem:[%s35] sm:$0xf]
  %v4902 = vld [vmem:[%s35 + $0x4] sm:$0x1]
  %v4903 = vunpack.c.l.bf16 %v4901
  %v4904 = vunpack.c.l.bf16 %v4902
  %v4905 = vld [vmem:[%s37] sm:$0xf]
  %v4906 = vld [vmem:[%s37 + $0x4] sm:$0xf]
  %v4907 = vld [vmem:[%s37 + $0x8] sm:$0xf]
  %v4908 = vld [vmem:[%s37 + $0xc] sm:$0xf]
  %v4909 = vld [vmem:[%s37 + $0x10] sm:$0xf]
  %v4910 = vld [vmem:[%s37 + $0x14] sm:$0xf]
  %v4911 = vld [vmem:[%s37 + $0x18] sm:$0xf]
  %v4912 = vld [vmem:[%s37 + $0x1c] sm:$0xf]
  %v4913 = vld [vmem:[%s37 + $0x20] sm:$0xf]
  %v4914 = vld [vmem:[%s37 + $0x24] sm:$0xf]
  %v4915 = vld [vmem:[%s37 + $0x28] sm:$0xf]
  %v4916 = vld [vmem:[%s37 + $0x2c] sm:$0xf]
  %v4917 = vld [vmem:[%s37 + $0x30] sm:$0xf]
  %v4918 = vld [vmem:[%s37 + $0x34] sm:$0xf]
  %v4919 = vld [vmem:[%s37 + $0x38] sm:$0xf]
  %v4920 = vld [vmem:[%s37 + $0x3c] sm:$0xf]
  %v4921 = vld [vmem:[%s27] sm:$0xff]
  %v4922 = vld [vmem:[%s27 + $0x8] sm:$0xff]
  %v4923 = vld [vmem:[%s27 + $0x10] sm:$0xff]
  %v4924 = vld [vmem:[%s27 + $0x18] sm:$0xff]
  %v4925 = vld [vmem:[%s29] sm:$0xff]
  %v4926 = vld [vmem:[%s29 + $0x8] sm:$0xff]
  %v4927 = vld [vmem:[%s29 + $0x10] sm:$0xff]
  %v4928 = vld [vmem:[%s29 + $0x18] sm:$0xff]
  %4929 = vrot.lane.b32.xlu0 %v4899, 9
  %v4930 = vpop.permute.xlu0 %4929
  %4931 = vrot.lane.b32.xlu0 %v4900, 9
  %v4932 = vpop.permute.xlu0 %4931
  %v4933 = vlaneseq
  %v4934 = vshrl.u32 %v4933, 7
  %v4935 = vsub.s32 0, %v4934
  %v4936 = vrot.slane %v4903, %v4935
  %v4937 = vmul.f32 %v4930, %v4936
  %v4938 = vmul.f32 %v4932, %v4936
  %4939 = vrot.lane.b32.xlu0 %v4899, 8
  %v4940 = vpop.permute.xlu0 %4939
  %4941 = vrot.lane.b32.xlu0 %v4900, 8
  %v4942 = vpop.permute.xlu0 %4941
  %v4943 = vlaneseq
  %v4944 = vshrl.u32 %v4943, 7
  %v4945 = vsub.s32 1, %v4944
  %v4946 = vrot.slane %v4903, %v4945
  %v4947 = vmul.f32 %v4940, %v4946
  %v4948 = vmul.f32 %v4942, %v4946
  %4949 = vrot.lane.b32.xlu0 %v4899, 7
  %v4950 = vpop.permute.xlu0 %4949
  %4951 = vrot.lane.b32.xlu0 %v4900, 7
  %v4952 = vpop.permute.xlu0 %4951
  %v4953 = vlaneseq
  %v4954 = vshrl.u32 %v4953, 7
  %v4955 = vsub.s32 2, %v4954
  %v4956 = vrot.slane %v4903, %v4955
  %v4957 = vmul.f32 %v4950, %v4956
  %v4958 = vmul.f32 %v4952, %v4956
  %4959 = vrot.lane.b32.xlu0 %v4899, 1
  %v4960 = vpop.permute.xlu0 %4959
  %4961 = vrot.lane.b32.xlu0 %v4900, 1
  %v4962 = vpop.permute.xlu0 %4961
  %v4963 = vlaneseq
  %v4964 = vshrl.u32 %v4963, 7
  %v4965 = vsub.s32 3, %v4964
  %v4966 = vrot.slane %v4903, %v4965
  %v4967 = vmul.f32 %v4960, %v4966
  %v4968 = vmul.f32 %v4962, %v4966
  %4969 = vrot.lane.b32.xlu0 %v4899, 127
  %v4970 = vpop.permute.xlu0 %4969
  %4971 = vrot.lane.b32.xlu0 %v4900, 127
  %v4972 = vpop.permute.xlu0 %4971
  %v4973 = vlaneseq
  %v4974 = vshrl.u32 %v4973, 7
  %v4975 = vsub.s32 5, %v4974
  %v4976 = vrot.slane %v4903, %v4975
  %v4977 = vmul.f32 %v4970, %v4976
  %v4978 = vmul.f32 %v4972, %v4976
  %4979 = vrot.lane.b32.xlu0 %v4899, 121
  %v4980 = vpop.permute.xlu0 %4979
  %4981 = vrot.lane.b32.xlu0 %v4900, 121
  %v4982 = vpop.permute.xlu0 %4981
  %v4983 = vlaneseq
  %v4984 = vshrl.u32 %v4983, 7
  %v4985 = vsub.s32 6, %v4984
  %v4986 = vrot.slane %v4903, %v4985
  %v4987 = vmul.f32 %v4980, %v4986
  %v4988 = vmul.f32 %v4982, %v4986
  %4989 = vrot.lane.b32.xlu0 %v4899, 120
  %v4990 = vpop.permute.xlu0 %4989
  %4991 = vrot.lane.b32.xlu0 %v4900, 120
  %v4992 = vpop.permute.xlu0 %4991
  %v4993 = vlaneseq
  %v4994 = vshrl.u32 %v4993, 7
  %v4995 = vsub.s32 7, %v4994
  %v4996 = vrot.slane %v4903, %v4995
  %v4997 = vmul.f32 %v4990, %v4996
  %v4998 = vmul.f32 %v4992, %v4996
  %4999 = vrot.lane.b32.xlu0 %v4899, 119
  %v5000 = vpop.permute.xlu0 %4999
  %5001 = vrot.lane.b32.xlu0 %v4900, 119
  %v5002 = vpop.permute.xlu0 %5001
  %v5003 = vlaneseq
  %v5004 = vshrl.u32 %v5003, 7
  %v5005 = vsub.s32 0, %v5004
  %v5006 = vrot.slane %v4904, %v5005
  %v5007 = vmul.f32 %v5000, %v5006
  %v5008 = vmul.f32 %v5002, %v5006
  %v5009 = vpack.c.bf16 %v4938, %v4937
  %v5010 = vpack.c.bf16 %v4948, %v4947
  %v5011 = vpack.c.bf16 %v4958, %v4957
  %v5012 = vpack.c.bf16 %v4968, %v4967
  %v5013 = vpack.c.bf16 %v4900, %v4899
  %v5014 = vpack.c.bf16 %v4978, %v4977
  %v5015 = vpack.c.bf16 %v4988, %v4987
  %v5016 = vpack.c.bf16 %v4998, %v4997
  %v5017 = vpack.c.bf16 %v5008, %v5007
  %5019 = vset.pattern.permute.xlu0 0
  %5020 = vperm.xlu0 %5019, %v4925
  %v5021 = vpop.permute.xlu0 %5020
  %5024 = vset.pattern.permute.xlu0 0
  %5025 = vperm.xlu0 %5024, %v4926
  %v5026 = vpop.permute.xlu0 %5025
  %5029 = vset.pattern.permute.xlu0 0
  %5030 = vperm.xlu0 %5029, %v4927
  %v5031 = vpop.permute.xlu0 %5030
  %5034 = vset.pattern.permute.xlu0 0
  %5035 = vperm.xlu0 %5034, %v4928
  %v5036 = vpop.permute.xlu0 %5035
  %v5042 = vunpack.c.l.b16 %v4921
  %v5043 = vunpack.c.h.b16 %v4921
  %v5044 = vunpack.c.l.b16 %v4922
  %v5045 = vunpack.c.h.b16 %v4922
  %v5046 = vunpack.c.l.b16 %v4923
  %v5047 = vunpack.c.h.b16 %v4923
  %v5048 = vunpack.c.l.b16 %v4924
  %v5049 = vunpack.c.h.b16 %v4924
  %v5050 = vpack.c.b16 %v5044, %v5042
  %v5051 = vpack.c.b16 %v5045, %v5043
  %v5052 = vpack.c.b16 %v5048, %v5046
  %v5053 = vpack.c.b16 %v5049, %v5047
  %v5057 = vsel %vm4610, %v5051, 0
  %v5060 = vsel %vm4610, %v5053, 0
  %5062 = vmatprep.subr.bf16.mxu0 0
  %5063 = vmatpush1.bf16.msra.mxu0 %v5009
  %5064 = vmatprep.subr.bf16.mxu0 0
  %5065 = vmatpush1.bf16.msra.mxu0 %v5010
  %5066 = vmatprep.subr.bf16.mxu0 0
  %5067 = vmatpush1.bf16.msra.mxu0 %v5011
  %5068 = vmatprep.subr.bf16.mxu0 0
  %5069 = vmatpush1.bf16.msra.mxu0 %v5012
  %5070 = vmatprep.subr.bf16.mxu0 0
  %5071 = vmatpush1.bf16.msra.mxu0 %v5013
  %5072 = vmatprep.subr.bf16.mxu0 0
  %5073 = vmatpush1.bf16.msra.mxu0 %v5014
  %5074 = vmatprep.subr.bf16.mxu0 0
  %5075 = vmatpush1.bf16.msra.mxu0 %v5015
  %5076 = vmatprep.subr.bf16.mxu0 0
  %5077 = vmatpush1.bf16.msra.mxu0 %v5016
  %5078 = vmatprep.subr.bf16.mxu0 0
  %5079 = vmatpush1.bf16.msra.mxu0 %v5017
  %5080 = vmatprep.subr.bf16.mxu0 0
  %5081 = vmatpush1.bf16.msra.mxu0 0
  %5082 = vmatprep.subr.bf16.mxu0 0
  %5083 = vmatpush1.bf16.msra.mxu0 0
  %5084 = vmatprep.subr.bf16.mxu0 0
  %5085 = vmatpush1.bf16.msra.mxu0 0
  %5086 = vmatprep.subr.bf16.mxu0 0
  %5087 = vmatpush1.bf16.msra.mxu0 0
  %5088 = vmatprep.subr.bf16.mxu0 0
  %5089 = vmatpush1.bf16.msra.mxu0 0
  %5090 = vmatprep.subr.bf16.mxu0 0
  %5091 = vmatpush1.bf16.msra.mxu0 0
  %5092 = vmatprep.subr.bf16.mxu0 0
  %5093 = vmatpush1.bf16.msra.mxu0 0
  %5094 = vmatprep.mubr.bf16.mxu0 %v5057
  %5095 = vmatmul.mubr.bf16.gmra.mrb[0].mxu0 %v5050
  %v5096 = vpop.f32.mrb[0].mxu0
  %v5097 = vadd.f32 %v5021, %v5096
  %v5098 = vpop.f32.mrb[0].mxu0
  %v5099 = vpop.f32.mrb[0].mxu0
  %v5100 = vadd.f32 %v5026, %v5099
  %v5101 = vpop.f32.mrb[0].mxu0
  %5102 = vmatprep.mubr.bf16.mxu0 %v5060
  %5103 = vmatmul.mubr.bf16.gmra.mrb[0].mxu0 %v5052
  %v5104 = vpop.f32.mrb[0].mxu0
  %v5105 = vadd.f32 %v5031, %v5104
  %v5106 = vpop.f32.mrb[0].mxu0
  %v5107 = vpop.f32.mrb[0].mxu0
  %v5108 = vadd.f32 %v5036, %v5107
  %v5109 = vpop.f32.mrb[0].mxu0
  %5110 = vdwg.mxu0
  %v5111 = vmax.f32 %v5097, 0.0
  %v5112 = vmax.f32 %v5100, 0.0
  %v5113 = vmax.f32 %v5105, 0.0
  %v5114 = vmax.f32 %v5108, 0.0
  %v5115 = vld [vmem:[%s31] sm:$0xff]
  %v5116 = vld [vmem:[%s31 + $0x8] sm:$0xf]
  %v5117 = vld [vmem:[%s31 + $0xc] sm:$0xff]
  %v5118 = vld [vmem:[%s31 + $0x14] sm:$0xf]
  %v5119 = vld [vmem:[%s31 + $0x18] sm:$0xff]
  %v5120 = vld [vmem:[%s31 + $0x20] sm:$0xf]
  %v5121 = vld [vmem:[%s31 + $0x24] sm:$0xff]
  %v5122 = vld [vmem:[%s31 + $0x2c] sm:$0xf]
  %v5123 = vld [vmem:[%s33] sm:$0xff]
  %v5124 = vld [vmem:[%s33 + $0x8] sm:$0xff]
  %v5125 = vld [vmem:[%s33 + $0x10] sm:$0xff]
  %v5126 = vld [vmem:[%s33 + $0x18] sm:$0xff]
  %5127 = vrot.lane.b32.xlu0 %v5111, 9
  %v5128 = vpop.permute.xlu0 %5127
  %5129 = vrot.lane.b32.xlu0 %v5112, 9
  %v5130 = vpop.permute.xlu0 %5129
  %5131 = vrot.lane.b32.xlu0 %v5113, 9
  %v5132 = vpop.permute.xlu0 %5131
  %5133 = vrot.lane.b32.xlu0 %v5114, 9
  %v5134 = vpop.permute.xlu0 %5133
  %v5135 = vmul.f32 %v5128, %v4936
  %v5136 = vmul.f32 %v5130, %v4936
  %v5137 = vmul.f32 %v5132, %v4936
  %v5138 = vmul.f32 %v5134, %v4936
  %5139 = vrot.lane.b32.xlu0 %v5111, 8
  %v5140 = vpop.permute.xlu0 %5139
  %5141 = vrot.lane.b32.xlu0 %v5112, 8
  %v5142 = vpop.permute.xlu0 %5141
  %5143 = vrot.lane.b32.xlu0 %v5113, 8
  %v5144 = vpop.permute.xlu0 %5143
  %5145 = vrot.lane.b32.xlu0 %v5114, 8
  %v5146 = vpop.permute.xlu0 %5145
  %v5147 = vmul.f32 %v5140, %v4946
  %v5148 = vmul.f32 %v5142, %v4946
  %v5149 = vmul.f32 %v5144, %v4946
  %v5150 = vmul.f32 %v5146, %v4946
  %5151 = vrot.lane.b32.xlu0 %v5111, 7
  %v5152 = vpop.permute.xlu0 %5151
  %5153 = vrot.lane.b32.xlu0 %v5112, 7
  %v5154 = vpop.permute.xlu0 %5153
  %5155 = vrot.lane.b32.xlu0 %v5113, 7
  %v5156 = vpop.permute.xlu0 %5155
  %5157 = vrot.lane.b32.xlu0 %v5114, 7
  %v5158 = vpop.permute.xlu0 %5157
  %v5159 = vmul.f32 %v5152, %v4956
  %v5160 = vmul.f32 %v5154, %v4956
  %v5161 = vmul.f32 %v5156, %v4956
  %v5162 = vmul.f32 %v5158, %v4956
  %5163 = vrot.lane.b32.xlu0 %v5111, 1
  %v5164 = vpop.permute.xlu0 %5163
  %5165 = vrot.lane.b32.xlu0 %v5112, 1
  %v5166 = vpop.permute.xlu0 %5165
  %5167 = vrot.lane.b32.xlu0 %v5113, 1
  %v5168 = vpop.permute.xlu0 %5167
  %5169 = vrot.lane.b32.xlu0 %v5114, 1
  %v5170 = vpop.permute.xlu0 %5169
  %v5171 = vmul.f32 %v5164, %v4966
  %v5172 = vmul.f32 %v5166, %v4966
  %v5173 = vmul.f32 %v5168, %v4966
  %v5174 = vmul.f32 %v5170, %v4966
  %5175 = vrot.lane.b32.xlu0 %v5111, 127
  %v5176 = vpop.permute.xlu0 %5175
  %5177 = vrot.lane.b32.xlu0 %v5112, 127
  %v5178 = vpop.permute.xlu0 %5177
  %5179 = vrot.lane.b32.xlu0 %v5113, 127
  %v5180 = vpop.permute.xlu0 %5179
  %5181 = vrot.lane.b32.xlu0 %v5114, 127
  %v5182 = vpop.permute.xlu0 %5181
  %v5183 = vmul.f32 %v5176, %v4976
  %v5184 = vmul.f32 %v5178, %v4976
  %v5185 = vmul.f32 %v5180, %v4976
  %v5186 = vmul.f32 %v5182, %v4976
  %5187 = vrot.lane.b32.xlu0 %v5111, 121
  %v5188 = vpop.permute.xlu0 %5187
  %5189 = vrot.lane.b32.xlu0 %v5112, 121
  %v5190 = vpop.permute.xlu0 %5189
  %5191 = vrot.lane.b32.xlu0 %v5113, 121
  %v5192 = vpop.permute.xlu0 %5191
  %5193 = vrot.lane.b32.xlu0 %v5114, 121
  %v5194 = vpop.permute.xlu0 %5193
  %v5195 = vmul.f32 %v5188, %v4986
  %v5196 = vmul.f32 %v5190, %v4986
  %v5197 = vmul.f32 %v5192, %v4986
  %v5198 = vmul.f32 %v5194, %v4986
  %5199 = vrot.lane.b32.xlu0 %v5111, 120
  %v5200 = vpop.permute.xlu0 %5199
  %5201 = vrot.lane.b32.xlu0 %v5112, 120
  %v5202 = vpop.permute.xlu0 %5201
  %5203 = vrot.lane.b32.xlu0 %v5113, 120
  %v5204 = vpop.permute.xlu0 %5203
  %5205 = vrot.lane.b32.xlu0 %v5114, 120
  %v5206 = vpop.permute.xlu0 %5205
  %v5207 = vmul.f32 %v5200, %v4996
  %v5208 = vmul.f32 %v5202, %v4996
  %v5209 = vmul.f32 %v5204, %v4996
  %v5210 = vmul.f32 %v5206, %v4996
  %5211 = vrot.lane.b32.xlu0 %v5111, 119
  %v5212 = vpop.permute.xlu0 %5211
  %5213 = vrot.lane.b32.xlu0 %v5112, 119
  %v5214 = vpop.permute.xlu0 %5213
  %5215 = vrot.lane.b32.xlu0 %v5113, 119
  %v5216 = vpop.permute.xlu0 %5215
  %5217 = vrot.lane.b32.xlu0 %v5114, 119
  %v5218 = vpop.permute.xlu0 %5217
  %v5219 = vmul.f32 %v5212, %v5006
  %v5220 = vmul.f32 %v5214, %v5006
  %v5221 = vmul.f32 %v5216, %v5006
  %v5222 = vmul.f32 %v5218, %v5006
  %v5223 = vpack.c.bf16 %v5136, %v5135
  %v5224 = vpack.c.bf16 %v5138, %v5137
  %v5225 = vpack.c.bf16 %v5148, %v5147
  %v5226 = vpack.c.bf16 %v5150, %v5149
  %v5227 = vpack.c.bf16 %v5160, %v5159
  %v5228 = vpack.c.bf16 %v5162, %v5161
  %v5229 = vpack.c.bf16 %v5172, %v5171
  %v5230 = vpack.c.bf16 %v5174, %v5173
  %v5231 = vpack.c.bf16 %v5112, %v5111
  %v5232 = vpack.c.bf16 %v5114, %v5113
  %v5233 = vpack.c.bf16 %v5184, %v5183
  %v5234 = vpack.c.bf16 %v5186, %v5185
  %v5235 = vpack.c.bf16 %v5196, %v5195
  %v5236 = vpack.c.bf16 %v5198, %v5197
  %v5237 = vpack.c.bf16 %v5208, %v5207
  %v5238 = vpack.c.bf16 %v5210, %v5209
  %v5239 = vpack.c.bf16 %v5220, %v5219
  %v5240 = vpack.c.bf16 %v5222, %v5221
  %5242 = vset.pattern.permute.xlu0 0
  %5243 = vperm.xlu0 %5242, %v5123
  %v5244 = vpop.permute.xlu0 %5243
  %5247 = vset.pattern.permute.xlu0 0
  %5248 = vperm.xlu0 %5247, %v5124
  %v5249 = vpop.permute.xlu0 %5248
  %5252 = vset.pattern.permute.xlu0 0
  %5253 = vperm.xlu0 %5252, %v5125
  %v5254 = vpop.permute.xlu0 %5253
  %5257 = vset.pattern.permute.xlu0 0
  %5258 = vperm.xlu0 %5257, %v5126
  %v5259 = vpop.permute.xlu0 %5258
  %v5269 = vunpack.c.l.b16 %v5115
  %v5270 = vunpack.c.h.b16 %v5115
  %v5271 = vunpack.c.l.b16 %v5116
  %v5272 = vunpack.c.l.b16 %v5117
  %v5273 = vunpack.c.h.b16 %v5117
  %v5274 = vunpack.c.l.b16 %v5118
  %v5275 = vunpack.c.l.b16 %v5119
  %v5276 = vunpack.c.h.b16 %v5119
  %v5277 = vunpack.c.l.b16 %v5120
  %v5278 = vunpack.c.l.b16 %v5121
  %v5279 = vunpack.c.h.b16 %v5121
  %v5280 = vunpack.c.l.b16 %v5122
  %v5281 = vpack.c.b16 %v5272, %v5269
  %v5282 = vpack.c.b16 %v5273, %v5270
  %v5283 = vpack.c.b16 %v5274, %v5271
  %v5284 = vpack.c.b16 %v5278, %v5275
  %v5285 = vpack.c.b16 %v5279, %v5276
  %v5286 = vpack.c.b16 %v5280, %v5277
  %vm5291 = vcmask 261120
  %v5293 = vsel %vm5291, %v5283, 0
  %v5296 = vsel %vm5291, %v5286, 0
  %5298 = vmatprep.subr.bf16.mxu0 0
  %5299 = vmatpush1.bf16.msra.mxu0 %v5223
  %5300 = vmatprep.subr.bf16.mxu0 0
  %5301 = vmatpush1.bf16.msra.mxu0 %v5224
  %5302 = vmatprep.subr.bf16.mxu0 0
  %5303 = vmatpush1.bf16.msra.mxu0 %v5225
  %5304 = vmatprep.subr.bf16.mxu0 0
  %5305 = vmatpush1.bf16.msra.mxu0 %v5226
  %5306 = vmatprep.subr.bf16.mxu0 0
  %5307 = vmatpush1.bf16.msra.mxu0 %v5227
  %5308 = vmatprep.subr.bf16.mxu0 0
  %5309 = vmatpush1.bf16.msra.mxu0 %v5228
  %5310 = vmatprep.subr.bf16.mxu0 0
  %5311 = vmatpush1.bf16.msra.mxu0 %v5229
  %5312 = vmatprep.subr.bf16.mxu0 0
  %5313 = vmatpush1.bf16.msra.mxu0 %v5230
  %5314 = vmatprep.subr.bf16.mxu0 0
  %5315 = vmatpush1.bf16.msra.mxu0 %v5231
  %5316 = vmatprep.subr.bf16.mxu0 0
  %5317 = vmatpush1.bf16.msra.mxu0 %v5232
  %5318 = vmatprep.subr.bf16.mxu0 0
  %5319 = vmatpush1.bf16.msra.mxu0 %v5233
  %5320 = vmatprep.subr.bf16.mxu0 0
  %5321 = vmatpush1.bf16.msra.mxu0 %v5234
  %5322 = vmatprep.subr.bf16.mxu0 0
  %5323 = vmatpush1.bf16.msra.mxu0 %v5235
  %5324 = vmatprep.subr.bf16.mxu0 0
  %5325 = vmatpush1.bf16.msra.mxu0 %v5236
  %5326 = vmatprep.subr.bf16.mxu0 0
  %5327 = vmatpush1.bf16.msra.mxu0 %v5237
  %5328 = vmatprep.subr.bf16.mxu0 0
  %5329 = vmatpush1.bf16.msra.mxu0 %v5238
  %5330 = vmatprep.mubr.bf16.mxu0 %v5282
  %5331 = vmatmul.mubr.bf16.gmra.mrb[0].mxu0 %v5281
  %v5332 = vpop.f32.mrb[0].mxu0
  %v5333 = vadd.f32 %v5244, %v5332
  %v5334 = vpop.f32.mrb[0].mxu0
  %v5335 = vpop.f32.mrb[0].mxu0
  %v5336 = vadd.f32 %v5249, %v5335
  %v5337 = vpop.f32.mrb[0].mxu0
  %5338 = vmatprep.mubr.bf16.mxu0 %v5285
  %5339 = vmatmul.mubr.bf16.gmra.mrb[0].mxu0 %v5284
  %v5340 = vpop.f32.mrb[0].mxu0
  %v5341 = vadd.f32 %v5254, %v5340
  %v5342 = vpop.f32.mrb[0].mxu0
  %v5343 = vpop.f32.mrb[0].mxu0
  %v5344 = vadd.f32 %v5259, %v5343
  %v5345 = vpop.f32.mrb[0].mxu0
  %5346 = vdwg.mxu0
  %5347 = vmatprep.subr.bf16.mxu0 0
  %5348 = vmatpush1.bf16.msra.mxu0 %v5239
  %5349 = vmatprep.subr.bf16.mxu0 0
  %5350 = vmatpush1.bf16.msra.mxu0 %v5240
  %5351 = vmatprep.subr.bf16.mxu0 0
  %5352 = vmatpush1.bf16.msra.mxu0 0
  %5353 = vmatprep.subr.bf16.mxu0 0
  %5354 = vmatpush1.bf16.msra.mxu0 0
  %5355 = vmatprep.subr.bf16.mxu0 0
  %5356 = vmatpush1.bf16.msra.mxu0 0
  %5357 = vmatprep.subr.bf16.mxu0 0
  %5358 = vmatpush1.bf16.msra.mxu0 0
  %5359 = vmatprep.subr.bf16.mxu0 0
  %5360 = vmatpush1.bf16.msra.mxu0 0
  %5361 = vmatprep.subr.bf16.mxu0 0
  %5362 = vmatpush1.bf16.msra.mxu0 0
  %5363 = vmatprep.subr.bf16.mxu0 0
  %5364 = vmatpush1.bf16.msra.mxu0 0
  %5365 = vmatprep.subr.bf16.mxu0 0
  %5366 = vmatpush1.bf16.msra.mxu0 0
  %5367 = vmatprep.subr.bf16.mxu0 0
  %5368 = vmatpush1.bf16.msra.mxu0 0
  %5369 = vmatprep.subr.bf16.mxu0 0
  %5370 = vmatpush1.bf16.msra.mxu0 0
  %5371 = vmatprep.subr.bf16.mxu0 0
  %5372 = vmatpush1.bf16.msra.mxu0 0
  %5373 = vmatprep.subr.bf16.mxu0 0
  %5374 = vmatpush1.bf16.msra.mxu0 0
  %5375 = vmatprep.subr.bf16.mxu0 0
  %5376 = vmatpush1.bf16.msra.mxu0 0
  %5377 = vmatprep.subr.bf16.mxu0 0
  %5378 = vmatpush1.bf16.msra.mxu0 0
  %5379 = vmatprep.mubr.bf16.mxu0 0
  %5380 = vmatmul.mubr.bf16.gmra.mrb[0].mxu0 %v5293
  %v5381 = vpop.f32.mrb[0].mxu0
  %v5382 = vadd.f32 %v5333, %v5381
  %v5383 = vpop.f32.mrb[0].mxu0
  %v5384 = vpop.f32.mrb[0].mxu0
  %v5385 = vadd.f32 %v5336, %v5384
  %v5386 = vpop.f32.mrb[0].mxu0
  %5387 = vmatprep.mubr.bf16.mxu0 0
  %5388 = vmatmul.mubr.bf16.gmra.mrb[0].mxu0 %v5296
  %v5389 = vpop.f32.mrb[0].mxu0
  %v5390 = vadd.f32 %v5341, %v5389
  %v5391 = vpop.f32.mrb[0].mxu0
  %v5392 = vpop.f32.mrb[0].mxu0
  %v5393 = vadd.f32 %v5344, %v5392
  %v5394 = vpop.f32.mrb[0].mxu0
  %5395 = vdwg.mxu0
  %v5396 = vmax.f32 %v5382, 0.0
  %v5397 = vmax.f32 %v5385, 0.0
  %v5398 = vmax.f32 %v5390, 0.0
  %v5399 = vmax.f32 %v5393, 0.0
  %v5400 = vpack.c.bf16 %v5397, %v5396
  %v5401 = vpack.c.bf16 %v5399, %v5398
  %v5418 = vunpack.c.l.b16 %v4905
  %v5419 = vunpack.c.l.b16 %v4906
  %v5420 = vunpack.c.l.b16 %v4907
  %v5421 = vunpack.c.l.b16 %v4908
  %v5422 = vunpack.c.l.b16 %v4909
  %v5423 = vunpack.c.l.b16 %v4910
  %v5424 = vunpack.c.l.b16 %v4911
  %v5425 = vunpack.c.l.b16 %v4912
  %v5426 = vunpack.c.l.b16 %v4913
  %v5427 = vunpack.c.l.b16 %v4914
  %v5428 = vunpack.c.l.b16 %v4915
  %v5429 = vunpack.c.l.b16 %v4916
  %v5430 = vunpack.c.l.b16 %v4917
  %v5431 = vunpack.c.l.b16 %v4918
  %v5432 = vunpack.c.l.b16 %v4919
  %v5433 = vunpack.c.l.b16 %v4920
  %v5434 = vpack.c.b16 %v5419, %v5418
  %v5435 = vpack.c.b16 %v5421, %v5420
  %v5436 = vpack.c.b16 %v5423, %v5422
  %v5437 = vpack.c.b16 %v5425, %v5424
  %v5438 = vpack.c.b16 %v5427, %v5426
  %v5439 = vpack.c.b16 %v5429, %v5428
  %v5440 = vpack.c.b16 %v5431, %v5430
  %v5441 = vpack.c.b16 %v5433, %v5432
  %5450 = vmatprep.subr.bf16.mxu0 0
  %5451 = vmatpush1.bf16.msra.mxu0 %v5434
  %5452 = vmatprep.subr.bf16.mxu0 0
  %5453 = vmatpush1.bf16.msra.mxu0 %v5435
  %5454 = vmatprep.subr.bf16.mxu0 0
  %5455 = vmatpush1.bf16.msra.mxu0 %v5436
  %5456 = vmatprep.subr.bf16.mxu0 0
  %5457 = vmatpush1.bf16.msra.mxu0 %v5437
  %5458 = vmatprep.subr.bf16.mxu0 0
  %5459 = vmatpush1.bf16.msra.mxu0 %v5438
  %5460 = vmatprep.subr.bf16.mxu0 0
  %5461 = vmatpush1.bf16.msra.mxu0 %v5439
  %5462 = vmatprep.subr.bf16.mxu0 0
  %5463 = vmatpush1.bf16.msra.mxu0 %v5440
  %5464 = vmatprep.subr.bf16.mxu0 0
  %5465 = vmatpush1.bf16.msra.mxu0 %v5441
  %5466 = vmatprep.subr.bf16.mxu0 0
  %5467 = vmatpush1.bf16.msra.mxu0 0
  %5468 = vmatprep.subr.bf16.mxu0 0
  %5469 = vmatpush1.bf16.msra.mxu0 0
  %5470 = vmatprep.subr.bf16.mxu0 0
  %5471 = vmatpush1.bf16.msra.mxu0 0
  %5472 = vmatprep.subr.bf16.mxu0 0
  %5473 = vmatpush1.bf16.msra.mxu0 0
  %5474 = vmatprep.subr.bf16.mxu0 0
  %5475 = vmatpush1.bf16.msra.mxu0 0
  %5476 = vmatprep.subr.bf16.mxu0 0
  %5477 = vmatpush1.bf16.msra.mxu0 0
  %5478 = vmatprep.subr.bf16.mxu0 0
  %5479 = vmatpush1.bf16.msra.mxu0 0
  %5480 = vmatprep.subr.bf16.mxu0 0
  %5481 = vmatpush1.bf16.msra.mxu0 0
  %5482 = vmatprep.mubr.bf16.mxu0 0
  %5483 = vmatmul.mubr.bf16.gmra.mrb[0].mxu0 %v5400
  %v5484 = vpop.f32.mrb[0].mxu0
  %v5485 = vadd.f32 0.0, %v5484
  %v5486 = vpop.f32.mrb[0].mxu0
  %v5487 = vpop.f32.mrb[0].mxu0
  %v5488 = vadd.f32 0.0, %v5487
  %v5489 = vpop.f32.mrb[0].mxu0
  %5490 = vmatprep.mubr.bf16.mxu0 0
  %5491 = vmatmul.mubr.bf16.gmra.mrb[0].mxu0 %v5401
  %v5492 = vpop.f32.mrb[0].mxu0
  %v5493 = vadd.f32 0.0, %v5492
  %v5494 = vpop.f32.mrb[0].mxu0
  %v5495 = vpop.f32.mrb[0].mxu0
  %v5496 = vadd.f32 0.0, %v5495
  %v5497 = vpop.f32.mrb[0].mxu0
  %5498 = vdwg.mxu0
  %v5499 = vld [vmem:[%s47] sm:$0xf]
  %v5500 = vld [vmem:[%s47 + $0x4] sm:$0x1]
  %v5501 = vunpack.c.l.bf16 %v5499
  %v5502 = vunpack.c.l.bf16 %v5500
  %v5503 = vld [vmem:[%s49] sm:$0xf]
  %v5504 = vld [vmem:[%s49 + $0x4] sm:$0xf]
  %v5505 = vld [vmem:[%s49 + $0x8] sm:$0xf]
  %v5506 = vld [vmem:[%s49 + $0xc] sm:$0xf]
  %v5507 = vld [vmem:[%s39] sm:$0xff]
  %v5508 = vld [vmem:[%s39 + $0x8] sm:$0xf]
  %v5509 = vld [vmem:[%s39 + $0xc] sm:$0xff]
  %v5510 = vld [vmem:[%s39 + $0x14] sm:$0xf]
  %v5511 = vld [vmem:[%s39 + $0x18] sm:$0xff]
  %v5512 = vld [vmem:[%s39 + $0x20] sm:$0xf]
  %v5513 = vld [vmem:[%s39 + $0x24] sm:$0xff]
  %v5514 = vld [vmem:[%s39 + $0x2c] sm:$0xf]
  %v5515 = vld [vmem:[%s39 + $0x30] sm:$0xff]
  %v5516 = vld [vmem:[%s39 + $0x38] sm:$0xf]
  %v5517 = vld [vmem:[%s39 + $0x3c] sm:$0xff]
  %v5518 = vld [vmem:[%s39 + $0x44] sm:$0xf]
  %v5519 = vld [vmem:[%s39 + $0x48] sm:$0xff]
  %v5520 = vld [vmem:[%s39 + $0x50] sm:$0xf]
  %v5521 = vld [vmem:[%s39 + $0x54] sm:$0xff]
  %v5522 = vld [vmem:[%s39 + $0x5c] sm:$0xf]
  %v5523 = vld [vmem:[%s41] sm:$0xff]
  %v5524 = vld [vmem:[%s41 + $0x8] sm:$0xff]
  %v5525 = vld [vmem:[%s41 + $0x10] sm:$0xff]
  %v5526 = vld [vmem:[%s41 + $0x18] sm:$0xff]
  %v5527 = vld [vmem:[%s41 + $0x20] sm:$0xff]
  %v5528 = vld [vmem:[%s41 + $0x28] sm:$0xff]
  %v5529 = vld [vmem:[%s41 + $0x30] sm:$0xff]
  %v5530 = vld [vmem:[%s41 + $0x38] sm:$0xff]
  %vm5531 = vcmask 1047808
  %5532 = vrot.lane.b32.xlu0 %v5485, 32
  %v5533 = vpop.permute.xlu0 %5532
  %v5534 = vsel %vm5531, %v5533, %v5485
  %5535 = vrot.lane.b32.xlu0 %v5488, 32
  %v5536 = vpop.permute.xlu0 %5535
  %v5537 = vsel %vm5531, %v5536, %v5488
  %5538 = vrot.lane.b32.xlu0 %v5493, 32
  %v5539 = vpop.permute.xlu0 %5538
  %v5540 = vsel %vm5531, %v5539, %v5493
  %5541 = vrot.lane.b32.xlu0 %v5496, 32
  %v5542 = vpop.permute.xlu0 %5541
  %v5543 = vsel %vm5531, %v5542, %v5496
  %5544 = vrot.lane.b32.xlu0 %v5534, 32
  %v5545 = vpop.permute.xlu0 %5544
  %5546 = vrot.lane.b32.xlu0 %v5537, 32
  %v5547 = vpop.permute.xlu0 %5546
  %5548 = vrot.lane.b32.xlu0 %v5540, 32
  %v5549 = vpop.permute.xlu0 %5548
  %5550 = vrot.lane.b32.xlu0 %v5543, 32
  %v5551 = vpop.permute.xlu0 %5550
  %v5552 = vsel %vm5531, %v5545, %v5485
  %v5553 = vsel %vm5531, %v5547, %v5488
  %v5554 = vsel %vm5531, %v5549, %v5493
  %v5555 = vsel %vm5531, %v5551, %v5496
  %v5556 = vlaneseq
  %v5557 = vshrl.u32 %v5556, 7
  %v5558 = vsub.s32 0, %v5557
  %v5559 = vrot.slane %v5501, %v5558
  %5561 = vrot.lane.b32.xlu0 %v5559, 27
  %v5562 = vpop.permute.xlu0 %5561
  %v5564 = vmul.f32 %v5552, %v5562
  %v5565 = vmul.f32 %v5553, %v5562
  %v5566 = vmul.f32 %v5554, %v5562
  %v5567 = vmul.f32 %v5555, %v5562
  %v5568 = vlaneseq
  %v5569 = vshrl.u32 %v5568, 7
  %v5570 = vsub.s32 1, %v5569
  %v5571 = vrot.slane %v5501, %v5570
  %5573 = vrot.lane.b32.xlu0 %v5571, 28
  %v5574 = vpop.permute.xlu0 %5573
  %v5576 = vmul.f32 %v5552, %v5574
  %v5577 = vmul.f32 %v5553, %v5574
  %v5578 = vmul.f32 %v5554, %v5574
  %v5579 = vmul.f32 %v5555, %v5574
  %v5580 = vlaneseq
  %v5581 = vshrl.u32 %v5580, 7
  %v5582 = vsub.s32 2, %v5581
  %v5583 = vrot.slane %v5501, %v5582
  %5585 = vrot.lane.b32.xlu0 %v5583, 29
  %v5586 = vpop.permute.xlu0 %5585
  %v5588 = vmul.f32 %v5552, %v5586
  %v5589 = vmul.f32 %v5553, %v5586
  %v5590 = vmul.f32 %v5554, %v5586
  %v5591 = vmul.f32 %v5555, %v5586
  %v5592 = vlaneseq
  %v5593 = vshrl.u32 %v5592, 7
  %v5594 = vsub.s32 3, %v5593
  %v5595 = vrot.slane %v5501, %v5594
  %5597 = vrot.lane.b32.xlu0 %v5595, 31
  %v5598 = vpop.permute.xlu0 %5597
  %v5600 = vmul.f32 %v5552, %v5598
  %v5601 = vmul.f32 %v5553, %v5598
  %v5602 = vmul.f32 %v5554, %v5598
  %v5603 = vmul.f32 %v5555, %v5598
  %v5604 = vlaneseq
  %v5605 = vshrl.u32 %v5604, 7
  %v5606 = vsub.s32 5, %v5605
  %v5607 = vrot.slane %v5501, %v5606
  %5609 = vrot.lane.b32.xlu0 %v5607, 1
  %v5610 = vpop.permute.xlu0 %5609
  %v5612 = vmul.f32 %v5552, %v5610
  %v5613 = vmul.f32 %v5553, %v5610
  %v5614 = vmul.f32 %v5554, %v5610
  %v5615 = vmul.f32 %v5555, %v5610
  %v5616 = vlaneseq
  %v5617 = vshrl.u32 %v5616, 7
  %v5618 = vsub.s32 6, %v5617
  %v5619 = vrot.slane %v5501, %v5618
  %5621 = vrot.lane.b32.xlu0 %v5619, 3
  %v5622 = vpop.permute.xlu0 %5621
  %v5624 = vmul.f32 %v5552, %v5622
  %v5625 = vmul.f32 %v5553, %v5622
  %v5626 = vmul.f32 %v5554, %v5622
  %v5627 = vmul.f32 %v5555, %v5622
  %v5628 = vlaneseq
  %v5629 = vshrl.u32 %v5628, 7
  %v5630 = vsub.s32 7, %v5629
  %v5631 = vrot.slane %v5501, %v5630
  %5633 = vrot.lane.b32.xlu0 %v5631, 4
  %v5634 = vpop.permute.xlu0 %5633
  %v5636 = vmul.f32 %v5552, %v5634
  %v5637 = vmul.f32 %v5553, %v5634
  %v5638 = vmul.f32 %v5554, %v5634
  %v5639 = vmul.f32 %v5555, %v5634
  %v5640 = vlaneseq
  %v5641 = vshrl.u32 %v5640, 7
  %v5642 = vsub.s32 0, %v5641
  %v5643 = vrot.slane %v5502, %v5642
  %5645 = vrot.lane.b32.xlu0 %v5643, 5
  %v5646 = vpop.permute.xlu0 %5645
  %v5648 = vmul.f32 %v5552, %v5646
  %v5649 = vmul.f32 %v5553, %v5646
  %v5650 = vmul.f32 %v5554, %v5646
  %v5651 = vmul.f32 %v5555, %v5646
  %5656 = vrot.lane.b32.xlu0 %v5576, 127
  %v5657 = vpop.permute.xlu0 %5656
  %5658 = vrot.lane.b32.xlu0 %v5577, 127
  %v5659 = vpop.permute.xlu0 %5658
  %5660 = vrot.lane.b32.xlu0 %v5578, 127
  %v5661 = vpop.permute.xlu0 %5660
  %5662 = vrot.lane.b32.xlu0 %v5579, 127
  %v5663 = vpop.permute.xlu0 %5662
  %5672 = vrot.lane.b32.xlu0 %v5588, 126
  %v5673 = vpop.permute.xlu0 %5672
  %5674 = vrot.lane.b32.xlu0 %v5589, 126
  %v5675 = vpop.permute.xlu0 %5674
  %5676 = vrot.lane.b32.xlu0 %v5590, 126
  %v5677 = vpop.permute.xlu0 %5676
  %5678 = vrot.lane.b32.xlu0 %v5591, 126
  %v5679 = vpop.permute.xlu0 %5678
  %5688 = vrot.lane.b32.xlu0 %v5600, 124
  %v5689 = vpop.permute.xlu0 %5688
  %5690 = vrot.lane.b32.xlu0 %v5601, 124
  %v5691 = vpop.permute.xlu0 %5690
  %5692 = vrot.lane.b32.xlu0 %v5602, 124
  %v5693 = vpop.permute.xlu0 %5692
  %5694 = vrot.lane.b32.xlu0 %v5603, 124
  %v5695 = vpop.permute.xlu0 %5694
  %5704 = vrot.lane.b32.xlu0 %v5485, 27
  %v5705 = vpop.permute.xlu0 %5704
  %5706 = vrot.lane.b32.xlu0 %v5488, 27
  %v5707 = vpop.permute.xlu0 %5706
  %5708 = vrot.lane.b32.xlu0 %v5493, 27
  %v5709 = vpop.permute.xlu0 %5708
  %5710 = vrot.lane.b32.xlu0 %v5496, 27
  %v5711 = vpop.permute.xlu0 %5710
  %5720 = vrot.lane.b32.xlu0 %v5612, 26
  %v5721 = vpop.permute.xlu0 %5720
  %5722 = vrot.lane.b32.xlu0 %v5613, 26
  %v5723 = vpop.permute.xlu0 %5722
  %5724 = vrot.lane.b32.xlu0 %v5614, 26
  %v5725 = vpop.permute.xlu0 %5724
  %5726 = vrot.lane.b32.xlu0 %v5615, 26
  %v5727 = vpop.permute.xlu0 %5726
  %5736 = vrot.lane.b32.xlu0 %v5624, 24
  %v5737 = vpop.permute.xlu0 %5736
  %5738 = vrot.lane.b32.xlu0 %v5625, 24
  %v5739 = vpop.permute.xlu0 %5738
  %5740 = vrot.lane.b32.xlu0 %v5626, 24
  %v5741 = vpop.permute.xlu0 %5740
  %5742 = vrot.lane.b32.xlu0 %v5627, 24
  %v5743 = vpop.permute.xlu0 %5742
  %5752 = vrot.lane.b32.xlu0 %v5636, 23
  %v5753 = vpop.permute.xlu0 %5752
  %5754 = vrot.lane.b32.xlu0 %v5637, 23
  %v5755 = vpop.permute.xlu0 %5754
  %5756 = vrot.lane.b32.xlu0 %v5638, 23
  %v5757 = vpop.permute.xlu0 %5756
  %5758 = vrot.lane.b32.xlu0 %v5639, 23
  %v5759 = vpop.permute.xlu0 %5758
  %5768 = vrot.lane.b32.xlu0 %v5648, 22
  %v5769 = vpop.permute.xlu0 %5768
  %5770 = vrot.lane.b32.xlu0 %v5649, 22
  %v5771 = vpop.permute.xlu0 %5770
  %5772 = vrot.lane.b32.xlu0 %v5650, 22
  %v5773 = vpop.permute.xlu0 %5772
  %5774 = vrot.lane.b32.xlu0 %v5651, 22
  %v5775 = vpop.permute.xlu0 %5774
  %v5780 = vpack.c.bf16 %v5565, %v5564
  %v5781 = vpack.c.bf16 %v5567, %v5566
  %v5782 = vpack.c.bf16 %v5659, %v5657
  %v5783 = vpack.c.bf16 %v5663, %v5661
  %v5784 = vpack.c.bf16 %v5675, %v5673
  %v5785 = vpack.c.bf16 %v5679, %v5677
  %v5786 = vpack.c.bf16 %v5691, %v5689
  %v5787 = vpack.c.bf16 %v5695, %v5693
  %v5788 = vpack.c.bf16 %v5707, %v5705
  %v5789 = vpack.c.bf16 %v5711, %v5709
  %v5790 = vpack.c.bf16 %v5723, %v5721
  %v5791 = vpack.c.bf16 %v5727, %v5725
  %v5792 = vpack.c.bf16 %v5739, %v5737
  %v5793 = vpack.c.bf16 %v5743, %v5741
  %v5794 = vpack.c.bf16 %v5755, %v5753
  %v5795 = vpack.c.bf16 %v5759, %v5757
  %v5796 = vpack.c.bf16 %v5771, %v5769
  %v5797 = vpack.c.bf16 %v5775, %v5773
  %5799 = vset.pattern.permute.xlu0 0
  %5800 = vperm.xlu0 %5799, %v5523
  %v5801 = vpop.permute.xlu0 %5800
  %5804 = vset.pattern.permute.xlu0 0
  %5805 = vperm.xlu0 %5804, %v5524
  %v5806 = vpop.permute.xlu0 %5805
  %5809 = vset.pattern.permute.xlu0 0
  %5810 = vperm.xlu0 %5809, %v5525
  %v5811 = vpop.permute.xlu0 %5810
  %5814 = vset.pattern.permute.xlu0 0
  %5815 = vperm.xlu0 %5814, %v5526
  %v5816 = vpop.permute.xlu0 %5815
  %5819 = vset.pattern.permute.xlu0 0
  %5820 = vperm.xlu0 %5819, %v5527
  %v5821 = vpop.permute.xlu0 %5820
  %5824 = vset.pattern.permute.xlu0 0
  %5825 = vperm.xlu0 %5824, %v5528
  %v5826 = vpop.permute.xlu0 %5825
  %5829 = vset.pattern.permute.xlu0 0
  %5830 = vperm.xlu0 %5829, %v5529
  %v5831 = vpop.permute.xlu0 %5830
  %5834 = vset.pattern.permute.xlu0 0
  %5835 = vperm.xlu0 %5834, %v5530
  %v5836 = vpop.permute.xlu0 %5835
  %v5854 = vunpack.c.l.b16 %v5507
  %v5855 = vunpack.c.h.b16 %v5507
  %v5856 = vunpack.c.l.b16 %v5508
  %v5857 = vunpack.c.l.b16 %v5509
  %v5858 = vunpack.c.h.b16 %v5509
  %v5859 = vunpack.c.l.b16 %v5510
  %v5860 = vunpack.c.l.b16 %v5511
  %v5861 = vunpack.c.h.b16 %v5511
  %v5862 = vunpack.c.l.b16 %v5512
  %v5863 = vunpack.c.l.b16 %v5513
  %v5864 = vunpack.c.h.b16 %v5513
  %v5865 = vunpack.c.l.b16 %v5514
  %v5866 = vunpack.c.l.b16 %v5515
  %v5867 = vunpack.c.h.b16 %v5515
  %v5868 = vunpack.c.l.b16 %v5516
  %v5869 = vunpack.c.l.b16 %v5517
  %v5870 = vunpack.c.h.b16 %v5517
  %v5871 = vunpack.c.l.b16 %v5518
  %v5872 = vunpack.c.l.b16 %v5519
  %v5873 = vunpack.c.h.b16 %v5519
  %v5874 = vunpack.c.l.b16 %v5520
  %v5875 = vunpack.c.l.b16 %v5521
  %v5876 = vunpack.c.h.b16 %v5521
  %v5877 = vunpack.c.l.b16 %v5522
  %v5878 = vpack.c.b16 %v5857, %v5854
  %v5879 = vpack.c.b16 %v5858, %v5855
  %v5880 = vpack.c.b16 %v5859, %v5856
  %v5881 = vpack.c.b16 %v5863, %v5860
  %v5882 = vpack.c.b16 %v5864, %v5861
  %v5883 = vpack.c.b16 %v5865, %v5862
  %v5884 = vpack.c.b16 %v5869, %v5866
  %v5885 = vpack.c.b16 %v5870, %v5867
  %v5886 = vpack.c.b16 %v5871, %v5868
  %v5887 = vpack.c.b16 %v5875, %v5872
  %v5888 = vpack.c.b16 %v5876, %v5873
  %v5889 = vpack.c.b16 %v5877, %v5874
  %5916 = vrot.lane.b32.xlu0 %v5780, 101
  %v5917 = vpop.permute.xlu0 %5916
  %5918 = vrot.lane.b32.xlu0 %v5781, 101
  %v5919 = vpop.permute.xlu0 %5918
  %5920 = vrot.lane.b32.xlu0 %v5782, 101
  %v5921 = vpop.permute.xlu0 %5920
  %5922 = vrot.lane.b32.xlu0 %v5783, 101
  %v5923 = vpop.permute.xlu0 %5922
  %5924 = vrot.lane.b32.xlu0 %v5784, 101
  %v5925 = vpop.permute.xlu0 %5924
  %5926 = vrot.lane.b32.xlu0 %v5785, 101
  %v5927 = vpop.permute.xlu0 %5926
  %5928 = vrot.lane.b32.xlu0 %v5786, 101
  %v5929 = vpop.permute.xlu0 %5928
  %5930 = vrot.lane.b32.xlu0 %v5787, 101
  %v5931 = vpop.permute.xlu0 %5930
  %5932 = vrot.lane.b32.xlu0 %v5788, 101
  %v5933 = vpop.permute.xlu0 %5932
  %5934 = vrot.lane.b32.xlu0 %v5789, 101
  %v5935 = vpop.permute.xlu0 %5934
  %5936 = vrot.lane.b32.xlu0 %v5790, 101
  %v5937 = vpop.permute.xlu0 %5936
  %5938 = vrot.lane.b32.xlu0 %v5791, 101
  %v5939 = vpop.permute.xlu0 %5938
  %5940 = vrot.lane.b32.xlu0 %v5792, 101
  %v5941 = vpop.permute.xlu0 %5940
  %5942 = vrot.lane.b32.xlu0 %v5793, 101
  %v5943 = vpop.permute.xlu0 %5942
  %5944 = vrot.lane.b32.xlu0 %v5794, 101
  %v5945 = vpop.permute.xlu0 %5944
  %5946 = vrot.lane.b32.xlu0 %v5795, 101
  %v5947 = vpop.permute.xlu0 %5946
  %5948 = vrot.lane.b32.xlu0 %v5796, 101
  %v5949 = vpop.permute.xlu0 %5948
  %5950 = vrot.lane.b32.xlu0 %v5797, 101
  %v5951 = vpop.permute.xlu0 %5950
  %v5971 = vsel %vm5291, %v5880, 0
  %v5974 = vsel %vm5291, %v5883, 0
  %v5977 = vsel %vm5291, %v5886, 0
  %v5980 = vsel %vm5291, %v5889, 0
  %5982 = vmatprep.subr.bf16.mxu0 0
  %5983 = vmatpush1.bf16.msra.mxu0 %v5917
  %5984 = vmatprep.subr.bf16.mxu0 0
  %5985 = vmatpush1.bf16.msra.mxu0 %v5919
  %5986 = vmatprep.subr.bf16.mxu0 0
  %5987 = vmatpush1.bf16.msra.mxu0 %v5921
  %5988 = vmatprep.subr.bf16.mxu0 0
  %5989 = vmatpush1.bf16.msra.mxu0 %v5923
  %5990 = vmatprep.subr.bf16.mxu0 0
  %5991 = vmatpush1.bf16.msra.mxu0 %v5925
  %5992 = vmatprep.subr.bf16.mxu0 0
  %5993 = vmatpush1.bf16.msra.mxu0 %v5927
  %5994 = vmatprep.subr.bf16.mxu0 0
  %5995 = vmatpush1.bf16.msra.mxu0 %v5929
  %5996 = vmatprep.subr.bf16.mxu0 0
  %5997 = vmatpush1.bf16.msra.mxu0 %v5931
  %5998 = vmatprep.subr.bf16.mxu0 0
  %5999 = vmatpush1.bf16.msra.mxu0 %v5933
  %6000 = vmatprep.subr.bf16.mxu0 0
  %6001 = vmatpush1.bf16.msra.mxu0 %v5935
  %6002 = vmatprep.subr.bf16.mxu0 0
  %6003 = vmatpush1.bf16.msra.mxu0 %v5937
  %6004 = vmatprep.subr.bf16.mxu0 0
  %6005 = vmatpush1.bf16.msra.mxu0 %v5939
  %6006 = vmatprep.subr.bf16.mxu0 0
  %6007 = vmatpush1.bf16.msra.mxu0 %v5941
  %6008 = vmatprep.subr.bf16.mxu0 0
  %6009 = vmatpush1.bf16.msra.mxu0 %v5943
  %6010 = vmatprep.subr.bf16.mxu0 0
  %6011 = vmatpush1.bf16.msra.mxu0 %v5945
  %6012 = vmatprep.subr.bf16.mxu0 0
  %6013 = vmatpush1.bf16.msra.mxu0 %v5947
  %6014 = vmatprep.mubr.bf16.mxu0 %v5879
  %6015 = vmatmul.mubr.bf16.gmra.mrb[0].mxu0 %v5878
  %v6016 = vpop.f32.mrb[0].mxu0
  %v6017 = vadd.f32 %v5801, %v6016
  %v6018 = vpop.f32.mrb[0].mxu0
  %v6019 = vpop.f32.mrb[0].mxu0
  %v6020 = vadd.f32 %v5806, %v6019
  %v6021 = vpop.f32.mrb[0].mxu0
  %6022 = vmatprep.mubr.bf16.mxu0 %v5882
  %6023 = vmatmul.mubr.bf16.gmra.mrb[0].mxu0 %v5881
  %v6024 = vpop.f32.mrb[0].mxu0
  %v6025 = vadd.f32 %v5811, %v6024
  %v6026 = vpop.f32.mrb[0].mxu0
  %v6027 = vpop.f32.mrb[0].mxu0
  %v6028 = vadd.f32 %v5816, %v6027
  %v6029 = vpop.f32.mrb[0].mxu0
  %6030 = vmatprep.mubr.bf16.mxu0 %v5885
  %6031 = vmatmul.mubr.bf16.gmra.mrb[0].mxu0 %v5884
  %v6032 = vpop.f32.mrb[0].mxu0
  %v6033 = vadd.f32 %v5821, %v6032
  %v6034 = vpop.f32.mrb[0].mxu0
  %v6035 = vpop.f32.mrb[0].mxu0
  %v6036 = vadd.f32 %v5826, %v6035
  %v6037 = vpop.f32.mrb[0].mxu0
  %6038 = vmatprep.mubr.bf16.mxu0 %v5888
  %6039 = vmatmul.mubr.bf16.gmra.mrb[0].mxu0 %v5887
  %v6040 = vpop.f32.mrb[0].mxu0
  %v6041 = vadd.f32 %v5831, %v6040
  %v6042 = vpop.f32.mrb[0].mxu0
  %v6043 = vpop.f32.mrb[0].mxu0
  %v6044 = vadd.f32 %v5836, %v6043
  %v6045 = vpop.f32.mrb[0].mxu0
  %6046 = vdwg.mxu0
  %6047 = vmatprep.subr.bf16.mxu0 0
  %6048 = vmatpush1.bf16.msra.mxu0 %v5949
  %6049 = vmatprep.subr.bf16.mxu0 0
  %6050 = vmatpush1.bf16.msra.mxu0 %v5951
  %6051 = vmatprep.subr.bf16.mxu0 0
  %6052 = vmatpush1.bf16.msra.mxu0 0
  %6053 = vmatprep.subr.bf16.mxu0 0
  %6054 = vmatpush1.bf16.msra.mxu0 0
  %6055 = vmatprep.subr.bf16.mxu0 0
  %6056 = vmatpush1.bf16.msra.mxu0 0
  %6057 = vmatprep.subr.bf16.mxu0 0
  %6058 = vmatpush1.bf16.msra.mxu0 0
  %6059 = vmatprep.subr.bf16.mxu0 0
  %6060 = vmatpush1.bf16.msra.mxu0 0
  %6061 = vmatprep.subr.bf16.mxu0 0
  %6062 = vmatpush1.bf16.msra.mxu0 0
  %6063 = vmatprep.subr.bf16.mxu0 0
  %6064 = vmatpush1.bf16.msra.mxu0 0
  %6065 = vmatprep.subr.bf16.mxu0 0
  %6066 = vmatpush1.bf16.msra.mxu0 0
  %6067 = vmatprep.subr.bf16.mxu0 0
  %6068 = vmatpush1.bf16.msra.mxu0 0
  %6069 = vmatprep.subr.bf16.mxu0 0
  %6070 = vmatpush1.bf16.msra.mxu0 0
  %6071 = vmatprep.subr.bf16.mxu0 0
  %6072 = vmatpush1.bf16.msra.mxu0 0
  %6073 = vmatprep.subr.bf16.mxu0 0
  %6074 = vmatpush1.bf16.msra.mxu0 0
  %6075 = vmatprep.subr.bf16.mxu0 0
  %6076 = vmatpush1.bf16.msra.mxu0 0
  %6077 = vmatprep.subr.bf16.mxu0 0
  %6078 = vmatpush1.bf16.msra.mxu0 0
  %6079 = vmatprep.mubr.bf16.mxu0 0
  %6080 = vmatmul.mubr.bf16.gmra.mrb[0].mxu0 %v5971
  %v6081 = vpop.f32.mrb[0].mxu0
  %v6082 = vadd.f32 %v6017, %v6081
  %v6083 = vpop.f32.mrb[0].mxu0
  %v6084 = vpop.f32.mrb[0].mxu0
  %v6085 = vadd.f32 %v6020, %v6084
  %v6086 = vpop.f32.mrb[0].mxu0
  %6087 = vmatprep.mubr.bf16.mxu0 0
  %6088 = vmatmul.mubr.bf16.gmra.mrb[0].mxu0 %v5974
  %v6089 = vpop.f32.mrb[0].mxu0
  %v6090 = vadd.f32 %v6025, %v6089
  %v6091 = vpop.f32.mrb[0].mxu0
  %v6092 = vpop.f32.mrb[0].mxu0
  %v6093 = vadd.f32 %v6028, %v6092
  %v6094 = vpop.f32.mrb[0].mxu0
  %6095 = vmatprep.mubr.bf16.mxu0 0
  %6096 = vmatmul.mubr.bf16.gmra.mrb[0].mxu0 %v5977
  %v6097 = vpop.f32.mrb[0].mxu0
  %v6098 = vadd.f32 %v6033, %v6097
  %v6099 = vpop.f32.mrb[0].mxu0
  %v6100 = vpop.f32.mrb[0].mxu0
  %v6101 = vadd.f32 %v6036, %v6100
  %v6102 = vpop.f32.mrb[0].mxu0
  %6103 = vmatprep.mubr.bf16.mxu0 0
  %6104 = vmatmul.mubr.bf16.gmra.mrb[0].mxu0 %v5980
  %v6105 = vpop.f32.mrb[0].mxu0
  %v6106 = vadd.f32 %v6041, %v6105
  %v6107 = vpop.f32.mrb[0].mxu0
  %v6108 = vpop.f32.mrb[0].mxu0
  %v6109 = vadd.f32 %v6044, %v6108
  %v6110 = vpop.f32.mrb[0].mxu0
  %6111 = vdwg.mxu0
  %v6112 = vmax.f32 %v6082, 0.0
  %v6113 = vmax.f32 %v6085, 0.0
  %v6114 = vmax.f32 %v6090, 0.0
  %v6115 = vmax.f32 %v6093, 0.0
  %v6116 = vmax.f32 %v6098, 0.0
  %v6117 = vmax.f32 %v6101, 0.0
  %v6118 = vmax.f32 %v6106, 0.0
  %v6119 = vmax.f32 %v6109, 0.0
  %v6120 = vld [vmem:[%s43] sm:$0xff]
  %v6121 = vld [vmem:[%s43 + $0x8] sm:$0xff]
  %v6122 = vld [vmem:[%s43 + $0x10] sm:$0xf]
  %v6123 = vld [vmem:[%s43 + $0x14] sm:$0xff]
  %v6124 = vld [vmem:[%s43 + $0x1c] sm:$0xff]
  %v6125 = vld [vmem:[%s43 + $0x24] sm:$0xf]
  %v6126 = vld [vmem:[%s43 + $0x28] sm:$0xff]
  %v6127 = vld [vmem:[%s43 + $0x30] sm:$0xff]
  %v6128 = vld [vmem:[%s43 + $0x38] sm:$0xf]
  %v6129 = vld [vmem:[%s43 + $0x3c] sm:$0xff]
  %v6130 = vld [vmem:[%s43 + $0x44] sm:$0xff]
  %v6131 = vld [vmem:[%s43 + $0x4c] sm:$0xf]
  %v6132 = vld [vmem:[%s43 + $0x50] sm:$0xff]
  %v6133 = vld [vmem:[%s43 + $0x58] sm:$0xff]
  %v6134 = vld [vmem:[%s43 + $0x60] sm:$0xf]
  %v6135 = vld [vmem:[%s43 + $0x64] sm:$0xff]
  %v6136 = vld [vmem:[%s43 + $0x6c] sm:$0xff]
  %v6137 = vld [vmem:[%s43 + $0x74] sm:$0xf]
  %v6138 = vld [vmem:[%s43 + $0x78] sm:$0xff]
  %v6139 = vld [vmem:[%s43 + $0x80] sm:$0xff]
  %v6140 = vld [vmem:[%s43 + $0x88] sm:$0xf]
  %v6141 = vld [vmem:[%s43 + $0x8c] sm:$0xff]
  %v6142 = vld [vmem:[%s43 + $0x94] sm:$0xff]
  %v6143 = vld [vmem:[%s43 + $0x9c] sm:$0xf]
  %v6144 = vld [vmem:[%s45] sm:$0xff]
  %v6145 = vld [vmem:[%s45 + $0x8] sm:$0xff]
  %v6146 = vld [vmem:[%s45 + $0x10] sm:$0xff]
  %v6147 = vld [vmem:[%s45 + $0x18] sm:$0xff]
  %v6148 = vld [vmem:[%s45 + $0x20] sm:$0xff]
  %v6149 = vld [vmem:[%s45 + $0x28] sm:$0xff]
  %v6150 = vld [vmem:[%s45 + $0x30] sm:$0xff]
  %v6151 = vld [vmem:[%s45 + $0x38] sm:$0xff]
  %6152 = vrot.lane.b32.xlu0 %v6112, 32
  %v6153 = vpop.permute.xlu0 %6152
  %v6154 = vsel %vm5531, %v6153, %v6112
  %6155 = vrot.lane.b32.xlu0 %v6113, 32
  %v6156 = vpop.permute.xlu0 %6155
  %v6157 = vsel %vm5531, %v6156, %v6113
  %6158 = vrot.lane.b32.xlu0 %v6114, 32
  %v6159 = vpop.permute.xlu0 %6158
  %v6160 = vsel %vm5531, %v6159, %v6114
  %6161 = vrot.lane.b32.xlu0 %v6115, 32
  %v6162 = vpop.permute.xlu0 %6161
  %v6163 = vsel %vm5531, %v6162, %v6115
  %6164 = vrot.lane.b32.xlu0 %v6116, 32
  %v6165 = vpop.permute.xlu0 %6164
  %v6166 = vsel %vm5531, %v6165, %v6116
  %6167 = vrot.lane.b32.xlu0 %v6117, 32
  %v6168 = vpop.permute.xlu0 %6167
  %v6169 = vsel %vm5531, %v6168, %v6117
  %6170 = vrot.lane.b32.xlu0 %v6118, 32
  %v6171 = vpop.permute.xlu0 %6170
  %v6172 = vsel %vm5531, %v6171, %v6118
  %6173 = vrot.lane.b32.xlu0 %v6119, 32
  %v6174 = vpop.permute.xlu0 %6173
  %v6175 = vsel %vm5531, %v6174, %v6119
  %6176 = vrot.lane.b32.xlu0 %v6154, 32
  %v6177 = vpop.permute.xlu0 %6176
  %6178 = vrot.lane.b32.xlu0 %v6157, 32
  %v6179 = vpop.permute.xlu0 %6178
  %6180 = vrot.lane.b32.xlu0 %v6160, 32
  %v6181 = vpop.permute.xlu0 %6180
  %6182 = vrot.lane.b32.xlu0 %v6163, 32
  %v6183 = vpop.permute.xlu0 %6182
  %6184 = vrot.lane.b32.xlu0 %v6166, 32
  %v6185 = vpop.permute.xlu0 %6184
  %6186 = vrot.lane.b32.xlu0 %v6169, 32
  %v6187 = vpop.permute.xlu0 %6186
  %6188 = vrot.lane.b32.xlu0 %v6172, 32
  %v6189 = vpop.permute.xlu0 %6188
  %6190 = vrot.lane.b32.xlu0 %v6175, 32
  %v6191 = vpop.permute.xlu0 %6190
  %v6192 = vsel %vm5531, %v6177, %v6112
  %v6193 = vsel %vm5531, %v6179, %v6113
  %v6194 = vsel %vm5531, %v6181, %v6114
  %v6195 = vsel %vm5531, %v6183, %v6115
  %v6196 = vsel %vm5531, %v6185, %v6116
  %v6197 = vsel %vm5531, %v6187, %v6117
  %v6198 = vsel %vm5531, %v6189, %v6118
  %v6199 = vsel %vm5531, %v6191, %v6119
  %v6200 = vmul.f32 %v6192, %v5562
  %v6201 = vmul.f32 %v6193, %v5562
  %v6202 = vmul.f32 %v6194, %v5562
  %v6203 = vmul.f32 %v6195, %v5562
  %v6204 = vmul.f32 %v6196, %v5562
  %v6205 = vmul.f32 %v6197, %v5562
  %v6206 = vmul.f32 %v6198, %v5562
  %v6207 = vmul.f32 %v6199, %v5562
  %v6208 = vmul.f32 %v6192, %v5574
  %v6209 = vmul.f32 %v6193, %v5574
  %v6210 = vmul.f32 %v6194, %v5574
  %v6211 = vmul.f32 %v6195, %v5574
  %v6212 = vmul.f32 %v6196, %v5574
  %v6213 = vmul.f32 %v6197, %v5574
  %v6214 = vmul.f32 %v6198, %v5574
  %v6215 = vmul.f32 %v6199, %v5574
  %v6216 = vmul.f32 %v6192, %v5586
  %v6217 = vmul.f32 %v6193, %v5586
  %v6218 = vmul.f32 %v6194, %v5586
  %v6219 = vmul.f32 %v6195, %v5586
  %v6220 = vmul.f32 %v6196, %v5586
  %v6221 = vmul.f32 %v6197, %v5586
  %v6222 = vmul.f32 %v6198, %v5586
  %v6223 = vmul.f32 %v6199, %v5586
  %v6224 = vmul.f32 %v6192, %v5598
  %v6225 = vmul.f32 %v6193, %v5598
  %v6226 = vmul.f32 %v6194, %v5598
  %v6227 = vmul.f32 %v6195, %v5598
  %v6228 = vmul.f32 %v6196, %v5598
  %v6229 = vmul.f32 %v6197, %v5598
  %v6230 = vmul.f32 %v6198, %v5598
  %v6231 = vmul.f32 %v6199, %v5598
  %v6232 = vmul.f32 %v6192, %v5610
  %v6233 = vmul.f32 %v6193, %v5610
  %v6234 = vmul.f32 %v6194, %v5610
  %v6235 = vmul.f32 %v6195, %v5610
  %v6236 = vmul.f32 %v6196, %v5610
  %v6237 = vmul.f32 %v6197, %v5610
  %v6238 = vmul.f32 %v6198, %v5610
  %v6239 = vmul.f32 %v6199, %v5610
  %v6240 = vmul.f32 %v6192, %v5622
  %v6241 = vmul.f32 %v6193, %v5622
  %v6242 = vmul.f32 %v6194, %v5622
  %v6243 = vmul.f32 %v6195, %v5622
  %v6244 = vmul.f32 %v6196, %v5622
  %v6245 = vmul.f32 %v6197, %v5622
  %v6246 = vmul.f32 %v6198, %v5622
  %v6247 = vmul.f32 %v6199, %v5622
  %v6248 = vmul.f32 %v6192, %v5634
  %v6249 = vmul.f32 %v6193, %v5634
  %v6250 = vmul.f32 %v6194, %v5634
  %v6251 = vmul.f32 %v6195, %v5634
  %v6252 = vmul.f32 %v6196, %v5634
  %v6253 = vmul.f32 %v6197, %v5634
  %v6254 = vmul.f32 %v6198, %v5634
  %v6255 = vmul.f32 %v6199, %v5634
  %v6256 = vmul.f32 %v6192, %v5646
  %v6257 = vmul.f32 %v6193, %v5646
  %v6258 = vmul.f32 %v6194, %v5646
  %v6259 = vmul.f32 %v6195, %v5646
  %v6260 = vmul.f32 %v6196, %v5646
  %v6261 = vmul.f32 %v6197, %v5646
  %v6262 = vmul.f32 %v6198, %v5646
  %v6263 = vmul.f32 %v6199, %v5646
  %6272 = vrot.lane.b32.xlu0 %v6208, 127
  %v6273 = vpop.permute.xlu0 %6272
  %6274 = vrot.lane.b32.xlu0 %v6209, 127
  %v6275 = vpop.permute.xlu0 %6274
  %6276 = vrot.lane.b32.xlu0 %v6210, 127
  %v6277 = vpop.permute.xlu0 %6276
  %6278 = vrot.lane.b32.xlu0 %v6211, 127
  %v6279 = vpop.permute.xlu0 %6278
  %6280 = vrot.lane.b32.xlu0 %v6212, 127
  %v6281 = vpop.permute.xlu0 %6280
  %6282 = vrot.lane.b32.xlu0 %v6213, 127
  %v6283 = vpop.permute.xlu0 %6282
  %6284 = vrot.lane.b32.xlu0 %v6214, 127
  %v6285 = vpop.permute.xlu0 %6284
  %6286 = vrot.lane.b32.xlu0 %v6215, 127
  %v6287 = vpop.permute.xlu0 %6286
  %6304 = vrot.lane.b32.xlu0 %v6216, 126
  %v6305 = vpop.permute.xlu0 %6304
  %6306 = vrot.lane.b32.xlu0 %v6217, 126
  %v6307 = vpop.permute.xlu0 %6306
  %6308 = vrot.lane.b32.xlu0 %v6218, 126
  %v6309 = vpop.permute.xlu0 %6308
  %6310 = vrot.lane.b32.xlu0 %v6219, 126
  %v6311 = vpop.permute.xlu0 %6310
  %6312 = vrot.lane.b32.xlu0 %v6220, 126
  %v6313 = vpop.permute.xlu0 %6312
  %6314 = vrot.lane.b32.xlu0 %v6221, 126
  %v6315 = vpop.permute.xlu0 %6314
  %6316 = vrot.lane.b32.xlu0 %v6222, 126
  %v6317 = vpop.permute.xlu0 %6316
  %6318 = vrot.lane.b32.xlu0 %v6223, 126
  %v6319 = vpop.permute.xlu0 %6318
  %6336 = vrot.lane.b32.xlu0 %v6224, 124
  %v6337 = vpop.permute.xlu0 %6336
  %6338 = vrot.lane.b32.xlu0 %v6225, 124
  %v6339 = vpop.permute.xlu0 %6338
  %6340 = vrot.lane.b32.xlu0 %v6226, 124
  %v6341 = vpop.permute.xlu0 %6340
  %6342 = vrot.lane.b32.xlu0 %v6227, 124
  %v6343 = vpop.permute.xlu0 %6342
  %6344 = vrot.lane.b32.xlu0 %v6228, 124
  %v6345 = vpop.permute.xlu0 %6344
  %6346 = vrot.lane.b32.xlu0 %v6229, 124
  %v6347 = vpop.permute.xlu0 %6346
  %6348 = vrot.lane.b32.xlu0 %v6230, 124
  %v6349 = vpop.permute.xlu0 %6348
  %6350 = vrot.lane.b32.xlu0 %v6231, 124
  %v6351 = vpop.permute.xlu0 %6350
  %6368 = vrot.lane.b32.xlu0 %v6112, 27
  %v6369 = vpop.permute.xlu0 %6368
  %6370 = vrot.lane.b32.xlu0 %v6113, 27
  %v6371 = vpop.permute.xlu0 %6370
  %6372 = vrot.lane.b32.xlu0 %v6114, 27
  %v6373 = vpop.permute.xlu0 %6372
  %6374 = vrot.lane.b32.xlu0 %v6115, 27
  %v6375 = vpop.permute.xlu0 %6374
  %6376 = vrot.lane.b32.xlu0 %v6116, 27
  %v6377 = vpop.permute.xlu0 %6376
  %6378 = vrot.lane.b32.xlu0 %v6117, 27
  %v6379 = vpop.permute.xlu0 %6378
  %6380 = vrot.lane.b32.xlu0 %v6118, 27
  %v6381 = vpop.permute.xlu0 %6380
  %6382 = vrot.lane.b32.xlu0 %v6119, 27
  %v6383 = vpop.permute.xlu0 %6382
  %6400 = vrot.lane.b32.xlu0 %v6232, 26
  %v6401 = vpop.permute.xlu0 %6400
  %6402 = vrot.lane.b32.xlu0 %v6233, 26
  %v6403 = vpop.permute.xlu0 %6402
  %6404 = vrot.lane.b32.xlu0 %v6234, 26
  %v6405 = vpop.permute.xlu0 %6404
  %6406 = vrot.lane.b32.xlu0 %v6235, 26
  %v6407 = vpop.permute.xlu0 %6406
  %6408 = vrot.lane.b32.xlu0 %v6236, 26
  %v6409 = vpop.permute.xlu0 %6408
  %6410 = vrot.lane.b32.xlu0 %v6237, 26
  %v6411 = vpop.permute.xlu0 %6410
  %6412 = vrot.lane.b32.xlu0 %v6238, 26
  %v6413 = vpop.permute.xlu0 %6412
  %6414 = vrot.lane.b32.xlu0 %v6239, 26
  %v6415 = vpop.permute.xlu0 %6414
  %6432 = vrot.lane.b32.xlu0 %v6240, 24
  %v6433 = vpop.permute.xlu0 %6432
  %6434 = vrot.lane.b32.xlu0 %v6241, 24
  %v6435 = vpop.permute.xlu0 %6434
  %6436 = vrot.lane.b32.xlu0 %v6242, 24
  %v6437 = vpop.permute.xlu0 %6436
  %6438 = vrot.lane.b32.xlu0 %v6243, 24
  %v6439 = vpop.permute.xlu0 %6438
  %6440 = vrot.lane.b32.xlu0 %v6244, 24
  %v6441 = vpop.permute.xlu0 %6440
  %6442 = vrot.lane.b32.xlu0 %v6245, 24
  %v6443 = vpop.permute.xlu0 %6442
  %6444 = vrot.lane.b32.xlu0 %v6246, 24
  %v6445 = vpop.permute.xlu0 %6444
  %6446 = vrot.lane.b32.xlu0 %v6247, 24
  %v6447 = vpop.permute.xlu0 %6446
  %6464 = vrot.lane.b32.xlu0 %v6248, 23
  %v6465 = vpop.permute.xlu0 %6464
  %6466 = vrot.lane.b32.xlu0 %v6249, 23
  %v6467 = vpop.permute.xlu0 %6466
  %6468 = vrot.lane.b32.xlu0 %v6250, 23
  %v6469 = vpop.permute.xlu0 %6468
  %6470 = vrot.lane.b32.xlu0 %v6251, 23
  %v6471 = vpop.permute.xlu0 %6470
  %6472 = vrot.lane.b32.xlu0 %v6252, 23
  %v6473 = vpop.permute.xlu0 %6472
  %6474 = vrot.lane.b32.xlu0 %v6253, 23
  %v6475 = vpop.permute.xlu0 %6474
  %6476 = vrot.lane.b32.xlu0 %v6254, 23
  %v6477 = vpop.permute.xlu0 %6476
  %6478 = vrot.lane.b32.xlu0 %v6255, 23
  %v6479 = vpop.permute.xlu0 %6478
  %6496 = vrot.lane.b32.xlu0 %v6256, 22
  %v6497 = vpop.permute.xlu0 %6496
  %6498 = vrot.lane.b32.xlu0 %v6257, 22
  %v6499 = vpop.permute.xlu0 %6498
  %6500 = vrot.lane.b32.xlu0 %v6258, 22
  %v6501 = vpop.permute.xlu0 %6500
  %6502 = vrot.lane.b32.xlu0 %v6259, 22
  %v6503 = vpop.permute.xlu0 %6502
  %6504 = vrot.lane.b32.xlu0 %v6260, 22
  %v6505 = vpop.permute.xlu0 %6504
  %6506 = vrot.lane.b32.xlu0 %v6261, 22
  %v6507 = vpop.permute.xlu0 %6506
  %6508 = vrot.lane.b32.xlu0 %v6262, 22
  %v6509 = vpop.permute.xlu0 %6508
  %6510 = vrot.lane.b32.xlu0 %v6263, 22
  %v6511 = vpop.permute.xlu0 %6510
  %v6520 = vpack.c.bf16 %v6201, %v6200
  %v6521 = vpack.c.bf16 %v6203, %v6202
  %v6522 = vpack.c.bf16 %v6205, %v6204
  %v6523 = vpack.c.bf16 %v6207, %v6206
  %v6524 = vpack.c.bf16 %v6275, %v6273
  %v6525 = vpack.c.bf16 %v6279, %v6277
  %v6526 = vpack.c.bf16 %v6283, %v6281
  %v6527 = vpack.c.bf16 %v6287, %v6285
  %v6528 = vpack.c.bf16 %v6307, %v6305
  %v6529 = vpack.c.bf16 %v6311, %v6309
  %v6530 = vpack.c.bf16 %v6315, %v6313
  %v6531 = vpack.c.bf16 %v6319, %v6317
  %v6532 = vpack.c.bf16 %v6339, %v6337
  %v6533 = vpack.c.bf16 %v6343, %v6341
  %v6534 = vpack.c.bf16 %v6347, %v6345
  %v6535 = vpack.c.bf16 %v6351, %v6349
  %v6536 = vpack.c.bf16 %v6371, %v6369
  %v6537 = vpack.c.bf16 %v6375, %v6373
  %v6538 = vpack.c.bf16 %v6379, %v6377
  %v6539 = vpack.c.bf16 %v6383, %v6381
  %v6540 = vpack.c.bf16 %v6403, %v6401
  %v6541 = vpack.c.bf16 %v6407, %v6405
  %v6542 = vpack.c.bf16 %v6411, %v6409
  %v6543 = vpack.c.bf16 %v6415, %v6413
  %v6544 = vpack.c.bf16 %v6435, %v6433
  %v6545 = vpack.c.bf16 %v6439, %v6437
  %v6546 = vpack.c.bf16 %v6443, %v6441
  %v6547 = vpack.c.bf16 %v6447, %v6445
  %v6548 = vpack.c.bf16 %v6467, %v6465
  %v6549 = vpack.c.bf16 %v6471, %v6469
  %v6550 = vpack.c.bf16 %v6475, %v6473
  %v6551 = vpack.c.bf16 %v6479, %v6477
  %v6552 = vpack.c.bf16 %v6499, %v6497
  %v6553 = vpack.c.bf16 %v6503, %v6501
  %v6554 = vpack.c.bf16 %v6507, %v6505
  %v6555 = vpack.c.bf16 %v6511, %v6509
  %6557 = vset.pattern.permute.xlu0 0
  %6558 = vperm.xlu0 %6557, %v6144
  %v6559 = vpop.permute.xlu0 %6558
  %6562 = vset.pattern.permute.xlu0 0
  %6563 = vperm.xlu0 %6562, %v6145
  %v6564 = vpop.permute.xlu0 %6563
  %6567 = vset.pattern.permute.xlu0 0
  %6568 = vperm.xlu0 %6567, %v6146
  %v6569 = vpop.permute.xlu0 %6568
  %6572 = vset.pattern.permute.xlu0 0
  %6573 = vperm.xlu0 %6572, %v6147
  %v6574 = vpop.permute.xlu0 %6573
  %6577 = vset.pattern.permute.xlu0 0
  %6578 = vperm.xlu0 %6577, %v6148
  %v6579 = vpop.permute.xlu0 %6578
  %6582 = vset.pattern.permute.xlu0 0
  %6583 = vperm.xlu0 %6582, %v6149
  %v6584 = vpop.permute.xlu0 %6583
  %6587 = vset.pattern.permute.xlu0 0
  %6588 = vperm.xlu0 %6587, %v6150
  %v6589 = vpop.permute.xlu0 %6588
  %6592 = vset.pattern.permute.xlu0 0
  %6593 = vperm.xlu0 %6592, %v6151
  %v6594 = vpop.permute.xlu0 %6593
  %v6620 = vunpack.c.l.b16 %v6120
  %v6621 = vunpack.c.h.b16 %v6120
  %v6622 = vunpack.c.l.b16 %v6121
  %v6623 = vunpack.c.h.b16 %v6121
  %v6624 = vunpack.c.l.b16 %v6122
  %v6625 = vunpack.c.l.b16 %v6123
  %v6626 = vunpack.c.h.b16 %v6123
  %v6627 = vunpack.c.l.b16 %v6124
  %v6628 = vunpack.c.h.b16 %v6124
  %v6629 = vunpack.c.l.b16 %v6125
  %v6630 = vunpack.c.l.b16 %v6126
  %v6631 = vunpack.c.h.b16 %v6126
  %v6632 = vunpack.c.l.b16 %v6127
  %v6633 = vunpack.c.h.b16 %v6127
  %v6634 = vunpack.c.l.b16 %v6128
  %v6635 = vunpack.c.l.b16 %v6129
  %v6636 = vunpack.c.h.b16 %v6129
  %v6637 = vunpack.c.l.b16 %v6130
  %v6638 = vunpack.c.h.b16 %v6130
  %v6639 = vunpack.c.l.b16 %v6131
  %v6640 = vunpack.c.l.b16 %v6132
  %v6641 = vunpack.c.h.b16 %v6132
  %v6642 = vunpack.c.l.b16 %v6133
  %v6643 = vunpack.c.h.b16 %v6133
  %v6644 = vunpack.c.l.b16 %v6134
  %v6645 = vunpack.c.l.b16 %v6135
  %v6646 = vunpack.c.h.b16 %v6135
  %v6647 = vunpack.c.l.b16 %v6136
  %v6648 = vunpack.c.h.b16 %v6136
  %v6649 = vunpack.c.l.b16 %v6137
  %v6650 = vunpack.c.l.b16 %v6138
  %v6651 = vunpack.c.h.b16 %v6138
  %v6652 = vunpack.c.l.b16 %v6139
  %v6653 = vunpack.c.h.b16 %v6139
  %v6654 = vunpack.c.l.b16 %v6140
  %v6655 = vunpack.c.l.b16 %v6141
  %v6656 = vunpack.c.h.b16 %v6141
  %v6657 = vunpack.c.l.b16 %v6142
  %v6658 = vunpack.c.h.b16 %v6142
  %v6659 = vunpack.c.l.b16 %v6143
  %v6660 = vpack.c.b16 %v6625, %v6620
  %v6661 = vpack.c.b16 %v6626, %v6621
  %v6662 = vpack.c.b16 %v6627, %v6622
  %v6663 = vpack.c.b16 %v6628, %v6623
  %v6664 = vpack.c.b16 %v6629, %v6624
  %v6665 = vpack.c.b16 %v6635, %v6630
  %v6666 = vpack.c.b16 %v6636, %v6631
  %v6667 = vpack.c.b16 %v6637, %v6632
  %v6668 = vpack.c.b16 %v6638, %v6633
  %v6669 = vpack.c.b16 %v6639, %v6634
  %v6670 = vpack.c.b16 %v6645, %v6640
  %v6671 = vpack.c.b16 %v6646, %v6641
  %v6672 = vpack.c.b16 %v6647, %v6642
  %v6673 = vpack.c.b16 %v6648, %v6643
  %v6674 = vpack.c.b16 %v6649, %v6644
  %v6675 = vpack.c.b16 %v6655, %v6650
  %v6676 = vpack.c.b16 %v6656, %v6651
  %v6677 = vpack.c.b16 %v6657, %v6652
  %v6678 = vpack.c.b16 %v6658, %v6653
  %v6679 = vpack.c.b16 %v6659, %v6654
  %6732 = vrot.lane.b32.xlu0 %v6520, 101
  %v6733 = vpop.permute.xlu0 %6732
  %6734 = vrot.lane.b32.xlu0 %v6521, 101
  %v6735 = vpop.permute.xlu0 %6734
  %6736 = vrot.lane.b32.xlu0 %v6522, 101
  %v6737 = vpop.permute.xlu0 %6736
  %6738 = vrot.lane.b32.xlu0 %v6523, 101
  %v6739 = vpop.permute.xlu0 %6738
  %6740 = vrot.lane.b32.xlu0 %v6524, 101
  %v6741 = vpop.permute.xlu0 %6740
  %6742 = vrot.lane.b32.xlu0 %v6525, 101
  %v6743 = vpop.permute.xlu0 %6742
  %6744 = vrot.lane.b32.xlu0 %v6526, 101
  %v6745 = vpop.permute.xlu0 %6744
  %6746 = vrot.lane.b32.xlu0 %v6527, 101
  %v6747 = vpop.permute.xlu0 %6746
  %6748 = vrot.lane.b32.xlu0 %v6528, 101
  %v6749 = vpop.permute.xlu0 %6748
  %6750 = vrot.lane.b32.xlu0 %v6529, 101
  %v6751 = vpop.permute.xlu0 %6750
  %6752 = vrot.lane.b32.xlu0 %v6530, 101
  %v6753 = vpop.permute.xlu0 %6752
  %6754 = vrot.lane.b32.xlu0 %v6531, 101
  %v6755 = vpop.permute.xlu0 %6754
  %6756 = vrot.lane.b32.xlu0 %v6532, 101
  %v6757 = vpop.permute.xlu0 %6756
  %6758 = vrot.lane.b32.xlu0 %v6533, 101
  %v6759 = vpop.permute.xlu0 %6758
  %6760 = vrot.lane.b32.xlu0 %v6534, 101
  %v6761 = vpop.permute.xlu0 %6760
  %6762 = vrot.lane.b32.xlu0 %v6535, 101
  %v6763 = vpop.permute.xlu0 %6762
  %6764 = vrot.lane.b32.xlu0 %v6536, 101
  %v6765 = vpop.permute.xlu0 %6764
  %6766 = vrot.lane.b32.xlu0 %v6537, 101
  %v6767 = vpop.permute.xlu0 %6766
  %6768 = vrot.lane.b32.xlu0 %v6538, 101
  %v6769 = vpop.permute.xlu0 %6768
  %6770 = vrot.lane.b32.xlu0 %v6539, 101
  %v6771 = vpop.permute.xlu0 %6770
  %6772 = vrot.lane.b32.xlu0 %v6540, 101
  %v6773 = vpop.permute.xlu0 %6772
  %6774 = vrot.lane.b32.xlu0 %v6541, 101
  %v6775 = vpop.permute.xlu0 %6774
  %6776 = vrot.lane.b32.xlu0 %v6542, 101
  %v6777 = vpop.permute.xlu0 %6776
  %6778 = vrot.lane.b32.xlu0 %v6543, 101
  %v6779 = vpop.permute.xlu0 %6778
  %6780 = vrot.lane.b32.xlu0 %v6544, 101
  %v6781 = vpop.permute.xlu0 %6780
  %6782 = vrot.lane.b32.xlu0 %v6545, 101
  %v6783 = vpop.permute.xlu0 %6782
  %6784 = vrot.lane.b32.xlu0 %v6546, 101
  %v6785 = vpop.permute.xlu0 %6784
  %6786 = vrot.lane.b32.xlu0 %v6547, 101
  %v6787 = vpop.permute.xlu0 %6786
  %6788 = vrot.lane.b32.xlu0 %v6548, 101
  %v6789 = vpop.permute.xlu0 %6788
  %6790 = vrot.lane.b32.xlu0 %v6549, 101
  %v6791 = vpop.permute.xlu0 %6790
  %6792 = vrot.lane.b32.xlu0 %v6550, 101
  %v6793 = vpop.permute.xlu0 %6792
  %6794 = vrot.lane.b32.xlu0 %v6551, 101
  %v6795 = vpop.permute.xlu0 %6794
  %6796 = vrot.lane.b32.xlu0 %v6552, 101
  %v6797 = vpop.permute.xlu0 %6796
  %6798 = vrot.lane.b32.xlu0 %v6553, 101
  %v6799 = vpop.permute.xlu0 %6798
  %6800 = vrot.lane.b32.xlu0 %v6554, 101
  %v6801 = vpop.permute.xlu0 %6800
  %6802 = vrot.lane.b32.xlu0 %v6555, 101
  %v6803 = vpop.permute.xlu0 %6802
  %v6841 = vsel %vm4898, %v6664, 0
  %v6844 = vsel %vm4898, %v6669, 0
  %v6847 = vsel %vm4898, %v6674, 0
  %v6850 = vsel %vm4898, %v6679, 0
  %6852 = vmatprep.subr.bf16.mxu0 0
  %6853 = vmatpush1.bf16.msra.mxu0 %v6733
  %6854 = vmatprep.subr.bf16.mxu0 0
  %6855 = vmatpush1.bf16.msra.mxu0 %v6735
  %6856 = vmatprep.subr.bf16.mxu0 0
  %6857 = vmatpush1.bf16.msra.mxu0 %v6737
  %6858 = vmatprep.subr.bf16.mxu0 0
  %6859 = vmatpush1.bf16.msra.mxu0 %v6739
  %6860 = vmatprep.subr.bf16.mxu0 0
  %6861 = vmatpush1.bf16.msra.mxu0 %v6741
  %6862 = vmatprep.subr.bf16.mxu0 0
  %6863 = vmatpush1.bf16.msra.mxu0 %v6743
  %6864 = vmatprep.subr.bf16.mxu0 0
  %6865 = vmatpush1.bf16.msra.mxu0 %v6745
  %6866 = vmatprep.subr.bf16.mxu0 0
  %6867 = vmatpush1.bf16.msra.mxu0 %v6747
  %6868 = vmatprep.subr.bf16.mxu0 0
  %6869 = vmatpush1.bf16.msra.mxu0 %v6749
  %6870 = vmatprep.subr.bf16.mxu0 0
  %6871 = vmatpush1.bf16.msra.mxu0 %v6751
  %6872 = vmatprep.subr.bf16.mxu0 0
  %6873 = vmatpush1.bf16.msra.mxu0 %v6753
  %6874 = vmatprep.subr.bf16.mxu0 0
  %6875 = vmatpush1.bf16.msra.mxu0 %v6755
  %6876 = vmatprep.subr.bf16.mxu0 0
  %6877 = vmatpush1.bf16.msra.mxu0 %v6757
  %6878 = vmatprep.subr.bf16.mxu0 0
  %6879 = vmatpush1.bf16.msra.mxu0 %v6759
  %6880 = vmatprep.subr.bf16.mxu0 0
  %6881 = vmatpush1.bf16.msra.mxu0 %v6761
  %6882 = vmatprep.subr.bf16.mxu0 0
  %6883 = vmatpush1.bf16.msra.mxu0 %v6763
  %6884 = vmatprep.mubr.bf16.mxu0 %v6661
  %6885 = vmatmul.mubr.bf16.gmra.mrb[0].mxu0 %v6660
  %v6886 = vpop.f32.mrb[0].mxu0
  %v6887 = vadd.f32 %v6559, %v6886
  %v6888 = vpop.f32.mrb[0].mxu0
  %v6889 = vpop.f32.mrb[0].mxu0
  %v6890 = vadd.f32 %v6564, %v6889
  %v6891 = vpop.f32.mrb[0].mxu0
  %6892 = vmatprep.mubr.bf16.mxu0 %v6666
  %6893 = vmatmul.mubr.bf16.gmra.mrb[0].mxu0 %v6665
  %v6894 = vpop.f32.mrb[0].mxu0
  %v6895 = vadd.f32 %v6569, %v6894
  %v6896 = vpop.f32.mrb[0].mxu0
  %v6897 = vpop.f32.mrb[0].mxu0
  %v6898 = vadd.f32 %v6574, %v6897
  %v6899 = vpop.f32.mrb[0].mxu0
  %6900 = vmatprep.mubr.bf16.mxu0 %v6671
  %6901 = vmatmul.mubr.bf16.gmra.mrb[0].mxu0 %v6670
  %v6902 = vpop.f32.mrb[0].mxu0
  %v6903 = vadd.f32 %v6579, %v6902
  %v6904 = vpop.f32.mrb[0].mxu0
  %v6905 = vpop.f32.mrb[0].mxu0
  %v6906 = vadd.f32 %v6584, %v6905
  %v6907 = vpop.f32.mrb[0].mxu0
  %6908 = vmatprep.mubr.bf16.mxu0 %v6676
  %6909 = vmatmul.mubr.bf16.gmra.mrb[0].mxu0 %v6675
  %v6910 = vpop.f32.mrb[0].mxu0
  %v6911 = vadd.f32 %v6589, %v6910
  %v6912 = vpop.f32.mrb[0].mxu0
  %v6913 = vpop.f32.mrb[0].mxu0
  %v6914 = vadd.f32 %v6594, %v6913
  %v6915 = vpop.f32.mrb[0].mxu0
  %6916 = vdwg.mxu0
  %6917 = vmatprep.subr.bf16.mxu0 0
  %6918 = vmatpush1.bf16.msra.mxu0 %v6765
  %6919 = vmatprep.subr.bf16.mxu0 0
  %6920 = vmatpush1.bf16.msra.mxu0 %v6767
  %6921 = vmatprep.subr.bf16.mxu0 0
  %6922 = vmatpush1.bf16.msra.mxu0 %v6769
  %6923 = vmatprep.subr.bf16.mxu0 0
  %6924 = vmatpush1.bf16.msra.mxu0 %v6771
  %6925 = vmatprep.subr.bf16.mxu0 0
  %6926 = vmatpush1.bf16.msra.mxu0 %v6773
  %6927 = vmatprep.subr.bf16.mxu0 0
  %6928 = vmatpush1.bf16.msra.mxu0 %v6775
  %6929 = vmatprep.subr.bf16.mxu0 0
  %6930 = vmatpush1.bf16.msra.mxu0 %v6777
  %6931 = vmatprep.subr.bf16.mxu0 0
  %6932 = vmatpush1.bf16.msra.mxu0 %v6779
  %6933 = vmatprep.subr.bf16.mxu0 0
  %6934 = vmatpush1.bf16.msra.mxu0 %v6781
  %6935 = vmatprep.subr.bf16.mxu0 0
  %6936 = vmatpush1.bf16.msra.mxu0 %v6783
  %6937 = vmatprep.subr.bf16.mxu0 0
  %6938 = vmatpush1.bf16.msra.mxu0 %v6785
  %6939 = vmatprep.subr.bf16.mxu0 0
  %6940 = vmatpush1.bf16.msra.mxu0 %v6787
  %6941 = vmatprep.subr.bf16.mxu0 0
  %6942 = vmatpush1.bf16.msra.mxu0 %v6789
  %6943 = vmatprep.subr.bf16.mxu0 0
  %6944 = vmatpush1.bf16.msra.mxu0 %v6791
  %6945 = vmatprep.subr.bf16.mxu0 0
  %6946 = vmatpush1.bf16.msra.mxu0 %v6793
  %6947 = vmatprep.subr.bf16.mxu0 0
  %6948 = vmatpush1.bf16.msra.mxu0 %v6795
  %6949 = vmatprep.mubr.bf16.mxu0 %v6663
  %6950 = vmatmul.mubr.bf16.gmra.mrb[0].mxu0 %v6662
  %v6951 = vpop.f32.mrb[0].mxu0
  %v6952 = vadd.f32 %v6887, %v6951
  %v6953 = vpop.f32.mrb[0].mxu0
  %v6954 = vpop.f32.mrb[0].mxu0
  %v6955 = vadd.f32 %v6890, %v6954
  %v6956 = vpop.f32.mrb[0].mxu0
  %6957 = vmatprep.mubr.bf16.mxu0 %v6668
  %6958 = vmatmul.mubr.bf16.gmra.mrb[0].mxu0 %v6667
  %v6959 = vpop.f32.mrb[0].mxu0
  %v6960 = vadd.f32 %v6895, %v6959
  %v6961 = vpop.f32.mrb[0].mxu0
  %v6962 = vpop.f32.mrb[0].mxu0
  %v6963 = vadd.f32 %v6898, %v6962
  %v6964 = vpop.f32.mrb[0].mxu0
  %6965 = vmatprep.mubr.bf16.mxu0 %v6673
  %6966 = vmatmul.mubr.bf16.gmra.mrb[0].mxu0 %v6672
  %v6967 = vpop.f32.mrb[0].mxu0
  %v6968 = vadd.f32 %v6903, %v6967
  %v6969 = vpop.f32.mrb[0].mxu0
  %v6970 = vpop.f32.mrb[0].mxu0
  %v6971 = vadd.f32 %v6906, %v6970
  %v6972 = vpop.f32.mrb[0].mxu0
  %6973 = vmatprep.mubr.bf16.mxu0 %v6678
  %6974 = vmatmul.mubr.bf16.gmra.mrb[0].mxu0 %v6677
  %v6975 = vpop.f32.mrb[0].mxu0
  %v6976 = vadd.f32 %v6911, %v6975
  %v6977 = vpop.f32.mrb[0].mxu0
  %v6978 = vpop.f32.mrb[0].mxu0
  %v6979 = vadd.f32 %v6914, %v6978
  %v6980 = vpop.f32.mrb[0].mxu0
  %6981 = vdwg.mxu0
  %6982 = vmatprep.subr.bf16.mxu0 0
  %6983 = vmatpush1.bf16.msra.mxu0 %v6797
  %6984 = vmatprep.subr.bf16.mxu0 0
  %6985 = vmatpush1.bf16.msra.mxu0 %v6799
  %6986 = vmatprep.subr.bf16.mxu0 0
  %6987 = vmatpush1.bf16.msra.mxu0 %v6801
  %6988 = vmatprep.subr.bf16.mxu0 0
  %6989 = vmatpush1.bf16.msra.mxu0 %v6803
  %6990 = vmatprep.subr.bf16.mxu0 0
  %6991 = vmatpush1.bf16.msra.mxu0 0
  %6992 = vmatprep.subr.bf16.mxu0 0
  %6993 = vmatpush1.bf16.msra.mxu0 0
  %6994 = vmatprep.subr.bf16.mxu0 0
  %6995 = vmatpush1.bf16.msra.mxu0 0
  %6996 = vmatprep.subr.bf16.mxu0 0
  %6997 = vmatpush1.bf16.msra.mxu0 0
  %6998 = vmatprep.subr.bf16.mxu0 0
  %6999 = vmatpush1.bf16.msra.mxu0 0
  %7000 = vmatprep.subr.bf16.mxu0 0
  %7001 = vmatpush1.bf16.msra.mxu0 0
  %7002 = vmatprep.subr.bf16.mxu0 0
  %7003 = vmatpush1.bf16.msra.mxu0 0
  %7004 = vmatprep.subr.bf16.mxu0 0
  %7005 = vmatpush1.bf16.msra.mxu0 0
  %7006 = vmatprep.subr.bf16.mxu0 0
  %7007 = vmatpush1.bf16.msra.mxu0 0
  %7008 = vmatprep.subr.bf16.mxu0 0
  %7009 = vmatpush1.bf16.msra.mxu0 0
  %7010 = vmatprep.subr.bf16.mxu0 0
  %7011 = vmatpush1.bf16.msra.mxu0 0
  %7012 = vmatprep.subr.bf16.mxu0 0
  %7013 = vmatpush1.bf16.msra.mxu0 0
  %7014 = vmatprep.mubr.bf16.mxu0 0
  %7015 = vmatmul.mubr.bf16.gmra.mrb[0].mxu0 %v6841
  %v7016 = vpop.f32.mrb[0].mxu0
  %v7017 = vadd.f32 %v6952, %v7016
  %v7018 = vpop.f32.mrb[0].mxu0
  %v7019 = vpop.f32.mrb[0].mxu0
  %v7020 = vadd.f32 %v6955, %v7019
  %v7021 = vpop.f32.mrb[0].mxu0
  %7022 = vmatprep.mubr.bf16.mxu0 0
  %7023 = vmatmul.mubr.bf16.gmra.mrb[0].mxu0 %v6844
  %v7024 = vpop.f32.mrb[0].mxu0
  %v7025 = vadd.f32 %v6960, %v7024
  %v7026 = vpop.f32.mrb[0].mxu0
  %v7027 = vpop.f32.mrb[0].mxu0
  %v7028 = vadd.f32 %v6963, %v7027
  %v7029 = vpop.f32.mrb[0].mxu0
  %7030 = vmatprep.mubr.bf16.mxu0 0
  %7031 = vmatmul.mubr.bf16.gmra.mrb[0].mxu0 %v6847
  %v7032 = vpop.f32.mrb[0].mxu0
  %v7033 = vadd.f32 %v6968, %v7032
  %v7034 = vpop.f32.mrb[0].mxu0
  %v7035 = vpop.f32.mrb[0].mxu0
  %v7036 = vadd.f32 %v6971, %v7035
  %v7037 = vpop.f32.mrb[0].mxu0
  %7038 = vmatprep.mubr.bf16.mxu0 0
  %7039 = vmatmul.mubr.bf16.gmra.mrb[0].mxu0 %v6850
  %v7040 = vpop.f32.mrb[0].mxu0
  %v7041 = vadd.f32 %v6976, %v7040
  %v7042 = vpop.f32.mrb[0].mxu0
  %v7043 = vpop.f32.mrb[0].mxu0
  %v7044 = vadd.f32 %v6979, %v7043
  %v7045 = vpop.f32.mrb[0].mxu0
  %7046 = vdwg.mxu0
  %v7047 = vmax.f32 %v7017, 0.0
  %v7048 = vmax.f32 %v7020, 0.0
  %v7049 = vmax.f32 %v7025, 0.0
  %v7050 = vmax.f32 %v7028, 0.0
  %v7051 = vmax.f32 %v7033, 0.0
  %v7052 = vmax.f32 %v7036, 0.0
  %v7053 = vmax.f32 %v7041, 0.0
  %v7054 = vmax.f32 %v7044, 0.0
  %v7055 = vpack.c.bf16 %v7048, %v7047
  %v7056 = vpack.c.bf16 %v7050, %v7049
  %v7057 = vpack.c.bf16 %v7052, %v7051
  %v7058 = vpack.c.bf16 %v7054, %v7053
  %v7063 = vunpack.c.l.b16 %v5503
  %v7064 = vunpack.c.l.b16 %v5504
  %v7065 = vunpack.c.l.b16 %v5505
  %v7066 = vunpack.c.l.b16 %v5506
  %v7067 = vpack.c.b16 %v7064, %v7063
  %v7068 = vpack.c.b16 %v7066, %v7065
  %v7072 = vsel %vm5291, %v7055, 0
  %v7075 = vsel %vm5291, %v7056, 0
  %v7078 = vsel %vm5291, %v7057, 0
  %v7081 = vsel %vm5291, %v7058, 0
  %7083 = vmatprep.subr.bf16.mxu0 0
  %7084 = vmatpush1.bf16.msra.mxu0 %v7067
  %7085 = vmatprep.subr.bf16.mxu0 0
  %7086 = vmatpush1.bf16.msra.mxu0 %v7068
  %7087 = vmatprep.subr.bf16.mxu0 0
  %7088 = vmatpush1.bf16.msra.mxu0 0
  %7089 = vmatprep.subr.bf16.mxu0 0
  %7090 = vmatpush1.bf16.msra.mxu0 0
  %7091 = vmatprep.subr.bf16.mxu0 0
  %7092 = vmatpush1.bf16.msra.mxu0 0
  %7093 = vmatprep.subr.bf16.mxu0 0
  %7094 = vmatpush1.bf16.msra.mxu0 0
  %7095 = vmatprep.subr.bf16.mxu0 0
  %7096 = vmatpush1.bf16.msra.mxu0 0
  %7097 = vmatprep.subr.bf16.mxu0 0
  %7098 = vmatpush1.bf16.msra.mxu0 0
  %7099 = vmatprep.subr.bf16.mxu0 0
  %7100 = vmatpush1.bf16.msra.mxu0 0
  %7101 = vmatprep.subr.bf16.mxu0 0
  %7102 = vmatpush1.bf16.msra.mxu0 0
  %7103 = vmatprep.subr.bf16.mxu0 0
  %7104 = vmatpush1.bf16.msra.mxu0 0
  %7105 = vmatprep.subr.bf16.mxu0 0
  %7106 = vmatpush1.bf16.msra.mxu0 0
  %7107 = vmatprep.subr.bf16.mxu0 0
  %7108 = vmatpush1.bf16.msra.mxu0 0
  %7109 = vmatprep.subr.bf16.mxu0 0
  %7110 = vmatpush1.bf16.msra.mxu0 0
  %7111 = vmatprep.subr.bf16.mxu0 0
  %7112 = vmatpush1.bf16.msra.mxu0 0
  %7113 = vmatprep.subr.bf16.mxu0 0
  %7114 = vmatpush1.bf16.msra.mxu0 0
  %7115 = vmatprep.mubr.bf16.mxu0 0
  %7116 = vmatmul.mubr.bf16.gmra.mrb[0].mxu0 %v7072
  %v7117 = vpop.f32.mrb[0].mxu0
  %v7118 = vadd.f32 0.0, %v7117
  %v7119 = vpop.f32.mrb[0].mxu0
  %v7120 = vpop.f32.mrb[0].mxu0
  %v7121 = vadd.f32 0.0, %v7120
  %v7122 = vpop.f32.mrb[0].mxu0
  %7123 = vmatprep.mubr.bf16.mxu0 0
  %7124 = vmatmul.mubr.bf16.gmra.mrb[0].mxu0 %v7075
  %v7125 = vpop.f32.mrb[0].mxu0
  %v7126 = vadd.f32 0.0, %v7125
  %v7127 = vpop.f32.mrb[0].mxu0
  %v7128 = vpop.f32.mrb[0].mxu0
  %v7129 = vadd.f32 0.0, %v7128
  %v7130 = vpop.f32.mrb[0].mxu0
  %7131 = vmatprep.mubr.bf16.mxu0 0
  %7132 = vmatmul.mubr.bf16.gmra.mrb[0].mxu0 %v7078
  %v7133 = vpop.f32.mrb[0].mxu0
  %v7134 = vadd.f32 0.0, %v7133
  %v7135 = vpop.f32.mrb[0].mxu0
  %v7136 = vpop.f32.mrb[0].mxu0
  %v7137 = vadd.f32 0.0, %v7136
  %v7138 = vpop.f32.mrb[0].mxu0
  %7139 = vmatprep.mubr.bf16.mxu0 0
  %7140 = vmatmul.mubr.bf16.gmra.mrb[0].mxu0 %v7081
  %v7141 = vpop.f32.mrb[0].mxu0
  %v7142 = vadd.f32 0.0, %v7141
  %v7143 = vpop.f32.mrb[0].mxu0
  %v7144 = vpop.f32.mrb[0].mxu0
  %v7145 = vadd.f32 0.0, %v7144
  %v7146 = vpop.f32.mrb[0].mxu0
  %7147 = vdwg.mxu0
  %vm7148 = vcmask 31744
  %v7149 = vsel %vm7148, %v7118, 0.0
  %7150 = vadd.xlane.f32.xlu0 %v7149
  %v7151 = vpop.xlane.xlu0 %7150
  %v7152 = vsel %vm7148, %v7121, 0.0
  %7153 = vadd.xlane.f32.xlu0 %v7152
  %v7154 = vpop.xlane.xlu0 %7153
  %v7155 = vsel %vm7148, %v7126, 0.0
  %7156 = vadd.xlane.f32.xlu0 %v7155
  %v7157 = vpop.xlane.xlu0 %7156
  %v7158 = vsel %vm7148, %v7129, 0.0
  %7159 = vadd.xlane.f32.xlu0 %v7158
  %v7160 = vpop.xlane.xlu0 %7159
  %v7161 = vsel %vm7148, %v7134, 0.0
  %7162 = vadd.xlane.f32.xlu0 %v7161
  %v7163 = vpop.xlane.xlu0 %7162
  %v7164 = vsel %vm7148, %v7137, 0.0
  %7165 = vadd.xlane.f32.xlu0 %v7164
  %v7166 = vpop.xlane.xlu0 %7165
  %v7167 = vsel %vm7148, %v7142, 0.0
  %7168 = vadd.xlane.f32.xlu0 %v7167
  %v7169 = vpop.xlane.xlu0 %7168
  %v7170 = vsel %vm7148, %v7145, 0.0
  %7171 = vadd.xlane.f32.xlu0 %v7170
  %v7172 = vpop.xlane.xlu0 %7171
  %v7173 = vrcp.pop 4.0
  %v7174 = vmul.f32 %v7151, %v7173
  %v7175 = vmul.f32 %v7154, %v7173
  %v7176 = vmul.f32 %v7157, %v7173
  %v7177 = vmul.f32 %v7160, %v7173
  %v7178 = vmul.f32 %v7163, %v7173
  %v7179 = vmul.f32 %v7166, %v7173
  %v7180 = vmul.f32 %v7169, %v7173
  %v7181 = vmul.f32 %v7172, %v7173
  %7190 = vrot.lane.b32.xlu0 %v7118, 124
  %v7191 = vpop.permute.xlu0 %7190
  %7192 = vrot.lane.b32.xlu0 %v7121, 124
  %v7193 = vpop.permute.xlu0 %7192
  %7194 = vrot.lane.b32.xlu0 %v7126, 124
  %v7195 = vpop.permute.xlu0 %7194
  %7196 = vrot.lane.b32.xlu0 %v7129, 124
  %v7197 = vpop.permute.xlu0 %7196
  %7198 = vrot.lane.b32.xlu0 %v7134, 124
  %v7199 = vpop.permute.xlu0 %7198
  %7200 = vrot.lane.b32.xlu0 %v7137, 124
  %v7201 = vpop.permute.xlu0 %7200
  %7202 = vrot.lane.b32.xlu0 %v7142, 124
  %v7203 = vpop.permute.xlu0 %7202
  %7204 = vrot.lane.b32.xlu0 %v7145, 124
  %v7205 = vpop.permute.xlu0 %7204
  %v7214 = vsel %vm7148, %v7191, 0.0
  %7215 = vadd.xlane.f32.xlu0 %v7214
  %v7216 = vpop.xlane.xlu0 %7215
  %v7217 = vsel %vm7148, %v7193, 0.0
  %7218 = vadd.xlane.f32.xlu0 %v7217
  %v7219 = vpop.xlane.xlu0 %7218
  %v7220 = vsel %vm7148, %v7195, 0.0
  %7221 = vadd.xlane.f32.xlu0 %v7220
  %v7222 = vpop.xlane.xlu0 %7221
  %v7223 = vsel %vm7148, %v7197, 0.0
  %7224 = vadd.xlane.f32.xlu0 %v7223
  %v7225 = vpop.xlane.xlu0 %7224
  %v7226 = vsel %vm7148, %v7199, 0.0
  %7227 = vadd.xlane.f32.xlu0 %v7226
  %v7228 = vpop.xlane.xlu0 %7227
  %v7229 = vsel %vm7148, %v7201, 0.0
  %7230 = vadd.xlane.f32.xlu0 %v7229
  %v7231 = vpop.xlane.xlu0 %7230
  %v7232 = vsel %vm7148, %v7203, 0.0
  %7233 = vadd.xlane.f32.xlu0 %v7232
  %v7234 = vpop.xlane.xlu0 %7233
  %v7235 = vsel %vm7148, %v7205, 0.0
  %7236 = vadd.xlane.f32.xlu0 %v7235
  %v7237 = vpop.xlane.xlu0 %7236
  %v7238 = vmul.f32 %v7216, %v7173
  %v7239 = vmul.f32 %v7219, %v7173
  %v7240 = vmul.f32 %v7222, %v7173
  %v7241 = vmul.f32 %v7225, %v7173
  %v7242 = vmul.f32 %v7228, %v7173
  %v7243 = vmul.f32 %v7231, %v7173
  %v7244 = vmul.f32 %v7234, %v7173
  %v7245 = vmul.f32 %v7237, %v7173
  %vm7246 = vcmask 7168
  %v7247 = vsel %vm7246, %v7174, %v7238
  %v7248 = vsel %vm7246, %v7175, %v7239
  %v7249 = vsel %vm7246, %v7176, %v7240
  %v7250 = vsel %vm7246, %v7177, %v7241
  %v7251 = vsel %vm7246, %v7178, %v7242
  %v7252 = vsel %vm7246, %v7179, %v7243
  %v7253 = vsel %vm7246, %v7180, %v7244
  %v7254 = vsel %vm7246, %v7181, %v7245
  %v7255 = vsel %vm7148, %v7118, -inf
  %7256 = vmax.xlane.f32.xlu0 %v7255
  %v7257 = vpop.xlane.xlu0 %7256
  %v7258 = vsel %vm7148, %v7121, -inf
  %7259 = vmax.xlane.f32.xlu0 %v7258
  %v7260 = vpop.xlane.xlu0 %7259
  %v7261 = vsel %vm7148, %v7126, -inf
  %7262 = vmax.xlane.f32.xlu0 %v7261
  %v7263 = vpop.xlane.xlu0 %7262
  %v7264 = vsel %vm7148, %v7129, -inf
  %7265 = vmax.xlane.f32.xlu0 %v7264
  %v7266 = vpop.xlane.xlu0 %7265
  %v7267 = vsel %vm7148, %v7134, -inf
  %7268 = vmax.xlane.f32.xlu0 %v7267
  %v7269 = vpop.xlane.xlu0 %7268
  %v7270 = vsel %vm7148, %v7137, -inf
  %7271 = vmax.xlane.f32.xlu0 %v7270
  %v7272 = vpop.xlane.xlu0 %7271
  %v7273 = vsel %vm7148, %v7142, -inf
  %7274 = vmax.xlane.f32.xlu0 %v7273
  %v7275 = vpop.xlane.xlu0 %7274
  %v7276 = vsel %vm7148, %v7145, -inf
  %7277 = vmax.xlane.f32.xlu0 %v7276
  %v7278 = vpop.xlane.xlu0 %7277
  %vm7279 = vcmask 64544
  %v7280 = vsel %vm7279, %v7118, -inf
  %7281 = vmax.xlane.f32.xlu0 %v7280
  %v7282 = vpop.xlane.xlu0 %7281
  %v7283 = vsel %vm7279, %v7121, -inf
  %7284 = vmax.xlane.f32.xlu0 %v7283
  %v7285 = vpop.xlane.xlu0 %7284
  %v7286 = vsel %vm7279, %v7126, -inf
  %7287 = vmax.xlane.f32.xlu0 %v7286
  %v7288 = vpop.xlane.xlu0 %7287
  %v7289 = vsel %vm7279, %v7129, -inf
  %7290 = vmax.xlane.f32.xlu0 %v7289
  %v7291 = vpop.xlane.xlu0 %7290
  %v7292 = vsel %vm7279, %v7134, -inf
  %7293 = vmax.xlane.f32.xlu0 %v7292
  %v7294 = vpop.xlane.xlu0 %7293
  %v7295 = vsel %vm7279, %v7137, -inf
  %7296 = vmax.xlane.f32.xlu0 %v7295
  %v7297 = vpop.xlane.xlu0 %7296
  %v7298 = vsel %vm7279, %v7142, -inf
  %7299 = vmax.xlane.f32.xlu0 %v7298
  %v7300 = vpop.xlane.xlu0 %7299
  %v7301 = vsel %vm7279, %v7145, -inf
  %7302 = vmax.xlane.f32.xlu0 %v7301
  %v7303 = vpop.xlane.xlu0 %7302
  %v7304 = vsel %vm7246, %v7257, %v7282
  %v7305 = vsel %vm7246, %v7260, %v7285
  %v7306 = vsel %vm7246, %v7263, %v7288
  %v7307 = vsel %vm7246, %v7266, %v7291
  %v7308 = vsel %vm7246, %v7269, %v7294
  %v7309 = vsel %vm7246, %v7272, %v7297
  %v7310 = vsel %vm7246, %v7275, %v7300
  %v7311 = vsel %vm7246, %v7278, %v7303
  %7320 = vrot.lane.b32.xlu0 %v7304, 2
  %v7321 = vpop.permute.xlu0 %7320
  %7322 = vrot.lane.b32.xlu0 %v7305, 2
  %v7323 = vpop.permute.xlu0 %7322
  %7324 = vrot.lane.b32.xlu0 %v7306, 2
  %v7325 = vpop.permute.xlu0 %7324
  %7326 = vrot.lane.b32.xlu0 %v7307, 2
  %v7327 = vpop.permute.xlu0 %7326
  %7328 = vrot.lane.b32.xlu0 %v7308, 2
  %v7329 = vpop.permute.xlu0 %7328
  %7330 = vrot.lane.b32.xlu0 %v7309, 2
  %v7331 = vpop.permute.xlu0 %7330
  %7332 = vrot.lane.b32.xlu0 %v7310, 2
  %v7333 = vpop.permute.xlu0 %7332
  %7334 = vrot.lane.b32.xlu0 %v7311, 2
  %v7335 = vpop.permute.xlu0 %7334
  %vm7344 = vcmask 15360
  %v7345 = vsel %vm7344, %v7247, %v7321
  %v7346 = vsel %vm7344, %v7248, %v7323
  %v7347 = vsel %vm7344, %v7249, %v7325
  %v7348 = vsel %vm7344, %v7250, %v7327
  %v7349 = vsel %vm7344, %v7251, %v7329
  %v7350 = vsel %vm7344, %v7252, %v7331
  %v7351 = vsel %vm7344, %v7253, %v7333
  %v7352 = vsel %vm7344, %v7254, %v7335
  %v7353 = vld [vmem:[%s51] sm:$0xf]
  %v7355 = vsel %vm4898, %v7353, 0
  %7357 = vmatprep.subr.mxu0 0.0
  %7358 = vmatpush1.msra.mxu0 %v7345
  %7359 = vmatprep.subr.mxu0 0.0
  %7360 = vmatpush1.msra.mxu0 %v7346
  %7361 = vmatprep.subr.mxu0 0.0
  %7362 = vmatpush1.msra.mxu0 %v7347
  %7363 = vmatprep.subr.mxu0 0.0
  %7364 = vmatpush1.msra.mxu0 %v7348
  %7365 = vmatprep.subr.mxu0 0.0
  %7366 = vmatpush1.msra.mxu0 %v7349
  %7367 = vmatprep.subr.mxu0 0.0
  %7368 = vmatpush1.msra.mxu0 %v7350
  %7369 = vmatprep.subr.mxu0 0.0
  %7370 = vmatpush1.msra.mxu0 %v7351
  %7371 = vmatprep.subr.mxu0 0.0
  %7372 = vmatpush1.msra.mxu0 %v7352
  %7373 = vmatprep.subr.mxu0 0.0
  %7374 = vmatpush1.msra.mxu0 0.0
  %7375 = vmatprep.subr.mxu0 0.0
  %7376 = vmatpush1.msra.mxu0 0.0
  %7377 = vmatprep.subr.mxu0 0.0
  %7378 = vmatpush1.msra.mxu0 0.0
  %7379 = vmatprep.subr.mxu0 0.0
  %7380 = vmatpush1.msra.mxu0 0.0
  %7381 = vmatprep.subr.mxu0 0.0
  %7382 = vmatpush1.msra.mxu0 0.0
  %7383 = vmatprep.subr.mxu0 0.0
  %7384 = vmatpush1.msra.mxu0 0.0
  %7385 = vmatprep.subr.mxu0 0.0
  %7386 = vmatpush1.msra.mxu0 0.0
  %7387 = vmatprep.subr.mxu0 0.0
  %7388 = vmatpush1.msra.mxu0 0.0
  %7389 = vmatprep.subr.mxu0 0.0
  %7390 = vmatpush1.msra.mxu0 0.0
  %7391 = vmatprep.subr.mxu0 0.0
  %7392 = vmatpush1.msra.mxu0 0.0
  %7393 = vmatprep.subr.mxu0 0.0
  %7394 = vmatpush1.msra.mxu0 0.0
  %7395 = vmatprep.subr.mxu0 0.0
  %7396 = vmatpush1.msra.mxu0 0.0
  %7397 = vmatprep.subr.mxu0 0.0
  %7398 = vmatpush1.msra.mxu0 0.0
  %7399 = vmatprep.subr.mxu0 0.0
  %7400 = vmatpush1.msra.mxu0 0.0
  %7401 = vmatprep.subr.mxu0 0.0
  %7402 = vmatpush1.msra.mxu0 0.0
  %7403 = vmatprep.subr.mxu0 0.0
  %7404 = vmatpush1.msra.mxu0 0.0
  %7405 = vmatprep.subr.mxu0 0.0
  %7406 = vmatpush1.msra.mxu0 0.0
  %7407 = vmatprep.subr.mxu0 0.0
  %7408 = vmatpush1.msra.mxu0 0.0
  %7409 = vmatprep.subr.mxu0 0.0
  %7410 = vmatpush1.msra.mxu0 0.0
  %7411 = vmatprep.subr.mxu0 0.0
  %7412 = vmatpush1.msra.mxu0 0.0
  %7413 = vmatprep.subr.mxu0 0.0
  %7414 = vmatpush1.msra.mxu0 0.0
  %7415 = vmatprep.subr.mxu0 0.0
  %7416 = vmatpush1.msra.mxu0 0.0
  %7417 = vmatprep.subr.mxu0 0.0
  %7418 = vmatpush1.msra.mxu0 0.0
  %7419 = vmatprep.subr.mxu0 0.0
  %7420 = vmatpush1.msra.mxu0 0.0
  %7421 = vmatprep.mubr.f32.mxu0 0.0
  %7422 = vmatmul.mubr.f32.gmra.mrb[0].mxu0 %v7355
  %v7423 = vpop.f32.mrb[0].mxu0
  %v7424 = vadd.f32 0.0, %v7423
  %v7425 = vpop.f32.mrb[0].mxu0
  %7426 = vdwg.mxu0
  %v7427 = vmax.f32 %v7424, 0.0
  %v7428 = vld [vmem:[%s53] sm:$0xff]
  %v7429 = vld [vmem:[%s53 + $0x8] sm:$0xff]
  %v7430 = vld [vmem:[%s53 + $0x10] sm:$0xff]
  %v7431 = vld [vmem:[%s53 + $0x18] sm:$0xff]
  %v7432 = vld [vmem:[%s53 + $0x20] sm:$0xff]
  %v7433 = vld [vmem:[%s53 + $0x28] sm:$0xff]
  %v7434 = vld [vmem:[%s53 + $0x30] sm:$0xff]
  %v7435 = vld [vmem:[%s53 + $0x38] sm:$0xff]
  %v7437 = vsel %vm7148, %v7428, 0
  %v7440 = vsel %vm7148, %v7429, 0
  %v7443 = vsel %vm7148, %v7430, 0
  %v7446 = vsel %vm7148, %v7431, 0
  %v7449 = vsel %vm7148, %v7432, 0
  %v7452 = vsel %vm7148, %v7433, 0
  %v7455 = vsel %vm7148, %v7434, 0
  %v7458 = vsel %vm7148, %v7435, 0
  %v7461 = vsel %vm1470, %v7427, 0
  %7463 = vmatprep.subr.mxu0 0.0
  %7464 = vmatpush1.msra.mxu0 %v7461
  %7465 = vmatprep.subr.mxu0 0.0
  %7466 = vmatpush1.msra.mxu0 0.0
  %7467 = vmatprep.subr.mxu0 0.0
  %7468 = vmatpush1.msra.mxu0 0.0
  %7469 = vmatprep.subr.mxu0 0.0
  %7470 = vmatpush1.msra.mxu0 0.0
  %7471 = vmatprep.subr.mxu0 0.0
  %7472 = vmatpush1.msra.mxu0 0.0
  %7473 = vmatprep.subr.mxu0 0.0
  %7474 = vmatpush1.msra.mxu0 0.0
  %7475 = vmatprep.subr.mxu0 0.0
  %7476 = vmatpush1.msra.mxu0 0.0
  %7477 = vmatprep.subr.mxu0 0.0
  %7478 = vmatpush1.msra.mxu0 0.0
  %7479 = vmatprep.subr.mxu0 0.0
  %7480 = vmatpush1.msra.mxu0 0.0
  %7481 = vmatprep.subr.mxu0 0.0
  %7482 = vmatpush1.msra.mxu0 0.0
  %7483 = vmatprep.subr.mxu0 0.0
  %7484 = vmatpush1.msra.mxu0 0.0
  %7485 = vmatprep.subr.mxu0 0.0
  %7486 = vmatpush1.msra.mxu0 0.0
  %7487 = vmatprep.subr.mxu0 0.0
  %7488 = vmatpush1.msra.mxu0 0.0
  %7489 = vmatprep.subr.mxu0 0.0
  %7490 = vmatpush1.msra.mxu0 0.0
  %7491 = vmatprep.subr.mxu0 0.0
  %7492 = vmatpush1.msra.mxu0 0.0
  %7493 = vmatprep.subr.mxu0 0.0
  %7494 = vmatpush1.msra.mxu0 0.0
  %7495 = vmatprep.subr.mxu0 0.0
  %7496 = vmatpush1.msra.mxu0 0.0
  %7497 = vmatprep.subr.mxu0 0.0
  %7498 = vmatpush1.msra.mxu0 0.0
  %7499 = vmatprep.subr.mxu0 0.0
  %7500 = vmatpush1.msra.mxu0 0.0
  %7501 = vmatprep.subr.mxu0 0.0
  %7502 = vmatpush1.msra.mxu0 0.0
  %7503 = vmatprep.subr.mxu0 0.0
  %7504 = vmatpush1.msra.mxu0 0.0
  %7505 = vmatprep.subr.mxu0 0.0
  %7506 = vmatpush1.msra.mxu0 0.0
  %7507 = vmatprep.subr.mxu0 0.0
  %7508 = vmatpush1.msra.mxu0 0.0
  %7509 = vmatprep.subr.mxu0 0.0
  %7510 = vmatpush1.msra.mxu0 0.0
  %7511 = vmatprep.subr.mxu0 0.0
  %7512 = vmatpush1.msra.mxu0 0.0
  %7513 = vmatprep.subr.mxu0 0.0
  %7514 = vmatpush1.msra.mxu0 0.0
  %7515 = vmatprep.subr.mxu0 0.0
  %7516 = vmatpush1.msra.mxu0 0.0
  %7517 = vmatprep.subr.mxu0 0.0
  %7518 = vmatpush1.msra.mxu0 0.0
  %7519 = vmatprep.subr.mxu0 0.0
  %7520 = vmatpush1.msra.mxu0 0.0
  %7521 = vmatprep.subr.mxu0 0.0
  %7522 = vmatpush1.msra.mxu0 0.0
  %7523 = vmatprep.subr.mxu0 0.0
  %7524 = vmatpush1.msra.mxu0 0.0
  %7525 = vmatprep.subr.mxu0 0.0
  %7526 = vmatpush1.msra.mxu0 0.0
  %7527 = vmatprep.mubr.f32.mxu0 0.0
  %7528 = vmatmul.mubr.f32.gmra.mrb[0].mxu0 %v7437
  %v7529 = vpop.f32.mrb[0].mxu0
  %v7530 = vadd.f32 0.0, %v7529
  %v7531 = vpop.f32.mrb[0].mxu0
  %7532 = vmatprep.mubr.f32.mxu0 0.0
  %7533 = vmatmul.mubr.f32.gmra.mrb[0].mxu0 %v7440
  %v7534 = vpop.f32.mrb[0].mxu0
  %v7535 = vadd.f32 0.0, %v7534
  %v7536 = vpop.f32.mrb[0].mxu0
  %7537 = vmatprep.mubr.f32.mxu0 0.0
  %7538 = vmatmul.mubr.f32.gmra.mrb[0].mxu0 %v7443
  %v7539 = vpop.f32.mrb[0].mxu0
  %v7540 = vadd.f32 0.0, %v7539
  %v7541 = vpop.f32.mrb[0].mxu0
  %7542 = vmatprep.mubr.f32.mxu0 0.0
  %7543 = vmatmul.mubr.f32.gmra.mrb[0].mxu0 %v7446
  %v7544 = vpop.f32.mrb[0].mxu0
  %v7545 = vadd.f32 0.0, %v7544
  %v7546 = vpop.f32.mrb[0].mxu0
  %7547 = vmatprep.mubr.f32.mxu0 0.0
  %7548 = vmatmul.mubr.f32.gmra.mrb[0].mxu0 %v7449
  %v7549 = vpop.f32.mrb[0].mxu0
  %v7550 = vadd.f32 0.0, %v7549
  %v7551 = vpop.f32.mrb[0].mxu0
  %7552 = vmatprep.mubr.f32.mxu0 0.0
  %7553 = vmatmul.mubr.f32.gmra.mrb[0].mxu0 %v7452
  %v7554 = vpop.f32.mrb[0].mxu0
  %v7555 = vadd.f32 0.0, %v7554
  %v7556 = vpop.f32.mrb[0].mxu0
  %7557 = vmatprep.mubr.f32.mxu0 0.0
  %7558 = vmatmul.mubr.f32.gmra.mrb[0].mxu0 %v7455
  %v7559 = vpop.f32.mrb[0].mxu0
  %v7560 = vadd.f32 0.0, %v7559
  %v7561 = vpop.f32.mrb[0].mxu0
  %7562 = vmatprep.mubr.f32.mxu0 0.0
  %7563 = vmatmul.mubr.f32.gmra.mrb[0].mxu0 %v7458
  %v7564 = vpop.f32.mrb[0].mxu0
  %v7565 = vadd.f32 0.0, %v7564
  %v7566 = vpop.f32.mrb[0].mxu0
  %7567 = vdwg.mxu0
  %7576 = vrot.lane.b32.xlu0 %v7530, 126
  %v7577 = vpop.permute.xlu0 %7576
  %7578 = vrot.lane.b32.xlu0 %v7535, 126
  %v7579 = vpop.permute.xlu0 %7578
  %7580 = vrot.lane.b32.xlu0 %v7540, 126
  %v7581 = vpop.permute.xlu0 %7580
  %7582 = vrot.lane.b32.xlu0 %v7545, 126
  %v7583 = vpop.permute.xlu0 %7582
  %7584 = vrot.lane.b32.xlu0 %v7550, 126
  %v7585 = vpop.permute.xlu0 %7584
  %7586 = vrot.lane.b32.xlu0 %v7555, 126
  %v7587 = vpop.permute.xlu0 %7586
  %7588 = vrot.lane.b32.xlu0 %v7560, 126
  %v7589 = vpop.permute.xlu0 %7588
  %7590 = vrot.lane.b32.xlu0 %v7565, 126
  %v7591 = vpop.permute.xlu0 %7590
  %v7600 = vadd.f32 %v7530, %v7577
  %v7601 = vadd.f32 %v7535, %v7579
  %v7602 = vadd.f32 %v7540, %v7581
  %v7603 = vadd.f32 %v7545, %v7583
  %v7604 = vadd.f32 %v7550, %v7585
  %v7605 = vadd.f32 %v7555, %v7587
  %v7606 = vadd.f32 %v7560, %v7589
  %v7607 = vadd.f32 %v7565, %v7591
  %v7608 = vxor.u32 %v7600, 2147483648
  %v7609 = vxor.u32 %v7601, 2147483648
  %v7610 = vxor.u32 %v7602, 2147483648
  %v7611 = vxor.u32 %v7603, 2147483648
  %v7612 = vxor.u32 %v7604, 2147483648
  %v7613 = vxor.u32 %v7605, 2147483648
  %v7614 = vxor.u32 %v7606, 2147483648
  %v7615 = vxor.u32 %v7607, 2147483648
  %v7616 = vmul.f32 %v7608, 1.442695
  %v7617 = vpow.pop %v7616
  %v7618 = vmul.f32 %v7609, 1.442695
  %v7619 = vpow.pop %v7618
  %v7620 = vmul.f32 %v7610, 1.442695
  %v7621 = vpow.pop %v7620
  %v7622 = vmul.f32 %v7611, 1.442695
  %v7623 = vpow.pop %v7622
  %v7624 = vmul.f32 %v7612, 1.442695
  %v7625 = vpow.pop %v7624
  %v7626 = vmul.f32 %v7613, 1.442695
  %v7627 = vpow.pop %v7626
  %v7628 = vmul.f32 %v7614, 1.442695
  %v7629 = vpow.pop %v7628
  %v7630 = vmul.f32 %v7615, 1.442695
  %v7631 = vpow.pop %v7630
  %v7632 = vadd.f32 %v7617, 1.0
  %v7633 = vadd.f32 %v7619, 1.0
  %v7634 = vadd.f32 %v7621, 1.0
  %v7635 = vadd.f32 %v7623, 1.0
  %v7636 = vadd.f32 %v7625, 1.0
  %v7637 = vadd.f32 %v7627, 1.0
  %v7638 = vadd.f32 %v7629, 1.0
  %v7639 = vadd.f32 %v7631, 1.0
  %v7640 = vrcp.pop %v7632
  %v7641 = vmul.f32 1.0, %v7640
  %v7642 = vrcp.pop %v7633
  %v7643 = vmul.f32 1.0, %v7642
  %v7644 = vrcp.pop %v7634
  %v7645 = vmul.f32 1.0, %v7644
  %v7646 = vrcp.pop %v7635
  %v7647 = vmul.f32 1.0, %v7646
  %v7648 = vrcp.pop %v7636
  %v7649 = vmul.f32 1.0, %v7648
  %v7650 = vrcp.pop %v7637
  %v7651 = vmul.f32 1.0, %v7650
  %v7652 = vrcp.pop %v7638
  %v7653 = vmul.f32 1.0, %v7652
  %v7654 = vrcp.pop %v7639
  %v7655 = vmul.f32 1.0, %v7654
  %7657 = vset.pattern.permute.xlu0 0
  %7658 = vperm.xlu0 %7657, %v7641
  %v7659 = vpop.permute.xlu0 %7658
  %7662 = vset.pattern.permute.xlu0 0
  %7663 = vperm.xlu0 %7662, %v7643
  %v7664 = vpop.permute.xlu0 %7663
  %7667 = vset.pattern.permute.xlu0 0
  %7668 = vperm.xlu0 %7667, %v7645
  %v7669 = vpop.permute.xlu0 %7668
  %7672 = vset.pattern.permute.xlu0 0
  %7673 = vperm.xlu0 %7672, %v7647
  %v7674 = vpop.permute.xlu0 %7673
  %7677 = vset.pattern.permute.xlu0 0
  %7678 = vperm.xlu0 %7677, %v7649
  %v7679 = vpop.permute.xlu0 %7678
  %7682 = vset.pattern.permute.xlu0 0
  %7683 = vperm.xlu0 %7682, %v7651
  %v7684 = vpop.permute.xlu0 %7683
  %7687 = vset.pattern.permute.xlu0 0
  %7688 = vperm.xlu0 %7687, %v7653
  %v7689 = vpop.permute.xlu0 %7688
  %7692 = vset.pattern.permute.xlu0 0
  %7693 = vperm.xlu0 %7692, %v7655
  %v7694 = vpop.permute.xlu0 %7693
  %v7696 = vmul.f32 %v7118, %v7659
  %v7697 = vmul.f32 %v7121, %v7664
  %v7698 = vmul.f32 %v7126, %v7669
  %v7699 = vmul.f32 %v7129, %v7674
  %v7700 = vmul.f32 %v7134, %v7679
  %v7701 = vmul.f32 %v7137, %v7684
  %v7702 = vmul.f32 %v7142, %v7689
  %v7703 = vmul.f32 %v7145, %v7694
  %7704 = vset.pattern.permute.xlu0 1
  %7705 = vperm.xlu0 %7704, %v7641
  %v7706 = vpop.permute.xlu0 %7705
  %7708 = vset.pattern.permute.xlu0 1
  %7709 = vperm.xlu0 %7708, %v7643
  %v7710 = vpop.permute.xlu0 %7709
  %7712 = vset.pattern.permute.xlu0 1
  %7713 = vperm.xlu0 %7712, %v7645
  %v7714 = vpop.permute.xlu0 %7713
  %7716 = vset.pattern.permute.xlu0 1
  %7717 = vperm.xlu0 %7716, %v7647
  %v7718 = vpop.permute.xlu0 %7717
  %7720 = vset.pattern.permute.xlu0 1
  %7721 = vperm.xlu0 %7720, %v7649
  %v7722 = vpop.permute.xlu0 %7721
  %7724 = vset.pattern.permute.xlu0 1
  %7725 = vperm.xlu0 %7724, %v7651
  %v7726 = vpop.permute.xlu0 %7725
  %7728 = vset.pattern.permute.xlu0 1
  %7729 = vperm.xlu0 %7728, %v7653
  %v7730 = vpop.permute.xlu0 %7729
  %7732 = vset.pattern.permute.xlu0 1
  %7733 = vperm.xlu0 %7732, %v7655
  %v7734 = vpop.permute.xlu0 %7733
  %v7736 = vmul.f32 %v7118, %v7706
  %v7737 = vmul.f32 %v7121, %v7710
  %v7738 = vmul.f32 %v7126, %v7714
  %v7739 = vmul.f32 %v7129, %v7718
  %v7740 = vmul.f32 %v7134, %v7722
  %v7741 = vmul.f32 %v7137, %v7726
  %v7742 = vmul.f32 %v7142, %v7730
  %v7743 = vmul.f32 %v7145, %v7734
  %v7744 = vsel %vm7148, %v7696, 0.0
  %v7745 = vsel %vm7148, %v7697, 0.0
  %v7746 = vadd.f32 %v7744, %v7745
  %v7747 = vsel %vm7148, %v7698, 0.0
  %v7748 = vadd.f32 %v7746, %v7747
  %v7749 = vsel %vm7148, %v7699, 0.0
  %v7750 = vadd.f32 %v7748, %v7749
  %v7751 = vsel %vm7148, %v7700, 0.0
  %v7752 = vadd.f32 %v7750, %v7751
  %v7753 = vsel %vm7148, %v7701, 0.0
  %v7754 = vadd.f32 %v7752, %v7753
  %v7755 = vsel %vm7148, %v7702, 0.0
  %v7756 = vadd.f32 %v7754, %v7755
  %v7757 = vsel %vm7148, %v7703, 0.0
  %v7758 = vadd.f32 %v7756, %v7757
  %v7759 = vrot.slane %v7758, 4
  %v7760 = vadd.f32 %v7758, %v7759
  %v7761 = vrot.slane %v7760, 2
  %v7762 = vadd.f32 %v7760, %v7761
  %v7763 = vrot.slane %v7762, 1
  %v7764 = vadd.f32 %v7762, %v7763
  %v7765 = vrcp.pop 64.0
  %v7766 = vmul.f32 %v7764, %v7765
  %v7767 = vsel %vm7279, %v7736, 0.0
  %v7768 = vsel %vm7279, %v7737, 0.0
  %v7769 = vadd.f32 %v7767, %v7768
  %v7770 = vsel %vm7279, %v7738, 0.0
  %v7771 = vadd.f32 %v7769, %v7770
  %v7772 = vsel %vm7279, %v7739, 0.0
  %v7773 = vadd.f32 %v7771, %v7772
  %v7774 = vsel %vm7279, %v7740, 0.0
  %v7775 = vadd.f32 %v7773, %v7774
  %v7776 = vsel %vm7279, %v7741, 0.0
  %v7777 = vadd.f32 %v7775, %v7776
  %v7778 = vsel %vm7279, %v7742, 0.0
  %v7779 = vadd.f32 %v7777, %v7778
  %v7780 = vsel %vm7279, %v7743, 0.0
  %v7781 = vadd.f32 %v7779, %v7780
  %v7782 = vrot.slane %v7781, 4
  %v7783 = vadd.f32 %v7781, %v7782
  %v7784 = vrot.slane %v7783, 2
  %v7785 = vadd.f32 %v7783, %v7784
  %v7786 = vrot.slane %v7785, 1
  %v7787 = vadd.f32 %v7785, %v7786
  %v7788 = vmul.f32 %v7787, %v7765
  %7790 = vrot.lane.b32.xlu0 %v7788, 124
  %v7791 = vpop.permute.xlu0 %7790
  %vm7793 = vcmask 1040384
  %v7794 = vsel %vm7793, %v7766, %v7791
  %v7795 = vsel %vm7148, %v7696, -inf
  %v7796 = vsel %vm7148, %v7697, -inf
  %v7797 = vsel %vm7148, %v7698, -inf
  %v7798 = vsel %vm7148, %v7699, -inf
  %v7799 = vsel %vm7148, %v7700, -inf
  %v7800 = vmax.f32 %v7795, %v7799
  %v7801 = vsel %vm7148, %v7701, -inf
  %v7802 = vmax.f32 %v7796, %v7801
  %v7803 = vsel %vm7148, %v7702, -inf
  %v7804 = vmax.f32 %v7797, %v7803
  %v7805 = vsel %vm7148, %v7703, -inf
  %v7806 = vmax.f32 %v7798, %v7805
  %v7807 = vmax.f32 %v7800, %v7802
  %v7808 = vmax.f32 %v7804, %v7806
  %v7809 = vmax.f32 %v7807, %v7808
  %v7810 = vrot.slane %v7809, 4
  %v7811 = vmax.f32 %v7809, %v7810
  %v7812 = vrot.slane %v7811, 2
  %v7813 = vmax.f32 %v7811, %v7812
  %v7814 = vrot.slane %v7813, 1
  %v7815 = vmax.f32 %v7813, %v7814
  %v7816 = vsel %vm7279, %v7736, -inf
  %v7817 = vsel %vm7279, %v7737, -inf
  %v7818 = vsel %vm7279, %v7738, -inf
  %v7819 = vsel %vm7279, %v7739, -inf
  %v7820 = vsel %vm7279, %v7740, -inf
  %v7821 = vmax.f32 %v7816, %v7820
  %v7822 = vsel %vm7279, %v7741, -inf
  %v7823 = vmax.f32 %v7817, %v7822
  %v7824 = vsel %vm7279, %v7742, -inf
  %v7825 = vmax.f32 %v7818, %v7824
  %v7826 = vsel %vm7279, %v7743, -inf
  %v7827 = vmax.f32 %v7819, %v7826
  %v7828 = vmax.f32 %v7821, %v7823
  %v7829 = vmax.f32 %v7825, %v7827
  %v7830 = vmax.f32 %v7828, %v7829
  %v7831 = vrot.slane %v7830, 4
  %v7832 = vmax.f32 %v7830, %v7831
  %v7833 = vrot.slane %v7832, 2
  %v7834 = vmax.f32 %v7832, %v7833
  %v7835 = vrot.slane %v7834, 1
  %v7836 = vmax.f32 %v7834, %v7835
  %7838 = vrot.lane.b32.xlu0 %v7836, 124
  %v7839 = vpop.permute.xlu0 %7838
  %v7841 = vsel %vm7793, %v7815, %v7839
  %v7842 = vld [vmem:[%s55] sm:$0xf]
  %v7843 = vld [vmem:[%s57] sm:$0xf]
  %v7845 = vsel %vm7148, %v7841, 0
  %v7848 = vsel %vm1470, %v7843, 0
  %7850 = vmatprep.subr.mxu0 0.0
  %7851 = vmatpush1.msra.mxu0 %v7848
  %7852 = vmatprep.subr.mxu0 0.0
  %7853 = vmatpush1.msra.mxu0 0.0
  %7854 = vmatprep.subr.mxu0 0.0
  %7855 = vmatpush1.msra.mxu0 0.0
  %7856 = vmatprep.subr.mxu0 0.0
  %7857 = vmatpush1.msra.mxu0 0.0
  %7858 = vmatprep.subr.mxu0 0.0
  %7859 = vmatpush1.msra.mxu0 0.0
  %7860 = vmatprep.subr.mxu0 0.0
  %7861 = vmatpush1.msra.mxu0 0.0
  %7862 = vmatprep.subr.mxu0 0.0
  %7863 = vmatpush1.msra.mxu0 0.0
  %7864 = vmatprep.subr.mxu0 0.0
  %7865 = vmatpush1.msra.mxu0 0.0
  %7866 = vmatprep.subr.mxu0 0.0
  %7867 = vmatpush1.msra.mxu0 0.0
  %7868 = vmatprep.subr.mxu0 0.0
  %7869 = vmatpush1.msra.mxu0 0.0
  %7870 = vmatprep.subr.mxu0 0.0
  %7871 = vmatpush1.msra.mxu0 0.0
  %7872 = vmatprep.subr.mxu0 0.0
  %7873 = vmatpush1.msra.mxu0 0.0
  %7874 = vmatprep.subr.mxu0 0.0
  %7875 = vmatpush1.msra.mxu0 0.0
  %7876 = vmatprep.subr.mxu0 0.0
  %7877 = vmatpush1.msra.mxu0 0.0
  %7878 = vmatprep.subr.mxu0 0.0
  %7879 = vmatpush1.msra.mxu0 0.0
  %7880 = vmatprep.subr.mxu0 0.0
  %7881 = vmatpush1.msra.mxu0 0.0
  %7882 = vmatprep.subr.mxu0 0.0
  %7883 = vmatpush1.msra.mxu0 0.0
  %7884 = vmatprep.subr.mxu0 0.0
  %7885 = vmatpush1.msra.mxu0 0.0
  %7886 = vmatprep.subr.mxu0 0.0
  %7887 = vmatpush1.msra.mxu0 0.0
  %7888 = vmatprep.subr.mxu0 0.0
  %7889 = vmatpush1.msra.mxu0 0.0
  %7890 = vmatprep.subr.mxu0 0.0
  %7891 = vmatpush1.msra.mxu0 0.0
  %7892 = vmatprep.subr.mxu0 0.0
  %7893 = vmatpush1.msra.mxu0 0.0
  %7894 = vmatprep.subr.mxu0 0.0
  %7895 = vmatpush1.msra.mxu0 0.0
  %7896 = vmatprep.subr.mxu0 0.0
  %7897 = vmatpush1.msra.mxu0 0.0
  %7898 = vmatprep.subr.mxu0 0.0
  %7899 = vmatpush1.msra.mxu0 0.0
  %7900 = vmatprep.subr.mxu0 0.0
  %7901 = vmatpush1.msra.mxu0 0.0
  %7902 = vmatprep.subr.mxu0 0.0
  %7903 = vmatpush1.msra.mxu0 0.0
  %7904 = vmatprep.subr.mxu0 0.0
  %7905 = vmatpush1.msra.mxu0 0.0
  %7906 = vmatprep.subr.mxu0 0.0
  %7907 = vmatpush1.msra.mxu0 0.0
  %7908 = vmatprep.subr.mxu0 0.0
  %7909 = vmatpush1.msra.mxu0 0.0
  %7910 = vmatprep.subr.mxu0 0.0
  %7911 = vmatpush1.msra.mxu0 0.0
  %7912 = vmatprep.subr.mxu0 0.0
  %7913 = vmatpush1.msra.mxu0 0.0
  %7914 = vmatprep.mubr.f32.mxu0 0.0
  %7915 = vmatmul.mubr.f32.gmra.mrb[0].mxu0 %v7845
  %v7916 = vpop.f32.mrb[0].mxu0
  %v7917 = vadd.f32 0.0, %v7916
  %v7918 = vpop.f32.mrb[0].mxu0
  %7919 = vdwg.mxu0
  %v7921 = vsel %vm7148, %v7794, 0
  %v7924 = vsel %vm1470, %v7842, 0
  %7926 = vmatprep.subr.mxu0 0.0
  %7927 = vmatpush1.msra.mxu0 %v7924
  %7928 = vmatprep.subr.mxu0 0.0
  %7929 = vmatpush1.msra.mxu0 0.0
  %7930 = vmatprep.subr.mxu0 0.0
  %7931 = vmatpush1.msra.mxu0 0.0
  %7932 = vmatprep.subr.mxu0 0.0
  %7933 = vmatpush1.msra.mxu0 0.0
  %7934 = vmatprep.subr.mxu0 0.0
  %7935 = vmatpush1.msra.mxu0 0.0
  %7936 = vmatprep.subr.mxu0 0.0
  %7937 = vmatpush1.msra.mxu0 0.0
  %7938 = vmatprep.subr.mxu0 0.0
  %7939 = vmatpush1.msra.mxu0 0.0
  %7940 = vmatprep.subr.mxu0 0.0
  %7941 = vmatpush1.msra.mxu0 0.0
  %7942 = vmatprep.subr.mxu0 0.0
  %7943 = vmatpush1.msra.mxu0 0.0
  %7944 = vmatprep.subr.mxu0 0.0
  %7945 = vmatpush1.msra.mxu0 0.0
  %7946 = vmatprep.subr.mxu0 0.0
  %7947 = vmatpush1.msra.mxu0 0.0
  %7948 = vmatprep.subr.mxu0 0.0
  %7949 = vmatpush1.msra.mxu0 0.0
  %7950 = vmatprep.subr.mxu0 0.0
  %7951 = vmatpush1.msra.mxu0 0.0
  %7952 = vmatprep.subr.mxu0 0.0
  %7953 = vmatpush1.msra.mxu0 0.0
  %7954 = vmatprep.subr.mxu0 0.0
  %7955 = vmatpush1.msra.mxu0 0.0
  %7956 = vmatprep.subr.mxu0 0.0
  %7957 = vmatpush1.msra.mxu0 0.0
  %7958 = vmatprep.subr.mxu0 0.0
  %7959 = vmatpush1.msra.mxu0 0.0
  %7960 = vmatprep.subr.mxu0 0.0
  %7961 = vmatpush1.msra.mxu0 0.0
  %7962 = vmatprep.subr.mxu0 0.0
  %7963 = vmatpush1.msra.mxu0 0.0
  %7964 = vmatprep.subr.mxu0 0.0
  %7965 = vmatpush1.msra.mxu0 0.0
  %7966 = vmatprep.subr.mxu0 0.0
  %7967 = vmatpush1.msra.mxu0 0.0
  %7968 = vmatprep.subr.mxu0 0.0
  %7969 = vmatpush1.msra.mxu0 0.0
  %7970 = vmatprep.subr.mxu0 0.0
  %7971 = vmatpush1.msra.mxu0 0.0
  %7972 = vmatprep.subr.mxu0 0.0
  %7973 = vmatpush1.msra.mxu0 0.0
  %7974 = vmatprep.subr.mxu0 0.0
  %7975 = vmatpush1.msra.mxu0 0.0
  %7976 = vmatprep.subr.mxu0 0.0
  %7977 = vmatpush1.msra.mxu0 0.0
  %7978 = vmatprep.subr.mxu0 0.0
  %7979 = vmatpush1.msra.mxu0 0.0
  %7980 = vmatprep.subr.mxu0 0.0
  %7981 = vmatpush1.msra.mxu0 0.0
  %7982 = vmatprep.subr.mxu0 0.0
  %7983 = vmatpush1.msra.mxu0 0.0
  %7984 = vmatprep.subr.mxu0 0.0
  %7985 = vmatpush1.msra.mxu0 0.0
  %7986 = vmatprep.subr.mxu0 0.0
  %7987 = vmatpush1.msra.mxu0 0.0
  %7988 = vmatprep.subr.mxu0 0.0
  %7989 = vmatpush1.msra.mxu0 0.0
  %7990 = vmatprep.mubr.f32.mxu0 0.0
  %7991 = vmatmul.mubr.f32.gmra.mrb[0].mxu0 %v7921
  %v7992 = vpop.f32.mrb[0].mxu0
  %v7993 = vadd.f32 %v7917, %v7992
  %v7994 = vpop.f32.mrb[0].mxu0
  %7995 = vdwg.mxu0
  %v7996 = vxor.u32 %v7993, 2147483648
  %v7997 = vmul.f32 %v7996, 1.442695
  %v7998 = vpow.pop %v7997
  %v7999 = vadd.f32 %v7998, 1.0
  %v8000 = vrcp.pop %v7999
  %v8001 = vmul.f32 1.0, %v8000
  %v8002 = vlaneseq
  %v8003 = vshrl.u32 %v8002, 7
  %v8004 = vsub.s32 0, %v8003
  %v8005 = vrot.slane %v8001, %v8004
  %v8006 = vmul.f32 %v7696, %v8005
  %v8007 = vmul.f32 %v7697, %v8005
  %v8008 = vmul.f32 %v7698, %v8005
  %v8009 = vmul.f32 %v7699, %v8005
  %v8010 = vmul.f32 %v7700, %v8005
  %v8011 = vmul.f32 %v7701, %v8005
  %v8012 = vmul.f32 %v7702, %v8005
  %v8013 = vmul.f32 %v7703, %v8005
  %v8014 = vsel %vm7148, %v8006, 0.0
  %8015 = vadd.xlane.f32.xlu0 %v8014
  %v8016 = vpop.xlane.xlu0 %8015
  %v8017 = vsel %vm7148, %v8007, 0.0
  %8018 = vadd.xlane.f32.xlu0 %v8017
  %v8019 = vpop.xlane.xlu0 %8018
  %v8020 = vsel %vm7148, %v8008, 0.0
  %8021 = vadd.xlane.f32.xlu0 %v8020
  %v8022 = vpop.xlane.xlu0 %8021
  %v8023 = vsel %vm7148, %v8009, 0.0
  %8024 = vadd.xlane.f32.xlu0 %v8023
  %v8025 = vpop.xlane.xlu0 %8024
  %v8026 = vsel %vm7148, %v8010, 0.0
  %8027 = vadd.xlane.f32.xlu0 %v8026
  %v8028 = vpop.xlane.xlu0 %8027
  %v8029 = vsel %vm7148, %v8011, 0.0
  %8030 = vadd.xlane.f32.xlu0 %v8029
  %v8031 = vpop.xlane.xlu0 %8030
  %v8032 = vsel %vm7148, %v8012, 0.0
  %8033 = vadd.xlane.f32.xlu0 %v8032
  %v8034 = vpop.xlane.xlu0 %8033
  %v8035 = vsel %vm7148, %v8013, 0.0
  %8036 = vadd.xlane.f32.xlu0 %v8035
  %v8037 = vpop.xlane.xlu0 %8036
  %v8038 = vmul.f32 %v8016, %v7173
  %v8039 = vmul.f32 %v8019, %v7173
  %v8040 = vmul.f32 %v8022, %v7173
  %v8041 = vmul.f32 %v8025, %v7173
  %v8042 = vmul.f32 %v8028, %v7173
  %v8043 = vmul.f32 %v8031, %v7173
  %v8044 = vmul.f32 %v8034, %v7173
  %v8045 = vmul.f32 %v8037, %v7173
  %v8046 = vlaneseq
  %v8047 = vshrl.u32 %v8046, 7
  %v8048 = vsub.s32 1, %v8047
  %v8049 = vrot.slane %v8001, %v8048
  %8051 = vrot.lane.b32.xlu0 %v8049, 4
  %v8052 = vpop.permute.xlu0 %8051
  %v8054 = vmul.f32 %v7736, %v8052
  %v8055 = vmul.f32 %v7737, %v8052
  %v8056 = vmul.f32 %v7738, %v8052
  %v8057 = vmul.f32 %v7739, %v8052
  %v8058 = vmul.f32 %v7740, %v8052
  %v8059 = vmul.f32 %v7741, %v8052
  %v8060 = vmul.f32 %v7742, %v8052
  %v8061 = vmul.f32 %v7743, %v8052
  %8070 = vrot.lane.b32.xlu0 %v8054, 124
  %v8071 = vpop.permute.xlu0 %8070
  %8072 = vrot.lane.b32.xlu0 %v8055, 124
  %v8073 = vpop.permute.xlu0 %8072
  %8074 = vrot.lane.b32.xlu0 %v8056, 124
  %v8075 = vpop.permute.xlu0 %8074
  %8076 = vrot.lane.b32.xlu0 %v8057, 124
  %v8077 = vpop.permute.xlu0 %8076
  %8078 = vrot.lane.b32.xlu0 %v8058, 124
  %v8079 = vpop.permute.xlu0 %8078
  %8080 = vrot.lane.b32.xlu0 %v8059, 124
  %v8081 = vpop.permute.xlu0 %8080
  %8082 = vrot.lane.b32.xlu0 %v8060, 124
  %v8083 = vpop.permute.xlu0 %8082
  %8084 = vrot.lane.b32.xlu0 %v8061, 124
  %v8085 = vpop.permute.xlu0 %8084
  %v8094 = vsel %vm7148, %v8071, 0.0
  %8095 = vadd.xlane.f32.xlu0 %v8094
  %v8096 = vpop.xlane.xlu0 %8095
  %v8097 = vsel %vm7148, %v8073, 0.0
  %8098 = vadd.xlane.f32.xlu0 %v8097
  %v8099 = vpop.xlane.xlu0 %8098
  %v8100 = vsel %vm7148, %v8075, 0.0
  %8101 = vadd.xlane.f32.xlu0 %v8100
  %v8102 = vpop.xlane.xlu0 %8101
  %v8103 = vsel %vm7148, %v8077, 0.0
  %8104 = vadd.xlane.f32.xlu0 %v8103
  %v8105 = vpop.xlane.xlu0 %8104
  %v8106 = vsel %vm7148, %v8079, 0.0
  %8107 = vadd.xlane.f32.xlu0 %v8106
  %v8108 = vpop.xlane.xlu0 %8107
  %v8109 = vsel %vm7148, %v8081, 0.0
  %8110 = vadd.xlane.f32.xlu0 %v8109
  %v8111 = vpop.xlane.xlu0 %8110
  %v8112 = vsel %vm7148, %v8083, 0.0
  %8113 = vadd.xlane.f32.xlu0 %v8112
  %v8114 = vpop.xlane.xlu0 %8113
  %v8115 = vsel %vm7148, %v8085, 0.0
  %8116 = vadd.xlane.f32.xlu0 %v8115
  %v8117 = vpop.xlane.xlu0 %8116
  %v8118 = vmul.f32 %v8096, %v7173
  %v8119 = vmul.f32 %v8099, %v7173
  %v8120 = vmul.f32 %v8102, %v7173
  %v8121 = vmul.f32 %v8105, %v7173
  %v8122 = vmul.f32 %v8108, %v7173
  %v8123 = vmul.f32 %v8111, %v7173
  %v8124 = vmul.f32 %v8114, %v7173
  %v8125 = vmul.f32 %v8117, %v7173
  %v8126 = vsel %vm7246, %v8038, %v8118
  %v8127 = vsel %vm7246, %v8039, %v8119
  %v8128 = vsel %vm7246, %v8040, %v8120
  %v8129 = vsel %vm7246, %v8041, %v8121
  %v8130 = vsel %vm7246, %v8042, %v8122
  %v8131 = vsel %vm7246, %v8043, %v8123
  %v8132 = vsel %vm7246, %v8044, %v8124
  %v8133 = vsel %vm7246, %v8045, %v8125
  %v8134 = vld [vmem:[%s59] sm:$0xff]
  %v8135 = vld [vmem:[%s59 + $0x8] sm:$0xff]
  %v8136 = vld [vmem:[%s61] sm:$0xff]
  %v8137 = vld [vmem:[%s61 + $0x8] sm:$0xff]
  %8139 = vset.pattern.permute.xlu0 0
  %8140 = vperm.xlu0 %8139, %v8136
  %v8141 = vpop.permute.xlu0 %8140
  %8144 = vset.pattern.permute.xlu0 0
  %8145 = vperm.xlu0 %8144, %v8137
  %v8146 = vpop.permute.xlu0 %8145
  %v8149 = vsel %vm4898, %v8134, 0
  %v8152 = vsel %vm4898, %v8135, 0
  %8154 = vmatprep.subr.mxu0 0.0
  %8155 = vmatpush1.msra.mxu0 %v8126
  %8156 = vmatprep.subr.mxu0 0.0
  %8157 = vmatpush1.msra.mxu0 %v8127
  %8158 = vmatprep.subr.mxu0 0.0
  %8159 = vmatpush1.msra.mxu0 %v8128
  %8160 = vmatprep.subr.mxu0 0.0
  %8161 = vmatpush1.msra.mxu0 %v8129
  %8162 = vmatprep.subr.mxu0 0.0
  %8163 = vmatpush1.msra.mxu0 %v8130
  %8164 = vmatprep.subr.mxu0 0.0
  %8165 = vmatpush1.msra.mxu0 %v8131
  %8166 = vmatprep.subr.mxu0 0.0
  %8167 = vmatpush1.msra.mxu0 %v8132
  %8168 = vmatprep.subr.mxu0 0.0
  %8169 = vmatpush1.msra.mxu0 %v8133
  %8170 = vmatprep.subr.mxu0 0.0
  %8171 = vmatpush1.msra.mxu0 0.0
  %8172 = vmatprep.subr.mxu0 0.0
  %8173 = vmatpush1.msra.mxu0 0.0
  %8174 = vmatprep.subr.mxu0 0.0
  %8175 = vmatpush1.msra.mxu0 0.0
  %8176 = vmatprep.subr.mxu0 0.0
  %8177 = vmatpush1.msra.mxu0 0.0
  %8178 = vmatprep.subr.mxu0 0.0
  %8179 = vmatpush1.msra.mxu0 0.0
  %8180 = vmatprep.subr.mxu0 0.0
  %8181 = vmatpush1.msra.mxu0 0.0
  %8182 = vmatprep.subr.mxu0 0.0
  %8183 = vmatpush1.msra.mxu0 0.0
  %8184 = vmatprep.subr.mxu0 0.0
  %8185 = vmatpush1.msra.mxu0 0.0
  %8186 = vmatprep.subr.mxu0 0.0
  %8187 = vmatpush1.msra.mxu0 0.0
  %8188 = vmatprep.subr.mxu0 0.0
  %8189 = vmatpush1.msra.mxu0 0.0
  %8190 = vmatprep.subr.mxu0 0.0
  %8191 = vmatpush1.msra.mxu0 0.0
  %8192 = vmatprep.subr.mxu0 0.0
  %8193 = vmatpush1.msra.mxu0 0.0
  %8194 = vmatprep.subr.mxu0 0.0
  %8195 = vmatpush1.msra.mxu0 0.0
  %8196 = vmatprep.subr.mxu0 0.0
  %8197 = vmatpush1.msra.mxu0 0.0
  %8198 = vmatprep.subr.mxu0 0.0
  %8199 = vmatpush1.msra.mxu0 0.0
  %8200 = vmatprep.subr.mxu0 0.0
  %8201 = vmatpush1.msra.mxu0 0.0
  %8202 = vmatprep.subr.mxu0 0.0
  %8203 = vmatpush1.msra.mxu0 0.0
  %8204 = vmatprep.subr.mxu0 0.0
  %8205 = vmatpush1.msra.mxu0 0.0
  %8206 = vmatprep.subr.mxu0 0.0
  %8207 = vmatpush1.msra.mxu0 0.0
  %8208 = vmatprep.subr.mxu0 0.0
  %8209 = vmatpush1.msra.mxu0 0.0
  %8210 = vmatprep.subr.mxu0 0.0
  %8211 = vmatpush1.msra.mxu0 0.0
  %8212 = vmatprep.subr.mxu0 0.0
  %8213 = vmatpush1.msra.mxu0 0.0
  %8214 = vmatprep.subr.mxu0 0.0
  %8215 = vmatpush1.msra.mxu0 0.0
  %8216 = vmatprep.subr.mxu0 0.0
  %8217 = vmatpush1.msra.mxu0 0.0
  %8218 = vmatprep.mubr.f32.mxu0 0.0
  %8219 = vmatmul.mubr.f32.gmra.mrb[0].mxu0 %v8149
  %v8220 = vpop.f32.mrb[0].mxu0
  %v8221 = vadd.f32 %v8141, %v8220
  %v8222 = vpop.f32.mrb[0].mxu0
  %8223 = vmatprep.mubr.f32.mxu0 0.0
  %8224 = vmatmul.mubr.f32.gmra.mrb[0].mxu0 %v8152
  %v8225 = vpop.f32.mrb[0].mxu0
  %v8226 = vadd.f32 %v8146, %v8225
  %v8227 = vpop.f32.mrb[0].mxu0
  %8228 = vdwg.mxu0
  %vm8229 = vcmp.ge.f32.partialorder %v8221, 0.0
  %vm8230 = vcmp.ge.f32.partialorder %v8226, 0.0
  %v8231 = vld [vmem:[#allocation2] sm:$0x1]
  %v8233 = vlaneseq
  %v8234 = vshrl.u32 %v8233, 7
  %v8235 = vsub.s32 0, %v8234
  %v8236 = vrot.slane %v8231, %v8235
  %8237 = vset.pattern.permute.xlu0 0
  %8238 = vperm.xlu0 %8237, %v8236
  %v8239 = vpop.permute.xlu0 %8238
  %v8241 = vmul.f32 %v8221, %v8239
  %v8242 = vmul.f32 %v8226, %v8239
  %v8243 = vsel %vm8229, %v8221, %v8241
  %v8244 = vsel %vm8230, %v8226, %v8242
  %v8245 = vld [vmem:[%s65] sm:$0xff]
  %v8246 = vld [vmem:[%s65 + $0x8] sm:$0xff]
  %8248 = vset.pattern.permute.xlu0 0
  %8249 = vperm.xlu0 %8248, %v8245
  %v8250 = vpop.permute.xlu0 %8249
  %8253 = vset.pattern.permute.xlu0 0
  %8254 = vperm.xlu0 %8253, %v8246
  %v8255 = vpop.permute.xlu0 %8254
  %v8257 = vmul.f32 %v8243, %v8250
  %v8258 = vmul.f32 %v8244, %v8255
  %v8259 = vld [vmem:[%s67] sm:$0xff]
  %v8260 = vld [vmem:[%s67 + $0x8] sm:$0xff]
  %8262 = vset.pattern.permute.xlu0 0
  %8263 = vperm.xlu0 %8262, %v8259
  %v8264 = vpop.permute.xlu0 %8263
  %8267 = vset.pattern.permute.xlu0 0
  %8268 = vperm.xlu0 %8267, %v8260
  %v8269 = vpop.permute.xlu0 %8268
  %v8271 = vadd.f32 %v8257, %v8264
  %v8272 = vadd.f32 %v8258, %v8269
  %v8273 = vld [vmem:[%s69] sm:$0xff]
  %v8274 = vld [vmem:[%s69 + $0x8] sm:$0x3]
  %v8275 = vld [vmem:[%s71] sm:$0xff]
  %v8276 = vld [vmem:[%s71 + $0x8] sm:$0x3]
  %8278 = vset.pattern.permute.xlu0 0
  %8279 = vperm.xlu0 %8278, %v8275
  %v8280 = vpop.permute.xlu0 %8279
  %8283 = vset.pattern.permute.xlu0 0
  %8284 = vperm.xlu0 %8283, %v8276
  %v8285 = vpop.permute.xlu0 %8284
  %v8288 = vsel %vm4610, %v8273, 0
  %v8291 = vsel %vm4610, %v8274, 0
  %8293 = vmatprep.subr.mxu0 0.0
  %8294 = vmatpush1.msra.mxu0 %v8271
  %8295 = vmatprep.subr.mxu0 0.0
  %8296 = vmatpush1.msra.mxu0 %v8272
  %8297 = vmatprep.subr.mxu0 0.0
  %8298 = vmatpush1.msra.mxu0 0.0
  %8299 = vmatprep.subr.mxu0 0.0
  %8300 = vmatpush1.msra.mxu0 0.0
  %8301 = vmatprep.subr.mxu0 0.0
  %8302 = vmatpush1.msra.mxu0 0.0
  %8303 = vmatprep.subr.mxu0 0.0
  %8304 = vmatpush1.msra.mxu0 0.0
  %8305 = vmatprep.subr.mxu0 0.0
  %8306 = vmatpush1.msra.mxu0 0.0
  %8307 = vmatprep.subr.mxu0 0.0
  %8308 = vmatpush1.msra.mxu0 0.0
  %8309 = vmatprep.subr.mxu0 0.0
  %8310 = vmatpush1.msra.mxu0 0.0
  %8311 = vmatprep.subr.mxu0 0.0
  %8312 = vmatpush1.msra.mxu0 0.0
  %8313 = vmatprep.subr.mxu0 0.0
  %8314 = vmatpush1.msra.mxu0 0.0
  %8315 = vmatprep.subr.mxu0 0.0
  %8316 = vmatpush1.msra.mxu0 0.0
  %8317 = vmatprep.subr.mxu0 0.0
  %8318 = vmatpush1.msra.mxu0 0.0
  %8319 = vmatprep.subr.mxu0 0.0
  %8320 = vmatpush1.msra.mxu0 0.0
  %8321 = vmatprep.subr.mxu0 0.0
  %8322 = vmatpush1.msra.mxu0 0.0
  %8323 = vmatprep.subr.mxu0 0.0
  %8324 = vmatpush1.msra.mxu0 0.0
  %8325 = vmatprep.subr.mxu0 0.0
  %8326 = vmatpush1.msra.mxu0 0.0
  %8327 = vmatprep.subr.mxu0 0.0
  %8328 = vmatpush1.msra.mxu0 0.0
  %8329 = vmatprep.subr.mxu0 0.0
  %8330 = vmatpush1.msra.mxu0 0.0
  %8331 = vmatprep.subr.mxu0 0.0
  %8332 = vmatpush1.msra.mxu0 0.0
  %8333 = vmatprep.subr.mxu0 0.0
  %8334 = vmatpush1.msra.mxu0 0.0
  %8335 = vmatprep.subr.mxu0 0.0
  %8336 = vmatpush1.msra.mxu0 0.0
  %8337 = vmatprep.subr.mxu0 0.0
  %8338 = vmatpush1.msra.mxu0 0.0
  %8339 = vmatprep.subr.mxu0 0.0
  %8340 = vmatpush1.msra.mxu0 0.0
  %8341 = vmatprep.subr.mxu0 0.0
  %8342 = vmatpush1.msra.mxu0 0.0
  %8343 = vmatprep.subr.mxu0 0.0
  %8344 = vmatpush1.msra.mxu0 0.0
  %8345 = vmatprep.subr.mxu0 0.0
  %8346 = vmatpush1.msra.mxu0 0.0
  %8347 = vmatprep.subr.mxu0 0.0
  %8348 = vmatpush1.msra.mxu0 0.0
  %8349 = vmatprep.subr.mxu0 0.0
  %8350 = vmatpush1.msra.mxu0 0.0
  %8351 = vmatprep.subr.mxu0 0.0
  %8352 = vmatpush1.msra.mxu0 0.0
  %8353 = vmatprep.subr.mxu0 0.0
  %8354 = vmatpush1.msra.mxu0 0.0
  %8355 = vmatprep.subr.mxu0 0.0
  %8356 = vmatpush1.msra.mxu0 0.0
  %8357 = vmatprep.mubr.f32.mxu0 0.0
  %8358 = vmatmul.mubr.f32.gmra.mrb[0].mxu0 %v8288
  %v8359 = vpop.f32.mrb[0].mxu0
  %v8360 = vadd.f32 %v8280, %v8359
  %v8361 = vpop.f32.mrb[0].mxu0
  %8362 = vmatprep.mubr.f32.mxu0 0.0
  %8363 = vmatmul.mubr.f32.gmra.mrb[0].mxu0 %v8291
  %v8364 = vpop.f32.mrb[0].mxu0
  %v8365 = vadd.f32 %v8285, %v8364
  %v8366 = vpop.f32.mrb[0].mxu0
  %8367 = vdwg.mxu0
  %8368 = vst.msk [vmem:[%s73] sm:$0xff] %vm7344, %v8360
  %vm8369 = vcmask 9216
  %8370 = vst.msk [vmem:[%s73 + $0x8] sm:$0x3] %vm8369, %v8365
  // Predicated region
  $region146: #{forward.1} parent=0 // pred_check
    _
  $region147: #{forward.1} parent=0 // pred_check_branch
    %8372 = sbr.rel (0) target = $region149
  $region148: #{forward.1} parent=0 // pred_region
    _
  $region149: #{forward.1} parent=0 // pred_fallthru
    _
  // Predicated region
  $region150: #{forward.1} parent=0 // pred_check
    _
  $region151: #{forward.1} parent=0 // pred_check_branch
    %8374 = sbr.rel (0) target = $region153
  $region152: #{forward.1} parent=0 // pred_region
    _
  $region153: #{forward.1} parent=0 // pred_fallthru
    _

</llo_original>
